<compile_context>
chip_gen: v7x
topology: tpu7x:2x2x1
jax: 0.10.0
libtpu: 0.0.40
codegen_flags: <defaults>
</compile_context>

<pallas_src>
import numpy as np
import jax
import jax.numpy as jnp
from jax import lax
from jax.experimental import pallas as pl
from jax.experimental.pallas import tpu as pltpu


def _round_up(v, m):
    return ((v + m - 1) // m) * m


# --------------------------------------------------------------------------
# Pallas kernels
# --------------------------------------------------------------------------
def _make_conv_kernel(wpp, h, w_real):
    """3x3x3 conv + bias + ReLU for one (n, d) output depth slice in PF layout.

    Refs:
      x0/x1/x2_ref : ((h+4)*wpp, CX) bf16 -- PF input slices at depth d-1, d, d+1
      w_ref        : (27, CX, COP)   bf16 -- fully resident weights
      b_ref        : (1, COP)        f32
      o_ref        : ((h+4)*wpp, COP) bf16 -- PF output slice (halos zeroed)
    """
    mc = h * wpp          # computed rows: real H rows x padded W columns
    top = 2 * wpp         # zero halo rows above / below the computed band

    def kernel(x0_ref, x1_ref, x2_ref, w_ref, b_ref, o_ref):
        dz = pl.program_id(1)
        nd = pl.num_programs(1)
        x_refs = (x0_ref, x1_ref, x2_ref)

        def taps(kd):
            s = None
            for kh in range(3):
                for kw in range(3):
                    off = (kh + 1) * wpp + (kw - 1)      # >= wpp - 1 >= 0
                    piece = x_refs[kd][off:off + mc, :]  # (mc, CX) bf16
                    c = jnp.dot(piece, w_ref[kd * 9 + kh * 3 + kw],
                                preferred_element_type=jnp.float32)
                    s = c if s is None else s + c
            return s

        # Center depth tap always valid; boundary taps scaled by 0/1 so no
        # depth-halo slices need to exist in HBM (clamped reads * 0 == 0).
        acc = taps(1)
        acc = acc + taps(0) * (dz > 0).astype(jnp.float32)
        acc = acc + taps(2) * (dz < nd - 1).astype(jnp.float32)

        y = jnp.maximum(acc + b_ref[...], 0.0)           # f32 epilogue
        # Zero the junk/halo columns so the next conv reads them as padding.
        col = lax.broadcasted_iota(jnp.int32, (mc, 1), 0) % wpp
        y = jnp.where((col >= 1) & (col <= w_real), y, 0.0)

        cop = o_ref.shape[1]
        zeros = jnp.zeros((top, cop), o_ref.dtype)
        o_ref[0:top, :] = zeros
        o_ref[top:top + mc, :] = y.astype(o_ref.dtype)
        o_ref[top + mc:top + mc + top, :] = zeros

    return kernel


def _head_kernel(feat_ref, w_ref, b_ref, mu_ref, sig_ref):
    """Fused 1x1x1 conv head on the (N, C) mean features: one matmul for
    [mu | log_sigma], split and exp() in-kernel."""
    z = jnp.dot(feat_ref[...], w_ref[...],
                preferred_element_type=jnp.float32) + b_ref[...]
    lpad = mu_ref.shape[-1]
    mu_ref[...] = z[:, :lpad]
    sig_ref[...] = jnp.exp(z[:, lpad:])


# --------------------------------------------------------------------------
# Wrappers / glue
# --------------------------------------------------------------------------
def _vmem_limit_bytes(needed):
    """Derive vmem_limit_bytes from the actual block sums, capped to ~75% of
    the physical VMEM of the local chip (v7x: 64 MiB, v5e/v6e: 128 MiB)."""
    cap = 128 * 1024 * 1024
    try:
        cap = int(getattr(pltpu.get_tpu_info(), "vmem_capacity_bytes", cap))
    except Exception:
        pass
    hi = max(int(cap * 3 // 4), 32 * 1024 * 1024)
    return int(min(max(2 * needed + (4 << 20), 32 << 20), hi))


def conv3x3x3_relu_pf(xpf, w, b, *, h, w_real, wpp):
    """3x3x3 conv (padding=1, stride=1) + bias + ReLU on the PF layout.

    xpf : (N, D, (h+4)*wpp, CX) bf16, halo rows/cols zero, real channels first.
    w   : (27*cin, cout) f32 with row order (kd, kh, kw, cin).  b: (1, cout).
    Returns (N, D, (h+4)*wpp, COP) bf16 in the same PF layout (halos zeroed).
    """
    n, dd, flp, cx = xpf.shape
    assert w.shape[0] % 27 == 0
    cin, cout = w.shape[0] // 27, w.shape[1]
    assert cin <= cx and flp == (h + 4) * wpp
    cop = _round_up(cout, 8)           # NOT 128: keep HBM traffic proportional
    mc = h * wpp

    # Fully resident weights: K padded to CX, N padded to COP, zeros elsewhere.
    wk = jnp.zeros((27, cx, cop), jnp.float32)
    wk = wk.at[:, :cin, :cout].set(w.reshape(27, cin, cout)).astype(jnp.bfloat16)
    bk = jnp.zeros((1, cop), jnp.float32).at[:, :cout].set(b)

    dmax = dd - 1

    def x_spec(shift):
        if shift == 0:
            idx = lambda ni, di: (ni, di, 0, 0)
        elif shift < 0:
            idx = lambda ni, di: (ni, jnp.maximum(di - 1, 0), 0, 0)
        else:
            idx = lambda ni, di: (ni, jnp.minimum(di + 1, dmax), 0, 0)
        return pl.BlockSpec((None, None, flp, cx), idx)

    # VMEM budget from actual block sums (x triple-spec double-buffered, out
    # double-buffered, resident weights, f32 temporaries).
    needed = (3 * 2 * flp * cx * 2 + 2 * flp * cop * 2
              + 2 * 27 * cx * cop * 2 + 4 * mc * cop * 4 + (1 << 20))

    return pl.pallas_call(
        _make_conv_kernel(wpp, h, w_real),
        out_shape=jax.ShapeDtypeStruct((n, dd, flp, cop), jnp.bfloat16),
        grid=(n, dd),
        in_specs=[
            x_spec(-1), x_spec(0), x_spec(+1),
            pl.BlockSpec((27, cx, cop), lambda ni, di: (0, 0, 0)),   # resident
            pl.BlockSpec((1, cop), lambda ni, di: (0, 0)),
        ],
        out_specs=pl.BlockSpec((None, None, flp, cop),
                               lambda ni, di: (ni, di, 0, 0)),
        compiler_params=pltpu.CompilerParams(
            dimension_semantics=("parallel", "parallel"),
            vmem_limit_bytes=_vmem_limit_bytes(needed)),
    )(xpf, xpf, xpf, wk, bk)


def _to_pf(x_dense):
    """(N, D, H, W, C) -> PF (N, D, (H+4)*Wpp, Cpad) with zero halos."""
    n, d, h, w, c = x_dense.shape
    wpp = _round_up(w + 2, 8)
    cpad = _round_up(c, 8)
    xp = jnp.pad(x_dense,
                 ((0, 0), (0, 0), (2, 2), (1, wpp - w - 1), (0, cpad - c)))
    return xp.reshape(n, d, (h + 4) * wpp, cpad), wpp


def _from_pf(xpf, d, h, w, wpp):
    n, _, _, c = xpf.shape
    return xpf.reshape(n, d, h + 4, wpp, c)[:, :, 2:2 + h, 1:1 + w, :]


def avg_pool3d_2x2x2_ceil(x):
    """AvgPool3d(kernel_size=2, stride=2, padding=0, ceil_mode=True).
    Partial (ceil-mode) windows average over the valid elements only (PyTorch
    behaviour when padding=0).  Sums accumulate in f32 without materializing an
    f32 copy of the activation."""
    n, d, h, w, c = x.shape
    pd, ph, pw = d % 2, h % 2, w % 2
    xs = jnp.pad(x, ((0, 0), (0, pd), (0, ph), (0, pw), (0, 0)))
    do, ho, wo = (d + pd) // 2, (h + ph) // 2, (w + pw) // 2
    s = xs.reshape(n, do, 2, ho, 2, wo, 2, c).sum(axis=(2, 4, 6),
                                                  dtype=jnp.float32)
    if pd or ph or pw:
        cnt = jnp.pad(jnp.ones((1, d, h, w, 1), jnp.float32),
                      ((0, 0), (0, pd), (0, ph), (0, pw), (0, 0)))
        cnt = cnt.reshape(1, do, 2, ho, 2, wo, 2, 1).sum(axis=(2, 4, 6))
        s = s / cnt
    else:
        s = s * 0.125
    return s.astype(x.dtype)


def _prep_input(x_ncdhw, segm, num_classes):
    """NCDHW -> NDHWC bf16, optional one-hot(num_classes) - 0.5 concat."""
    x = jnp.transpose(x_ncdhw, (0, 2, 3, 4, 1)).astype(jnp.float32)
    if segm is not None:
        onehot = jax.nn.one_hot(segm.astype(jnp.int32), num_classes,
                                dtype=jnp.float32)
        x = jnp.concatenate([x, onehot - 0.5], axis=-1)
    return x.astype(jnp.bfloat16)


# --------------------------------------------------------------------------
# Model
# --------------------------------------------------------------------------
class AxisAlignedConvGaussianPallas:
    """Pallas port of AxisAlignedConvGaussian (Encoder + 1x1x1 Gaussian head)."""

    def __init__(self, input_channels, num_filters, no_convs_per_block,
                 latent_dim, key, posterior=False, num_classes=2):
        self.posterior = posterior
        self.latent_dim = latent_dim
        self.num_classes = num_classes
        self.num_filters = list(num_filters)
        in_ch = input_channels + (num_classes if posterior else 0)

        # Encoder params: per block, `no_convs_per_block` (weight, bias) pairs.
        self.enc_params = []
        cin = in_ch
        for nf in self.num_filters:
            block = []
            for _ in range(no_convs_per_block):
                key, kw_, kb_ = jax.random.split(key, 3)
                fan_in = 27 * cin                      # kaiming fan_in, relu
                w = jax.random.normal(kw_, (27 * cin, nf), jnp.float32) \
                    * np.sqrt(2.0 / fan_in)
                b = jax.random.normal(kb_, (1, nf), jnp.float32) * 0.01
                block.append((w, b))
                cin = nf
            self.enc_params.append(block)

        # Final 1x1x1 conv: kaiming_normal_(fan_in) weight, normal_ bias.
        key, kwm, kbm = jax.random.split(key, 3)
        w_full = jax.random.normal(kwm, (cin, 2 * latent_dim), jnp.float32) \
            * np.sqrt(2.0 / cin)
        b_full = jax.random.normal(kbm, (1, 2 * latent_dim), jnp.float32)
        self.w_mu, self.w_ls = w_full[:, :latent_dim], w_full[:, latent_dim:]
        self.b_mu, self.b_ls = b_full[:, :latent_dim], b_full[:, latent_dim:]

        # Fused head parameters (K = stored channel width of the last conv).
        self._feat_dim = _round_up(cin, 8)
        self._lpad = _round_up(latent_dim, 128)
        w_head = jnp.zeros((self._feat_dim, 2 * self._lpad), jnp.float32)
        w_head = w_head.at[:cin, :latent_dim].set(self.w_mu)
        w_head = w_head.at[:cin, self._lpad:self._lpad + latent_dim].set(self.w_ls)
        b_head = jnp.zeros((1, 2 * self._lpad), jnp.float32)
        b_head = b_head.at[:, :latent_dim].set(self.b_mu)
        b_head = b_head.at[:, self._lpad:self._lpad + latent_dim].set(self.b_ls)
        self.w_head, self.b_head = w_head, b_head

    def __call__(self, input_ncdhw, segm=None):
        x = _prep_input(input_ncdhw, segm, self.num_classes)   # (N,D,H,W,C) bf16
        n = x.shape[0]

        # Encoder: per block, embed once into the PF layout, chain the convs
        # with zero inter-layer copies, AvgPool3d(2, ceil) between blocks.
        last_pf, last_dims = None, None
        for i, block in enumerate(self.enc_params):
            if i != 0:
                x = avg_pool3d_2x2x2_ceil(x)
            d, h, w = x.shape[1], x.shape[2], x.shape[3]
            xpf, wpp = _to_pf(x)
            for (wgt, bias) in block:
                xpf = conv3x3x3_relu_pf(xpf, wgt, bias, h=h, w_real=w, wpp=wpp)
            last_pf, last_dims = xpf, (d, h, w, wpp)
            if i != len(self.enc_params) - 1:
                x = _from_pf(xpf, d, h, w, wpp)

        # Head: halo entries of the PF activation are exactly zero, so the
        # global spatial mean over the real region is sum(PF)/(D*H*W)
        # (f32 accumulation, no f32 copy materialized).
        d, h, w, _ = last_dims
        feat = jnp.sum(last_pf, axis=(1, 2), dtype=jnp.float32) / float(d * h * w)
        mu_pad, sigma_pad = pl.pallas_call(
            _head_kernel,
            out_shape=(jax.ShapeDtypeStruct((n, self._lpad), jnp.float32),
                       jax.ShapeDtypeStruct((n, self._lpad), jnp.float32)),
        )(feat, self.w_head, self.b_head)

        # TODO(synk): torch.distributions.Independent(Normal(mu, sigma), 1) has
        # no Pallas equivalent; return the distribution parameters instead.
        return mu_pad[:, :self.latent_dim], sigma_pad[:, :self.latent_dim]


# --------------------------------------------------------------------------
# Pure-JAX reference (matches the kernel's bf16 storage / f32 accumulation)
# --------------------------------------------------------------------------
def _ref_forward(model, x_ncdhw, segm=None):
    cur = _prep_input(x_ncdhw, segm, model.num_classes)
    for i, block in enumerate(model.enc_params):
        if i != 0:
            cur = avg_pool3d_2x2x2_ceil(cur)
        for (w, b) in block:
            cin, cout = w.shape[0] // 27, w.shape[1]
            wk = w.astype(jnp.bfloat16).reshape(3, 3, 3, cin, cout)
            y = lax.conv_general_dilated(
                cur, wk, window_strides=(1, 1, 1), padding="SAME",
                dimension_numbers=("NDHWC", "DHWIO", "NDHWC"),
                preferred_element_type=jnp.float32)
            y = jnp.maximum(y + b.reshape(1, 1, 1, 1, cout), 0.0)
            cur = y.astype(jnp.bfloat16)
    feat = jnp.mean(cur.astype(jnp.float32), axis=(1, 2, 3))
    mu = jnp.dot(feat, model.w_mu, precision=lax.Precision.HIGHEST) + model.b_mu[0]
    log_sigma = jnp.dot(feat, model.w_ls, precision=lax.Precision.HIGHEST) + model.b_ls[0]
    return mu, jnp.exp(log_sigma)


# --------------------------------------------------------------------------
if __name__ == "__main__":
    key = jax.random.PRNGKey(0)
    k_param, k_param2, k_x, k_seg = jax.random.split(key, 4)

    input_channels = 4
    num_filters = [8, 16]
    no_convs_per_block = 2
    latent_dim = 6
    N, D, H, W = 2, 8, 8, 8

    # PyTorch-convention NCDHW input.
    x = jax.random.normal(k_x, (N, input_channels, D, H, W), dtype=jnp.float32)

    # ---- Prior net (no segmentation input) ------------------------------
    prior = AxisAlignedConvGaussianPallas(
        input_channels, num_filters, no_convs_per_block, latent_dim,
        key=k_param, posterior=False)
    mu, sigma = prior(x)
    jax.block_until_ready((mu, sigma))
    assert mu.shape == (N, latent_dim) and sigma.shape == (N, latent_dim)

    mu_ref, sigma_ref = _ref_forward(prior, x)
    np.testing.assert_allclose(np.asarray(mu), np.asarray(mu_ref),
                               rtol=2e-2, atol=2e-2)
    np.testing.assert_allclose(np.log(np.asarray(sigma)),
                               np.log(np.asarray(sigma_ref)),
                               rtol=2e-2, atol=2e-2)

    # ---- Posterior net (one-hot segmentation concat, num_classes=3) -----
    num_classes = 3
    posterior = AxisAlignedConvGaussianPallas(
        input_channels, num_filters, no_convs_per_block, latent_dim,
        key=k_param2, posterior=True, num_classes=num_classes)
    segm = jax.random.randint(k_seg, (N, D, H, W), 0, num_classes)
    mu_p, sigma_p = posterior(x, segm)
    jax.block_until_ready((mu_p, sigma_p))
    assert mu_p.shape == (N, latent_dim) and sigma_p.shape == (N, latent_dim)

    mu_pr, sigma_pr = _ref_forward(posterior, x, segm)
    np.testing.assert_allclose(np.asarray(mu_p), np.asarray(mu_pr),
                               rtol=2e-2, atol=2e-2)
    np.testing.assert_allclose(np.log(np.asarray(sigma_p)),
                               np.log(np.asarray(sigma_pr)),
                               rtol=2e-2, atol=2e-2)

    print("KERNEL_OK")
</pallas_src>

<mosaic_0001>
module attributes {stable_mosaic.version = 11 : i64} {
  func.func @kernel(%arg0: i32, %arg1: i32, %arg2: memref<1x1x192x8xbf16, #tpu.memory_space<vmem>>, %arg3: memref<1x1x192x8xbf16, #tpu.memory_space<vmem>>, %arg4: memref<1x1x192x8xbf16, #tpu.memory_space<vmem>>, %arg5: memref<27x8x8xbf16, #tpu.memory_space<vmem>>, %arg6: memref<1x8xf32, #tpu.memory_space<vmem>>, %arg7: memref<1x1x192x8xbf16, #tpu.memory_space<vmem>>) attributes {dimension_semantics = [#tpu.dimension_semantics<parallel>, #tpu.dimension_semantics<parallel>], iteration_bounds = array<i64: 2, 8>, scalar_prefetch = 0 : i64, scratch_operands = 0 : i64, tpu.core_type = #tpu.core_type<tc>, window_params = [{transform_indices = @transform_0, window_bounds = array<i64: 1, 1, 192, 8>}, {transform_indices = @transform_1, window_bounds = array<i64: 1, 1, 192, 8>}, {transform_indices = @transform_2, window_bounds = array<i64: 1, 1, 192, 8>}, {pipeline_mode = #tpu.pipeline_mode<synchronous>, transform_indices = @transform_3, window_bounds = array<i64: 27, 8, 8>}, {pipeline_mode = #tpu.pipeline_mode<synchronous>, transform_indices = @transform_4, window_bounds = array<i64: 1, 8>}, {transform_indices = @transform_5, window_bounds = array<i64: 1, 1, 192, 8>}]} {
    %c0 = arith.constant 0 : index
    %c0_0 = arith.constant 0 : index
    %c15 = arith.constant 15 : index
    %c0_1 = arith.constant 0 : index
    %0 = vector.load %arg3[%c0, %c0_0, %c15, %c0_1] : memref<1x1x192x8xbf16, #tpu.memory_space<vmem>>, vector<1x1x128x8xbf16>
    %1 = vector.shape_cast %0 : vector<1x1x128x8xbf16> to vector<128x8xbf16>
    %c9 = arith.constant 9 : index
    %c0_2 = arith.constant 0 : index
    %c0_3 = arith.constant 0 : index
    %2 = vector.load %arg5[%c9, %c0_2, %c0_3] : memref<27x8x8xbf16, #tpu.memory_space<vmem>>, vector<1x8x8xbf16>
    %3 = vector.shape_cast %2 : vector<1x8x8xbf16> to vector<8x8xbf16>
    %cst = arith.constant dense<0.000000e+00> : vector<128x8xf32>
    %4 = tpu.matmul %1, %3, %cst {dimension_numbers = #tpu.dot_dimension_numbers<[1], [0], [0], [1], [0, 0, 1, 1], [], []>} : vector<128x8xbf16>, vector<8x8xbf16>, vector<128x8xf32> -> vector<128x8xf32>
    %c0_4 = arith.constant 0 : index
    %c0_5 = arith.constant 0 : index
    %c16 = arith.constant 16 : index
    %c0_6 = arith.constant 0 : index
    %5 = vector.load %arg3[%c0_4, %c0_5, %c16, %c0_6] : memref<1x1x192x8xbf16, #tpu.memory_space<vmem>>, vector<1x1x128x8xbf16>
    %6 = vector.shape_cast %5 : vector<1x1x128x8xbf16> to vector<128x8xbf16>
    %c10 = arith.constant 10 : index
    %c0_7 = arith.constant 0 : index
    %c0_8 = arith.constant 0 : index
    %7 = vector.load %arg5[%c10, %c0_7, %c0_8] : memref<27x8x8xbf16, #tpu.memory_space<vmem>>, vector<1x8x8xbf16>
    %8 = vector.shape_cast %7 : vector<1x8x8xbf16> to vector<8x8xbf16>
    %cst_9 = arith.constant dense<0.000000e+00> : vector<128x8xf32>
    %9 = tpu.matmul %6, %8, %cst_9 {dimension_numbers = #tpu.dot_dimension_numbers<[1], [0], [0], [1], [0, 0, 1, 1], [], []>} : vector<128x8xbf16>, vector<8x8xbf16>, vector<128x8xf32> -> vector<128x8xf32>
    %10 = arith.addf %4, %9 : vector<128x8xf32>
    %c0_10 = arith.constant 0 : index
    %c0_11 = arith.constant 0 : index
    %c17 = arith.constant 17 : index
    %c0_12 = arith.constant 0 : index
    %11 = vector.load %arg3[%c0_10, %c0_11, %c17, %c0_12] : memref<1x1x192x8xbf16, #tpu.memory_space<vmem>>, vector<1x1x128x8xbf16>
    %12 = vector.shape_cast %11 : vector<1x1x128x8xbf16> to vector<128x8xbf16>
    %c11 = arith.constant 11 : index
    %c0_13 = arith.constant 0 : index
    %c0_14 = arith.constant 0 : index
    %13 = vector.load %arg5[%c11, %c0_13, %c0_14] : memref<27x8x8xbf16, #tpu.memory_space<vmem>>, vector<1x8x8xbf16>
    %14 = vector.shape_cast %13 : vector<1x8x8xbf16> to vector<8x8xbf16>
    %cst_15 = arith.constant dense<0.000000e+00> : vector<128x8xf32>
    %15 = tpu.matmul %12, %14, %cst_15 {dimension_numbers = #tpu.dot_dimension_numbers<[1], [0], [0], [1], [0, 0, 1, 1], [], []>} : vector<128x8xbf16>, vector<8x8xbf16>, vector<128x8xf32> -> vector<128x8xf32>
    %16 = arith.addf %10, %15 : vector<128x8xf32>
    %c0_16 = arith.constant 0 : index
    %c0_17 = arith.constant 0 : index
    %c31 = arith.constant 31 : index
    %c0_18 = arith.constant 0 : index
    %17 = vector.load %arg3[%c0_16, %c0_17, %c31, %c0_18] : memref<1x1x192x8xbf16, #tpu.memory_space<vmem>>, vector<1x1x128x8xbf16>
    %18 = vector.shape_cast %17 : vector<1x1x128x8xbf16> to vector<128x8xbf16>
    %c12 = arith.constant 12 : index
    %c0_19 = arith.constant 0 : index
    %c0_20 = arith.constant 0 : index
    %19 = vector.load %arg5[%c12, %c0_19, %c0_20] : memref<27x8x8xbf16, #tpu.memory_space<vmem>>, vector<1x8x8xbf16>
    %20 = vector.shape_cast %19 : vector<1x8x8xbf16> to vector<8x8xbf16>
    %cst_21 = arith.constant dense<0.000000e+00> : vector<128x8xf32>
    %21 = tpu.matmul %18, %20, %cst_21 {dimension_numbers = #tpu.dot_dimension_numbers<[1], [0], [0], [1], [0, 0, 1, 1], [], []>} : vector<128x8xbf16>, vector<8x8xbf16>, vector<128x8xf32> -> vector<128x8xf32>
    %22 = arith.addf %16, %21 : vector<128x8xf32>
    %c0_22 = arith.constant 0 : index
    %c0_23 = arith.constant 0 : index
    %c32 = arith.constant 32 : index
    %c0_24 = arith.constant 0 : index
    %23 = vector.load %arg3[%c0_22, %c0_23, %c32, %c0_24] : memref<1x1x192x8xbf16, #tpu.memory_space<vmem>>, vector<1x1x128x8xbf16>
    %24 = vector.shape_cast %23 : vector<1x1x128x8xbf16> to vector<128x8xbf16>
    %c13 = arith.constant 13 : index
    %c0_25 = arith.constant 0 : index
    %c0_26 = arith.constant 0 : index
    %25 = vector.load %arg5[%c13, %c0_25, %c0_26] : memref<27x8x8xbf16, #tpu.memory_space<vmem>>, vector<1x8x8xbf16>
    %26 = vector.shape_cast %25 : vector<1x8x8xbf16> to vector<8x8xbf16>
    %cst_27 = arith.constant dense<0.000000e+00> : vector<128x8xf32>
    %27 = tpu.matmul %24, %26, %cst_27 {dimension_numbers = #tpu.dot_dimension_numbers<[1], [0], [0], [1], [0, 0, 1, 1], [], []>} : vector<128x8xbf16>, vector<8x8xbf16>, vector<128x8xf32> -> vector<128x8xf32>
    %28 = arith.addf %22, %27 : vector<128x8xf32>
    %c0_28 = arith.constant 0 : index
    %c0_29 = arith.constant 0 : index
    %c33 = arith.constant 33 : index
    %c0_30 = arith.constant 0 : index
    %29 = vector.load %arg3[%c0_28, %c0_29, %c33, %c0_30] : memref<1x1x192x8xbf16, #tpu.memory_space<vmem>>, vector<1x1x128x8xbf16>
    %30 = vector.shape_cast %29 : vector<1x1x128x8xbf16> to vector<128x8xbf16>
    %c14 = arith.constant 14 : index
    %c0_31 = arith.constant 0 : index
    %c0_32 = arith.constant 0 : index
    %31 = vector.load %arg5[%c14, %c0_31, %c0_32] : memref<27x8x8xbf16, #tpu.memory_space<vmem>>, vector<1x8x8xbf16>
    %32 = vector.shape_cast %31 : vector<1x8x8xbf16> to vector<8x8xbf16>
    %cst_33 = arith.constant dense<0.000000e+00> : vector<128x8xf32>
    %33 = tpu.matmul %30, %32, %cst_33 {dimension_numbers = #tpu.dot_dimension_numbers<[1], [0], [0], [1], [0, 0, 1, 1], [], []>} : vector<128x8xbf16>, vector<8x8xbf16>, vector<128x8xf32> -> vector<128x8xf32>
    %34 = arith.addf %28, %33 : vector<128x8xf32>
    %c0_34 = arith.constant 0 : index
    %c0_35 = arith.constant 0 : index
    %c47 = arith.constant 47 : index
    %c0_36 = arith.constant 0 : index
    %35 = vector.load %arg3[%c0_34, %c0_35, %c47, %c0_36] : memref<1x1x192x8xbf16, #tpu.memory_space<vmem>>, vector<1x1x128x8xbf16>
    %36 = vector.shape_cast %35 : vector<1x1x128x8xbf16> to vector<128x8xbf16>
    %c15_37 = arith.constant 15 : index
    %c0_38 = arith.constant 0 : index
    %c0_39 = arith.constant 0 : index
    %37 = vector.load %arg5[%c15_37, %c0_38, %c0_39] : memref<27x8x8xbf16, #tpu.memory_space<vmem>>, vector<1x8x8xbf16>
    %38 = vector.shape_cast %37 : vector<1x8x8xbf16> to vector<8x8xbf16>
    %cst_40 = arith.constant dense<0.000000e+00> : vector<128x8xf32>
    %39 = tpu.matmul %36, %38, %cst_40 {dimension_numbers = #tpu.dot_dimension_numbers<[1], [0], [0], [1], [0, 0, 1, 1], [], []>} : vector<128x8xbf16>, vector<8x8xbf16>, vector<128x8xf32> -> vector<128x8xf32>
    %40 = arith.addf %34, %39 : vector<128x8xf32>
    %c0_41 = arith.constant 0 : index
    %c0_42 = arith.constant 0 : index
    %c48 = arith.constant 48 : index
    %c0_43 = arith.constant 0 : index
    %41 = vector.load %arg3[%c0_41, %c0_42, %c48, %c0_43] : memref<1x1x192x8xbf16, #tpu.memory_space<vmem>>, vector<1x1x128x8xbf16>
    %42 = vector.shape_cast %41 : vector<1x1x128x8xbf16> to vector<128x8xbf16>
    %c16_44 = arith.constant 16 : index
    %c0_45 = arith.constant 0 : index
    %c0_46 = arith.constant 0 : index
    %43 = vector.load %arg5[%c16_44, %c0_45, %c0_46] : memref<27x8x8xbf16, #tpu.memory_space<vmem>>, vector<1x8x8xbf16>
    %44 = vector.shape_cast %43 : vector<1x8x8xbf16> to vector<8x8xbf16>
    %cst_47 = arith.constant dense<0.000000e+00> : vector<128x8xf32>
    %45 = tpu.matmul %42, %44, %cst_47 {dimension_numbers = #tpu.dot_dimension_numbers<[1], [0], [0], [1], [0, 0, 1, 1], [], []>} : vector<128x8xbf16>, vector<8x8xbf16>, vector<128x8xf32> -> vector<128x8xf32>
    %46 = arith.addf %40, %45 : vector<128x8xf32>
    %c0_48 = arith.constant 0 : index
    %c0_49 = arith.constant 0 : index
    %c49 = arith.constant 49 : index
    %c0_50 = arith.constant 0 : index
    %47 = vector.load %arg3[%c0_48, %c0_49, %c49, %c0_50] : memref<1x1x192x8xbf16, #tpu.memory_space<vmem>>, vector<1x1x128x8xbf16>
    %48 = vector.shape_cast %47 : vector<1x1x128x8xbf16> to vector<128x8xbf16>
    %c17_51 = arith.constant 17 : index
    %c0_52 = arith.constant 0 : index
    %c0_53 = arith.constant 0 : index
    %49 = vector.load %arg5[%c17_51, %c0_52, %c0_53] : memref<27x8x8xbf16, #tpu.memory_space<vmem>>, vector<1x8x8xbf16>
    %50 = vector.shape_cast %49 : vector<1x8x8xbf16> to vector<8x8xbf16>
    %cst_54 = arith.constant dense<0.000000e+00> : vector<128x8xf32>
    %51 = tpu.matmul %48, %50, %cst_54 {dimension_numbers = #tpu.dot_dimension_numbers<[1], [0], [0], [1], [0, 0, 1, 1], [], []>} : vector<128x8xbf16>, vector<8x8xbf16>, vector<128x8xf32> -> vector<128x8xf32>
    %52 = arith.addf %46, %51 : vector<128x8xf32>
    %c0_55 = arith.constant 0 : index
    %c0_56 = arith.constant 0 : index
    %c15_57 = arith.constant 15 : index
    %c0_58 = arith.constant 0 : index
    %53 = vector.load %arg2[%c0_55, %c0_56, %c15_57, %c0_58] : memref<1x1x192x8xbf16, #tpu.memory_space<vmem>>, vector<1x1x128x8xbf16>
    %54 = vector.shape_cast %53 : vector<1x1x128x8xbf16> to vector<128x8xbf16>
    %c0_59 = arith.constant 0 : index
    %c0_60 = arith.constant 0 : index
    %c0_61 = arith.constant 0 : index
    %55 = vector.load %arg5[%c0_59, %c0_60, %c0_61] : memref<27x8x8xbf16, #tpu.memory_space<vmem>>, vector<1x8x8xbf16>
    %56 = vector.shape_cast %55 : vector<1x8x8xbf16> to vector<8x8xbf16>
    %cst_62 = arith.constant dense<0.000000e+00> : vector<128x8xf32>
    %57 = tpu.matmul %54, %56, %cst_62 {dimension_numbers = #tpu.dot_dimension_numbers<[1], [0], [0], [1], [0, 0, 1, 1], [], []>} : vector<128x8xbf16>, vector<8x8xbf16>, vector<128x8xf32> -> vector<128x8xf32>
    %c0_63 = arith.constant 0 : index
    %c0_64 = arith.constant 0 : index
    %c16_65 = arith.constant 16 : index
    %c0_66 = arith.constant 0 : index
    %58 = vector.load %arg2[%c0_63, %c0_64, %c16_65, %c0_66] : memref<1x1x192x8xbf16, #tpu.memory_space<vmem>>, vector<1x1x128x8xbf16>
    %59 = vector.shape_cast %58 : vector<1x1x128x8xbf16> to vector<128x8xbf16>
    %c1 = arith.constant 1 : index
    %c0_67 = arith.constant 0 : index
    %c0_68 = arith.constant 0 : index
    %60 = vector.load %arg5[%c1, %c0_67, %c0_68] : memref<27x8x8xbf16, #tpu.memory_space<vmem>>, vector<1x8x8xbf16>
    %61 = vector.shape_cast %60 : vector<1x8x8xbf16> to vector<8x8xbf16>
    %cst_69 = arith.constant dense<0.000000e+00> : vector<128x8xf32>
    %62 = tpu.matmul %59, %61, %cst_69 {dimension_numbers = #tpu.dot_dimension_numbers<[1], [0], [0], [1], [0, 0, 1, 1], [], []>} : vector<128x8xbf16>, vector<8x8xbf16>, vector<128x8xf32> -> vector<128x8xf32>
    %63 = arith.addf %57, %62 : vector<128x8xf32>
    %c0_70 = arith.constant 0 : index
    %c0_71 = arith.constant 0 : index
    %c17_72 = arith.constant 17 : index
    %c0_73 = arith.constant 0 : index
    %64 = vector.load %arg2[%c0_70, %c0_71, %c17_72, %c0_73] : memref<1x1x192x8xbf16, #tpu.memory_space<vmem>>, vector<1x1x128x8xbf16>
    %65 = vector.shape_cast %64 : vector<1x1x128x8xbf16> to vector<128x8xbf16>
    %c2 = arith.constant 2 : index
    %c0_74 = arith.constant 0 : index
    %c0_75 = arith.constant 0 : index
    %66 = vector.load %arg5[%c2, %c0_74, %c0_75] : memref<27x8x8xbf16, #tpu.memory_space<vmem>>, vector<1x8x8xbf16>
    %67 = vector.shape_cast %66 : vector<1x8x8xbf16> to vector<8x8xbf16>
    %cst_76 = arith.constant dense<0.000000e+00> : vector<128x8xf32>
    %68 = tpu.matmul %65, %67, %cst_76 {dimension_numbers = #tpu.dot_dimension_numbers<[1], [0], [0], [1], [0, 0, 1, 1], [], []>} : vector<128x8xbf16>, vector<8x8xbf16>, vector<128x8xf32> -> vector<128x8xf32>
    %69 = arith.addf %63, %68 : vector<128x8xf32>
    %c0_77 = arith.constant 0 : index
    %c0_78 = arith.constant 0 : index
    %c31_79 = arith.constant 31 : index
    %c0_80 = arith.constant 0 : index
    %70 = vector.load %arg2[%c0_77, %c0_78, %c31_79, %c0_80] : memref<1x1x192x8xbf16, #tpu.memory_space<vmem>>, vector<1x1x128x8xbf16>
    %71 = vector.shape_cast %70 : vector<1x1x128x8xbf16> to vector<128x8xbf16>
    %c3 = arith.constant 3 : index
    %c0_81 = arith.constant 0 : index
    %c0_82 = arith.constant 0 : index
    %72 = vector.load %arg5[%c3, %c0_81, %c0_82] : memref<27x8x8xbf16, #tpu.memory_space<vmem>>, vector<1x8x8xbf16>
    %73 = vector.shape_cast %72 : vector<1x8x8xbf16> to vector<8x8xbf16>
    %cst_83 = arith.constant dense<0.000000e+00> : vector<128x8xf32>
    %74 = tpu.matmul %71, %73, %cst_83 {dimension_numbers = #tpu.dot_dimension_numbers<[1], [0], [0], [1], [0, 0, 1, 1], [], []>} : vector<128x8xbf16>, vector<8x8xbf16>, vector<128x8xf32> -> vector<128x8xf32>
    %75 = arith.addf %69, %74 : vector<128x8xf32>
    %c0_84 = arith.constant 0 : index
    %c0_85 = arith.constant 0 : index
    %c32_86 = arith.constant 32 : index
    %c0_87 = arith.constant 0 : index
    %76 = vector.load %arg2[%c0_84, %c0_85, %c32_86, %c0_87] : memref<1x1x192x8xbf16, #tpu.memory_space<vmem>>, vector<1x1x128x8xbf16>
    %77 = vector.shape_cast %76 : vector<1x1x128x8xbf16> to vector<128x8xbf16>
    %c4 = arith.constant 4 : index
    %c0_88 = arith.constant 0 : index
    %c0_89 = arith.constant 0 : index
    %78 = vector.load %arg5[%c4, %c0_88, %c0_89] : memref<27x8x8xbf16, #tpu.memory_space<vmem>>, vector<1x8x8xbf16>
    %79 = vector.shape_cast %78 : vector<1x8x8xbf16> to vector<8x8xbf16>
    %cst_90 = arith.constant dense<0.000000e+00> : vector<128x8xf32>
    %80 = tpu.matmul %77, %79, %cst_90 {dimension_numbers = #tpu.dot_dimension_numbers<[1], [0], [0], [1], [0, 0, 1, 1], [], []>} : vector<128x8xbf16>, vector<8x8xbf16>, vector<128x8xf32> -> vector<128x8xf32>
    %81 = arith.addf %75, %80 : vector<128x8xf32>
    %c0_91 = arith.constant 0 : index
    %c0_92 = arith.constant 0 : index
    %c33_93 = arith.constant 33 : index
    %c0_94 = arith.constant 0 : index
    %82 = vector.load %arg2[%c0_91, %c0_92, %c33_93, %c0_94] : memref<1x1x192x8xbf16, #tpu.memory_space<vmem>>, vector<1x1x128x8xbf16>
    %83 = vector.shape_cast %82 : vector<1x1x128x8xbf16> to vector<128x8xbf16>
    %c5 = arith.constant 5 : index
    %c0_95 = arith.constant 0 : index
    %c0_96 = arith.constant 0 : index
    %84 = vector.load %arg5[%c5, %c0_95, %c0_96] : memref<27x8x8xbf16, #tpu.memory_space<vmem>>, vector<1x8x8xbf16>
    %85 = vector.shape_cast %84 : vector<1x8x8xbf16> to vector<8x8xbf16>
    %cst_97 = arith.constant dense<0.000000e+00> : vector<128x8xf32>
    %86 = tpu.matmul %83, %85, %cst_97 {dimension_numbers = #tpu.dot_dimension_numbers<[1], [0], [0], [1], [0, 0, 1, 1], [], []>} : vector<128x8xbf16>, vector<8x8xbf16>, vector<128x8xf32> -> vector<128x8xf32>
    %87 = arith.addf %81, %86 : vector<128x8xf32>
    %c0_98 = arith.constant 0 : index
    %c0_99 = arith.constant 0 : index
    %c47_100 = arith.constant 47 : index
    %c0_101 = arith.constant 0 : index
    %88 = vector.load %arg2[%c0_98, %c0_99, %c47_100, %c0_101] : memref<1x1x192x8xbf16, #tpu.memory_space<vmem>>, vector<1x1x128x8xbf16>
    %89 = vector.shape_cast %88 : vector<1x1x128x8xbf16> to vector<128x8xbf16>
    %c6 = arith.constant 6 : index
    %c0_102 = arith.constant 0 : index
    %c0_103 = arith.constant 0 : index
    %90 = vector.load %arg5[%c6, %c0_102, %c0_103] : memref<27x8x8xbf16, #tpu.memory_space<vmem>>, vector<1x8x8xbf16>
    %91 = vector.shape_cast %90 : vector<1x8x8xbf16> to vector<8x8xbf16>
    %cst_104 = arith.constant dense<0.000000e+00> : vector<128x8xf32>
    %92 = tpu.matmul %89, %91, %cst_104 {dimension_numbers = #tpu.dot_dimension_numbers<[1], [0], [0], [1], [0, 0, 1, 1], [], []>} : vector<128x8xbf16>, vector<8x8xbf16>, vector<128x8xf32> -> vector<128x8xf32>
    %93 = arith.addf %87, %92 : vector<128x8xf32>
    %c0_105 = arith.constant 0 : index
    %c0_106 = arith.constant 0 : index
    %c48_107 = arith.constant 48 : index
    %c0_108 = arith.constant 0 : index
    %94 = vector.load %arg2[%c0_105, %c0_106, %c48_107, %c0_108] : memref<1x1x192x8xbf16, #tpu.memory_space<vmem>>, vector<1x1x128x8xbf16>
    %95 = vector.shape_cast %94 : vector<1x1x128x8xbf16> to vector<128x8xbf16>
    %c7 = arith.constant 7 : index
    %c0_109 = arith.constant 0 : index
    %c0_110 = arith.constant 0 : index
    %96 = vector.load %arg5[%c7, %c0_109, %c0_110] : memref<27x8x8xbf16, #tpu.memory_space<vmem>>, vector<1x8x8xbf16>
    %97 = vector.shape_cast %96 : vector<1x8x8xbf16> to vector<8x8xbf16>
    %cst_111 = arith.constant dense<0.000000e+00> : vector<128x8xf32>
    %98 = tpu.matmul %95, %97, %cst_111 {dimension_numbers = #tpu.dot_dimension_numbers<[1], [0], [0], [1], [0, 0, 1, 1], [], []>} : vector<128x8xbf16>, vector<8x8xbf16>, vector<128x8xf32> -> vector<128x8xf32>
    %99 = arith.addf %93, %98 : vector<128x8xf32>
    %c0_112 = arith.constant 0 : index
    %c0_113 = arith.constant 0 : index
    %c49_114 = arith.constant 49 : index
    %c0_115 = arith.constant 0 : index
    %100 = vector.load %arg2[%c0_112, %c0_113, %c49_114, %c0_115] : memref<1x1x192x8xbf16, #tpu.memory_space<vmem>>, vector<1x1x128x8xbf16>
    %101 = vector.shape_cast %100 : vector<1x1x128x8xbf16> to vector<128x8xbf16>
    %c8 = arith.constant 8 : index
    %c0_116 = arith.constant 0 : index
    %c0_117 = arith.constant 0 : index
    %102 = vector.load %arg5[%c8, %c0_116, %c0_117] : memref<27x8x8xbf16, #tpu.memory_space<vmem>>, vector<1x8x8xbf16>
    %103 = vector.shape_cast %102 : vector<1x8x8xbf16> to vector<8x8xbf16>
    %cst_118 = arith.constant dense<0.000000e+00> : vector<128x8xf32>
    %104 = tpu.matmul %101, %103, %cst_118 {dimension_numbers = #tpu.dot_dimension_numbers<[1], [0], [0], [1], [0, 0, 1, 1], [], []>} : vector<128x8xbf16>, vector<8x8xbf16>, vector<128x8xf32> -> vector<128x8xf32>
    %105 = arith.addf %99, %104 : vector<128x8xf32>
    %c0_i32 = arith.constant 0 : i32
    %106 = arith.cmpi sgt, %arg1, %c0_i32 : i32
    %107 = arith.extui %106 : i1 to i32
    %108 = arith.sitofp %107 : i32 to f32
    %109 = vector.broadcast %108 : f32 to vector<128x8xf32>
    %110 = arith.mulf %105, %109 : vector<128x8xf32>
    %111 = arith.addf %52, %110 : vector<128x8xf32>
    %c0_119 = arith.constant 0 : index
    %c0_120 = arith.constant 0 : index
    %c15_121 = arith.constant 15 : index
    %c0_122 = arith.constant 0 : index
    %112 = vector.load %arg4[%c0_119, %c0_120, %c15_121, %c0_122] : memref<1x1x192x8xbf16, #tpu.memory_space<vmem>>, vector<1x1x128x8xbf16>
    %113 = vector.shape_cast %112 : vector<1x1x128x8xbf16> to vector<128x8xbf16>
    %c18 = arith.constant 18 : index
    %c0_123 = arith.constant 0 : index
    %c0_124 = arith.constant 0 : index
    %114 = vector.load %arg5[%c18, %c0_123, %c0_124] : memref<27x8x8xbf16, #tpu.memory_space<vmem>>, vector<1x8x8xbf16>
    %115 = vector.shape_cast %114 : vector<1x8x8xbf16> to vector<8x8xbf16>
    %cst_125 = arith.constant dense<0.000000e+00> : vector<128x8xf32>
    %116 = tpu.matmul %113, %115, %cst_125 {dimension_numbers = #tpu.dot_dimension_numbers<[1], [0], [0], [1], [0, 0, 1, 1], [], []>} : vector<128x8xbf16>, vector<8x8xbf16>, vector<128x8xf32> -> vector<128x8xf32>
    %c0_126 = arith.constant 0 : index
    %c0_127 = arith.constant 0 : index
    %c16_128 = arith.constant 16 : index
    %c0_129 = arith.constant 0 : index
    %117 = vector.load %arg4[%c0_126, %c0_127, %c16_128, %c0_129] : memref<1x1x192x8xbf16, #tpu.memory_space<vmem>>, vector<1x1x128x8xbf16>
    %118 = vector.shape_cast %117 : vector<1x1x128x8xbf16> to vector<128x8xbf16>
    %c19 = arith.constant 19 : index
    %c0_130 = arith.constant 0 : index
    %c0_131 = arith.constant 0 : index
    %119 = vector.load %arg5[%c19, %c0_130, %c0_131] : memref<27x8x8xbf16, #tpu.memory_space<vmem>>, vector<1x8x8xbf16>
    %120 = vector.shape_cast %119 : vector<1x8x8xbf16> to vector<8x8xbf16>
    %cst_132 = arith.constant dense<0.000000e+00> : vector<128x8xf32>
    %121 = tpu.matmul %118, %120, %cst_132 {dimension_numbers = #tpu.dot_dimension_numbers<[1], [0], [0], [1], [0, 0, 1, 1], [], []>} : vector<128x8xbf16>, vector<8x8xbf16>, vector<128x8xf32> -> vector<128x8xf32>
    %122 = arith.addf %116, %121 : vector<128x8xf32>
    %c0_133 = arith.constant 0 : index
    %c0_134 = arith.constant 0 : index
    %c17_135 = arith.constant 17 : index
    %c0_136 = arith.constant 0 : index
    %123 = vector.load %arg4[%c0_133, %c0_134, %c17_135, %c0_136] : memref<1x1x192x8xbf16, #tpu.memory_space<vmem>>, vector<1x1x128x8xbf16>
    %124 = vector.shape_cast %123 : vector<1x1x128x8xbf16> to vector<128x8xbf16>
    %c20 = arith.constant 20 : index
    %c0_137 = arith.constant 0 : index
    %c0_138 = arith.constant 0 : index
    %125 = vector.load %arg5[%c20, %c0_137, %c0_138] : memref<27x8x8xbf16, #tpu.memory_space<vmem>>, vector<1x8x8xbf16>
    %126 = vector.shape_cast %125 : vector<1x8x8xbf16> to vector<8x8xbf16>
    %cst_139 = arith.constant dense<0.000000e+00> : vector<128x8xf32>
    %127 = tpu.matmul %124, %126, %cst_139 {dimension_numbers = #tpu.dot_dimension_numbers<[1], [0], [0], [1], [0, 0, 1, 1], [], []>} : vector<128x8xbf16>, vector<8x8xbf16>, vector<128x8xf32> -> vector<128x8xf32>
    %128 = arith.addf %122, %127 : vector<128x8xf32>
    %c0_140 = arith.constant 0 : index
    %c0_141 = arith.constant 0 : index
    %c31_142 = arith.constant 31 : index
    %c0_143 = arith.constant 0 : index
    %129 = vector.load %arg4[%c0_140, %c0_141, %c31_142, %c0_143] : memref<1x1x192x8xbf16, #tpu.memory_space<vmem>>, vector<1x1x128x8xbf16>
    %130 = vector.shape_cast %129 : vector<1x1x128x8xbf16> to vector<128x8xbf16>
    %c21 = arith.constant 21 : index
    %c0_144 = arith.constant 0 : index
    %c0_145 = arith.constant 0 : index
    %131 = vector.load %arg5[%c21, %c0_144, %c0_145] : memref<27x8x8xbf16, #tpu.memory_space<vmem>>, vector<1x8x8xbf16>
    %132 = vector.shape_cast %131 : vector<1x8x8xbf16> to vector<8x8xbf16>
    %cst_146 = arith.constant dense<0.000000e+00> : vector<128x8xf32>
    %133 = tpu.matmul %130, %132, %cst_146 {dimension_numbers = #tpu.dot_dimension_numbers<[1], [0], [0], [1], [0, 0, 1, 1], [], []>} : vector<128x8xbf16>, vector<8x8xbf16>, vector<128x8xf32> -> vector<128x8xf32>
    %134 = arith.addf %128, %133 : vector<128x8xf32>
    %c0_147 = arith.constant 0 : index
    %c0_148 = arith.constant 0 : index
    %c32_149 = arith.constant 32 : index
    %c0_150 = arith.constant 0 : index
    %135 = vector.load %arg4[%c0_147, %c0_148, %c32_149, %c0_150] : memref<1x1x192x8xbf16, #tpu.memory_space<vmem>>, vector<1x1x128x8xbf16>
    %136 = vector.shape_cast %135 : vector<1x1x128x8xbf16> to vector<128x8xbf16>
    %c22 = arith.constant 22 : index
    %c0_151 = arith.constant 0 : index
    %c0_152 = arith.constant 0 : index
    %137 = vector.load %arg5[%c22, %c0_151, %c0_152] : memref<27x8x8xbf16, #tpu.memory_space<vmem>>, vector<1x8x8xbf16>
    %138 = vector.shape_cast %137 : vector<1x8x8xbf16> to vector<8x8xbf16>
    %cst_153 = arith.constant dense<0.000000e+00> : vector<128x8xf32>
    %139 = tpu.matmul %136, %138, %cst_153 {dimension_numbers = #tpu.dot_dimension_numbers<[1], [0], [0], [1], [0, 0, 1, 1], [], []>} : vector<128x8xbf16>, vector<8x8xbf16>, vector<128x8xf32> -> vector<128x8xf32>
    %140 = arith.addf %134, %139 : vector<128x8xf32>
    %c0_154 = arith.constant 0 : index
    %c0_155 = arith.constant 0 : index
    %c33_156 = arith.constant 33 : index
    %c0_157 = arith.constant 0 : index
    %141 = vector.load %arg4[%c0_154, %c0_155, %c33_156, %c0_157] : memref<1x1x192x8xbf16, #tpu.memory_space<vmem>>, vector<1x1x128x8xbf16>
    %142 = vector.shape_cast %141 : vector<1x1x128x8xbf16> to vector<128x8xbf16>
    %c23 = arith.constant 23 : index
    %c0_158 = arith.constant 0 : index
    %c0_159 = arith.constant 0 : index
    %143 = vector.load %arg5[%c23, %c0_158, %c0_159] : memref<27x8x8xbf16, #tpu.memory_space<vmem>>, vector<1x8x8xbf16>
    %144 = vector.shape_cast %143 : vector<1x8x8xbf16> to vector<8x8xbf16>
    %cst_160 = arith.constant dense<0.000000e+00> : vector<128x8xf32>
    %145 = tpu.matmul %142, %144, %cst_160 {dimension_numbers = #tpu.dot_dimension_numbers<[1], [0], [0], [1], [0, 0, 1, 1], [], []>} : vector<128x8xbf16>, vector<8x8xbf16>, vector<128x8xf32> -> vector<128x8xf32>
    %146 = arith.addf %140, %145 : vector<128x8xf32>
    %c0_161 = arith.constant 0 : index
    %c0_162 = arith.constant 0 : index
    %c47_163 = arith.constant 47 : index
    %c0_164 = arith.constant 0 : index
    %147 = vector.load %arg4[%c0_161, %c0_162, %c47_163, %c0_164] : memref<1x1x192x8xbf16, #tpu.memory_space<vmem>>, vector<1x1x128x8xbf16>
    %148 = vector.shape_cast %147 : vector<1x1x128x8xbf16> to vector<128x8xbf16>
    %c24 = arith.constant 24 : index
    %c0_165 = arith.constant 0 : index
    %c0_166 = arith.constant 0 : index
    %149 = vector.load %arg5[%c24, %c0_165, %c0_166] : memref<27x8x8xbf16, #tpu.memory_space<vmem>>, vector<1x8x8xbf16>
    %150 = vector.shape_cast %149 : vector<1x8x8xbf16> to vector<8x8xbf16>
    %cst_167 = arith.constant dense<0.000000e+00> : vector<128x8xf32>
    %151 = tpu.matmul %148, %150, %cst_167 {dimension_numbers = #tpu.dot_dimension_numbers<[1], [0], [0], [1], [0, 0, 1, 1], [], []>} : vector<128x8xbf16>, vector<8x8xbf16>, vector<128x8xf32> -> vector<128x8xf32>
    %152 = arith.addf %146, %151 : vector<128x8xf32>
    %c0_168 = arith.constant 0 : index
    %c0_169 = arith.constant 0 : index
    %c48_170 = arith.constant 48 : index
    %c0_171 = arith.constant 0 : index
    %153 = vector.load %arg4[%c0_168, %c0_169, %c48_170, %c0_171] : memref<1x1x192x8xbf16, #tpu.memory_space<vmem>>, vector<1x1x128x8xbf16>
    %154 = vector.shape_cast %153 : vector<1x1x128x8xbf16> to vector<128x8xbf16>
    %c25 = arith.constant 25 : index
    %c0_172 = arith.constant 0 : index
    %c0_173 = arith.constant 0 : index
    %155 = vector.load %arg5[%c25, %c0_172, %c0_173] : memref<27x8x8xbf16, #tpu.memory_space<vmem>>, vector<1x8x8xbf16>
    %156 = vector.shape_cast %155 : vector<1x8x8xbf16> to vector<8x8xbf16>
    %cst_174 = arith.constant dense<0.000000e+00> : vector<128x8xf32>
    %157 = tpu.matmul %154, %156, %cst_174 {dimension_numbers = #tpu.dot_dimension_numbers<[1], [0], [0], [1], [0, 0, 1, 1], [], []>} : vector<128x8xbf16>, vector<8x8xbf16>, vector<128x8xf32> -> vector<128x8xf32>
    %158 = arith.addf %152, %157 : vector<128x8xf32>
    %c0_175 = arith.constant 0 : index
    %c0_176 = arith.constant 0 : index
    %c49_177 = arith.constant 49 : index
    %c0_178 = arith.constant 0 : index
    %159 = vector.load %arg4[%c0_175, %c0_176, %c49_177, %c0_178] : memref<1x1x192x8xbf16, #tpu.memory_space<vmem>>, vector<1x1x128x8xbf16>
    %160 = vector.shape_cast %159 : vector<1x1x128x8xbf16> to vector<128x8xbf16>
    %c26 = arith.constant 26 : index
    %c0_179 = arith.constant 0 : index
    %c0_180 = arith.constant 0 : index
    %161 = vector.load %arg5[%c26, %c0_179, %c0_180] : memref<27x8x8xbf16, #tpu.memory_space<vmem>>, vector<1x8x8xbf16>
    %162 = vector.shape_cast %161 : vector<1x8x8xbf16> to vector<8x8xbf16>
    %cst_181 = arith.constant dense<0.000000e+00> : vector<128x8xf32>
    %163 = tpu.matmul %160, %162, %cst_181 {dimension_numbers = #tpu.dot_dimension_numbers<[1], [0], [0], [1], [0, 0, 1, 1], [], []>} : vector<128x8xbf16>, vector<8x8xbf16>, vector<128x8xf32> -> vector<128x8xf32>
    %164 = arith.addf %158, %163 : vector<128x8xf32>
    %c7_i32 = arith.constant 7 : i32
    %165 = arith.cmpi slt, %arg1, %c7_i32 : i32
    %166 = arith.extui %165 : i1 to i32
    %167 = arith.sitofp %166 : i32 to f32
    %168 = vector.broadcast %167 : f32 to vector<128x8xf32>
    %169 = arith.mulf %164, %168 : vector<128x8xf32>
    %170 = arith.addf %111, %169 : vector<128x8xf32>
    %c0_182 = arith.constant 0 : index
    %c0_183 = arith.constant 0 : index
    %171 = vector.load %arg6[%c0_182, %c0_183] : memref<1x8xf32, #tpu.memory_space<vmem>>, vector<1x8xf32>
    %172 = vector.broadcast %171 : vector<1x8xf32> to vector<128x8xf32>
    %173 = arith.addf %170, %172 : vector<128x8xf32>
    %cst_184 = arith.constant 0.000000e+00 : f32
    %174 = vector.broadcast %cst_184 : f32 to vector<128x8xf32>
    %175 = arith.maximumf %173, %174 : vector<128x8xf32>
    %176 = tpu.iota {dimensions = array<i32: 0>} : vector<128x1xi32>
    %c16_i32 = arith.constant 16 : i32
    %c0_i32_185 = arith.constant 0 : i32
    %177 = arith.cmpi eq, %c16_i32, %c0_i32_185 : i32
    %c1_i32 = arith.constant 1 : i32
    %178 = arith.select %177, %c1_i32, %c16_i32 : i32
    %179 = vector.broadcast %178 : i32 to vector<128x1xi32>
    %180 = arith.remsi %176, %179 : vector<128x1xi32>
    %c0_i32_186 = arith.constant 0 : i32
    %181 = vector.broadcast %c0_i32_186 : i32 to vector<128x1xi32>
    %182 = arith.cmpi ne, %180, %181 : vector<128x1xi32>
    %c0_i32_187 = arith.constant 0 : i32
    %183 = vector.broadcast %c0_i32_187 : i32 to vector<128x1xi32>
    %184 = arith.cmpi slt, %180, %183 : vector<128x1xi32>
    %c0_i32_188 = arith.constant 0 : i32
    %185 = arith.cmpi slt, %178, %c0_i32_188 : i32
    %186 = vector.broadcast %185 : i1 to vector<128x1xi1>
    %187 = vector.broadcast %186 : vector<128x1xi1> to vector<128x1xi1>
    %188 = arith.xori %184, %187 : vector<128x1xi1>
    %189 = arith.andi %188, %182 : vector<128x1xi1>
    %190 = vector.broadcast %178 : i32 to vector<128x1xi32>
    %191 = arith.addi %180, %190 : vector<128x1xi32>
    %192 = arith.select %189, %191, %180 : vector<128x1xi1>, vector<128x1xi32>
    %c1_i32_189 = arith.constant 1 : i32
    %193 = vector.broadcast %c1_i32_189 : i32 to vector<128x1xi32>
    %194 = arith.cmpi sge, %192, %193 : vector<128x1xi32>
    %c8_i32 = arith.constant 8 : i32
    %195 = vector.broadcast %c8_i32 : i32 to vector<128x1xi32>
    %196 = arith.cmpi sle, %192, %195 : vector<128x1xi32>
    %197 = arith.andi %194, %196 : vector<128x1xi1>
    %cst_190 = arith.constant 0.000000e+00 : f32
    %198 = vector.shape_cast %197 : vector<128x1xi1> to vector<128x1xi1>
    %199 = vector.broadcast %198 : vector<128x1xi1> to vector<128x8xi1>
    %200 = vector.broadcast %cst_190 : f32 to vector<128x8xf32>
    %201 = arith.select %199, %175, %200 : vector<128x8xi1>, vector<128x8xf32>
    %cst_191 = arith.constant 0.000000e+00 : bf16
    %202 = vector.broadcast %cst_191 : bf16 to vector<32x8xbf16>
    %c0_192 = arith.constant 0 : index
    %c0_193 = arith.constant 0 : index
    %c0_194 = arith.constant 0 : index
    %c0_195 = arith.constant 0 : index
    %203 = vector.load %arg7[%c0_192, %c0_193, %c0_194, %c0_195] : memref<1x1x192x8xbf16, #tpu.memory_space<vmem>>, vector<1x1x32x8xbf16>
    %204 = vector.shape_cast %203 : vector<1x1x32x8xbf16> to vector<32x8xbf16>
    %205 = vector.shape_cast %202 : vector<32x8xbf16> to vector<1x1x32x8xbf16>
    tpu.vector_store %arg7[%c0_192, %c0_193, %c0_194, %c0_195], %205 {strides = array<i32>} : memref<1x1x192x8xbf16, #tpu.memory_space<vmem>>, vector<1x1x32x8xbf16>,
    %206 = arith.truncf %201 : vector<128x8xf32> to vector<128x8xbf16>
    %c0_196 = arith.constant 0 : index
    %c0_197 = arith.constant 0 : index
    %c32_198 = arith.constant 32 : index
    %c0_199 = arith.constant 0 : index
    %207 = vector.load %arg7[%c0_196, %c0_197, %c32_198, %c0_199] : memref<1x1x192x8xbf16, #tpu.memory_space<vmem>>, vector<1x1x128x8xbf16>
    %208 = vector.shape_cast %207 : vector<1x1x128x8xbf16> to vector<128x8xbf16>
    %209 = vector.shape_cast %206 : vector<128x8xbf16> to vector<1x1x128x8xbf16>
    tpu.vector_store %arg7[%c0_196, %c0_197, %c32_198, %c0_199], %209 {strides = array<i32>} : memref<1x1x192x8xbf16, #tpu.memory_space<vmem>>, vector<1x1x128x8xbf16>,
    %c0_200 = arith.constant 0 : index
    %c0_201 = arith.constant 0 : index
    %c160 = arith.constant 160 : index
    %c0_202 = arith.constant 0 : index
    %210 = vector.load %arg7[%c0_200, %c0_201, %c160, %c0_202] : memref<1x1x192x8xbf16, #tpu.memory_space<vmem>>, vector<1x1x32x8xbf16>
    %211 = vector.shape_cast %210 : vector<1x1x32x8xbf16> to vector<32x8xbf16>
    %212 = vector.shape_cast %202 : vector<32x8xbf16> to vector<1x1x32x8xbf16>
    tpu.vector_store %arg7[%c0_200, %c0_201, %c160, %c0_202], %212 {strides = array<i32>} : memref<1x1x192x8xbf16, #tpu.memory_space<vmem>>, vector<1x1x32x8xbf16>,
    return
  }
  func.func @transform_0(%arg0: i32, %arg1: i32) -> (i32, i32, i32, i32) {
    %c1_i32 = arith.constant 1 : i32
    %0 = arith.subi %arg1, %c1_i32 : i32
    %c0_i32 = arith.constant 0 : i32
    %1 = arith.maxsi %0, %c0_i32 : i32
    %c0_i32_0 = arith.constant 0 : i32
    %c0_i32_1 = arith.constant 0 : i32
    %c0_i32_2 = arith.constant 0 : i32
    return %arg0, %1, %c0_i32_0, %c0_i32_1 : i32, i32, i32, i32
  }
  func.func @transform_1(%arg0: i32, %arg1: i32) -> (i32, i32, i32, i32) {
    %c0_i32 = arith.constant 0 : i32
    %c0_i32_0 = arith.constant 0 : i32
    %c0_i32_1 = arith.constant 0 : i32
    return %arg0, %arg1, %c0_i32, %c0_i32_0 : i32, i32, i32, i32
  }
  func.func @transform_2(%arg0: i32, %arg1: i32) -> (i32, i32, i32, i32) {
    %c1_i32 = arith.constant 1 : i32
    %0 = arith.addi %arg1, %c1_i32 : i32
    %c7_i32 = arith.constant 7 : i32
    %1 = arith.minsi %0, %c7_i32 : i32
    %c0_i32 = arith.constant 0 : i32
    %c0_i32_0 = arith.constant 0 : i32
    %c0_i32_1 = arith.constant 0 : i32
    return %arg0, %1, %c0_i32, %c0_i32_0 : i32, i32, i32, i32
  }
  func.func @transform_3(%arg0: i32, %arg1: i32) -> (i32, i32, i32) {
    %c0_i32 = arith.constant 0 : i32
    %c0_i32_0 = arith.constant 0 : i32
    %c0_i32_1 = arith.constant 0 : i32
    %c0_i32_2 = arith.constant 0 : i32
    return %c0_i32, %c0_i32_0, %c0_i32_1 : i32, i32, i32
  }
  func.func @transform_4(%arg0: i32, %arg1: i32) -> (i32, i32) {
    %c0_i32 = arith.constant 0 : i32
    %c0_i32_0 = arith.constant 0 : i32
    %c0_i32_1 = arith.constant 0 : i32
    return %c0_i32, %c0_i32_0 : i32, i32
  }
  func.func @transform_5(%arg0: i32, %arg1: i32) -> (i32, i32, i32, i32) {
    %c0_i32 = arith.constant 0 : i32
    %c0_i32_0 = arith.constant 0 : i32
    %c0_i32_1 = arith.constant 0 : i32
    return %arg0, %arg1, %c0_i32, %c0_i32_0 : i32, i32, i32, i32
  }
}

</mosaic_0001>

<llo_original>
// kernel: tpu_custom_call.1
$region0: #{tpu_custom_call.1}
  #allocation0 [shape = 'u32[]', space=smem, size = 0x4, offset = 0x4, fixed_abs, tag = 'smem constant byte address 0x4 - core index']
  #allocation1 [shape = 'u32[144,128]{1,0:T(1,128)}', space=vmem, size = 0x12000, scoped, tag = 'internal scratch']
  %s0 = inlined_call_operand.vmem [shape: bf16[2,8,192,8], index: 0, kind: input, shape index: {}]
  %s1 = inlined_call_operand.vmem [shape: bf16[2,8,192,8], index: 1, kind: input, shape index: {}]
  %s2 = inlined_call_operand.vmem [shape: bf16[2,8,192,8], index: 2, kind: input, shape index: {}]
  %s3 = inlined_call_operand.vmem [shape: bf16[27,8,8], index: 3, kind: input, shape index: {}]
  %s4 = inlined_call_operand.vmem [shape: f32[1,8], index: 4, kind: input, shape index: {}]
  %s5 = inlined_call_operand.vmem [shape: bf16[2,8,192,8], index: 5, kind: output, shape index: {}]
  %s6 = sld [smem:[#allocation0]]
  $region53: #{tpu_custom_call.1} parent=0
    _
  %s8 = ssub.s32 1, %s6
  %s9 = scalar_select 0, %s8, %s6
  loop: start=0, step=1, limit=18
  $region2: #{tpu_custom_call.1} parent=0 // loop_pre_header
    _
  $region3: #{tpu_custom_call.1} parent=0 // loop_header
    %s11 = sphi 0, %s15
    %p12 = scmp.ge.s32.totalorder %s11, 18
    %s18 = sphi 0, %s30
    %s19 = sphi 0, %s26
    %s20 = sphi 0, %s18
    %s21 = sphi 0, %s19
    %s22 = sphi 0, %s20
    %s23 = sphi 0, %s21
    %s41 = sphi 0, %s43
    %s44 = sphi 0, %s41
    %s45 = sphi 0, %s44
    %s61 = sphi 0, %s45
    %s69 = sphi 0, %s71
    %s72 = sphi 0, %s69
    %s73 = sphi 0, %s72
    %s89 = sphi 0, %s73
    %s103 = sphi 0, %s105
    %s106 = sphi 0, %s103
    %s107 = sphi 0, %s106
    %s123 = sphi 0, %s107
    %s127 = sphi 0, %s127
    %s129 = sphi 0, %s127
    %s130 = sphi 0, %s129
    %s144 = sphi 0, %s130
    %s148 = sphi 0, %s148
    %s150 = sphi 0, %s148
    %s151 = sphi 0, %s150
    %s165 = sphi 0, %s151
    %s173 = sphi 0, %s175
    %s176 = sphi 0, %s173
    %s177 = sphi 0, %s176
    %s193 = sphi 0, %s177
  $region4: #{tpu_custom_call.1} parent=0 // loop_header_branch
    %14 = sbr.rel (%p12) target = $region8
  $region5: #{tpu_custom_call.1} parent=0 // loop_body
    %s16 = ssub.s32 %s11, 1
    %s17 = ssub.s32 %s11, 2
    %s24 = sadd.s32 1, %s19
    %p25 = scmp.ge.s32.totalorder %s24, 8
    %s26 = scalar_select %p25, 0, %s24
    %s27 = sadd.s32 1, %s18
    %s28 = scalar_select %p25, %s27, %s18
    %p29 = scmp.ge.s32.totalorder %s28, 2
    %s30 = scalar_select %p29, 0, %s28
    %s31 = ssub.s32 %s19, 1
    %p32 = scmp.gt.s32.totalorder %s31, 0
    %s33 = scalar_select %p32, %s31, 0
    %s34 = ssub.s32 %s26, 1
    %p35 = scmp.gt.s32.totalorder %s34, 0
    %s36 = scalar_select %p35, %s34, 0
    %s37 = ssub.s32 %s18, %s30
    %s38 = ssub.s32 %s33, %s36
    %s39 = sor.u32 %s37, %s38
    %p40 = scmp.eq.s32.totalorder %s39, 0
    %s42 = sadd.s32 %s41, 1
    %s43 = scalar_select %p40, %s41, %s42
    %p46 = pneg %p40
    %p47 = scmp.eq.s32.totalorder %s11, 15
    %p48 = por %p46, %p47
    %p49 = scmp.ne.s32.totalorder %s41, %s44
    %p50 = scmp.eq.s32.totalorder %s11, 0
    %p51 = por %p49, %p50
    %p52 = scmp.ne.s32.totalorder %s41, %s44
    %p53 = scmp.eq.s32.totalorder %s16, 15
    %p54 = por %p52, %p53
    %p55 = scmp.ne.s32.totalorder %s44, %s45
    %p56 = scmp.eq.s32.totalorder %s16, 0
    %p57 = por %p55, %p56
    %p58 = scmp.ne.s32.totalorder %s44, %s45
    %p59 = scmp.eq.s32.totalorder %s17, 15
    %p60 = por %p58, %p59
    %p62 = scmp.ne.s32.totalorder %s45, %s61
    %p63 = scmp.eq.s32.totalorder %s17, 0
    %p64 = por %p62, %p63
    %s65 = ssub.s32 %s18, %s30
    %s66 = ssub.s32 %s19, %s26
    %s67 = sor.u32 %s65, %s66
    %p68 = scmp.eq.s32.totalorder %s67, 0
    %s70 = sadd.s32 %s69, 1
    %s71 = scalar_select %p68, %s69, %s70
    %p74 = pneg %p68
    %p75 = scmp.eq.s32.totalorder %s11, 15
    %p76 = por %p74, %p75
    %p77 = scmp.ne.s32.totalorder %s69, %s72
    %p78 = scmp.eq.s32.totalorder %s11, 0
    %p79 = por %p77, %p78
    %p80 = scmp.ne.s32.totalorder %s69, %s72
    %p81 = scmp.eq.s32.totalorder %s16, 15
    %p82 = por %p80, %p81
    %p83 = scmp.ne.s32.totalorder %s72, %s73
    %p84 = scmp.eq.s32.totalorder %s16, 0
    %p85 = por %p83, %p84
    %p86 = scmp.ne.s32.totalorder %s72, %s73
    %p87 = scmp.eq.s32.totalorder %s17, 15
    %p88 = por %p86, %p87
    %p90 = scmp.ne.s32.totalorder %s73, %s89
    %p91 = scmp.eq.s32.totalorder %s17, 0
    %p92 = por %p90, %p91
    %s93 = sadd.s32 %s19, 1
    %p94 = scmp.lt.s32.totalorder %s93, 7
    %s95 = scalar_select %p94, %s93, 7
    %s96 = sadd.s32 %s26, 1
    %p97 = scmp.lt.s32.totalorder %s96, 7
    %s98 = scalar_select %p97, %s96, 7
    %s99 = ssub.s32 %s18, %s30
    %s100 = ssub.s32 %s95, %s98
    %s101 = sor.u32 %s99, %s100
    %p102 = scmp.eq.s32.totalorder %s101, 0
    %s104 = sadd.s32 %s103, 1
    %s105 = scalar_select %p102, %s103, %s104
    %p108 = pneg %p102
    %p109 = scmp.eq.s32.totalorder %s11, 15
    %p110 = por %p108, %p109
    %p111 = scmp.ne.s32.totalorder %s103, %s106
    %p112 = scmp.eq.s32.totalorder %s11, 0
    %p113 = por %p111, %p112
    %p114 = scmp.ne.s32.totalorder %s103, %s106
    %p115 = scmp.eq.s32.totalorder %s16, 15
    %p116 = por %p114, %p115
    %p117 = scmp.ne.s32.totalorder %s106, %s107
    %p118 = scmp.eq.s32.totalorder %s16, 0
    %p119 = por %p117, %p118
    %p120 = scmp.ne.s32.totalorder %s106, %s107
    %p121 = scmp.eq.s32.totalorder %s17, 15
    %p122 = por %p120, %p121
    %p124 = scmp.ne.s32.totalorder %s107, %s123
    %p125 = scmp.eq.s32.totalorder %s17, 0
    %p126 = por %p124, %p125
    %s128 = sadd.s32 %s127, 1
    %p131 = scmp.eq.s32.totalorder %s11, 15
    %p132 = scmp.ne.s32.totalorder %s127, %s129
    %p133 = scmp.eq.s32.totalorder %s11, 0
    %p134 = por %p132, %p133
    %p135 = scmp.ne.s32.totalorder %s127, %s129
    %p136 = scmp.eq.s32.totalorder %s16, 15
    %p137 = por %p135, %p136
    %p138 = scmp.ne.s32.totalorder %s129, %s130
    %p139 = scmp.eq.s32.totalorder %s16, 0
    %p140 = por %p138, %p139
    %p141 = scmp.ne.s32.totalorder %s129, %s130
    %p142 = scmp.eq.s32.totalorder %s17, 15
    %p143 = por %p141, %p142
    %p145 = scmp.ne.s32.totalorder %s130, %s144
    %p146 = scmp.eq.s32.totalorder %s17, 0
    %p147 = por %p145, %p146
    %s149 = sadd.s32 %s148, 1
    %p152 = scmp.eq.s32.totalorder %s11, 15
    %p153 = scmp.ne.s32.totalorder %s148, %s150
    %p154 = scmp.eq.s32.totalorder %s11, 0
    %p155 = por %p153, %p154
    %p156 = scmp.ne.s32.totalorder %s148, %s150
    %p157 = scmp.eq.s32.totalorder %s16, 15
    %p158 = por %p156, %p157
    %p159 = scmp.ne.s32.totalorder %s150, %s151
    %p160 = scmp.eq.s32.totalorder %s16, 0
    %p161 = por %p159, %p160
    %p162 = scmp.ne.s32.totalorder %s150, %s151
    %p163 = scmp.eq.s32.totalorder %s17, 15
    %p164 = por %p162, %p163
    %p166 = scmp.ne.s32.totalorder %s151, %s165
    %p167 = scmp.eq.s32.totalorder %s17, 0
    %p168 = por %p166, %p167
    %s169 = ssub.s32 %s18, %s30
    %s170 = ssub.s32 %s19, %s26
    %s171 = sor.u32 %s169, %s170
    %p172 = scmp.eq.s32.totalorder %s171, 0
    %s174 = sadd.s32 %s173, 1
    %s175 = scalar_select %p172, %s173, %s174
    %p178 = pneg %p172
    %p179 = scmp.eq.s32.totalorder %s11, 15
    %p180 = por %p178, %p179
    %p181 = scmp.ne.s32.totalorder %s173, %s176
    %p182 = scmp.eq.s32.totalorder %s11, 0
    %p183 = por %p181, %p182
    %p184 = scmp.ne.s32.totalorder %s173, %s176
    %p185 = scmp.eq.s32.totalorder %s16, 15
    %p186 = por %p184, %p185
    %p187 = scmp.ne.s32.totalorder %s176, %s177
    %p188 = scmp.eq.s32.totalorder %s16, 0
    %p189 = por %p187, %p188
    %p190 = scmp.ne.s32.totalorder %s176, %s177
    %p191 = scmp.eq.s32.totalorder %s17, 15
    %p192 = por %p190, %p191
    %p194 = scmp.ne.s32.totalorder %s177, %s193
    %p195 = scmp.eq.s32.totalorder %s17, 0
    %p196 = por %p194, %p195
    %p197 = scmp.le.s32.totalorder 1, %s11
    %p198 = scmp.lt.s32.totalorder %s11, 17
    %p199 = pnand %p197, %p198
    %p200 = pneg %p199
    // Predicated region
    $region9: #{tpu_custom_call.1} parent=5 // pred_check
      _
    $region10: #{tpu_custom_call.1} parent=5 // pred_check_branch
      %202 = sbr.rel (%p199) target = $region12
    $region11: #{tpu_custom_call.1} parent=5 // pred_region
      %s203 = ssub.s32 %s11, 1
      // Predicated region
      $region13: #{tpu_custom_call.1} parent=11 // pred_check
        %p204 = pneg %p140
      $region14: #{tpu_custom_call.1} parent=11 // pred_check_branch
        %206 = sbr.rel (%p204) target = $region16
      $region15: #{tpu_custom_call.1} parent=11 // pred_region
        _
      $region16: #{tpu_custom_call.1} parent=11 // pred_fallthru
        _
      // Predicated region
      $region17: #{tpu_custom_call.1} parent=11 // pred_check
        %p207 = pneg %p161
      $region18: #{tpu_custom_call.1} parent=11 // pred_check_branch
        %209 = sbr.rel (%p207) target = $region20
      $region19: #{tpu_custom_call.1} parent=11 // pred_region
        _
      $region20: #{tpu_custom_call.1} parent=11 // pred_fallthru
        _
    $region12: #{tpu_custom_call.1} parent=5 // pred_fallthru
      _
    %p210 = scmp.lt.s32.totalorder %s11, 16
    // Predicated region
    $region21: #{tpu_custom_call.1} parent=5 // pred_check
      %p211 = pneg %p210
    $region22: #{tpu_custom_call.1} parent=5 // pred_check_branch
      %213 = sbr.rel (%p211) target = $region24
    $region23: #{tpu_custom_call.1} parent=5 // pred_region
      // Predicated region
      $region25: #{tpu_custom_call.1} parent=23 // pred_check
        %p214 = pneg %p51
      $region26: #{tpu_custom_call.1} parent=23 // pred_check_branch
        %216 = sbr.rel (%p214) target = $region28
      $region27: #{tpu_custom_call.1} parent=23 // pred_region
        %s217 = ssub.s32 %s19, 1
        %p218 = scmp.gt.s32.totalorder %s217, 0
        %s219 = scalar_select %p218, %s217, 0
        %p220 = scmp.lt.s32.totalorder %s18, 1
        %s221 = scalar_select %p220, %s18, 1
        %p222 = scmp.lt.s32.totalorder %s219, 7
        %s223 = scalar_select %p222, %s219, 7
        %s224 = smul.addr %s223, 24
        %s225 = smul.addr %s221, 192
        %s226 = sadd.s32 %s224, %s225
        %s227 = smul.addr %s226, 4
        %s228 = scalar_lea.vmem %s0, %s227
        %s229 = ssub.s32 %s19, 1
        %p230 = scmp.gt.s32.totalorder %s229, 0
        %s231 = scalar_select %p230, %s229, 0
      $region28: #{tpu_custom_call.1} parent=23 // pred_fallthru
        _
      // Predicated region
      $region29: #{tpu_custom_call.1} parent=23 // pred_check
        %p232 = pneg %p79
      $region30: #{tpu_custom_call.1} parent=23 // pred_check_branch
        %234 = sbr.rel (%p232) target = $region32
      $region31: #{tpu_custom_call.1} parent=23 // pred_region
        %p235 = scmp.lt.s32.totalorder %s18, 1
        %s236 = scalar_select %p235, %s18, 1
        %p237 = scmp.lt.s32.totalorder %s19, 7
        %s238 = scalar_select %p237, %s19, 7
        %s239 = smul.addr %s238, 24
        %s240 = smul.addr %s236, 192
        %s241 = sadd.s32 %s239, %s240
        %s242 = smul.addr %s241, 4
        %s243 = scalar_lea.vmem %s1, %s242
      $region32: #{tpu_custom_call.1} parent=23 // pred_fallthru
        _
      // Predicated region
      $region33: #{tpu_custom_call.1} parent=23 // pred_check
        %p244 = pneg %p113
      $region34: #{tpu_custom_call.1} parent=23 // pred_check_branch
        %246 = sbr.rel (%p244) target = $region36
      $region35: #{tpu_custom_call.1} parent=23 // pred_region
        %s247 = sadd.s32 %s19, 1
        %p248 = scmp.lt.s32.totalorder %s247, 7
        %s249 = scalar_select %p248, %s247, 7
        %p250 = scmp.lt.s32.totalorder %s18, 1
        %s251 = scalar_select %p250, %s18, 1
        %p252 = scmp.lt.s32.totalorder %s249, 7
        %s253 = scalar_select %p252, %s249, 7
        %s254 = smul.addr %s253, 24
        %s255 = smul.addr %s251, 192
        %s256 = sadd.s32 %s254, %s255
        %s257 = smul.addr %s256, 4
        %s258 = scalar_lea.vmem %s2, %s257
        %s259 = sadd.s32 %s19, 1
        %p260 = scmp.lt.s32.totalorder %s259, 7
        %s261 = scalar_select %p260, %s259, 7
      $region36: #{tpu_custom_call.1} parent=23 // pred_fallthru
        _
    $region24: #{tpu_custom_call.1} parent=5 // pred_fallthru
      _
    %p262 = scmp.le.s32.totalorder 1, %s11
    %p263 = scmp.lt.s32.totalorder %s11, 17
    %p264 = pnand %p262, %p263
    %p265 = pneg %p264
    // Predicated region
    $region37: #{tpu_custom_call.1} parent=5 // pred_check
      _
    $region38: #{tpu_custom_call.1} parent=5 // pred_check_branch
      %267 = sbr.rel (%p264) target = $region40
    $region39: #{tpu_custom_call.1} parent=5 // pred_region
      %s268 = ssub.s32 %s11, 1
      %s269 = ssub.s32 %s21, 1
      %p270 = scmp.gt.s32.totalorder %s269, 0
      %s271 = scalar_select %p270, %s269, 0
      %p272 = scmp.lt.s32.totalorder %s20, 1
      %s273 = scalar_select %p272, %s20, 1
      %p274 = scmp.lt.s32.totalorder %s271, 7
      %s275 = scalar_select %p274, %s271, 7
      %s276 = smul.addr %s275, 24
      %s277 = smul.addr %s273, 192
      %s278 = sadd.s32 %s276, %s277
      %s279 = smul.addr %s278, 4
      %s280 = scalar_lea.vmem %s0, %s279
      %p281 = pneg %p57
      %p282 = pneg %p54
      %p283 = scmp.lt.s32.totalorder %s20, 1
      %s284 = scalar_select %p283, %s20, 1
      %p285 = scmp.lt.s32.totalorder %s21, 7
      %s286 = scalar_select %p285, %s21, 7
      %s287 = smul.addr %s286, 24
      %s288 = smul.addr %s284, 192
      %s289 = sadd.s32 %s287, %s288
      %s290 = smul.addr %s289, 4
      %s291 = scalar_lea.vmem %s1, %s290
      %p292 = pneg %p85
      %p293 = pneg %p82
      %s294 = sadd.s32 %s21, 1
      %p295 = scmp.lt.s32.totalorder %s294, 7
      %s296 = scalar_select %p295, %s294, 7
      %p297 = scmp.lt.s32.totalorder %s20, 1
      %s298 = scalar_select %p297, %s20, 1
      %p299 = scmp.lt.s32.totalorder %s296, 7
      %s300 = scalar_select %p299, %s296, 7
      %s301 = smul.addr %s300, 24
      %s302 = smul.addr %s298, 192
      %s303 = sadd.s32 %s301, %s302
      %s304 = smul.addr %s303, 4
      %s305 = scalar_lea.vmem %s2, %s304
      %p306 = pneg %p119
      %p307 = pneg %p116
      %p308 = pneg %p140
      %p309 = pneg %p137
      %p310 = pneg %p161
      %p311 = pneg %p158
      %p312 = pneg %p189
      %p313 = pneg %p186
      %p314 = scmp.lt.s32.totalorder %s20, 1
      %s315 = scalar_select %p314, %s20, 1
      %p316 = scmp.lt.s32.totalorder %s21, 7
      %s317 = scalar_select %p316, %s21, 7
      %s318 = smul.addr %s317, 24
      %s319 = smul.addr %s315, 192
      %s320 = sadd.s32 %s318, %s319
      %s321 = smul.addr %s320, 4
      %s322 = scalar_lea.vmem %s5, %s321
      %s323 = ssub.s32 %s21, 1
      %p324 = scmp.gt.s32.totalorder %s323, 0
      %s325 = scalar_select %p324, %s323, 0
      %p326 = scmp.lt.s32.totalorder %s20, 1
      %s327 = scalar_select %p326, %s20, 1
      %p328 = scmp.lt.s32.totalorder %s325, 7
      %s329 = scalar_select %p328, %s325, 7
      %s330 = smul.addr %s329, 24
      %s331 = smul.addr %s327, 192
      %s332 = sadd.s32 %s330, %s331
      %s333 = smul.addr %s332, 4
      %s334 = scalar_lea.vmem %s0, %s333
      %s335 = ssub.s32 %s21, 1
      %p336 = scmp.gt.s32.totalorder %s335, 0
      %s337 = scalar_select %p336, %s335, 0
      %p338 = scmp.lt.s32.totalorder %s20, 1
      %s339 = scalar_select %p338, %s20, 1
      %p340 = scmp.lt.s32.totalorder %s21, 7
      %s341 = scalar_select %p340, %s21, 7
      %s342 = smul.addr %s341, 24
      %s343 = smul.addr %s339, 192
      %s344 = sadd.s32 %s342, %s343
      %s345 = smul.addr %s344, 4
      %s346 = scalar_lea.vmem %s1, %s345
      %s347 = sadd.s32 %s21, 1
      %p348 = scmp.lt.s32.totalorder %s347, 7
      %s349 = scalar_select %p348, %s347, 7
      %p350 = scmp.lt.s32.totalorder %s20, 1
      %s351 = scalar_select %p350, %s20, 1
      %p352 = scmp.lt.s32.totalorder %s349, 7
      %s353 = scalar_select %p352, %s349, 7
      %s354 = smul.addr %s353, 24
      %s355 = smul.addr %s351, 192
      %s356 = sadd.s32 %s354, %s355
      %s357 = smul.addr %s356, 4
      %s358 = scalar_lea.vmem %s2, %s357
      %s359 = sadd.s32 %s21, 1
      %p360 = scmp.lt.s32.totalorder %s359, 7
      %s361 = scalar_select %p360, %s359, 7
      %p362 = scmp.lt.s32.totalorder %s20, 1
      %s363 = scalar_select %p362, %s20, 1
      %p364 = scmp.lt.s32.totalorder %s21, 7
      %s365 = scalar_select %p364, %s21, 7
      %s366 = smul.addr %s365, 24
      %s367 = smul.addr %s363, 192
      %s368 = sadd.s32 %s366, %s367
      %s369 = smul.addr %s368, 4
      %s370 = scalar_lea.vmem %s5, %s369
      %v372 = vld [vmem:[%s346 + $0x4] sm:$0x8]
      %v373 = vld [vmem:[%s346 + $0x8] sm:$0xf]
      %v374 = vld [vmem:[%s346 + $0xc] sm:$0xf]
      %v375 = vld [vmem:[%s346 + $0x10] sm:$0xf]
      %v376 = vld [vmem:[%s346 + $0x14] sm:$0xf]
      %v377 = vld [vmem:[%s346 + $0x18] sm:$0xf]
      %v378 = vld [vmem:[%s346 + $0x1c] sm:$0xf]
      %v379 = vld [vmem:[%s346 + $0x20] sm:$0xf]
      %v380 = vld [vmem:[%s346 + $0x24] sm:$0xf]
      %v381 = vld [vmem:[%s346 + $0x28] sm:$0xf]
      %v382 = vld [vmem:[%s346 + $0x2c] sm:$0xf]
      %v383 = vld [vmem:[%s346 + $0x30] sm:$0xf]
      %v384 = vld [vmem:[%s346 + $0x34] sm:$0xf]
      %v385 = vld [vmem:[%s346 + $0x38] sm:$0xf]
      %v386 = vld [vmem:[%s346 + $0x3c] sm:$0xf]
      %v387 = vld [vmem:[%s346 + $0x40] sm:$0xf]
      %v388 = vld [vmem:[%s346 + $0x44] sm:$0xf]
      %s389 = scalar_lea.vmem %s3, 36
      %v390 = vld [vmem:[%s389] sm:$0xf]
      %s391 = scalar_lea.vmem %s3, 40
      %v392 = vld [vmem:[%s391] sm:$0xf]
      %v409 = vunpack.c.l.b16 %v373
      %v410 = vunpack.c.l.b16 %v374
      %v411 = vunpack.c.l.b16 %v375
      %v412 = vunpack.c.l.b16 %v376
      %v413 = vunpack.c.l.b16 %v377
      %v414 = vunpack.c.l.b16 %v378
      %v415 = vunpack.c.l.b16 %v379
      %v416 = vunpack.c.l.b16 %v380
      %v417 = vunpack.c.l.b16 %v381
      %v418 = vunpack.c.l.b16 %v382
      %v419 = vunpack.c.l.b16 %v383
      %v420 = vunpack.c.l.b16 %v384
      %v421 = vunpack.c.l.b16 %v385
      %v422 = vunpack.c.l.b16 %v386
      %v423 = vunpack.c.l.b16 %v387
      %v424 = vunpack.c.l.b16 %v388
      %v425 = vpack.c.b16 %v410, %v409
      %v426 = vpack.c.b16 %v412, %v411
      %v427 = vpack.c.b16 %v414, %v413
      %v428 = vpack.c.b16 %v416, %v415
      %v429 = vpack.c.b16 %v418, %v417
      %v430 = vpack.c.b16 %v420, %v419
      %v431 = vpack.c.b16 %v422, %v421
      %v432 = vpack.c.b16 %v424, %v423
      %vm433 = vcmask 64512
      %v435 = vsel %vm433, %v425, 0
      %v438 = vsel %vm433, %v426, 0
      %v441 = vsel %vm433, %v427, 0
      %v444 = vsel %vm433, %v428, 0
      %v447 = vsel %vm433, %v429, 0
      %v450 = vsel %vm433, %v430, 0
      %v453 = vsel %vm433, %v431, 0
      %v456 = vsel %vm433, %v432, 0
      %vm458 = vcmask 1043456
      %v460 = vsel %vm458, %v392, 0
      %462 = vmatprep.subr.bf16.mxu0 0
      %463 = vmatpush1.bf16.msra.mxu0 %v460
      %464 = vmatprep.subr.bf16.mxu0 0
      %465 = vmatpush1.bf16.msra.mxu0 0
      %466 = vmatprep.subr.bf16.mxu0 0
      %467 = vmatpush1.bf16.msra.mxu0 0
      %468 = vmatprep.subr.bf16.mxu0 0
      %469 = vmatpush1.bf16.msra.mxu0 0
      %470 = vmatprep.subr.bf16.mxu0 0
      %471 = vmatpush1.bf16.msra.mxu0 0
      %472 = vmatprep.subr.bf16.mxu0 0
      %473 = vmatpush1.bf16.msra.mxu0 0
      %474 = vmatprep.subr.bf16.mxu0 0
      %475 = vmatpush1.bf16.msra.mxu0 0
      %476 = vmatprep.subr.bf16.mxu0 0
      %477 = vmatpush1.bf16.msra.mxu0 0
      %478 = vmatprep.subr.bf16.mxu0 0
      %479 = vmatpush1.bf16.msra.mxu0 0
      %480 = vmatprep.subr.bf16.mxu0 0
      %481 = vmatpush1.bf16.msra.mxu0 0
      %482 = vmatprep.subr.bf16.mxu0 0
      %483 = vmatpush1.bf16.msra.mxu0 0
      %484 = vmatprep.subr.bf16.mxu0 0
      %485 = vmatpush1.bf16.msra.mxu0 0
      %486 = vmatprep.subr.bf16.mxu0 0
      %487 = vmatpush1.bf16.msra.mxu0 0
      %488 = vmatprep.subr.bf16.mxu0 0
      %489 = vmatpush1.bf16.msra.mxu0 0
      %490 = vmatprep.subr.bf16.mxu0 0
      %491 = vmatpush1.bf16.msra.mxu0 0
      %492 = vmatprep.subr.bf16.mxu0 0
      %493 = vmatpush1.bf16.msra.mxu0 0
      %494 = vmatprep.mubr.bf16.mxu0 0
      %495 = vmatmul.mubr.bf16.gmra.mrb[0].mxu0 %v435
      %v496 = vpop.f32.mrb[0].mxu0
      %v497 = vadd.f32 0.0, %v496
      %v498 = vpop.f32.mrb[0].mxu0
      %v499 = vpop.f32.mrb[0].mxu0
      %v500 = vadd.f32 0.0, %v499
      %v501 = vpop.f32.mrb[0].mxu0
      %502 = vmatprep.mubr.bf16.mxu0 0
      %503 = vmatmul.mubr.bf16.gmra.mrb[0].mxu0 %v438
      %v504 = vpop.f32.mrb[0].mxu0
      %v505 = vadd.f32 0.0, %v504
      %v506 = vpop.f32.mrb[0].mxu0
      %v507 = vpop.f32.mrb[0].mxu0
      %v508 = vadd.f32 0.0, %v507
      %v509 = vpop.f32.mrb[0].mxu0
      %510 = vmatprep.mubr.bf16.mxu0 0
      %511 = vmatmul.mubr.bf16.gmra.mrb[0].mxu0 %v441
      %v512 = vpop.f32.mrb[0].mxu0
      %v513 = vadd.f32 0.0, %v512
      %v514 = vpop.f32.mrb[0].mxu0
      %v515 = vpop.f32.mrb[0].mxu0
      %v516 = vadd.f32 0.0, %v515
      %v517 = vpop.f32.mrb[0].mxu0
      %518 = vmatprep.mubr.bf16.mxu0 0
      %519 = vmatmul.mubr.bf16.gmra.mrb[0].mxu0 %v444
      %v520 = vpop.f32.mrb[0].mxu0
      %v521 = vadd.f32 0.0, %v520
      %v522 = vpop.f32.mrb[0].mxu0
      %v523 = vpop.f32.mrb[0].mxu0
      %v524 = vadd.f32 0.0, %v523
      %v525 = vpop.f32.mrb[0].mxu0
      %526 = vmatprep.mubr.bf16.mxu0 0
      %527 = vmatmul.mubr.bf16.gmra.mrb[0].mxu0 %v447
      %v528 = vpop.f32.mrb[0].mxu0
      %v529 = vadd.f32 0.0, %v528
      %v530 = vpop.f32.mrb[0].mxu0
      %v531 = vpop.f32.mrb[0].mxu0
      %v532 = vadd.f32 0.0, %v531
      %v533 = vpop.f32.mrb[0].mxu0
      %534 = vmatprep.mubr.bf16.mxu0 0
      %535 = vmatmul.mubr.bf16.gmra.mrb[0].mxu0 %v450
      %v536 = vpop.f32.mrb[0].mxu0
      %v537 = vadd.f32 0.0, %v536
      %v538 = vpop.f32.mrb[0].mxu0
      %v539 = vpop.f32.mrb[0].mxu0
      %v540 = vadd.f32 0.0, %v539
      %v541 = vpop.f32.mrb[0].mxu0
      %542 = vmatprep.mubr.bf16.mxu0 0
      %543 = vmatmul.mubr.bf16.gmra.mrb[0].mxu0 %v453
      %v544 = vpop.f32.mrb[0].mxu0
      %v545 = vadd.f32 0.0, %v544
      %v546 = vpop.f32.mrb[0].mxu0
      %v547 = vpop.f32.mrb[0].mxu0
      %v548 = vadd.f32 0.0, %v547
      %v549 = vpop.f32.mrb[0].mxu0
      %550 = vmatprep.mubr.bf16.mxu0 0
      %551 = vmatmul.mubr.bf16.gmra.mrb[0].mxu0 %v456
      %v552 = vpop.f32.mrb[0].mxu0
      %v553 = vadd.f32 0.0, %v552
      %v554 = vpop.f32.mrb[0].mxu0
      %v555 = vpop.f32.mrb[0].mxu0
      %v556 = vadd.f32 0.0, %v555
      %v557 = vpop.f32.mrb[0].mxu0
      %558 = vdwg.mxu0
      %v560 = vunpack.c.l.b16 %v372
      %v561 = vpack.c.b16 %v409, %v560
      %v562 = vpack.c.b16 %v411, %v410
      %v563 = vpack.c.b16 %v413, %v412
      %v564 = vpack.c.b16 %v415, %v414
      %v565 = vpack.c.b16 %v417, %v416
      %v566 = vpack.c.b16 %v419, %v418
      %v567 = vpack.c.b16 %v421, %v420
      %v568 = vpack.c.b16 %v423, %v422
      %v569 = vpack.c.b16 %v424, %v424
      %vm570 = vsmask.f32 4352
      %v572 = vshrl.u32 %v561, 16
      %v574 = vrot.slane %v572, 3
      %v575 = vshll.u32 %v561, 16
      %v577 = vrot.slane %v575, 4
      %v578 = vor.u32 %v574, %v577
      %v580 = vshrl.u32 %v562, 16
      %v582 = vrot.slane %v580, 3
      %v583 = vshll.u32 %v562, 16
      %v585 = vrot.slane %v583, 4
      %v586 = vor.u32 %v582, %v585
      %v587 = vsel %vm570, %v578, %v586
      %v589 = vshrl.u32 %v563, 16
      %v591 = vrot.slane %v589, 3
      %v592 = vshll.u32 %v563, 16
      %v594 = vrot.slane %v592, 4
      %v595 = vor.u32 %v591, %v594
      %v596 = vsel %vm570, %v586, %v595
      %v598 = vshrl.u32 %v564, 16
      %v600 = vrot.slane %v598, 3
      %v601 = vshll.u32 %v564, 16
      %v603 = vrot.slane %v601, 4
      %v604 = vor.u32 %v600, %v603
      %v605 = vsel %vm570, %v595, %v604
      %v607 = vshrl.u32 %v565, 16
      %v609 = vrot.slane %v607, 3
      %v610 = vshll.u32 %v565, 16
      %v612 = vrot.slane %v610, 4
      %v613 = vor.u32 %v609, %v612
      %v614 = vsel %vm570, %v604, %v613
      %v616 = vshrl.u32 %v566, 16
      %v618 = vrot.slane %v616, 3
      %v619 = vshll.u32 %v566, 16
      %v621 = vrot.slane %v619, 4
      %v622 = vor.u32 %v618, %v621
      %v623 = vsel %vm570, %v613, %v622
      %v625 = vshrl.u32 %v567, 16
      %v627 = vrot.slane %v625, 3
      %v628 = vshll.u32 %v567, 16
      %v630 = vrot.slane %v628, 4
      %v631 = vor.u32 %v627, %v630
      %v632 = vsel %vm570, %v622, %v631
      %v634 = vshrl.u32 %v568, 16
      %v636 = vrot.slane %v634, 3
      %v637 = vshll.u32 %v568, 16
      %v639 = vrot.slane %v637, 4
      %v640 = vor.u32 %v636, %v639
      %v641 = vsel %vm570, %v631, %v640
      %v643 = vshrl.u32 %v569, 16
      %v645 = vrot.slane %v643, 3
      %v646 = vshll.u32 %v569, 16
      %v648 = vrot.slane %v646, 4
      %v649 = vor.u32 %v645, %v648
      %v650 = vsel %vm570, %v640, %v649
      %v652 = vsel %vm433, %v587, 0
      %v655 = vsel %vm433, %v596, 0
      %v658 = vsel %vm433, %v605, 0
      %v661 = vsel %vm433, %v614, 0
      %v664 = vsel %vm433, %v623, 0
      %v667 = vsel %vm433, %v632, 0
      %v670 = vsel %vm433, %v641, 0
      %v673 = vsel %vm433, %v650, 0
      %v676 = vsel %vm458, %v390, 0
      %678 = vmatprep.subr.bf16.mxu0 0
      %679 = vmatpush1.bf16.msra.mxu0 %v676
      %680 = vmatprep.subr.bf16.mxu0 0
      %681 = vmatpush1.bf16.msra.mxu0 0
      %682 = vmatprep.subr.bf16.mxu0 0
      %683 = vmatpush1.bf16.msra.mxu0 0
      %684 = vmatprep.subr.bf16.mxu0 0
      %685 = vmatpush1.bf16.msra.mxu0 0
      %686 = vmatprep.subr.bf16.mxu0 0
      %687 = vmatpush1.bf16.msra.mxu0 0
      %688 = vmatprep.subr.bf16.mxu0 0
      %689 = vmatpush1.bf16.msra.mxu0 0
      %690 = vmatprep.subr.bf16.mxu0 0
      %691 = vmatpush1.bf16.msra.mxu0 0
      %692 = vmatprep.subr.bf16.mxu0 0
      %693 = vmatpush1.bf16.msra.mxu0 0
      %694 = vmatprep.subr.bf16.mxu0 0
      %695 = vmatpush1.bf16.msra.mxu0 0
      %696 = vmatprep.subr.bf16.mxu0 0
      %697 = vmatpush1.bf16.msra.mxu0 0
      %698 = vmatprep.subr.bf16.mxu0 0
      %699 = vmatpush1.bf16.msra.mxu0 0
      %700 = vmatprep.subr.bf16.mxu0 0
      %701 = vmatpush1.bf16.msra.mxu0 0
      %702 = vmatprep.subr.bf16.mxu0 0
      %703 = vmatpush1.bf16.msra.mxu0 0
      %704 = vmatprep.subr.bf16.mxu0 0
      %705 = vmatpush1.bf16.msra.mxu0 0
      %706 = vmatprep.subr.bf16.mxu0 0
      %707 = vmatpush1.bf16.msra.mxu0 0
      %708 = vmatprep.subr.bf16.mxu0 0
      %709 = vmatpush1.bf16.msra.mxu0 0
      %710 = vmatprep.mubr.bf16.mxu0 0
      %711 = vmatmul.mubr.bf16.gmra.mrb[0].mxu0 %v652
      %v712 = vpop.f32.mrb[0].mxu0
      %v713 = vadd.f32 %v497, %v712
      %v714 = vpop.f32.mrb[0].mxu0
      %v715 = vpop.f32.mrb[0].mxu0
      %v716 = vadd.f32 %v500, %v715
      %v717 = vpop.f32.mrb[0].mxu0
      %718 = vmatprep.mubr.bf16.mxu0 0
      %719 = vmatmul.mubr.bf16.gmra.mrb[0].mxu0 %v655
      %v720 = vpop.f32.mrb[0].mxu0
      %v721 = vadd.f32 %v505, %v720
      %v722 = vpop.f32.mrb[0].mxu0
      %v723 = vpop.f32.mrb[0].mxu0
      %v724 = vadd.f32 %v508, %v723
      %v725 = vpop.f32.mrb[0].mxu0
      %726 = vmatprep.mubr.bf16.mxu0 0
      %727 = vmatmul.mubr.bf16.gmra.mrb[0].mxu0 %v658
      %v728 = vpop.f32.mrb[0].mxu0
      %v729 = vadd.f32 %v513, %v728
      %v730 = vpop.f32.mrb[0].mxu0
      %v731 = vpop.f32.mrb[0].mxu0
      %v732 = vadd.f32 %v516, %v731
      %v733 = vpop.f32.mrb[0].mxu0
      %734 = vmatprep.mubr.bf16.mxu0 0
      %735 = vmatmul.mubr.bf16.gmra.mrb[0].mxu0 %v661
      %v736 = vpop.f32.mrb[0].mxu0
      %v737 = vadd.f32 %v521, %v736
      %v738 = vpop.f32.mrb[0].mxu0
      %v739 = vpop.f32.mrb[0].mxu0
      %v740 = vadd.f32 %v524, %v739
      %v741 = vpop.f32.mrb[0].mxu0
      %742 = vmatprep.mubr.bf16.mxu0 0
      %743 = vmatmul.mubr.bf16.gmra.mrb[0].mxu0 %v664
      %v744 = vpop.f32.mrb[0].mxu0
      %v745 = vadd.f32 %v529, %v744
      %v746 = vpop.f32.mrb[0].mxu0
      %v747 = vpop.f32.mrb[0].mxu0
      %v748 = vadd.f32 %v532, %v747
      %v749 = vpop.f32.mrb[0].mxu0
      %750 = vmatprep.mubr.bf16.mxu0 0
      %751 = vmatmul.mubr.bf16.gmra.mrb[0].mxu0 %v667
      %v752 = vpop.f32.mrb[0].mxu0
      %v753 = vadd.f32 %v537, %v752
      %v754 = vpop.f32.mrb[0].mxu0
      %v755 = vpop.f32.mrb[0].mxu0
      %v756 = vadd.f32 %v540, %v755
      %v757 = vpop.f32.mrb[0].mxu0
      %758 = vmatprep.mubr.bf16.mxu0 0
      %759 = vmatmul.mubr.bf16.gmra.mrb[0].mxu0 %v670
      %v760 = vpop.f32.mrb[0].mxu0
      %v761 = vadd.f32 %v545, %v760
      %v762 = vpop.f32.mrb[0].mxu0
      %v763 = vpop.f32.mrb[0].mxu0
      %v764 = vadd.f32 %v548, %v763
      %v765 = vpop.f32.mrb[0].mxu0
      %766 = vmatprep.mubr.bf16.mxu0 0
      %767 = vmatmul.mubr.bf16.gmra.mrb[0].mxu0 %v673
      %v768 = vpop.f32.mrb[0].mxu0
      %v769 = vadd.f32 %v553, %v768
      %v770 = vpop.f32.mrb[0].mxu0
      %v771 = vpop.f32.mrb[0].mxu0
      %v772 = vadd.f32 %v556, %v771
      %v773 = vpop.f32.mrb[0].mxu0
      %774 = vdwg.mxu0
      %v775 = vld [vmem:[%s346 + $0x8] sm:$0xf]
      %v776 = vld [vmem:[%s346 + $0xc] sm:$0xf]
      %v777 = vld [vmem:[%s346 + $0x10] sm:$0xf]
      %v778 = vld [vmem:[%s346 + $0x14] sm:$0xf]
      %v779 = vld [vmem:[%s346 + $0x18] sm:$0xf]
      %v780 = vld [vmem:[%s346 + $0x1c] sm:$0xf]
      %v781 = vld [vmem:[%s346 + $0x20] sm:$0xf]
      %v782 = vld [vmem:[%s346 + $0x24] sm:$0xf]
      %v783 = vld [vmem:[%s346 + $0x28] sm:$0xf]
      %v784 = vld [vmem:[%s346 + $0x2c] sm:$0xf]
      %v785 = vld [vmem:[%s346 + $0x30] sm:$0xf]
      %v786 = vld [vmem:[%s346 + $0x34] sm:$0xf]
      %v787 = vld [vmem:[%s346 + $0x38] sm:$0xf]
      %v788 = vld [vmem:[%s346 + $0x3c] sm:$0xf]
      %v789 = vld [vmem:[%s346 + $0x40] sm:$0xf]
      %v790 = vld [vmem:[%s346 + $0x44] sm:$0xf]
      %v791 = vld [vmem:[%s346 + $0x48] sm:$0x1]
      %s792 = scalar_lea.vmem %s3, 44
      %v793 = vld [vmem:[%s792] sm:$0xf]
      %v811 = vunpack.c.l.b16 %v775
      %v812 = vunpack.c.l.b16 %v776
      %v813 = vunpack.c.l.b16 %v777
      %v814 = vunpack.c.l.b16 %v778
      %v815 = vunpack.c.l.b16 %v779
      %v816 = vunpack.c.l.b16 %v780
      %v817 = vunpack.c.l.b16 %v781
      %v818 = vunpack.c.l.b16 %v782
      %v819 = vunpack.c.l.b16 %v783
      %v820 = vunpack.c.l.b16 %v784
      %v821 = vunpack.c.l.b16 %v785
      %v822 = vunpack.c.l.b16 %v786
      %v823 = vunpack.c.l.b16 %v787
      %v824 = vunpack.c.l.b16 %v788
      %v825 = vunpack.c.l.b16 %v789
      %v826 = vunpack.c.l.b16 %v790
      %v827 = vunpack.c.l.b16 %v791
      %v828 = vpack.c.b16 %v812, %v811
      %v829 = vpack.c.b16 %v814, %v813
      %v830 = vpack.c.b16 %v816, %v815
      %v831 = vpack.c.b16 %v818, %v817
      %v832 = vpack.c.b16 %v820, %v819
      %v833 = vpack.c.b16 %v822, %v821
      %v834 = vpack.c.b16 %v824, %v823
      %v835 = vpack.c.b16 %v826, %v825
      %v836 = vpack.c.b16 %v827, %v827
      %vm837 = vsmask.f32 7424
      %v839 = vshrl.u32 %v828, 16
      %v841 = vshll.u32 %v828, 16
      %v843 = vrot.slane %v841, 1
      %v844 = vor.u32 %v839, %v843
      %v846 = vshll.u32 %v829, 16
      %v848 = vrot.slane %v846, 1
      %v849 = vsel %vm837, %v844, %v848
      %v850 = vshrl.u32 %v829, 16
      %v852 = vor.u32 %v850, %v848
      %v854 = vshll.u32 %v830, 16
      %v856 = vrot.slane %v854, 1
      %v857 = vsel %vm837, %v852, %v856
      %v858 = vshrl.u32 %v830, 16
      %v860 = vor.u32 %v858, %v856
      %v862 = vshll.u32 %v831, 16
      %v864 = vrot.slane %v862, 1
      %v865 = vsel %vm837, %v860, %v864
      %v866 = vshrl.u32 %v831, 16
      %v868 = vor.u32 %v866, %v864
      %v870 = vshll.u32 %v832, 16
      %v872 = vrot.slane %v870, 1
      %v873 = vsel %vm837, %v868, %v872
      %v874 = vshrl.u32 %v832, 16
      %v876 = vor.u32 %v874, %v872
      %v878 = vshll.u32 %v833, 16
      %v880 = vrot.slane %v878, 1
      %v881 = vsel %vm837, %v876, %v880
      %v882 = vshrl.u32 %v833, 16
      %v884 = vor.u32 %v882, %v880
      %v886 = vshll.u32 %v834, 16
      %v888 = vrot.slane %v886, 1
      %v889 = vsel %vm837, %v884, %v888
      %v890 = vshrl.u32 %v834, 16
      %v892 = vor.u32 %v890, %v888
      %v894 = vshll.u32 %v835, 16
      %v896 = vrot.slane %v894, 1
      %v897 = vsel %vm837, %v892, %v896
      %v898 = vshrl.u32 %v835, 16
      %v900 = vor.u32 %v898, %v896
      %v902 = vshll.u32 %v836, 16
      %v904 = vrot.slane %v902, 1
      %v905 = vsel %vm837, %v900, %v904
      %v907 = vsel %vm433, %v849, 0
      %v910 = vsel %vm433, %v857, 0
      %v913 = vsel %vm433, %v865, 0
      %v916 = vsel %vm433, %v873, 0
      %v919 = vsel %vm433, %v881, 0
      %v922 = vsel %vm433, %v889, 0
      %v925 = vsel %vm433, %v897, 0
      %v928 = vsel %vm433, %v905, 0
      %v931 = vsel %vm458, %v793, 0
      %933 = vmatprep.subr.bf16.mxu0 0
      %934 = vmatpush1.bf16.msra.mxu0 %v931
      %935 = vmatprep.subr.bf16.mxu0 0
      %936 = vmatpush1.bf16.msra.mxu0 0
      %937 = vmatprep.subr.bf16.mxu0 0
      %938 = vmatpush1.bf16.msra.mxu0 0
      %939 = vmatprep.subr.bf16.mxu0 0
      %940 = vmatpush1.bf16.msra.mxu0 0
      %941 = vmatprep.subr.bf16.mxu0 0
      %942 = vmatpush1.bf16.msra.mxu0 0
      %943 = vmatprep.subr.bf16.mxu0 0
      %944 = vmatpush1.bf16.msra.mxu0 0
      %945 = vmatprep.subr.bf16.mxu0 0
      %946 = vmatpush1.bf16.msra.mxu0 0
      %947 = vmatprep.subr.bf16.mxu0 0
      %948 = vmatpush1.bf16.msra.mxu0 0
      %949 = vmatprep.subr.bf16.mxu0 0
      %950 = vmatpush1.bf16.msra.mxu0 0
      %951 = vmatprep.subr.bf16.mxu0 0
      %952 = vmatpush1.bf16.msra.mxu0 0
      %953 = vmatprep.subr.bf16.mxu0 0
      %954 = vmatpush1.bf16.msra.mxu0 0
      %955 = vmatprep.subr.bf16.mxu0 0
      %956 = vmatpush1.bf16.msra.mxu0 0
      %957 = vmatprep.subr.bf16.mxu0 0
      %958 = vmatpush1.bf16.msra.mxu0 0
      %959 = vmatprep.subr.bf16.mxu0 0
      %960 = vmatpush1.bf16.msra.mxu0 0
      %961 = vmatprep.subr.bf16.mxu0 0
      %962 = vmatpush1.bf16.msra.mxu0 0
      %963 = vmatprep.subr.bf16.mxu0 0
      %964 = vmatpush1.bf16.msra.mxu0 0
      %965 = vmatprep.mubr.bf16.mxu0 0
      %966 = vmatmul.mubr.bf16.gmra.mrb[0].mxu0 %v907
      %v967 = vpop.f32.mrb[0].mxu0
      %v968 = vadd.f32 0.0, %v967
      %v969 = vpop.f32.mrb[0].mxu0
      %v970 = vpop.f32.mrb[0].mxu0
      %v971 = vadd.f32 0.0, %v970
      %v972 = vpop.f32.mrb[0].mxu0
      %973 = vmatprep.mubr.bf16.mxu0 0
      %974 = vmatmul.mubr.bf16.gmra.mrb[0].mxu0 %v910
      %v975 = vpop.f32.mrb[0].mxu0
      %v976 = vadd.f32 0.0, %v975
      %v977 = vpop.f32.mrb[0].mxu0
      %v978 = vpop.f32.mrb[0].mxu0
      %v979 = vadd.f32 0.0, %v978
      %v980 = vpop.f32.mrb[0].mxu0
      %981 = vmatprep.mubr.bf16.mxu0 0
      %982 = vmatmul.mubr.bf16.gmra.mrb[0].mxu0 %v913
      %v983 = vpop.f32.mrb[0].mxu0
      %v984 = vadd.f32 0.0, %v983
      %v985 = vpop.f32.mrb[0].mxu0
      %v986 = vpop.f32.mrb[0].mxu0
      %v987 = vadd.f32 0.0, %v986
      %v988 = vpop.f32.mrb[0].mxu0
      %989 = vmatprep.mubr.bf16.mxu0 0
      %990 = vmatmul.mubr.bf16.gmra.mrb[0].mxu0 %v916
      %v991 = vpop.f32.mrb[0].mxu0
      %v992 = vadd.f32 0.0, %v991
      %v993 = vpop.f32.mrb[0].mxu0
      %v994 = vpop.f32.mrb[0].mxu0
      %v995 = vadd.f32 0.0, %v994
      %v996 = vpop.f32.mrb[0].mxu0
      %997 = vmatprep.mubr.bf16.mxu0 0
      %998 = vmatmul.mubr.bf16.gmra.mrb[0].mxu0 %v919
      %v999 = vpop.f32.mrb[0].mxu0
      %v1000 = vadd.f32 0.0, %v999
      %v1001 = vpop.f32.mrb[0].mxu0
      %v1002 = vpop.f32.mrb[0].mxu0
      %v1003 = vadd.f32 0.0, %v1002
      %v1004 = vpop.f32.mrb[0].mxu0
      %1005 = vmatprep.mubr.bf16.mxu0 0
      %1006 = vmatmul.mubr.bf16.gmra.mrb[0].mxu0 %v922
      %v1007 = vpop.f32.mrb[0].mxu0
      %v1008 = vadd.f32 0.0, %v1007
      %v1009 = vpop.f32.mrb[0].mxu0
      %v1010 = vpop.f32.mrb[0].mxu0
      %v1011 = vadd.f32 0.0, %v1010
      %v1012 = vpop.f32.mrb[0].mxu0
      %1013 = vmatprep.mubr.bf16.mxu0 0
      %1014 = vmatmul.mubr.bf16.gmra.mrb[0].mxu0 %v925
      %v1015 = vpop.f32.mrb[0].mxu0
      %v1016 = vadd.f32 0.0, %v1015
      %v1017 = vpop.f32.mrb[0].mxu0
      %v1018 = vpop.f32.mrb[0].mxu0
      %v1019 = vadd.f32 0.0, %v1018
      %v1020 = vpop.f32.mrb[0].mxu0
      %1021 = vmatprep.mubr.bf16.mxu0 0
      %1022 = vmatmul.mubr.bf16.gmra.mrb[0].mxu0 %v928
      %v1023 = vpop.f32.mrb[0].mxu0
      %v1024 = vadd.f32 0.0, %v1023
      %v1025 = vpop.f32.mrb[0].mxu0
      %v1026 = vpop.f32.mrb[0].mxu0
      %v1027 = vadd.f32 0.0, %v1026
      %v1028 = vpop.f32.mrb[0].mxu0
      %1029 = vdwg.mxu0
      %v1030 = vadd.f32 %v713, %v968
      %v1031 = vadd.f32 %v716, %v971
      %v1032 = vadd.f32 %v721, %v976
      %v1033 = vadd.f32 %v724, %v979
      %v1034 = vadd.f32 %v729, %v984
      %v1035 = vadd.f32 %v732, %v987
      %v1036 = vadd.f32 %v737, %v992
      %v1037 = vadd.f32 %v740, %v995
      %v1038 = vadd.f32 %v745, %v1000
      %v1039 = vadd.f32 %v748, %v1003
      %v1040 = vadd.f32 %v753, %v1008
      %v1041 = vadd.f32 %v756, %v1011
      %v1042 = vadd.f32 %v761, %v1016
      %v1043 = vadd.f32 %v764, %v1019
      %v1044 = vadd.f32 %v769, %v1024
      %v1045 = vadd.f32 %v772, %v1027
      %v1046 = vld [vmem:[%s346 + $0xc] sm:$0x8]
      %v1047 = vld [vmem:[%s346 + $0x10] sm:$0xf]
      %v1048 = vld [vmem:[%s346 + $0x14] sm:$0xf]
      %v1049 = vld [vmem:[%s346 + $0x18] sm:$0xf]
      %v1050 = vld [vmem:[%s346 + $0x1c] sm:$0xf]
      %v1051 = vld [vmem:[%s346 + $0x20] sm:$0xf]
      %v1052 = vld [vmem:[%s346 + $0x24] sm:$0xf]
      %v1053 = vld [vmem:[%s346 + $0x28] sm:$0xf]
      %v1054 = vld [vmem:[%s346 + $0x2c] sm:$0xf]
      %v1055 = vld [vmem:[%s346 + $0x30] sm:$0xf]
      %v1056 = vld [vmem:[%s346 + $0x34] sm:$0xf]
      %v1057 = vld [vmem:[%s346 + $0x38] sm:$0xf]
      %v1058 = vld [vmem:[%s346 + $0x3c] sm:$0xf]
      %v1059 = vld [vmem:[%s346 + $0x40] sm:$0xf]
      %v1060 = vld [vmem:[%s346 + $0x44] sm:$0xf]
      %v1061 = vld [vmem:[%s346 + $0x48] sm:$0xf]
      %v1062 = vld [vmem:[%s346 + $0x4c] sm:$0xf]
      %s1063 = scalar_lea.vmem %s3, 48
      %v1064 = vld [vmem:[%s1063] sm:$0xf]
      %v1082 = vunpack.c.l.b16 %v1046
      %v1083 = vunpack.c.l.b16 %v1047
      %v1084 = vunpack.c.l.b16 %v1048
      %v1085 = vunpack.c.l.b16 %v1049
      %v1086 = vunpack.c.l.b16 %v1050
      %v1087 = vunpack.c.l.b16 %v1051
      %v1088 = vunpack.c.l.b16 %v1052
      %v1089 = vunpack.c.l.b16 %v1053
      %v1090 = vunpack.c.l.b16 %v1054
      %v1091 = vunpack.c.l.b16 %v1055
      %v1092 = vunpack.c.l.b16 %v1056
      %v1093 = vunpack.c.l.b16 %v1057
      %v1094 = vunpack.c.l.b16 %v1058
      %v1095 = vunpack.c.l.b16 %v1059
      %v1096 = vunpack.c.l.b16 %v1060
      %v1097 = vunpack.c.l.b16 %v1061
      %v1098 = vunpack.c.l.b16 %v1062
      %v1099 = vpack.c.b16 %v1083, %v1082
      %v1100 = vpack.c.b16 %v1085, %v1084
      %v1101 = vpack.c.b16 %v1087, %v1086
      %v1102 = vpack.c.b16 %v1089, %v1088
      %v1103 = vpack.c.b16 %v1091, %v1090
      %v1104 = vpack.c.b16 %v1093, %v1092
      %v1105 = vpack.c.b16 %v1095, %v1094
      %v1106 = vpack.c.b16 %v1097, %v1096
      %v1107 = vpack.c.b16 %v1098, %v1098
      %v1109 = vshrl.u32 %v1099, 16
      %v1111 = vrot.slane %v1109, 3
      %v1112 = vshll.u32 %v1099, 16
      %v1114 = vrot.slane %v1112, 4
      %v1115 = vor.u32 %v1111, %v1114
      %v1117 = vshrl.u32 %v1100, 16
      %v1119 = vrot.slane %v1117, 3
      %v1120 = vshll.u32 %v1100, 16
      %v1122 = vrot.slane %v1120, 4
      %v1123 = vor.u32 %v1119, %v1122
      %v1124 = vsel %vm570, %v1115, %v1123
      %v1126 = vshrl.u32 %v1101, 16
      %v1128 = vrot.slane %v1126, 3
      %v1129 = vshll.u32 %v1101, 16
      %v1131 = vrot.slane %v1129, 4
      %v1132 = vor.u32 %v1128, %v1131
      %v1133 = vsel %vm570, %v1123, %v1132
      %v1135 = vshrl.u32 %v1102, 16
      %v1137 = vrot.slane %v1135, 3
      %v1138 = vshll.u32 %v1102, 16
      %v1140 = vrot.slane %v1138, 4
      %v1141 = vor.u32 %v1137, %v1140
      %v1142 = vsel %vm570, %v1132, %v1141
      %v1144 = vshrl.u32 %v1103, 16
      %v1146 = vrot.slane %v1144, 3
      %v1147 = vshll.u32 %v1103, 16
      %v1149 = vrot.slane %v1147, 4
      %v1150 = vor.u32 %v1146, %v1149
      %v1151 = vsel %vm570, %v1141, %v1150
      %v1153 = vshrl.u32 %v1104, 16
      %v1155 = vrot.slane %v1153, 3
      %v1156 = vshll.u32 %v1104, 16
      %v1158 = vrot.slane %v1156, 4
      %v1159 = vor.u32 %v1155, %v1158
      %v1160 = vsel %vm570, %v1150, %v1159
      %v1162 = vshrl.u32 %v1105, 16
      %v1164 = vrot.slane %v1162, 3
      %v1165 = vshll.u32 %v1105, 16
      %v1167 = vrot.slane %v1165, 4
      %v1168 = vor.u32 %v1164, %v1167
      %v1169 = vsel %vm570, %v1159, %v1168
      %v1171 = vshrl.u32 %v1106, 16
      %v1173 = vrot.slane %v1171, 3
      %v1174 = vshll.u32 %v1106, 16
      %v1176 = vrot.slane %v1174, 4
      %v1177 = vor.u32 %v1173, %v1176
      %v1178 = vsel %vm570, %v1168, %v1177
      %v1180 = vshrl.u32 %v1107, 16
      %v1182 = vrot.slane %v1180, 3
      %v1183 = vshll.u32 %v1107, 16
      %v1185 = vrot.slane %v1183, 4
      %v1186 = vor.u32 %v1182, %v1185
      %v1187 = vsel %vm570, %v1177, %v1186
      %v1189 = vsel %vm433, %v1124, 0
      %v1192 = vsel %vm433, %v1133, 0
      %v1195 = vsel %vm433, %v1142, 0
      %v1198 = vsel %vm433, %v1151, 0
      %v1201 = vsel %vm433, %v1160, 0
      %v1204 = vsel %vm433, %v1169, 0
      %v1207 = vsel %vm433, %v1178, 0
      %v1210 = vsel %vm433, %v1187, 0
      %v1213 = vsel %vm458, %v1064, 0
      %1215 = vmatprep.subr.bf16.mxu0 0
      %1216 = vmatpush1.bf16.msra.mxu0 %v1213
      %1217 = vmatprep.subr.bf16.mxu0 0
      %1218 = vmatpush1.bf16.msra.mxu0 0
      %1219 = vmatprep.subr.bf16.mxu0 0
      %1220 = vmatpush1.bf16.msra.mxu0 0
      %1221 = vmatprep.subr.bf16.mxu0 0
      %1222 = vmatpush1.bf16.msra.mxu0 0
      %1223 = vmatprep.subr.bf16.mxu0 0
      %1224 = vmatpush1.bf16.msra.mxu0 0
      %1225 = vmatprep.subr.bf16.mxu0 0
      %1226 = vmatpush1.bf16.msra.mxu0 0
      %1227 = vmatprep.subr.bf16.mxu0 0
      %1228 = vmatpush1.bf16.msra.mxu0 0
      %1229 = vmatprep.subr.bf16.mxu0 0
      %1230 = vmatpush1.bf16.msra.mxu0 0
      %1231 = vmatprep.subr.bf16.mxu0 0
      %1232 = vmatpush1.bf16.msra.mxu0 0
      %1233 = vmatprep.subr.bf16.mxu0 0
      %1234 = vmatpush1.bf16.msra.mxu0 0
      %1235 = vmatprep.subr.bf16.mxu0 0
      %1236 = vmatpush1.bf16.msra.mxu0 0
      %1237 = vmatprep.subr.bf16.mxu0 0
      %1238 = vmatpush1.bf16.msra.mxu0 0
      %1239 = vmatprep.subr.bf16.mxu0 0
      %1240 = vmatpush1.bf16.msra.mxu0 0
      %1241 = vmatprep.subr.bf16.mxu0 0
      %1242 = vmatpush1.bf16.msra.mxu0 0
      %1243 = vmatprep.subr.bf16.mxu0 0
      %1244 = vmatpush1.bf16.msra.mxu0 0
      %1245 = vmatprep.subr.bf16.mxu0 0
      %1246 = vmatpush1.bf16.msra.mxu0 0
      %1247 = vmatprep.mubr.bf16.mxu0 0
      %1248 = vmatmul.mubr.bf16.gmra.mrb[0].mxu0 %v1189
      %v1249 = vpop.f32.mrb[0].mxu0
      %v1250 = vadd.f32 0.0, %v1249
      %v1251 = vpop.f32.mrb[0].mxu0
      %v1252 = vpop.f32.mrb[0].mxu0
      %v1253 = vadd.f32 0.0, %v1252
      %v1254 = vpop.f32.mrb[0].mxu0
      %1255 = vmatprep.mubr.bf16.mxu0 0
      %1256 = vmatmul.mubr.bf16.gmra.mrb[0].mxu0 %v1192
      %v1257 = vpop.f32.mrb[0].mxu0
      %v1258 = vadd.f32 0.0, %v1257
      %v1259 = vpop.f32.mrb[0].mxu0
      %v1260 = vpop.f32.mrb[0].mxu0
      %v1261 = vadd.f32 0.0, %v1260
      %v1262 = vpop.f32.mrb[0].mxu0
      %1263 = vmatprep.mubr.bf16.mxu0 0
      %1264 = vmatmul.mubr.bf16.gmra.mrb[0].mxu0 %v1195
      %v1265 = vpop.f32.mrb[0].mxu0
      %v1266 = vadd.f32 0.0, %v1265
      %v1267 = vpop.f32.mrb[0].mxu0
      %v1268 = vpop.f32.mrb[0].mxu0
      %v1269 = vadd.f32 0.0, %v1268
      %v1270 = vpop.f32.mrb[0].mxu0
      %1271 = vmatprep.mubr.bf16.mxu0 0
      %1272 = vmatmul.mubr.bf16.gmra.mrb[0].mxu0 %v1198
      %v1273 = vpop.f32.mrb[0].mxu0
      %v1274 = vadd.f32 0.0, %v1273
      %v1275 = vpop.f32.mrb[0].mxu0
      %v1276 = vpop.f32.mrb[0].mxu0
      %v1277 = vadd.f32 0.0, %v1276
      %v1278 = vpop.f32.mrb[0].mxu0
      %1279 = vmatprep.mubr.bf16.mxu0 0
      %1280 = vmatmul.mubr.bf16.gmra.mrb[0].mxu0 %v1201
      %v1281 = vpop.f32.mrb[0].mxu0
      %v1282 = vadd.f32 0.0, %v1281
      %v1283 = vpop.f32.mrb[0].mxu0
      %v1284 = vpop.f32.mrb[0].mxu0
      %v1285 = vadd.f32 0.0, %v1284
      %v1286 = vpop.f32.mrb[0].mxu0
      %1287 = vmatprep.mubr.bf16.mxu0 0
      %1288 = vmatmul.mubr.bf16.gmra.mrb[0].mxu0 %v1204
      %v1289 = vpop.f32.mrb[0].mxu0
      %v1290 = vadd.f32 0.0, %v1289
      %v1291 = vpop.f32.mrb[0].mxu0
      %v1292 = vpop.f32.mrb[0].mxu0
      %v1293 = vadd.f32 0.0, %v1292
      %v1294 = vpop.f32.mrb[0].mxu0
      %1295 = vmatprep.mubr.bf16.mxu0 0
      %1296 = vmatmul.mubr.bf16.gmra.mrb[0].mxu0 %v1207
      %v1297 = vpop.f32.mrb[0].mxu0
      %v1298 = vadd.f32 0.0, %v1297
      %v1299 = vpop.f32.mrb[0].mxu0
      %v1300 = vpop.f32.mrb[0].mxu0
      %v1301 = vadd.f32 0.0, %v1300
      %v1302 = vpop.f32.mrb[0].mxu0
      %1303 = vmatprep.mubr.bf16.mxu0 0
      %1304 = vmatmul.mubr.bf16.gmra.mrb[0].mxu0 %v1210
      %v1305 = vpop.f32.mrb[0].mxu0
      %v1306 = vadd.f32 0.0, %v1305
      %v1307 = vpop.f32.mrb[0].mxu0
      %v1308 = vpop.f32.mrb[0].mxu0
      %v1309 = vadd.f32 0.0, %v1308
      %v1310 = vpop.f32.mrb[0].mxu0
      %1311 = vdwg.mxu0
      %v1312 = vadd.f32 %v1030, %v1250
      %v1313 = vadd.f32 %v1031, %v1253
      %v1314 = vadd.f32 %v1032, %v1258
      %v1315 = vadd.f32 %v1033, %v1261
      %v1316 = vadd.f32 %v1034, %v1266
      %v1317 = vadd.f32 %v1035, %v1269
      %v1318 = vadd.f32 %v1036, %v1274
      %v1319 = vadd.f32 %v1037, %v1277
      %v1320 = vadd.f32 %v1038, %v1282
      %v1321 = vadd.f32 %v1039, %v1285
      %v1322 = vadd.f32 %v1040, %v1290
      %v1323 = vadd.f32 %v1041, %v1293
      %v1324 = vadd.f32 %v1042, %v1298
      %v1325 = vadd.f32 %v1043, %v1301
      %v1326 = vadd.f32 %v1044, %v1306
      %v1327 = vadd.f32 %v1045, %v1309
      %s1328 = scalar_lea.vmem %s3, 52
      %v1329 = vld [vmem:[%s1328] sm:$0xf]
      %v1330 = vpack.c.b16 %v1084, %v1083
      %v1331 = vpack.c.b16 %v1086, %v1085
      %v1332 = vpack.c.b16 %v1088, %v1087
      %v1333 = vpack.c.b16 %v1090, %v1089
      %v1334 = vpack.c.b16 %v1092, %v1091
      %v1335 = vpack.c.b16 %v1094, %v1093
      %v1336 = vpack.c.b16 %v1096, %v1095
      %v1337 = vpack.c.b16 %v1098, %v1097
      %v1339 = vsel %vm433, %v1330, 0
      %v1342 = vsel %vm433, %v1331, 0
      %v1345 = vsel %vm433, %v1332, 0
      %v1348 = vsel %vm433, %v1333, 0
      %v1351 = vsel %vm433, %v1334, 0
      %v1354 = vsel %vm433, %v1335, 0
      %v1357 = vsel %vm433, %v1336, 0
      %v1360 = vsel %vm433, %v1337, 0
      %v1363 = vsel %vm458, %v1329, 0
      %1365 = vmatprep.subr.bf16.mxu0 0
      %1366 = vmatpush1.bf16.msra.mxu0 %v1363
      %1367 = vmatprep.subr.bf16.mxu0 0
      %1368 = vmatpush1.bf16.msra.mxu0 0
      %1369 = vmatprep.subr.bf16.mxu0 0
      %1370 = vmatpush1.bf16.msra.mxu0 0
      %1371 = vmatprep.subr.bf16.mxu0 0
      %1372 = vmatpush1.bf16.msra.mxu0 0
      %1373 = vmatprep.subr.bf16.mxu0 0
      %1374 = vmatpush1.bf16.msra.mxu0 0
      %1375 = vmatprep.subr.bf16.mxu0 0
      %1376 = vmatpush1.bf16.msra.mxu0 0
      %1377 = vmatprep.subr.bf16.mxu0 0
      %1378 = vmatpush1.bf16.msra.mxu0 0
      %1379 = vmatprep.subr.bf16.mxu0 0
      %1380 = vmatpush1.bf16.msra.mxu0 0
      %1381 = vmatprep.subr.bf16.mxu0 0
      %1382 = vmatpush1.bf16.msra.mxu0 0
      %1383 = vmatprep.subr.bf16.mxu0 0
      %1384 = vmatpush1.bf16.msra.mxu0 0
      %1385 = vmatprep.subr.bf16.mxu0 0
      %1386 = vmatpush1.bf16.msra.mxu0 0
      %1387 = vmatprep.subr.bf16.mxu0 0
      %1388 = vmatpush1.bf16.msra.mxu0 0
      %1389 = vmatprep.subr.bf16.mxu0 0
      %1390 = vmatpush1.bf16.msra.mxu0 0
      %1391 = vmatprep.subr.bf16.mxu0 0
      %1392 = vmatpush1.bf16.msra.mxu0 0
      %1393 = vmatprep.subr.bf16.mxu0 0
      %1394 = vmatpush1.bf16.msra.mxu0 0
      %1395 = vmatprep.subr.bf16.mxu0 0
      %1396 = vmatpush1.bf16.msra.mxu0 0
      %1397 = vmatprep.mubr.bf16.mxu0 0
      %1398 = vmatmul.mubr.bf16.gmra.mrb[0].mxu0 %v1339
      %v1399 = vpop.f32.mrb[0].mxu0
      %v1400 = vadd.f32 0.0, %v1399
      %v1401 = vpop.f32.mrb[0].mxu0
      %v1402 = vpop.f32.mrb[0].mxu0
      %v1403 = vadd.f32 0.0, %v1402
      %v1404 = vpop.f32.mrb[0].mxu0
      %1405 = vmatprep.mubr.bf16.mxu0 0
      %1406 = vmatmul.mubr.bf16.gmra.mrb[0].mxu0 %v1342
      %v1407 = vpop.f32.mrb[0].mxu0
      %v1408 = vadd.f32 0.0, %v1407
      %v1409 = vpop.f32.mrb[0].mxu0
      %v1410 = vpop.f32.mrb[0].mxu0
      %v1411 = vadd.f32 0.0, %v1410
      %v1412 = vpop.f32.mrb[0].mxu0
      %1413 = vmatprep.mubr.bf16.mxu0 0
      %1414 = vmatmul.mubr.bf16.gmra.mrb[0].mxu0 %v1345
      %v1415 = vpop.f32.mrb[0].mxu0
      %v1416 = vadd.f32 0.0, %v1415
      %v1417 = vpop.f32.mrb[0].mxu0
      %v1418 = vpop.f32.mrb[0].mxu0
      %v1419 = vadd.f32 0.0, %v1418
      %v1420 = vpop.f32.mrb[0].mxu0
      %1421 = vmatprep.mubr.bf16.mxu0 0
      %1422 = vmatmul.mubr.bf16.gmra.mrb[0].mxu0 %v1348
      %v1423 = vpop.f32.mrb[0].mxu0
      %v1424 = vadd.f32 0.0, %v1423
      %v1425 = vpop.f32.mrb[0].mxu0
      %v1426 = vpop.f32.mrb[0].mxu0
      %v1427 = vadd.f32 0.0, %v1426
      %v1428 = vpop.f32.mrb[0].mxu0
      %1429 = vmatprep.mubr.bf16.mxu0 0
      %1430 = vmatmul.mubr.bf16.gmra.mrb[0].mxu0 %v1351
      %v1431 = vpop.f32.mrb[0].mxu0
      %v1432 = vadd.f32 0.0, %v1431
      %v1433 = vpop.f32.mrb[0].mxu0
      %v1434 = vpop.f32.mrb[0].mxu0
      %v1435 = vadd.f32 0.0, %v1434
      %v1436 = vpop.f32.mrb[0].mxu0
      %1437 = vmatprep.mubr.bf16.mxu0 0
      %1438 = vmatmul.mubr.bf16.gmra.mrb[0].mxu0 %v1354
      %v1439 = vpop.f32.mrb[0].mxu0
      %v1440 = vadd.f32 0.0, %v1439
      %v1441 = vpop.f32.mrb[0].mxu0
      %v1442 = vpop.f32.mrb[0].mxu0
      %v1443 = vadd.f32 0.0, %v1442
      %v1444 = vpop.f32.mrb[0].mxu0
      %1445 = vmatprep.mubr.bf16.mxu0 0
      %1446 = vmatmul.mubr.bf16.gmra.mrb[0].mxu0 %v1357
      %v1447 = vpop.f32.mrb[0].mxu0
      %v1448 = vadd.f32 0.0, %v1447
      %v1449 = vpop.f32.mrb[0].mxu0
      %v1450 = vpop.f32.mrb[0].mxu0
      %v1451 = vadd.f32 0.0, %v1450
      %v1452 = vpop.f32.mrb[0].mxu0
      %1453 = vmatprep.mubr.bf16.mxu0 0
      %1454 = vmatmul.mubr.bf16.gmra.mrb[0].mxu0 %v1360
      %v1455 = vpop.f32.mrb[0].mxu0
      %v1456 = vadd.f32 0.0, %v1455
      %v1457 = vpop.f32.mrb[0].mxu0
      %v1458 = vpop.f32.mrb[0].mxu0
      %v1459 = vadd.f32 0.0, %v1458
      %v1460 = vpop.f32.mrb[0].mxu0
      %1461 = vdwg.mxu0
      %v1462 = vadd.f32 %v1312, %v1400
      %v1463 = vadd.f32 %v1313, %v1403
      %v1464 = vadd.f32 %v1314, %v1408
      %v1465 = vadd.f32 %v1315, %v1411
      %v1466 = vadd.f32 %v1316, %v1416
      %v1467 = vadd.f32 %v1317, %v1419
      %v1468 = vadd.f32 %v1318, %v1424
      %v1469 = vadd.f32 %v1319, %v1427
      %v1470 = vadd.f32 %v1320, %v1432
      %v1471 = vadd.f32 %v1321, %v1435
      %v1472 = vadd.f32 %v1322, %v1440
      %v1473 = vadd.f32 %v1323, %v1443
      %v1474 = vadd.f32 %v1324, %v1448
      %v1475 = vadd.f32 %v1325, %v1451
      %v1476 = vadd.f32 %v1326, %v1456
      %v1477 = vadd.f32 %v1327, %v1459
      %v1478 = vld [vmem:[%s346 + $0x10] sm:$0xf]
      %v1479 = vld [vmem:[%s346 + $0x14] sm:$0xf]
      %v1480 = vld [vmem:[%s346 + $0x18] sm:$0xf]
      %v1481 = vld [vmem:[%s346 + $0x1c] sm:$0xf]
      %v1482 = vld [vmem:[%s346 + $0x20] sm:$0xf]
      %v1483 = vld [vmem:[%s346 + $0x24] sm:$0xf]
      %v1484 = vld [vmem:[%s346 + $0x28] sm:$0xf]
      %v1485 = vld [vmem:[%s346 + $0x2c] sm:$0xf]
      %v1486 = vld [vmem:[%s346 + $0x30] sm:$0xf]
      %v1487 = vld [vmem:[%s346 + $0x34] sm:$0xf]
      %v1488 = vld [vmem:[%s346 + $0x38] sm:$0xf]
      %v1489 = vld [vmem:[%s346 + $0x3c] sm:$0xf]
      %v1490 = vld [vmem:[%s346 + $0x40] sm:$0xf]
      %v1491 = vld [vmem:[%s346 + $0x44] sm:$0xf]
      %v1492 = vld [vmem:[%s346 + $0x48] sm:$0xf]
      %v1493 = vld [vmem:[%s346 + $0x4c] sm:$0xf]
      %v1494 = vld [vmem:[%s346 + $0x50] sm:$0x1]
      %s1495 = scalar_lea.vmem %s3, 56
      %v1496 = vld [vmem:[%s1495] sm:$0xf]
      %v1514 = vunpack.c.l.b16 %v1478
      %v1515 = vunpack.c.l.b16 %v1479
      %v1516 = vunpack.c.l.b16 %v1480
      %v1517 = vunpack.c.l.b16 %v1481
      %v1518 = vunpack.c.l.b16 %v1482
      %v1519 = vunpack.c.l.b16 %v1483
      %v1520 = vunpack.c.l.b16 %v1484
      %v1521 = vunpack.c.l.b16 %v1485
      %v1522 = vunpack.c.l.b16 %v1486
      %v1523 = vunpack.c.l.b16 %v1487
      %v1524 = vunpack.c.l.b16 %v1488
      %v1525 = vunpack.c.l.b16 %v1489
      %v1526 = vunpack.c.l.b16 %v1490
      %v1527 = vunpack.c.l.b16 %v1491
      %v1528 = vunpack.c.l.b16 %v1492
      %v1529 = vunpack.c.l.b16 %v1493
      %v1530 = vunpack.c.l.b16 %v1494
      %v1531 = vpack.c.b16 %v1515, %v1514
      %v1532 = vpack.c.b16 %v1517, %v1516
      %v1533 = vpack.c.b16 %v1519, %v1518
      %v1534 = vpack.c.b16 %v1521, %v1520
      %v1535 = vpack.c.b16 %v1523, %v1522
      %v1536 = vpack.c.b16 %v1525, %v1524
      %v1537 = vpack.c.b16 %v1527, %v1526
      %v1538 = vpack.c.b16 %v1529, %v1528
      %v1539 = vpack.c.b16 %v1530, %v1530
      %v1541 = vshrl.u32 %v1531, 16
      %v1543 = vshll.u32 %v1531, 16
      %v1545 = vrot.slane %v1543, 1
      %v1546 = vor.u32 %v1541, %v1545
      %v1548 = vshll.u32 %v1532, 16
      %v1550 = vrot.slane %v1548, 1
      %v1551 = vsel %vm837, %v1546, %v1550
      %v1552 = vshrl.u32 %v1532, 16
      %v1554 = vor.u32 %v1552, %v1550
      %v1556 = vshll.u32 %v1533, 16
      %v1558 = vrot.slane %v1556, 1
      %v1559 = vsel %vm837, %v1554, %v1558
      %v1560 = vshrl.u32 %v1533, 16
      %v1562 = vor.u32 %v1560, %v1558
      %v1564 = vshll.u32 %v1534, 16
      %v1566 = vrot.slane %v1564, 1
      %v1567 = vsel %vm837, %v1562, %v1566
      %v1568 = vshrl.u32 %v1534, 16
      %v1570 = vor.u32 %v1568, %v1566
      %v1572 = vshll.u32 %v1535, 16
      %v1574 = vrot.slane %v1572, 1
      %v1575 = vsel %vm837, %v1570, %v1574
      %v1576 = vshrl.u32 %v1535, 16
      %v1578 = vor.u32 %v1576, %v1574
      %v1580 = vshll.u32 %v1536, 16
      %v1582 = vrot.slane %v1580, 1
      %v1583 = vsel %vm837, %v1578, %v1582
      %v1584 = vshrl.u32 %v1536, 16
      %v1586 = vor.u32 %v1584, %v1582
      %v1588 = vshll.u32 %v1537, 16
      %v1590 = vrot.slane %v1588, 1
      %v1591 = vsel %vm837, %v1586, %v1590
      %v1592 = vshrl.u32 %v1537, 16
      %v1594 = vor.u32 %v1592, %v1590
      %v1596 = vshll.u32 %v1538, 16
      %v1598 = vrot.slane %v1596, 1
      %v1599 = vsel %vm837, %v1594, %v1598
      %v1600 = vshrl.u32 %v1538, 16
      %v1602 = vor.u32 %v1600, %v1598
      %v1604 = vshll.u32 %v1539, 16
      %v1606 = vrot.slane %v1604, 1
      %v1607 = vsel %vm837, %v1602, %v1606
      %v1609 = vsel %vm433, %v1551, 0
      %v1612 = vsel %vm433, %v1559, 0
      %v1615 = vsel %vm433, %v1567, 0
      %v1618 = vsel %vm433, %v1575, 0
      %v1621 = vsel %vm433, %v1583, 0
      %v1624 = vsel %vm433, %v1591, 0
      %v1627 = vsel %vm433, %v1599, 0
      %v1630 = vsel %vm433, %v1607, 0
      %v1633 = vsel %vm458, %v1496, 0
      %1635 = vmatprep.subr.bf16.mxu0 0
      %1636 = vmatpush1.bf16.msra.mxu0 %v1633
      %1637 = vmatprep.subr.bf16.mxu0 0
      %1638 = vmatpush1.bf16.msra.mxu0 0
      %1639 = vmatprep.subr.bf16.mxu0 0
      %1640 = vmatpush1.bf16.msra.mxu0 0
      %1641 = vmatprep.subr.bf16.mxu0 0
      %1642 = vmatpush1.bf16.msra.mxu0 0
      %1643 = vmatprep.subr.bf16.mxu0 0
      %1644 = vmatpush1.bf16.msra.mxu0 0
      %1645 = vmatprep.subr.bf16.mxu0 0
      %1646 = vmatpush1.bf16.msra.mxu0 0
      %1647 = vmatprep.subr.bf16.mxu0 0
      %1648 = vmatpush1.bf16.msra.mxu0 0
      %1649 = vmatprep.subr.bf16.mxu0 0
      %1650 = vmatpush1.bf16.msra.mxu0 0
      %1651 = vmatprep.subr.bf16.mxu0 0
      %1652 = vmatpush1.bf16.msra.mxu0 0
      %1653 = vmatprep.subr.bf16.mxu0 0
      %1654 = vmatpush1.bf16.msra.mxu0 0
      %1655 = vmatprep.subr.bf16.mxu0 0
      %1656 = vmatpush1.bf16.msra.mxu0 0
      %1657 = vmatprep.subr.bf16.mxu0 0
      %1658 = vmatpush1.bf16.msra.mxu0 0
      %1659 = vmatprep.subr.bf16.mxu0 0
      %1660 = vmatpush1.bf16.msra.mxu0 0
      %1661 = vmatprep.subr.bf16.mxu0 0
      %1662 = vmatpush1.bf16.msra.mxu0 0
      %1663 = vmatprep.subr.bf16.mxu0 0
      %1664 = vmatpush1.bf16.msra.mxu0 0
      %1665 = vmatprep.subr.bf16.mxu0 0
      %1666 = vmatpush1.bf16.msra.mxu0 0
      %1667 = vmatprep.mubr.bf16.mxu0 0
      %1668 = vmatmul.mubr.bf16.gmra.mrb[0].mxu0 %v1609
      %v1669 = vpop.f32.mrb[0].mxu0
      %v1670 = vadd.f32 0.0, %v1669
      %v1671 = vpop.f32.mrb[0].mxu0
      %v1672 = vpop.f32.mrb[0].mxu0
      %v1673 = vadd.f32 0.0, %v1672
      %v1674 = vpop.f32.mrb[0].mxu0
      %1675 = vmatprep.mubr.bf16.mxu0 0
      %1676 = vmatmul.mubr.bf16.gmra.mrb[0].mxu0 %v1612
      %v1677 = vpop.f32.mrb[0].mxu0
      %v1678 = vadd.f32 0.0, %v1677
      %v1679 = vpop.f32.mrb[0].mxu0
      %v1680 = vpop.f32.mrb[0].mxu0
      %v1681 = vadd.f32 0.0, %v1680
      %v1682 = vpop.f32.mrb[0].mxu0
      %1683 = vmatprep.mubr.bf16.mxu0 0
      %1684 = vmatmul.mubr.bf16.gmra.mrb[0].mxu0 %v1615
      %v1685 = vpop.f32.mrb[0].mxu0
      %v1686 = vadd.f32 0.0, %v1685
      %v1687 = vpop.f32.mrb[0].mxu0
      %v1688 = vpop.f32.mrb[0].mxu0
      %v1689 = vadd.f32 0.0, %v1688
      %v1690 = vpop.f32.mrb[0].mxu0
      %1691 = vmatprep.mubr.bf16.mxu0 0
      %1692 = vmatmul.mubr.bf16.gmra.mrb[0].mxu0 %v1618
      %v1693 = vpop.f32.mrb[0].mxu0
      %v1694 = vadd.f32 0.0, %v1693
      %v1695 = vpop.f32.mrb[0].mxu0
      %v1696 = vpop.f32.mrb[0].mxu0
      %v1697 = vadd.f32 0.0, %v1696
      %v1698 = vpop.f32.mrb[0].mxu0
      %1699 = vmatprep.mubr.bf16.mxu0 0
      %1700 = vmatmul.mubr.bf16.gmra.mrb[0].mxu0 %v1621
      %v1701 = vpop.f32.mrb[0].mxu0
      %v1702 = vadd.f32 0.0, %v1701
      %v1703 = vpop.f32.mrb[0].mxu0
      %v1704 = vpop.f32.mrb[0].mxu0
      %v1705 = vadd.f32 0.0, %v1704
      %v1706 = vpop.f32.mrb[0].mxu0
      %1707 = vmatprep.mubr.bf16.mxu0 0
      %1708 = vmatmul.mubr.bf16.gmra.mrb[0].mxu0 %v1624
      %v1709 = vpop.f32.mrb[0].mxu0
      %v1710 = vadd.f32 0.0, %v1709
      %v1711 = vpop.f32.mrb[0].mxu0
      %v1712 = vpop.f32.mrb[0].mxu0
      %v1713 = vadd.f32 0.0, %v1712
      %v1714 = vpop.f32.mrb[0].mxu0
      %1715 = vmatprep.mubr.bf16.mxu0 0
      %1716 = vmatmul.mubr.bf16.gmra.mrb[0].mxu0 %v1627
      %v1717 = vpop.f32.mrb[0].mxu0
      %v1718 = vadd.f32 0.0, %v1717
      %v1719 = vpop.f32.mrb[0].mxu0
      %v1720 = vpop.f32.mrb[0].mxu0
      %v1721 = vadd.f32 0.0, %v1720
      %v1722 = vpop.f32.mrb[0].mxu0
      %1723 = vmatprep.mubr.bf16.mxu0 0
      %1724 = vmatmul.mubr.bf16.gmra.mrb[0].mxu0 %v1630
      %v1725 = vpop.f32.mrb[0].mxu0
      %v1726 = vadd.f32 0.0, %v1725
      %v1727 = vpop.f32.mrb[0].mxu0
      %v1728 = vpop.f32.mrb[0].mxu0
      %v1729 = vadd.f32 0.0, %v1728
      %v1730 = vpop.f32.mrb[0].mxu0
      %1731 = vdwg.mxu0
      %v1732 = vadd.f32 %v1462, %v1670
      %v1733 = vadd.f32 %v1463, %v1673
      %v1734 = vadd.f32 %v1464, %v1678
      %v1735 = vadd.f32 %v1465, %v1681
      %v1736 = vadd.f32 %v1466, %v1686
      %v1737 = vadd.f32 %v1467, %v1689
      %v1738 = vadd.f32 %v1468, %v1694
      %v1739 = vadd.f32 %v1469, %v1697
      %v1740 = vadd.f32 %v1470, %v1702
      %v1741 = vadd.f32 %v1471, %v1705
      %v1742 = vadd.f32 %v1472, %v1710
      %v1743 = vadd.f32 %v1473, %v1713
      %v1744 = vadd.f32 %v1474, %v1718
      %v1745 = vadd.f32 %v1475, %v1721
      %v1746 = vadd.f32 %v1476, %v1726
      %v1747 = vadd.f32 %v1477, %v1729
      %v1748 = vld [vmem:[%s346 + $0x14] sm:$0x8]
      %v1749 = vld [vmem:[%s346 + $0x18] sm:$0xf]
      %v1750 = vld [vmem:[%s346 + $0x1c] sm:$0xf]
      %v1751 = vld [vmem:[%s346 + $0x20] sm:$0xf]
      %v1752 = vld [vmem:[%s346 + $0x24] sm:$0xf]
      %v1753 = vld [vmem:[%s346 + $0x28] sm:$0xf]
      %v1754 = vld [vmem:[%s346 + $0x2c] sm:$0xf]
      %v1755 = vld [vmem:[%s346 + $0x30] sm:$0xf]
      %v1756 = vld [vmem:[%s346 + $0x34] sm:$0xf]
      %v1757 = vld [vmem:[%s346 + $0x38] sm:$0xf]
      %v1758 = vld [vmem:[%s346 + $0x3c] sm:$0xf]
      %v1759 = vld [vmem:[%s346 + $0x40] sm:$0xf]
      %v1760 = vld [vmem:[%s346 + $0x44] sm:$0xf]
      %v1761 = vld [vmem:[%s346 + $0x48] sm:$0xf]
      %v1762 = vld [vmem:[%s346 + $0x4c] sm:$0xf]
      %v1763 = vld [vmem:[%s346 + $0x50] sm:$0xf]
      %v1764 = vld [vmem:[%s346 + $0x54] sm:$0xf]
      %s1765 = scalar_lea.vmem %s3, 60
      %v1766 = vld [vmem:[%s1765] sm:$0xf]
      %v1784 = vunpack.c.l.b16 %v1748
      %v1785 = vunpack.c.l.b16 %v1749
      %v1786 = vunpack.c.l.b16 %v1750
      %v1787 = vunpack.c.l.b16 %v1751
      %v1788 = vunpack.c.l.b16 %v1752
      %v1789 = vunpack.c.l.b16 %v1753
      %v1790 = vunpack.c.l.b16 %v1754
      %v1791 = vunpack.c.l.b16 %v1755
      %v1792 = vunpack.c.l.b16 %v1756
      %v1793 = vunpack.c.l.b16 %v1757
      %v1794 = vunpack.c.l.b16 %v1758
      %v1795 = vunpack.c.l.b16 %v1759
      %v1796 = vunpack.c.l.b16 %v1760
      %v1797 = vunpack.c.l.b16 %v1761
      %v1798 = vunpack.c.l.b16 %v1762
      %v1799 = vunpack.c.l.b16 %v1763
      %v1800 = vunpack.c.l.b16 %v1764
      %v1801 = vpack.c.b16 %v1785, %v1784
      %v1802 = vpack.c.b16 %v1787, %v1786
      %v1803 = vpack.c.b16 %v1789, %v1788
      %v1804 = vpack.c.b16 %v1791, %v1790
      %v1805 = vpack.c.b16 %v1793, %v1792
      %v1806 = vpack.c.b16 %v1795, %v1794
      %v1807 = vpack.c.b16 %v1797, %v1796
      %v1808 = vpack.c.b16 %v1799, %v1798
      %v1809 = vpack.c.b16 %v1800, %v1800
      %v1811 = vshrl.u32 %v1801, 16
      %v1813 = vrot.slane %v1811, 3
      %v1814 = vshll.u32 %v1801, 16
      %v1816 = vrot.slane %v1814, 4
      %v1817 = vor.u32 %v1813, %v1816
      %v1819 = vshrl.u32 %v1802, 16
      %v1821 = vrot.slane %v1819, 3
      %v1822 = vshll.u32 %v1802, 16
      %v1824 = vrot.slane %v1822, 4
      %v1825 = vor.u32 %v1821, %v1824
      %v1826 = vsel %vm570, %v1817, %v1825
      %v1828 = vshrl.u32 %v1803, 16
      %v1830 = vrot.slane %v1828, 3
      %v1831 = vshll.u32 %v1803, 16
      %v1833 = vrot.slane %v1831, 4
      %v1834 = vor.u32 %v1830, %v1833
      %v1835 = vsel %vm570, %v1825, %v1834
      %v1837 = vshrl.u32 %v1804, 16
      %v1839 = vrot.slane %v1837, 3
      %v1840 = vshll.u32 %v1804, 16
      %v1842 = vrot.slane %v1840, 4
      %v1843 = vor.u32 %v1839, %v1842
      %v1844 = vsel %vm570, %v1834, %v1843
      %v1846 = vshrl.u32 %v1805, 16
      %v1848 = vrot.slane %v1846, 3
      %v1849 = vshll.u32 %v1805, 16
      %v1851 = vrot.slane %v1849, 4
      %v1852 = vor.u32 %v1848, %v1851
      %v1853 = vsel %vm570, %v1843, %v1852
      %v1855 = vshrl.u32 %v1806, 16
      %v1857 = vrot.slane %v1855, 3
      %v1858 = vshll.u32 %v1806, 16
      %v1860 = vrot.slane %v1858, 4
      %v1861 = vor.u32 %v1857, %v1860
      %v1862 = vsel %vm570, %v1852, %v1861
      %v1864 = vshrl.u32 %v1807, 16
      %v1866 = vrot.slane %v1864, 3
      %v1867 = vshll.u32 %v1807, 16
      %v1869 = vrot.slane %v1867, 4
      %v1870 = vor.u32 %v1866, %v1869
      %v1871 = vsel %vm570, %v1861, %v1870
      %v1873 = vshrl.u32 %v1808, 16
      %v1875 = vrot.slane %v1873, 3
      %v1876 = vshll.u32 %v1808, 16
      %v1878 = vrot.slane %v1876, 4
      %v1879 = vor.u32 %v1875, %v1878
      %v1880 = vsel %vm570, %v1870, %v1879
      %v1882 = vshrl.u32 %v1809, 16
      %v1884 = vrot.slane %v1882, 3
      %v1885 = vshll.u32 %v1809, 16
      %v1887 = vrot.slane %v1885, 4
      %v1888 = vor.u32 %v1884, %v1887
      %v1889 = vsel %vm570, %v1879, %v1888
      %v1891 = vsel %vm433, %v1826, 0
      %v1894 = vsel %vm433, %v1835, 0
      %v1897 = vsel %vm433, %v1844, 0
      %v1900 = vsel %vm433, %v1853, 0
      %v1903 = vsel %vm433, %v1862, 0
      %v1906 = vsel %vm433, %v1871, 0
      %v1909 = vsel %vm433, %v1880, 0
      %v1912 = vsel %vm433, %v1889, 0
      %v1915 = vsel %vm458, %v1766, 0
      %1917 = vmatprep.subr.bf16.mxu0 0
      %1918 = vmatpush1.bf16.msra.mxu0 %v1915
      %1919 = vmatprep.subr.bf16.mxu0 0
      %1920 = vmatpush1.bf16.msra.mxu0 0
      %1921 = vmatprep.subr.bf16.mxu0 0
      %1922 = vmatpush1.bf16.msra.mxu0 0
      %1923 = vmatprep.subr.bf16.mxu0 0
      %1924 = vmatpush1.bf16.msra.mxu0 0
      %1925 = vmatprep.subr.bf16.mxu0 0
      %1926 = vmatpush1.bf16.msra.mxu0 0
      %1927 = vmatprep.subr.bf16.mxu0 0
      %1928 = vmatpush1.bf16.msra.mxu0 0
      %1929 = vmatprep.subr.bf16.mxu0 0
      %1930 = vmatpush1.bf16.msra.mxu0 0
      %1931 = vmatprep.subr.bf16.mxu0 0
      %1932 = vmatpush1.bf16.msra.mxu0 0
      %1933 = vmatprep.subr.bf16.mxu0 0
      %1934 = vmatpush1.bf16.msra.mxu0 0
      %1935 = vmatprep.subr.bf16.mxu0 0
      %1936 = vmatpush1.bf16.msra.mxu0 0
      %1937 = vmatprep.subr.bf16.mxu0 0
      %1938 = vmatpush1.bf16.msra.mxu0 0
      %1939 = vmatprep.subr.bf16.mxu0 0
      %1940 = vmatpush1.bf16.msra.mxu0 0
      %1941 = vmatprep.subr.bf16.mxu0 0
      %1942 = vmatpush1.bf16.msra.mxu0 0
      %1943 = vmatprep.subr.bf16.mxu0 0
      %1944 = vmatpush1.bf16.msra.mxu0 0
      %1945 = vmatprep.subr.bf16.mxu0 0
      %1946 = vmatpush1.bf16.msra.mxu0 0
      %1947 = vmatprep.subr.bf16.mxu0 0
      %1948 = vmatpush1.bf16.msra.mxu0 0
      %1949 = vmatprep.mubr.bf16.mxu0 0
      %1950 = vmatmul.mubr.bf16.gmra.mrb[0].mxu0 %v1891
      %v1951 = vpop.f32.mrb[0].mxu0
      %v1952 = vadd.f32 0.0, %v1951
      %v1953 = vpop.f32.mrb[0].mxu0
      %v1954 = vpop.f32.mrb[0].mxu0
      %v1955 = vadd.f32 0.0, %v1954
      %v1956 = vpop.f32.mrb[0].mxu0
      %1957 = vmatprep.mubr.bf16.mxu0 0
      %1958 = vmatmul.mubr.bf16.gmra.mrb[0].mxu0 %v1894
      %v1959 = vpop.f32.mrb[0].mxu0
      %v1960 = vadd.f32 0.0, %v1959
      %v1961 = vpop.f32.mrb[0].mxu0
      %v1962 = vpop.f32.mrb[0].mxu0
      %v1963 = vadd.f32 0.0, %v1962
      %v1964 = vpop.f32.mrb[0].mxu0
      %1965 = vmatprep.mubr.bf16.mxu0 0
      %1966 = vmatmul.mubr.bf16.gmra.mrb[0].mxu0 %v1897
      %v1967 = vpop.f32.mrb[0].mxu0
      %v1968 = vadd.f32 0.0, %v1967
      %v1969 = vpop.f32.mrb[0].mxu0
      %v1970 = vpop.f32.mrb[0].mxu0
      %v1971 = vadd.f32 0.0, %v1970
      %v1972 = vpop.f32.mrb[0].mxu0
      %1973 = vmatprep.mubr.bf16.mxu0 0
      %1974 = vmatmul.mubr.bf16.gmra.mrb[0].mxu0 %v1900
      %v1975 = vpop.f32.mrb[0].mxu0
      %v1976 = vadd.f32 0.0, %v1975
      %v1977 = vpop.f32.mrb[0].mxu0
      %v1978 = vpop.f32.mrb[0].mxu0
      %v1979 = vadd.f32 0.0, %v1978
      %v1980 = vpop.f32.mrb[0].mxu0
      %1981 = vmatprep.mubr.bf16.mxu0 0
      %1982 = vmatmul.mubr.bf16.gmra.mrb[0].mxu0 %v1903
      %v1983 = vpop.f32.mrb[0].mxu0
      %v1984 = vadd.f32 0.0, %v1983
      %v1985 = vpop.f32.mrb[0].mxu0
      %v1986 = vpop.f32.mrb[0].mxu0
      %v1987 = vadd.f32 0.0, %v1986
      %v1988 = vpop.f32.mrb[0].mxu0
      %1989 = vmatprep.mubr.bf16.mxu0 0
      %1990 = vmatmul.mubr.bf16.gmra.mrb[0].mxu0 %v1906
      %v1991 = vpop.f32.mrb[0].mxu0
      %v1992 = vadd.f32 0.0, %v1991
      %v1993 = vpop.f32.mrb[0].mxu0
      %v1994 = vpop.f32.mrb[0].mxu0
      %v1995 = vadd.f32 0.0, %v1994
      %v1996 = vpop.f32.mrb[0].mxu0
      %1997 = vmatprep.mubr.bf16.mxu0 0
      %1998 = vmatmul.mubr.bf16.gmra.mrb[0].mxu0 %v1909
      %v1999 = vpop.f32.mrb[0].mxu0
      %v2000 = vadd.f32 0.0, %v1999
      %v2001 = vpop.f32.mrb[0].mxu0
      %v2002 = vpop.f32.mrb[0].mxu0
      %v2003 = vadd.f32 0.0, %v2002
      %v2004 = vpop.f32.mrb[0].mxu0
      %2005 = vmatprep.mubr.bf16.mxu0 0
      %2006 = vmatmul.mubr.bf16.gmra.mrb[0].mxu0 %v1912
      %v2007 = vpop.f32.mrb[0].mxu0
      %v2008 = vadd.f32 0.0, %v2007
      %v2009 = vpop.f32.mrb[0].mxu0
      %v2010 = vpop.f32.mrb[0].mxu0
      %v2011 = vadd.f32 0.0, %v2010
      %v2012 = vpop.f32.mrb[0].mxu0
      %2013 = vdwg.mxu0
      %v2014 = vadd.f32 %v1732, %v1952
      %v2015 = vadd.f32 %v1733, %v1955
      %v2016 = vadd.f32 %v1734, %v1960
      %v2017 = vadd.f32 %v1735, %v1963
      %v2018 = vadd.f32 %v1736, %v1968
      %v2019 = vadd.f32 %v1737, %v1971
      %v2020 = vadd.f32 %v1738, %v1976
      %v2021 = vadd.f32 %v1739, %v1979
      %v2022 = vadd.f32 %v1740, %v1984
      %v2023 = vadd.f32 %v1741, %v1987
      %v2024 = vadd.f32 %v1742, %v1992
      %v2025 = vadd.f32 %v1743, %v1995
      %v2026 = vadd.f32 %v1744, %v2000
      %v2027 = vadd.f32 %v1745, %v2003
      %v2028 = vadd.f32 %v1746, %v2008
      %v2029 = vadd.f32 %v1747, %v2011
      %s2030 = scalar_lea.vmem %s3, 64
      %v2031 = vld [vmem:[%s2030] sm:$0xf]
      %v2032 = vpack.c.b16 %v1786, %v1785
      %v2033 = vpack.c.b16 %v1788, %v1787
      %v2034 = vpack.c.b16 %v1790, %v1789
      %v2035 = vpack.c.b16 %v1792, %v1791
      %v2036 = vpack.c.b16 %v1794, %v1793
      %v2037 = vpack.c.b16 %v1796, %v1795
      %v2038 = vpack.c.b16 %v1798, %v1797
      %v2039 = vpack.c.b16 %v1800, %v1799
      %v2041 = vsel %vm433, %v2032, 0
      %v2044 = vsel %vm433, %v2033, 0
      %v2047 = vsel %vm433, %v2034, 0
      %v2050 = vsel %vm433, %v2035, 0
      %v2053 = vsel %vm433, %v2036, 0
      %v2056 = vsel %vm433, %v2037, 0
      %v2059 = vsel %vm433, %v2038, 0
      %v2062 = vsel %vm433, %v2039, 0
      %v2065 = vsel %vm458, %v2031, 0
      %2067 = vmatprep.subr.bf16.mxu0 0
      %2068 = vmatpush1.bf16.msra.mxu0 %v2065
      %2069 = vmatprep.subr.bf16.mxu0 0
      %2070 = vmatpush1.bf16.msra.mxu0 0
      %2071 = vmatprep.subr.bf16.mxu0 0
      %2072 = vmatpush1.bf16.msra.mxu0 0
      %2073 = vmatprep.subr.bf16.mxu0 0
      %2074 = vmatpush1.bf16.msra.mxu0 0
      %2075 = vmatprep.subr.bf16.mxu0 0
      %2076 = vmatpush1.bf16.msra.mxu0 0
      %2077 = vmatprep.subr.bf16.mxu0 0
      %2078 = vmatpush1.bf16.msra.mxu0 0
      %2079 = vmatprep.subr.bf16.mxu0 0
      %2080 = vmatpush1.bf16.msra.mxu0 0
      %2081 = vmatprep.subr.bf16.mxu0 0
      %2082 = vmatpush1.bf16.msra.mxu0 0
      %2083 = vmatprep.subr.bf16.mxu0 0
      %2084 = vmatpush1.bf16.msra.mxu0 0
      %2085 = vmatprep.subr.bf16.mxu0 0
      %2086 = vmatpush1.bf16.msra.mxu0 0
      %2087 = vmatprep.subr.bf16.mxu0 0
      %2088 = vmatpush1.bf16.msra.mxu0 0
      %2089 = vmatprep.subr.bf16.mxu0 0
      %2090 = vmatpush1.bf16.msra.mxu0 0
      %2091 = vmatprep.subr.bf16.mxu0 0
      %2092 = vmatpush1.bf16.msra.mxu0 0
      %2093 = vmatprep.subr.bf16.mxu0 0
      %2094 = vmatpush1.bf16.msra.mxu0 0
      %2095 = vmatprep.subr.bf16.mxu0 0
      %2096 = vmatpush1.bf16.msra.mxu0 0
      %2097 = vmatprep.subr.bf16.mxu0 0
      %2098 = vmatpush1.bf16.msra.mxu0 0
      %2099 = vmatprep.mubr.bf16.mxu0 0
      %2100 = vmatmul.mubr.bf16.gmra.mrb[0].mxu0 %v2041
      %v2101 = vpop.f32.mrb[0].mxu0
      %v2102 = vadd.f32 0.0, %v2101
      %v2103 = vpop.f32.mrb[0].mxu0
      %v2104 = vpop.f32.mrb[0].mxu0
      %v2105 = vadd.f32 0.0, %v2104
      %v2106 = vpop.f32.mrb[0].mxu0
      %2107 = vmatprep.mubr.bf16.mxu0 0
      %2108 = vmatmul.mubr.bf16.gmra.mrb[0].mxu0 %v2044
      %v2109 = vpop.f32.mrb[0].mxu0
      %v2110 = vadd.f32 0.0, %v2109
      %v2111 = vpop.f32.mrb[0].mxu0
      %v2112 = vpop.f32.mrb[0].mxu0
      %v2113 = vadd.f32 0.0, %v2112
      %v2114 = vpop.f32.mrb[0].mxu0
      %2115 = vmatprep.mubr.bf16.mxu0 0
      %2116 = vmatmul.mubr.bf16.gmra.mrb[0].mxu0 %v2047
      %v2117 = vpop.f32.mrb[0].mxu0
      %v2118 = vadd.f32 0.0, %v2117
      %v2119 = vpop.f32.mrb[0].mxu0
      %v2120 = vpop.f32.mrb[0].mxu0
      %v2121 = vadd.f32 0.0, %v2120
      %v2122 = vpop.f32.mrb[0].mxu0
      %2123 = vmatprep.mubr.bf16.mxu0 0
      %2124 = vmatmul.mubr.bf16.gmra.mrb[0].mxu0 %v2050
      %v2125 = vpop.f32.mrb[0].mxu0
      %v2126 = vadd.f32 0.0, %v2125
      %v2127 = vpop.f32.mrb[0].mxu0
      %v2128 = vpop.f32.mrb[0].mxu0
      %v2129 = vadd.f32 0.0, %v2128
      %v2130 = vpop.f32.mrb[0].mxu0
      %2131 = vmatprep.mubr.bf16.mxu0 0
      %2132 = vmatmul.mubr.bf16.gmra.mrb[0].mxu0 %v2053
      %v2133 = vpop.f32.mrb[0].mxu0
      %v2134 = vadd.f32 0.0, %v2133
      %v2135 = vpop.f32.mrb[0].mxu0
      %v2136 = vpop.f32.mrb[0].mxu0
      %v2137 = vadd.f32 0.0, %v2136
      %v2138 = vpop.f32.mrb[0].mxu0
      %2139 = vmatprep.mubr.bf16.mxu0 0
      %2140 = vmatmul.mubr.bf16.gmra.mrb[0].mxu0 %v2056
      %v2141 = vpop.f32.mrb[0].mxu0
      %v2142 = vadd.f32 0.0, %v2141
      %v2143 = vpop.f32.mrb[0].mxu0
      %v2144 = vpop.f32.mrb[0].mxu0
      %v2145 = vadd.f32 0.0, %v2144
      %v2146 = vpop.f32.mrb[0].mxu0
      %2147 = vmatprep.mubr.bf16.mxu0 0
      %2148 = vmatmul.mubr.bf16.gmra.mrb[0].mxu0 %v2059
      %v2149 = vpop.f32.mrb[0].mxu0
      %v2150 = vadd.f32 0.0, %v2149
      %v2151 = vpop.f32.mrb[0].mxu0
      %v2152 = vpop.f32.mrb[0].mxu0
      %v2153 = vadd.f32 0.0, %v2152
      %v2154 = vpop.f32.mrb[0].mxu0
      %2155 = vmatprep.mubr.bf16.mxu0 0
      %2156 = vmatmul.mubr.bf16.gmra.mrb[0].mxu0 %v2062
      %v2157 = vpop.f32.mrb[0].mxu0
      %v2158 = vadd.f32 0.0, %v2157
      %v2159 = vpop.f32.mrb[0].mxu0
      %v2160 = vpop.f32.mrb[0].mxu0
      %v2161 = vadd.f32 0.0, %v2160
      %v2162 = vpop.f32.mrb[0].mxu0
      %2163 = vdwg.mxu0
      %v2164 = vadd.f32 %v2014, %v2102
      %v2165 = vadd.f32 %v2015, %v2105
      %v2166 = vadd.f32 %v2016, %v2110
      %v2167 = vadd.f32 %v2017, %v2113
      %v2168 = vadd.f32 %v2018, %v2118
      %v2169 = vadd.f32 %v2019, %v2121
      %v2170 = vadd.f32 %v2020, %v2126
      %v2171 = vadd.f32 %v2021, %v2129
      %v2172 = vadd.f32 %v2022, %v2134
      %v2173 = vadd.f32 %v2023, %v2137
      %v2174 = vadd.f32 %v2024, %v2142
      %v2175 = vadd.f32 %v2025, %v2145
      %v2176 = vadd.f32 %v2026, %v2150
      %v2177 = vadd.f32 %v2027, %v2153
      %v2178 = vadd.f32 %v2028, %v2158
      %v2179 = vadd.f32 %v2029, %v2161
      %v2180 = vld [vmem:[%s346 + $0x18] sm:$0xf]
      %v2181 = vld [vmem:[%s346 + $0x1c] sm:$0xf]
      %v2182 = vld [vmem:[%s346 + $0x20] sm:$0xf]
      %v2183 = vld [vmem:[%s346 + $0x24] sm:$0xf]
      %v2184 = vld [vmem:[%s346 + $0x28] sm:$0xf]
      %v2185 = vld [vmem:[%s346 + $0x2c] sm:$0xf]
      %v2186 = vld [vmem:[%s346 + $0x30] sm:$0xf]
      %v2187 = vld [vmem:[%s346 + $0x34] sm:$0xf]
      %v2188 = vld [vmem:[%s346 + $0x38] sm:$0xf]
      %v2189 = vld [vmem:[%s346 + $0x3c] sm:$0xf]
      %v2190 = vld [vmem:[%s346 + $0x40] sm:$0xf]
      %v2191 = vld [vmem:[%s346 + $0x44] sm:$0xf]
      %v2192 = vld [vmem:[%s346 + $0x48] sm:$0xf]
      %v2193 = vld [vmem:[%s346 + $0x4c] sm:$0xf]
      %v2194 = vld [vmem:[%s346 + $0x50] sm:$0xf]
      %v2195 = vld [vmem:[%s346 + $0x54] sm:$0xf]
      %v2196 = vld [vmem:[%s346 + $0x58] sm:$0x1]
      %s2197 = scalar_lea.vmem %s3, 68
      %v2198 = vld [vmem:[%s2197] sm:$0xf]
      %v2216 = vunpack.c.l.b16 %v2180
      %v2217 = vunpack.c.l.b16 %v2181
      %v2218 = vunpack.c.l.b16 %v2182
      %v2219 = vunpack.c.l.b16 %v2183
      %v2220 = vunpack.c.l.b16 %v2184
      %v2221 = vunpack.c.l.b16 %v2185
      %v2222 = vunpack.c.l.b16 %v2186
      %v2223 = vunpack.c.l.b16 %v2187
      %v2224 = vunpack.c.l.b16 %v2188
      %v2225 = vunpack.c.l.b16 %v2189
      %v2226 = vunpack.c.l.b16 %v2190
      %v2227 = vunpack.c.l.b16 %v2191
      %v2228 = vunpack.c.l.b16 %v2192
      %v2229 = vunpack.c.l.b16 %v2193
      %v2230 = vunpack.c.l.b16 %v2194
      %v2231 = vunpack.c.l.b16 %v2195
      %v2232 = vunpack.c.l.b16 %v2196
      %v2233 = vpack.c.b16 %v2217, %v2216
      %v2234 = vpack.c.b16 %v2219, %v2218
      %v2235 = vpack.c.b16 %v2221, %v2220
      %v2236 = vpack.c.b16 %v2223, %v2222
      %v2237 = vpack.c.b16 %v2225, %v2224
      %v2238 = vpack.c.b16 %v2227, %v2226
      %v2239 = vpack.c.b16 %v2229, %v2228
      %v2240 = vpack.c.b16 %v2231, %v2230
      %v2241 = vpack.c.b16 %v2232, %v2232
      %v2243 = vshrl.u32 %v2233, 16
      %v2245 = vshll.u32 %v2233, 16
      %v2247 = vrot.slane %v2245, 1
      %v2248 = vor.u32 %v2243, %v2247
      %v2250 = vshll.u32 %v2234, 16
      %v2252 = vrot.slane %v2250, 1
      %v2253 = vsel %vm837, %v2248, %v2252
      %v2254 = vshrl.u32 %v2234, 16
      %v2256 = vor.u32 %v2254, %v2252
      %v2258 = vshll.u32 %v2235, 16
      %v2260 = vrot.slane %v2258, 1
      %v2261 = vsel %vm837, %v2256, %v2260
      %v2262 = vshrl.u32 %v2235, 16
      %v2264 = vor.u32 %v2262, %v2260
      %v2266 = vshll.u32 %v2236, 16
      %v2268 = vrot.slane %v2266, 1
      %v2269 = vsel %vm837, %v2264, %v2268
      %v2270 = vshrl.u32 %v2236, 16
      %v2272 = vor.u32 %v2270, %v2268
      %v2274 = vshll.u32 %v2237, 16
      %v2276 = vrot.slane %v2274, 1
      %v2277 = vsel %vm837, %v2272, %v2276
      %v2278 = vshrl.u32 %v2237, 16
      %v2280 = vor.u32 %v2278, %v2276
      %v2282 = vshll.u32 %v2238, 16
      %v2284 = vrot.slane %v2282, 1
      %v2285 = vsel %vm837, %v2280, %v2284
      %v2286 = vshrl.u32 %v2238, 16
      %v2288 = vor.u32 %v2286, %v2284
      %v2290 = vshll.u32 %v2239, 16
      %v2292 = vrot.slane %v2290, 1
      %v2293 = vsel %vm837, %v2288, %v2292
      %v2294 = vshrl.u32 %v2239, 16
      %v2296 = vor.u32 %v2294, %v2292
      %v2298 = vshll.u32 %v2240, 16
      %v2300 = vrot.slane %v2298, 1
      %v2301 = vsel %vm837, %v2296, %v2300
      %v2302 = vshrl.u32 %v2240, 16
      %v2304 = vor.u32 %v2302, %v2300
      %v2306 = vshll.u32 %v2241, 16
      %v2308 = vrot.slane %v2306, 1
      %v2309 = vsel %vm837, %v2304, %v2308
      %v2311 = vsel %vm433, %v2253, 0
      %v2314 = vsel %vm433, %v2261, 0
      %v2317 = vsel %vm433, %v2269, 0
      %v2320 = vsel %vm433, %v2277, 0
      %v2323 = vsel %vm433, %v2285, 0
      %v2326 = vsel %vm433, %v2293, 0
      %v2329 = vsel %vm433, %v2301, 0
      %v2332 = vsel %vm433, %v2309, 0
      %v2335 = vsel %vm458, %v2198, 0
      %2337 = vmatprep.subr.bf16.mxu0 0
      %2338 = vmatpush1.bf16.msra.mxu0 %v2335
      %2339 = vmatprep.subr.bf16.mxu0 0
      %2340 = vmatpush1.bf16.msra.mxu0 0
      %2341 = vmatprep.subr.bf16.mxu0 0
      %2342 = vmatpush1.bf16.msra.mxu0 0
      %2343 = vmatprep.subr.bf16.mxu0 0
      %2344 = vmatpush1.bf16.msra.mxu0 0
      %2345 = vmatprep.subr.bf16.mxu0 0
      %2346 = vmatpush1.bf16.msra.mxu0 0
      %2347 = vmatprep.subr.bf16.mxu0 0
      %2348 = vmatpush1.bf16.msra.mxu0 0
      %2349 = vmatprep.subr.bf16.mxu0 0
      %2350 = vmatpush1.bf16.msra.mxu0 0
      %2351 = vmatprep.subr.bf16.mxu0 0
      %2352 = vmatpush1.bf16.msra.mxu0 0
      %2353 = vmatprep.subr.bf16.mxu0 0
      %2354 = vmatpush1.bf16.msra.mxu0 0
      %2355 = vmatprep.subr.bf16.mxu0 0
      %2356 = vmatpush1.bf16.msra.mxu0 0
      %2357 = vmatprep.subr.bf16.mxu0 0
      %2358 = vmatpush1.bf16.msra.mxu0 0
      %2359 = vmatprep.subr.bf16.mxu0 0
      %2360 = vmatpush1.bf16.msra.mxu0 0
      %2361 = vmatprep.subr.bf16.mxu0 0
      %2362 = vmatpush1.bf16.msra.mxu0 0
      %2363 = vmatprep.subr.bf16.mxu0 0
      %2364 = vmatpush1.bf16.msra.mxu0 0
      %2365 = vmatprep.subr.bf16.mxu0 0
      %2366 = vmatpush1.bf16.msra.mxu0 0
      %2367 = vmatprep.subr.bf16.mxu0 0
      %2368 = vmatpush1.bf16.msra.mxu0 0
      %2369 = vmatprep.mubr.bf16.mxu0 0
      %2370 = vmatmul.mubr.bf16.gmra.mrb[0].mxu0 %v2311
      %v2371 = vpop.f32.mrb[0].mxu0
      %v2372 = vadd.f32 0.0, %v2371
      %v2373 = vpop.f32.mrb[0].mxu0
      %v2374 = vpop.f32.mrb[0].mxu0
      %v2375 = vadd.f32 0.0, %v2374
      %v2376 = vpop.f32.mrb[0].mxu0
      %2377 = vmatprep.mubr.bf16.mxu0 0
      %2378 = vmatmul.mubr.bf16.gmra.mrb[0].mxu0 %v2314
      %v2379 = vpop.f32.mrb[0].mxu0
      %v2380 = vadd.f32 0.0, %v2379
      %v2381 = vpop.f32.mrb[0].mxu0
      %v2382 = vpop.f32.mrb[0].mxu0
      %v2383 = vadd.f32 0.0, %v2382
      %v2384 = vpop.f32.mrb[0].mxu0
      %2385 = vmatprep.mubr.bf16.mxu0 0
      %2386 = vmatmul.mubr.bf16.gmra.mrb[0].mxu0 %v2317
      %v2387 = vpop.f32.mrb[0].mxu0
      %v2388 = vadd.f32 0.0, %v2387
      %v2389 = vpop.f32.mrb[0].mxu0
      %v2390 = vpop.f32.mrb[0].mxu0
      %v2391 = vadd.f32 0.0, %v2390
      %v2392 = vpop.f32.mrb[0].mxu0
      %2393 = vmatprep.mubr.bf16.mxu0 0
      %2394 = vmatmul.mubr.bf16.gmra.mrb[0].mxu0 %v2320
      %v2395 = vpop.f32.mrb[0].mxu0
      %v2396 = vadd.f32 0.0, %v2395
      %v2397 = vpop.f32.mrb[0].mxu0
      %v2398 = vpop.f32.mrb[0].mxu0
      %v2399 = vadd.f32 0.0, %v2398
      %v2400 = vpop.f32.mrb[0].mxu0
      %2401 = vmatprep.mubr.bf16.mxu0 0
      %2402 = vmatmul.mubr.bf16.gmra.mrb[0].mxu0 %v2323
      %v2403 = vpop.f32.mrb[0].mxu0
      %v2404 = vadd.f32 0.0, %v2403
      %v2405 = vpop.f32.mrb[0].mxu0
      %v2406 = vpop.f32.mrb[0].mxu0
      %v2407 = vadd.f32 0.0, %v2406
      %v2408 = vpop.f32.mrb[0].mxu0
      %2409 = vmatprep.mubr.bf16.mxu0 0
      %2410 = vmatmul.mubr.bf16.gmra.mrb[0].mxu0 %v2326
      %v2411 = vpop.f32.mrb[0].mxu0
      %v2412 = vadd.f32 0.0, %v2411
      %v2413 = vpop.f32.mrb[0].mxu0
      %v2414 = vpop.f32.mrb[0].mxu0
      %v2415 = vadd.f32 0.0, %v2414
      %v2416 = vpop.f32.mrb[0].mxu0
      %2417 = vmatprep.mubr.bf16.mxu0 0
      %2418 = vmatmul.mubr.bf16.gmra.mrb[0].mxu0 %v2329
      %v2419 = vpop.f32.mrb[0].mxu0
      %v2420 = vadd.f32 0.0, %v2419
      %v2421 = vpop.f32.mrb[0].mxu0
      %v2422 = vpop.f32.mrb[0].mxu0
      %v2423 = vadd.f32 0.0, %v2422
      %v2424 = vpop.f32.mrb[0].mxu0
      %2425 = vmatprep.mubr.bf16.mxu0 0
      %2426 = vmatmul.mubr.bf16.gmra.mrb[0].mxu0 %v2332
      %v2427 = vpop.f32.mrb[0].mxu0
      %v2428 = vadd.f32 0.0, %v2427
      %v2429 = vpop.f32.mrb[0].mxu0
      %v2430 = vpop.f32.mrb[0].mxu0
      %v2431 = vadd.f32 0.0, %v2430
      %v2432 = vpop.f32.mrb[0].mxu0
      %2433 = vdwg.mxu0
      %v2434 = vadd.f32 %v2164, %v2372
      %v2435 = vadd.f32 %v2165, %v2375
      %v2436 = vadd.f32 %v2166, %v2380
      %v2437 = vadd.f32 %v2167, %v2383
      %v2438 = vadd.f32 %v2168, %v2388
      %v2439 = vadd.f32 %v2169, %v2391
      %v2440 = vadd.f32 %v2170, %v2396
      %v2441 = vadd.f32 %v2171, %v2399
      %v2442 = vadd.f32 %v2172, %v2404
      %v2443 = vadd.f32 %v2173, %v2407
      %v2444 = vadd.f32 %v2174, %v2412
      %v2445 = vadd.f32 %v2175, %v2415
      %v2446 = vadd.f32 %v2176, %v2420
      %v2447 = vadd.f32 %v2177, %v2423
      %v2448 = vadd.f32 %v2178, %v2428
      %v2449 = vadd.f32 %v2179, %v2431
      %v2450 = vld [vmem:[%s334 + $0x4] sm:$0x8]
      %v2451 = vld [vmem:[%s334 + $0x8] sm:$0xf]
      %v2452 = vld [vmem:[%s334 + $0xc] sm:$0xf]
      %v2453 = vld [vmem:[%s334 + $0x10] sm:$0xf]
      %v2454 = vld [vmem:[%s334 + $0x14] sm:$0xf]
      %v2455 = vld [vmem:[%s334 + $0x18] sm:$0xf]
      %v2456 = vld [vmem:[%s334 + $0x1c] sm:$0xf]
      %v2457 = vld [vmem:[%s334 + $0x20] sm:$0xf]
      %v2458 = vld [vmem:[%s334 + $0x24] sm:$0xf]
      %v2459 = vld [vmem:[%s334 + $0x28] sm:$0xf]
      %v2460 = vld [vmem:[%s334 + $0x2c] sm:$0xf]
      %v2461 = vld [vmem:[%s334 + $0x30] sm:$0xf]
      %v2462 = vld [vmem:[%s334 + $0x34] sm:$0xf]
      %v2463 = vld [vmem:[%s334 + $0x38] sm:$0xf]
      %v2464 = vld [vmem:[%s334 + $0x3c] sm:$0xf]
      %v2465 = vld [vmem:[%s334 + $0x40] sm:$0xf]
      %v2466 = vld [vmem:[%s334 + $0x44] sm:$0xf]
      %v2467 = vld [vmem:[%s3] sm:$0xf]
      %s2468 = scalar_lea.vmem %s3, 4
      %v2469 = vld [vmem:[%s2468] sm:$0xf]
      %v2486 = vunpack.c.l.b16 %v2451
      %v2487 = vunpack.c.l.b16 %v2452
      %v2488 = vunpack.c.l.b16 %v2453
      %v2489 = vunpack.c.l.b16 %v2454
      %v2490 = vunpack.c.l.b16 %v2455
      %v2491 = vunpack.c.l.b16 %v2456
      %v2492 = vunpack.c.l.b16 %v2457
      %v2493 = vunpack.c.l.b16 %v2458
      %v2494 = vunpack.c.l.b16 %v2459
      %v2495 = vunpack.c.l.b16 %v2460
      %v2496 = vunpack.c.l.b16 %v2461
      %v2497 = vunpack.c.l.b16 %v2462
      %v2498 = vunpack.c.l.b16 %v2463
      %v2499 = vunpack.c.l.b16 %v2464
      %v2500 = vunpack.c.l.b16 %v2465
      %v2501 = vunpack.c.l.b16 %v2466
      %v2502 = vpack.c.b16 %v2487, %v2486
      %v2503 = vpack.c.b16 %v2489, %v2488
      %v2504 = vpack.c.b16 %v2491, %v2490
      %v2505 = vpack.c.b16 %v2493, %v2492
      %v2506 = vpack.c.b16 %v2495, %v2494
      %v2507 = vpack.c.b16 %v2497, %v2496
      %v2508 = vpack.c.b16 %v2499, %v2498
      %v2509 = vpack.c.b16 %v2501, %v2500
      %v2511 = vsel %vm433, %v2502, 0
      %v2514 = vsel %vm433, %v2503, 0
      %v2517 = vsel %vm433, %v2504, 0
      %v2520 = vsel %vm433, %v2505, 0
      %v2523 = vsel %vm433, %v2506, 0
      %v2526 = vsel %vm433, %v2507, 0
      %v2529 = vsel %vm433, %v2508, 0
      %v2532 = vsel %vm433, %v2509, 0
      %v2535 = vsel %vm458, %v2469, 0
      %2537 = vmatprep.subr.bf16.mxu0 0
      %2538 = vmatpush1.bf16.msra.mxu0 %v2535
      %2539 = vmatprep.subr.bf16.mxu0 0
      %2540 = vmatpush1.bf16.msra.mxu0 0
      %2541 = vmatprep.subr.bf16.mxu0 0
      %2542 = vmatpush1.bf16.msra.mxu0 0
      %2543 = vmatprep.subr.bf16.mxu0 0
      %2544 = vmatpush1.bf16.msra.mxu0 0
      %2545 = vmatprep.subr.bf16.mxu0 0
      %2546 = vmatpush1.bf16.msra.mxu0 0
      %2547 = vmatprep.subr.bf16.mxu0 0
      %2548 = vmatpush1.bf16.msra.mxu0 0
      %2549 = vmatprep.subr.bf16.mxu0 0
      %2550 = vmatpush1.bf16.msra.mxu0 0
      %2551 = vmatprep.subr.bf16.mxu0 0
      %2552 = vmatpush1.bf16.msra.mxu0 0
      %2553 = vmatprep.subr.bf16.mxu0 0
      %2554 = vmatpush1.bf16.msra.mxu0 0
      %2555 = vmatprep.subr.bf16.mxu0 0
      %2556 = vmatpush1.bf16.msra.mxu0 0
      %2557 = vmatprep.subr.bf16.mxu0 0
      %2558 = vmatpush1.bf16.msra.mxu0 0
      %2559 = vmatprep.subr.bf16.mxu0 0
      %2560 = vmatpush1.bf16.msra.mxu0 0
      %2561 = vmatprep.subr.bf16.mxu0 0
      %2562 = vmatpush1.bf16.msra.mxu0 0
      %2563 = vmatprep.subr.bf16.mxu0 0
      %2564 = vmatpush1.bf16.msra.mxu0 0
      %2565 = vmatprep.subr.bf16.mxu0 0
      %2566 = vmatpush1.bf16.msra.mxu0 0
      %2567 = vmatprep.subr.bf16.mxu0 0
      %2568 = vmatpush1.bf16.msra.mxu0 0
      %2569 = vmatprep.mubr.bf16.mxu0 0
      %2570 = vmatmul.mubr.bf16.gmra.mrb[0].mxu0 %v2511
      %v2571 = vpop.f32.mrb[0].mxu0
      %v2572 = vadd.f32 0.0, %v2571
      %v2573 = vpop.f32.mrb[0].mxu0
      %v2574 = vpop.f32.mrb[0].mxu0
      %v2575 = vadd.f32 0.0, %v2574
      %v2576 = vpop.f32.mrb[0].mxu0
      %2577 = vmatprep.mubr.bf16.mxu0 0
      %2578 = vmatmul.mubr.bf16.gmra.mrb[0].mxu0 %v2514
      %v2579 = vpop.f32.mrb[0].mxu0
      %v2580 = vadd.f32 0.0, %v2579
      %v2581 = vpop.f32.mrb[0].mxu0
      %v2582 = vpop.f32.mrb[0].mxu0
      %v2583 = vadd.f32 0.0, %v2582
      %v2584 = vpop.f32.mrb[0].mxu0
      %2585 = vmatprep.mubr.bf16.mxu0 0
      %2586 = vmatmul.mubr.bf16.gmra.mrb[0].mxu0 %v2517
      %v2587 = vpop.f32.mrb[0].mxu0
      %v2588 = vadd.f32 0.0, %v2587
      %v2589 = vpop.f32.mrb[0].mxu0
      %v2590 = vpop.f32.mrb[0].mxu0
      %v2591 = vadd.f32 0.0, %v2590
      %v2592 = vpop.f32.mrb[0].mxu0
      %2593 = vmatprep.mubr.bf16.mxu0 0
      %2594 = vmatmul.mubr.bf16.gmra.mrb[0].mxu0 %v2520
      %v2595 = vpop.f32.mrb[0].mxu0
      %v2596 = vadd.f32 0.0, %v2595
      %v2597 = vpop.f32.mrb[0].mxu0
      %v2598 = vpop.f32.mrb[0].mxu0
      %v2599 = vadd.f32 0.0, %v2598
      %v2600 = vpop.f32.mrb[0].mxu0
      %2601 = vmatprep.mubr.bf16.mxu0 0
      %2602 = vmatmul.mubr.bf16.gmra.mrb[0].mxu0 %v2523
      %v2603 = vpop.f32.mrb[0].mxu0
      %v2604 = vadd.f32 0.0, %v2603
      %v2605 = vpop.f32.mrb[0].mxu0
      %v2606 = vpop.f32.mrb[0].mxu0
      %v2607 = vadd.f32 0.0, %v2606
      %v2608 = vpop.f32.mrb[0].mxu0
      %2609 = vmatprep.mubr.bf16.mxu0 0
      %2610 = vmatmul.mubr.bf16.gmra.mrb[0].mxu0 %v2526
      %v2611 = vpop.f32.mrb[0].mxu0
      %v2612 = vadd.f32 0.0, %v2611
      %v2613 = vpop.f32.mrb[0].mxu0
      %v2614 = vpop.f32.mrb[0].mxu0
      %v2615 = vadd.f32 0.0, %v2614
      %v2616 = vpop.f32.mrb[0].mxu0
      %2617 = vmatprep.mubr.bf16.mxu0 0
      %2618 = vmatmul.mubr.bf16.gmra.mrb[0].mxu0 %v2529
      %v2619 = vpop.f32.mrb[0].mxu0
      %v2620 = vadd.f32 0.0, %v2619
      %v2621 = vpop.f32.mrb[0].mxu0
      %v2622 = vpop.f32.mrb[0].mxu0
      %v2623 = vadd.f32 0.0, %v2622
      %v2624 = vpop.f32.mrb[0].mxu0
      %2625 = vmatprep.mubr.bf16.mxu0 0
      %2626 = vmatmul.mubr.bf16.gmra.mrb[0].mxu0 %v2532
      %v2627 = vpop.f32.mrb[0].mxu0
      %v2628 = vadd.f32 0.0, %v2627
      %v2629 = vpop.f32.mrb[0].mxu0
      %v2630 = vpop.f32.mrb[0].mxu0
      %v2631 = vadd.f32 0.0, %v2630
      %v2632 = vpop.f32.mrb[0].mxu0
      %2633 = vdwg.mxu0
      %v2635 = vunpack.c.l.b16 %v2450
      %v2636 = vpack.c.b16 %v2486, %v2635
      %v2637 = vpack.c.b16 %v2488, %v2487
      %v2638 = vpack.c.b16 %v2490, %v2489
      %v2639 = vpack.c.b16 %v2492, %v2491
      %v2640 = vpack.c.b16 %v2494, %v2493
      %v2641 = vpack.c.b16 %v2496, %v2495
      %v2642 = vpack.c.b16 %v2498, %v2497
      %v2643 = vpack.c.b16 %v2500, %v2499
      %v2644 = vpack.c.b16 %v2501, %v2501
      %v2646 = vshrl.u32 %v2636, 16
      %v2648 = vrot.slane %v2646, 3
      %v2649 = vshll.u32 %v2636, 16
      %v2651 = vrot.slane %v2649, 4
      %v2652 = vor.u32 %v2648, %v2651
      %v2654 = vshrl.u32 %v2637, 16
      %v2656 = vrot.slane %v2654, 3
      %v2657 = vshll.u32 %v2637, 16
      %v2659 = vrot.slane %v2657, 4
      %v2660 = vor.u32 %v2656, %v2659
      %v2661 = vsel %vm570, %v2652, %v2660
      %v2663 = vshrl.u32 %v2638, 16
      %v2665 = vrot.slane %v2663, 3
      %v2666 = vshll.u32 %v2638, 16
      %v2668 = vrot.slane %v2666, 4
      %v2669 = vor.u32 %v2665, %v2668
      %v2670 = vsel %vm570, %v2660, %v2669
      %v2672 = vshrl.u32 %v2639, 16
      %v2674 = vrot.slane %v2672, 3
      %v2675 = vshll.u32 %v2639, 16
      %v2677 = vrot.slane %v2675, 4
      %v2678 = vor.u32 %v2674, %v2677
      %v2679 = vsel %vm570, %v2669, %v2678
      %v2681 = vshrl.u32 %v2640, 16
      %v2683 = vrot.slane %v2681, 3
      %v2684 = vshll.u32 %v2640, 16
      %v2686 = vrot.slane %v2684, 4
      %v2687 = vor.u32 %v2683, %v2686
      %v2688 = vsel %vm570, %v2678, %v2687
      %v2690 = vshrl.u32 %v2641, 16
      %v2692 = vrot.slane %v2690, 3
      %v2693 = vshll.u32 %v2641, 16
      %v2695 = vrot.slane %v2693, 4
      %v2696 = vor.u32 %v2692, %v2695
      %v2697 = vsel %vm570, %v2687, %v2696
      %v2699 = vshrl.u32 %v2642, 16
      %v2701 = vrot.slane %v2699, 3
      %v2702 = vshll.u32 %v2642, 16
      %v2704 = vrot.slane %v2702, 4
      %v2705 = vor.u32 %v2701, %v2704
      %v2706 = vsel %vm570, %v2696, %v2705
      %v2708 = vshrl.u32 %v2643, 16
      %v2710 = vrot.slane %v2708, 3
      %v2711 = vshll.u32 %v2643, 16
      %v2713 = vrot.slane %v2711, 4
      %v2714 = vor.u32 %v2710, %v2713
      %v2715 = vsel %vm570, %v2705, %v2714
      %v2717 = vshrl.u32 %v2644, 16
      %v2719 = vrot.slane %v2717, 3
      %v2720 = vshll.u32 %v2644, 16
      %v2722 = vrot.slane %v2720, 4
      %v2723 = vor.u32 %v2719, %v2722
      %v2724 = vsel %vm570, %v2714, %v2723
      %v2726 = vsel %vm433, %v2661, 0
      %v2729 = vsel %vm433, %v2670, 0
      %v2732 = vsel %vm433, %v2679, 0
      %v2735 = vsel %vm433, %v2688, 0
      %v2738 = vsel %vm433, %v2697, 0
      %v2741 = vsel %vm433, %v2706, 0
      %v2744 = vsel %vm433, %v2715, 0
      %v2747 = vsel %vm433, %v2724, 0
      %v2750 = vsel %vm458, %v2467, 0
      %2752 = vmatprep.subr.bf16.mxu0 0
      %2753 = vmatpush1.bf16.msra.mxu0 %v2750
      %2754 = vmatprep.subr.bf16.mxu0 0
      %2755 = vmatpush1.bf16.msra.mxu0 0
      %2756 = vmatprep.subr.bf16.mxu0 0
      %2757 = vmatpush1.bf16.msra.mxu0 0
      %2758 = vmatprep.subr.bf16.mxu0 0
      %2759 = vmatpush1.bf16.msra.mxu0 0
      %2760 = vmatprep.subr.bf16.mxu0 0
      %2761 = vmatpush1.bf16.msra.mxu0 0
      %2762 = vmatprep.subr.bf16.mxu0 0
      %2763 = vmatpush1.bf16.msra.mxu0 0
      %2764 = vmatprep.subr.bf16.mxu0 0
      %2765 = vmatpush1.bf16.msra.mxu0 0
      %2766 = vmatprep.subr.bf16.mxu0 0
      %2767 = vmatpush1.bf16.msra.mxu0 0
      %2768 = vmatprep.subr.bf16.mxu0 0
      %2769 = vmatpush1.bf16.msra.mxu0 0
      %2770 = vmatprep.subr.bf16.mxu0 0
      %2771 = vmatpush1.bf16.msra.mxu0 0
      %2772 = vmatprep.subr.bf16.mxu0 0
      %2773 = vmatpush1.bf16.msra.mxu0 0
      %2774 = vmatprep.subr.bf16.mxu0 0
      %2775 = vmatpush1.bf16.msra.mxu0 0
      %2776 = vmatprep.subr.bf16.mxu0 0
      %2777 = vmatpush1.bf16.msra.mxu0 0
      %2778 = vmatprep.subr.bf16.mxu0 0
      %2779 = vmatpush1.bf16.msra.mxu0 0
      %2780 = vmatprep.subr.bf16.mxu0 0
      %2781 = vmatpush1.bf16.msra.mxu0 0
      %2782 = vmatprep.subr.bf16.mxu0 0
      %2783 = vmatpush1.bf16.msra.mxu0 0
      %2784 = vmatprep.mubr.bf16.mxu0 0
      %2785 = vmatmul.mubr.bf16.gmra.mrb[0].mxu0 %v2726
      %v2786 = vpop.f32.mrb[0].mxu0
      %v2787 = vadd.f32 %v2572, %v2786
      %v2788 = vpop.f32.mrb[0].mxu0
      %v2789 = vpop.f32.mrb[0].mxu0
      %v2790 = vadd.f32 %v2575, %v2789
      %v2791 = vpop.f32.mrb[0].mxu0
      %2792 = vmatprep.mubr.bf16.mxu0 0
      %2793 = vmatmul.mubr.bf16.gmra.mrb[0].mxu0 %v2729
      %v2794 = vpop.f32.mrb[0].mxu0
      %v2795 = vadd.f32 %v2580, %v2794
      %v2796 = vpop.f32.mrb[0].mxu0
      %v2797 = vpop.f32.mrb[0].mxu0
      %v2798 = vadd.f32 %v2583, %v2797
      %v2799 = vpop.f32.mrb[0].mxu0
      %2800 = vmatprep.mubr.bf16.mxu0 0
      %2801 = vmatmul.mubr.bf16.gmra.mrb[0].mxu0 %v2732
      %v2802 = vpop.f32.mrb[0].mxu0
      %v2803 = vadd.f32 %v2588, %v2802
      %v2804 = vpop.f32.mrb[0].mxu0
      %v2805 = vpop.f32.mrb[0].mxu0
      %v2806 = vadd.f32 %v2591, %v2805
      %v2807 = vpop.f32.mrb[0].mxu0
      %2808 = vmatprep.mubr.bf16.mxu0 0
      %2809 = vmatmul.mubr.bf16.gmra.mrb[0].mxu0 %v2735
      %v2810 = vpop.f32.mrb[0].mxu0
      %v2811 = vadd.f32 %v2596, %v2810
      %v2812 = vpop.f32.mrb[0].mxu0
      %v2813 = vpop.f32.mrb[0].mxu0
      %v2814 = vadd.f32 %v2599, %v2813
      %v2815 = vpop.f32.mrb[0].mxu0
      %2816 = vmatprep.mubr.bf16.mxu0 0
      %2817 = vmatmul.mubr.bf16.gmra.mrb[0].mxu0 %v2738
      %v2818 = vpop.f32.mrb[0].mxu0
      %v2819 = vadd.f32 %v2604, %v2818
      %v2820 = vpop.f32.mrb[0].mxu0
      %v2821 = vpop.f32.mrb[0].mxu0
      %v2822 = vadd.f32 %v2607, %v2821
      %v2823 = vpop.f32.mrb[0].mxu0
      %2824 = vmatprep.mubr.bf16.mxu0 0
      %2825 = vmatmul.mubr.bf16.gmra.mrb[0].mxu0 %v2741
      %v2826 = vpop.f32.mrb[0].mxu0
      %v2827 = vadd.f32 %v2612, %v2826
      %v2828 = vpop.f32.mrb[0].mxu0
      %v2829 = vpop.f32.mrb[0].mxu0
      %v2830 = vadd.f32 %v2615, %v2829
      %v2831 = vpop.f32.mrb[0].mxu0
      %2832 = vmatprep.mubr.bf16.mxu0 0
      %2833 = vmatmul.mubr.bf16.gmra.mrb[0].mxu0 %v2744
      %v2834 = vpop.f32.mrb[0].mxu0
      %v2835 = vadd.f32 %v2620, %v2834
      %v2836 = vpop.f32.mrb[0].mxu0
      %v2837 = vpop.f32.mrb[0].mxu0
      %v2838 = vadd.f32 %v2623, %v2837
      %v2839 = vpop.f32.mrb[0].mxu0
      %2840 = vmatprep.mubr.bf16.mxu0 0
      %2841 = vmatmul.mubr.bf16.gmra.mrb[0].mxu0 %v2747
      %v2842 = vpop.f32.mrb[0].mxu0
      %v2843 = vadd.f32 %v2628, %v2842
      %v2844 = vpop.f32.mrb[0].mxu0
      %v2845 = vpop.f32.mrb[0].mxu0
      %v2846 = vadd.f32 %v2631, %v2845
      %v2847 = vpop.f32.mrb[0].mxu0
      %2848 = vdwg.mxu0
      %v2849 = vld [vmem:[%s334 + $0x8] sm:$0xf]
      %v2850 = vld [vmem:[%s334 + $0xc] sm:$0xf]
      %v2851 = vld [vmem:[%s334 + $0x10] sm:$0xf]
      %v2852 = vld [vmem:[%s334 + $0x14] sm:$0xf]
      %v2853 = vld [vmem:[%s334 + $0x18] sm:$0xf]
      %v2854 = vld [vmem:[%s334 + $0x1c] sm:$0xf]
      %v2855 = vld [vmem:[%s334 + $0x20] sm:$0xf]
      %v2856 = vld [vmem:[%s334 + $0x24] sm:$0xf]
      %v2857 = vld [vmem:[%s334 + $0x28] sm:$0xf]
      %v2858 = vld [vmem:[%s334 + $0x2c] sm:$0xf]
      %v2859 = vld [vmem:[%s334 + $0x30] sm:$0xf]
      %v2860 = vld [vmem:[%s334 + $0x34] sm:$0xf]
      %v2861 = vld [vmem:[%s334 + $0x38] sm:$0xf]
      %v2862 = vld [vmem:[%s334 + $0x3c] sm:$0xf]
      %v2863 = vld [vmem:[%s334 + $0x40] sm:$0xf]
      %v2864 = vld [vmem:[%s334 + $0x44] sm:$0xf]
      %v2865 = vld [vmem:[%s334 + $0x48] sm:$0x1]
      %s2866 = scalar_lea.vmem %s3, 8
      %v2867 = vld [vmem:[%s2866] sm:$0xf]
      %v2885 = vunpack.c.l.b16 %v2849
      %v2886 = vunpack.c.l.b16 %v2850
      %v2887 = vunpack.c.l.b16 %v2851
      %v2888 = vunpack.c.l.b16 %v2852
      %v2889 = vunpack.c.l.b16 %v2853
      %v2890 = vunpack.c.l.b16 %v2854
      %v2891 = vunpack.c.l.b16 %v2855
      %v2892 = vunpack.c.l.b16 %v2856
      %v2893 = vunpack.c.l.b16 %v2857
      %v2894 = vunpack.c.l.b16 %v2858
      %v2895 = vunpack.c.l.b16 %v2859
      %v2896 = vunpack.c.l.b16 %v2860
      %v2897 = vunpack.c.l.b16 %v2861
      %v2898 = vunpack.c.l.b16 %v2862
      %v2899 = vunpack.c.l.b16 %v2863
      %v2900 = vunpack.c.l.b16 %v2864
      %v2901 = vunpack.c.l.b16 %v2865
      %v2902 = vpack.c.b16 %v2886, %v2885
      %v2903 = vpack.c.b16 %v2888, %v2887
      %v2904 = vpack.c.b16 %v2890, %v2889
      %v2905 = vpack.c.b16 %v2892, %v2891
      %v2906 = vpack.c.b16 %v2894, %v2893
      %v2907 = vpack.c.b16 %v2896, %v2895
      %v2908 = vpack.c.b16 %v2898, %v2897
      %v2909 = vpack.c.b16 %v2900, %v2899
      %v2910 = vpack.c.b16 %v2901, %v2901
      %v2912 = vshrl.u32 %v2902, 16
      %v2914 = vshll.u32 %v2902, 16
      %v2916 = vrot.slane %v2914, 1
      %v2917 = vor.u32 %v2912, %v2916
      %v2919 = vshll.u32 %v2903, 16
      %v2921 = vrot.slane %v2919, 1
      %v2922 = vsel %vm837, %v2917, %v2921
      %v2923 = vshrl.u32 %v2903, 16
      %v2925 = vor.u32 %v2923, %v2921
      %v2927 = vshll.u32 %v2904, 16
      %v2929 = vrot.slane %v2927, 1
      %v2930 = vsel %vm837, %v2925, %v2929
      %v2931 = vshrl.u32 %v2904, 16
      %v2933 = vor.u32 %v2931, %v2929
      %v2935 = vshll.u32 %v2905, 16
      %v2937 = vrot.slane %v2935, 1
      %v2938 = vsel %vm837, %v2933, %v2937
      %v2939 = vshrl.u32 %v2905, 16
      %v2941 = vor.u32 %v2939, %v2937
      %v2943 = vshll.u32 %v2906, 16
      %v2945 = vrot.slane %v2943, 1
      %v2946 = vsel %vm837, %v2941, %v2945
      %v2947 = vshrl.u32 %v2906, 16
      %v2949 = vor.u32 %v2947, %v2945
      %v2951 = vshll.u32 %v2907, 16
      %v2953 = vrot.slane %v2951, 1
      %v2954 = vsel %vm837, %v2949, %v2953
      %v2955 = vshrl.u32 %v2907, 16
      %v2957 = vor.u32 %v2955, %v2953
      %v2959 = vshll.u32 %v2908, 16
      %v2961 = vrot.slane %v2959, 1
      %v2962 = vsel %vm837, %v2957, %v2961
      %v2963 = vshrl.u32 %v2908, 16
      %v2965 = vor.u32 %v2963, %v2961
      %v2967 = vshll.u32 %v2909, 16
      %v2969 = vrot.slane %v2967, 1
      %v2970 = vsel %vm837, %v2965, %v2969
      %v2971 = vshrl.u32 %v2909, 16
      %v2973 = vor.u32 %v2971, %v2969
      %v2975 = vshll.u32 %v2910, 16
      %v2977 = vrot.slane %v2975, 1
      %v2978 = vsel %vm837, %v2973, %v2977
      %v2980 = vsel %vm433, %v2922, 0
      %v2983 = vsel %vm433, %v2930, 0
      %v2986 = vsel %vm433, %v2938, 0
      %v2989 = vsel %vm433, %v2946, 0
      %v2992 = vsel %vm433, %v2954, 0
      %v2995 = vsel %vm433, %v2962, 0
      %v2998 = vsel %vm433, %v2970, 0
      %v3001 = vsel %vm433, %v2978, 0
      %v3004 = vsel %vm458, %v2867, 0
      %3006 = vmatprep.subr.bf16.mxu0 0
      %3007 = vmatpush1.bf16.msra.mxu0 %v3004
      %3008 = vmatprep.subr.bf16.mxu0 0
      %3009 = vmatpush1.bf16.msra.mxu0 0
      %3010 = vmatprep.subr.bf16.mxu0 0
      %3011 = vmatpush1.bf16.msra.mxu0 0
      %3012 = vmatprep.subr.bf16.mxu0 0
      %3013 = vmatpush1.bf16.msra.mxu0 0
      %3014 = vmatprep.subr.bf16.mxu0 0
      %3015 = vmatpush1.bf16.msra.mxu0 0
      %3016 = vmatprep.subr.bf16.mxu0 0
      %3017 = vmatpush1.bf16.msra.mxu0 0
      %3018 = vmatprep.subr.bf16.mxu0 0
      %3019 = vmatpush1.bf16.msra.mxu0 0
      %3020 = vmatprep.subr.bf16.mxu0 0
      %3021 = vmatpush1.bf16.msra.mxu0 0
      %3022 = vmatprep.subr.bf16.mxu0 0
      %3023 = vmatpush1.bf16.msra.mxu0 0
      %3024 = vmatprep.subr.bf16.mxu0 0
      %3025 = vmatpush1.bf16.msra.mxu0 0
      %3026 = vmatprep.subr.bf16.mxu0 0
      %3027 = vmatpush1.bf16.msra.mxu0 0
      %3028 = vmatprep.subr.bf16.mxu0 0
      %3029 = vmatpush1.bf16.msra.mxu0 0
      %3030 = vmatprep.subr.bf16.mxu0 0
      %3031 = vmatpush1.bf16.msra.mxu0 0
      %3032 = vmatprep.subr.bf16.mxu0 0
      %3033 = vmatpush1.bf16.msra.mxu0 0
      %3034 = vmatprep.subr.bf16.mxu0 0
      %3035 = vmatpush1.bf16.msra.mxu0 0
      %3036 = vmatprep.subr.bf16.mxu0 0
      %3037 = vmatpush1.bf16.msra.mxu0 0
      %3038 = vmatprep.mubr.bf16.mxu0 0
      %3039 = vmatmul.mubr.bf16.gmra.mrb[0].mxu0 %v2980
      %v3040 = vpop.f32.mrb[0].mxu0
      %v3041 = vadd.f32 0.0, %v3040
      %v3042 = vpop.f32.mrb[0].mxu0
      %v3043 = vpop.f32.mrb[0].mxu0
      %v3044 = vadd.f32 0.0, %v3043
      %v3045 = vpop.f32.mrb[0].mxu0
      %3046 = vmatprep.mubr.bf16.mxu0 0
      %3047 = vmatmul.mubr.bf16.gmra.mrb[0].mxu0 %v2983
      %v3048 = vpop.f32.mrb[0].mxu0
      %v3049 = vadd.f32 0.0, %v3048
      %v3050 = vpop.f32.mrb[0].mxu0
      %v3051 = vpop.f32.mrb[0].mxu0
      %v3052 = vadd.f32 0.0, %v3051
      %v3053 = vpop.f32.mrb[0].mxu0
      %3054 = vmatprep.mubr.bf16.mxu0 0
      %3055 = vmatmul.mubr.bf16.gmra.mrb[0].mxu0 %v2986
      %v3056 = vpop.f32.mrb[0].mxu0
      %v3057 = vadd.f32 0.0, %v3056
      %v3058 = vpop.f32.mrb[0].mxu0
      %v3059 = vpop.f32.mrb[0].mxu0
      %v3060 = vadd.f32 0.0, %v3059
      %v3061 = vpop.f32.mrb[0].mxu0
      %3062 = vmatprep.mubr.bf16.mxu0 0
      %3063 = vmatmul.mubr.bf16.gmra.mrb[0].mxu0 %v2989
      %v3064 = vpop.f32.mrb[0].mxu0
      %v3065 = vadd.f32 0.0, %v3064
      %v3066 = vpop.f32.mrb[0].mxu0
      %v3067 = vpop.f32.mrb[0].mxu0
      %v3068 = vadd.f32 0.0, %v3067
      %v3069 = vpop.f32.mrb[0].mxu0
      %3070 = vmatprep.mubr.bf16.mxu0 0
      %3071 = vmatmul.mubr.bf16.gmra.mrb[0].mxu0 %v2992
      %v3072 = vpop.f32.mrb[0].mxu0
      %v3073 = vadd.f32 0.0, %v3072
      %v3074 = vpop.f32.mrb[0].mxu0
      %v3075 = vpop.f32.mrb[0].mxu0
      %v3076 = vadd.f32 0.0, %v3075
      %v3077 = vpop.f32.mrb[0].mxu0
      %3078 = vmatprep.mubr.bf16.mxu0 0
      %3079 = vmatmul.mubr.bf16.gmra.mrb[0].mxu0 %v2995
      %v3080 = vpop.f32.mrb[0].mxu0
      %v3081 = vadd.f32 0.0, %v3080
      %v3082 = vpop.f32.mrb[0].mxu0
      %v3083 = vpop.f32.mrb[0].mxu0
      %v3084 = vadd.f32 0.0, %v3083
      %v3085 = vpop.f32.mrb[0].mxu0
      %3086 = vmatprep.mubr.bf16.mxu0 0
      %3087 = vmatmul.mubr.bf16.gmra.mrb[0].mxu0 %v2998
      %v3088 = vpop.f32.mrb[0].mxu0
      %v3089 = vadd.f32 0.0, %v3088
      %v3090 = vpop.f32.mrb[0].mxu0
      %v3091 = vpop.f32.mrb[0].mxu0
      %v3092 = vadd.f32 0.0, %v3091
      %v3093 = vpop.f32.mrb[0].mxu0
      %3094 = vmatprep.mubr.bf16.mxu0 0
      %3095 = vmatmul.mubr.bf16.gmra.mrb[0].mxu0 %v3001
      %v3096 = vpop.f32.mrb[0].mxu0
      %v3097 = vadd.f32 0.0, %v3096
      %v3098 = vpop.f32.mrb[0].mxu0
      %v3099 = vpop.f32.mrb[0].mxu0
      %v3100 = vadd.f32 0.0, %v3099
      %v3101 = vpop.f32.mrb[0].mxu0
      %3102 = vdwg.mxu0
      %v3103 = vadd.f32 %v2787, %v3041
      %v3104 = vadd.f32 %v2790, %v3044
      %v3105 = vadd.f32 %v2795, %v3049
      %v3106 = vadd.f32 %v2798, %v3052
      %v3107 = vadd.f32 %v2803, %v3057
      %v3108 = vadd.f32 %v2806, %v3060
      %v3109 = vadd.f32 %v2811, %v3065
      %v3110 = vadd.f32 %v2814, %v3068
      %v3111 = vadd.f32 %v2819, %v3073
      %v3112 = vadd.f32 %v2822, %v3076
      %v3113 = vadd.f32 %v2827, %v3081
      %v3114 = vadd.f32 %v2830, %v3084
      %v3115 = vadd.f32 %v2835, %v3089
      %v3116 = vadd.f32 %v2838, %v3092
      %v3117 = vadd.f32 %v2843, %v3097
      %v3118 = vadd.f32 %v2846, %v3100
      %v3119 = vld [vmem:[%s334 + $0xc] sm:$0x8]
      %v3120 = vld [vmem:[%s334 + $0x10] sm:$0xf]
      %v3121 = vld [vmem:[%s334 + $0x14] sm:$0xf]
      %v3122 = vld [vmem:[%s334 + $0x18] sm:$0xf]
      %v3123 = vld [vmem:[%s334 + $0x1c] sm:$0xf]
      %v3124 = vld [vmem:[%s334 + $0x20] sm:$0xf]
      %v3125 = vld [vmem:[%s334 + $0x24] sm:$0xf]
      %v3126 = vld [vmem:[%s334 + $0x28] sm:$0xf]
      %v3127 = vld [vmem:[%s334 + $0x2c] sm:$0xf]
      %v3128 = vld [vmem:[%s334 + $0x30] sm:$0xf]
      %v3129 = vld [vmem:[%s334 + $0x34] sm:$0xf]
      %v3130 = vld [vmem:[%s334 + $0x38] sm:$0xf]
      %v3131 = vld [vmem:[%s334 + $0x3c] sm:$0xf]
      %v3132 = vld [vmem:[%s334 + $0x40] sm:$0xf]
      %v3133 = vld [vmem:[%s334 + $0x44] sm:$0xf]
      %v3134 = vld [vmem:[%s334 + $0x48] sm:$0xf]
      %v3135 = vld [vmem:[%s334 + $0x4c] sm:$0xf]
      %s3136 = scalar_lea.vmem %s3, 12
      %v3137 = vld [vmem:[%s3136] sm:$0xf]
      %v3155 = vunpack.c.l.b16 %v3119
      %v3156 = vunpack.c.l.b16 %v3120
      %v3157 = vunpack.c.l.b16 %v3121
      %v3158 = vunpack.c.l.b16 %v3122
      %v3159 = vunpack.c.l.b16 %v3123
      %v3160 = vunpack.c.l.b16 %v3124
      %v3161 = vunpack.c.l.b16 %v3125
      %v3162 = vunpack.c.l.b16 %v3126
      %v3163 = vunpack.c.l.b16 %v3127
      %v3164 = vunpack.c.l.b16 %v3128
      %v3165 = vunpack.c.l.b16 %v3129
      %v3166 = vunpack.c.l.b16 %v3130
      %v3167 = vunpack.c.l.b16 %v3131
      %v3168 = vunpack.c.l.b16 %v3132
      %v3169 = vunpack.c.l.b16 %v3133
      %v3170 = vunpack.c.l.b16 %v3134
      %v3171 = vunpack.c.l.b16 %v3135
      %v3172 = vpack.c.b16 %v3156, %v3155
      %v3173 = vpack.c.b16 %v3158, %v3157
      %v3174 = vpack.c.b16 %v3160, %v3159
      %v3175 = vpack.c.b16 %v3162, %v3161
      %v3176 = vpack.c.b16 %v3164, %v3163
      %v3177 = vpack.c.b16 %v3166, %v3165
      %v3178 = vpack.c.b16 %v3168, %v3167
      %v3179 = vpack.c.b16 %v3170, %v3169
      %v3180 = vpack.c.b16 %v3171, %v3171
      %v3182 = vshrl.u32 %v3172, 16
      %v3184 = vrot.slane %v3182, 3
      %v3185 = vshll.u32 %v3172, 16
      %v3187 = vrot.slane %v3185, 4
      %v3188 = vor.u32 %v3184, %v3187
      %v3190 = vshrl.u32 %v3173, 16
      %v3192 = vrot.slane %v3190, 3
      %v3193 = vshll.u32 %v3173, 16
      %v3195 = vrot.slane %v3193, 4
      %v3196 = vor.u32 %v3192, %v3195
      %v3197 = vsel %vm570, %v3188, %v3196
      %v3199 = vshrl.u32 %v3174, 16
      %v3201 = vrot.slane %v3199, 3
      %v3202 = vshll.u32 %v3174, 16
      %v3204 = vrot.slane %v3202, 4
      %v3205 = vor.u32 %v3201, %v3204
      %v3206 = vsel %vm570, %v3196, %v3205
      %v3208 = vshrl.u32 %v3175, 16
      %v3210 = vrot.slane %v3208, 3
      %v3211 = vshll.u32 %v3175, 16
      %v3213 = vrot.slane %v3211, 4
      %v3214 = vor.u32 %v3210, %v3213
      %v3215 = vsel %vm570, %v3205, %v3214
      %v3217 = vshrl.u32 %v3176, 16
      %v3219 = vrot.slane %v3217, 3
      %v3220 = vshll.u32 %v3176, 16
      %v3222 = vrot.slane %v3220, 4
      %v3223 = vor.u32 %v3219, %v3222
      %v3224 = vsel %vm570, %v3214, %v3223
      %v3226 = vshrl.u32 %v3177, 16
      %v3228 = vrot.slane %v3226, 3
      %v3229 = vshll.u32 %v3177, 16
      %v3231 = vrot.slane %v3229, 4
      %v3232 = vor.u32 %v3228, %v3231
      %v3233 = vsel %vm570, %v3223, %v3232
      %v3235 = vshrl.u32 %v3178, 16
      %v3237 = vrot.slane %v3235, 3
      %v3238 = vshll.u32 %v3178, 16
      %v3240 = vrot.slane %v3238, 4
      %v3241 = vor.u32 %v3237, %v3240
      %v3242 = vsel %vm570, %v3232, %v3241
      %v3244 = vshrl.u32 %v3179, 16
      %v3246 = vrot.slane %v3244, 3
      %v3247 = vshll.u32 %v3179, 16
      %v3249 = vrot.slane %v3247, 4
      %v3250 = vor.u32 %v3246, %v3249
      %v3251 = vsel %vm570, %v3241, %v3250
      %v3253 = vshrl.u32 %v3180, 16
      %v3255 = vrot.slane %v3253, 3
      %v3256 = vshll.u32 %v3180, 16
      %v3258 = vrot.slane %v3256, 4
      %v3259 = vor.u32 %v3255, %v3258
      %v3260 = vsel %vm570, %v3250, %v3259
      %v3262 = vsel %vm433, %v3197, 0
      %v3265 = vsel %vm433, %v3206, 0
      %v3268 = vsel %vm433, %v3215, 0
      %v3271 = vsel %vm433, %v3224, 0
      %v3274 = vsel %vm433, %v3233, 0
      %v3277 = vsel %vm433, %v3242, 0
      %v3280 = vsel %vm433, %v3251, 0
      %v3283 = vsel %vm433, %v3260, 0
      %v3286 = vsel %vm458, %v3137, 0
      %3288 = vmatprep.subr.bf16.mxu0 0
      %3289 = vmatpush1.bf16.msra.mxu0 %v3286
      %3290 = vmatprep.subr.bf16.mxu0 0
      %3291 = vmatpush1.bf16.msra.mxu0 0
      %3292 = vmatprep.subr.bf16.mxu0 0
      %3293 = vmatpush1.bf16.msra.mxu0 0
      %3294 = vmatprep.subr.bf16.mxu0 0
      %3295 = vmatpush1.bf16.msra.mxu0 0
      %3296 = vmatprep.subr.bf16.mxu0 0
      %3297 = vmatpush1.bf16.msra.mxu0 0
      %3298 = vmatprep.subr.bf16.mxu0 0
      %3299 = vmatpush1.bf16.msra.mxu0 0
      %3300 = vmatprep.subr.bf16.mxu0 0
      %3301 = vmatpush1.bf16.msra.mxu0 0
      %3302 = vmatprep.subr.bf16.mxu0 0
      %3303 = vmatpush1.bf16.msra.mxu0 0
      %3304 = vmatprep.subr.bf16.mxu0 0
      %3305 = vmatpush1.bf16.msra.mxu0 0
      %3306 = vmatprep.subr.bf16.mxu0 0
      %3307 = vmatpush1.bf16.msra.mxu0 0
      %3308 = vmatprep.subr.bf16.mxu0 0
      %3309 = vmatpush1.bf16.msra.mxu0 0
      %3310 = vmatprep.subr.bf16.mxu0 0
      %3311 = vmatpush1.bf16.msra.mxu0 0
      %3312 = vmatprep.subr.bf16.mxu0 0
      %3313 = vmatpush1.bf16.msra.mxu0 0
      %3314 = vmatprep.subr.bf16.mxu0 0
      %3315 = vmatpush1.bf16.msra.mxu0 0
      %3316 = vmatprep.subr.bf16.mxu0 0
      %3317 = vmatpush1.bf16.msra.mxu0 0
      %3318 = vmatprep.subr.bf16.mxu0 0
      %3319 = vmatpush1.bf16.msra.mxu0 0
      %3320 = vmatprep.mubr.bf16.mxu0 0
      %3321 = vmatmul.mubr.bf16.gmra.mrb[0].mxu0 %v3262
      %v3322 = vpop.f32.mrb[0].mxu0
      %v3323 = vadd.f32 0.0, %v3322
      %v3324 = vpop.f32.mrb[0].mxu0
      %v3325 = vpop.f32.mrb[0].mxu0
      %v3326 = vadd.f32 0.0, %v3325
      %v3327 = vpop.f32.mrb[0].mxu0
      %3328 = vmatprep.mubr.bf16.mxu0 0
      %3329 = vmatmul.mubr.bf16.gmra.mrb[0].mxu0 %v3265
      %v3330 = vpop.f32.mrb[0].mxu0
      %v3331 = vadd.f32 0.0, %v3330
      %v3332 = vpop.f32.mrb[0].mxu0
      %v3333 = vpop.f32.mrb[0].mxu0
      %v3334 = vadd.f32 0.0, %v3333
      %v3335 = vpop.f32.mrb[0].mxu0
      %3336 = vmatprep.mubr.bf16.mxu0 0
      %3337 = vmatmul.mubr.bf16.gmra.mrb[0].mxu0 %v3268
      %v3338 = vpop.f32.mrb[0].mxu0
      %v3339 = vadd.f32 0.0, %v3338
      %v3340 = vpop.f32.mrb[0].mxu0
      %v3341 = vpop.f32.mrb[0].mxu0
      %v3342 = vadd.f32 0.0, %v3341
      %v3343 = vpop.f32.mrb[0].mxu0
      %3344 = vmatprep.mubr.bf16.mxu0 0
      %3345 = vmatmul.mubr.bf16.gmra.mrb[0].mxu0 %v3271
      %v3346 = vpop.f32.mrb[0].mxu0
      %v3347 = vadd.f32 0.0, %v3346
      %v3348 = vpop.f32.mrb[0].mxu0
      %v3349 = vpop.f32.mrb[0].mxu0
      %v3350 = vadd.f32 0.0, %v3349
      %v3351 = vpop.f32.mrb[0].mxu0
      %3352 = vmatprep.mubr.bf16.mxu0 0
      %3353 = vmatmul.mubr.bf16.gmra.mrb[0].mxu0 %v3274
      %v3354 = vpop.f32.mrb[0].mxu0
      %v3355 = vadd.f32 0.0, %v3354
      %v3356 = vpop.f32.mrb[0].mxu0
      %v3357 = vpop.f32.mrb[0].mxu0
      %v3358 = vadd.f32 0.0, %v3357
      %v3359 = vpop.f32.mrb[0].mxu0
      %3360 = vmatprep.mubr.bf16.mxu0 0
      %3361 = vmatmul.mubr.bf16.gmra.mrb[0].mxu0 %v3277
      %v3362 = vpop.f32.mrb[0].mxu0
      %v3363 = vadd.f32 0.0, %v3362
      %v3364 = vpop.f32.mrb[0].mxu0
      %v3365 = vpop.f32.mrb[0].mxu0
      %v3366 = vadd.f32 0.0, %v3365
      %v3367 = vpop.f32.mrb[0].mxu0
      %3368 = vmatprep.mubr.bf16.mxu0 0
      %3369 = vmatmul.mubr.bf16.gmra.mrb[0].mxu0 %v3280
      %v3370 = vpop.f32.mrb[0].mxu0
      %v3371 = vadd.f32 0.0, %v3370
      %v3372 = vpop.f32.mrb[0].mxu0
      %v3373 = vpop.f32.mrb[0].mxu0
      %v3374 = vadd.f32 0.0, %v3373
      %v3375 = vpop.f32.mrb[0].mxu0
      %3376 = vmatprep.mubr.bf16.mxu0 0
      %3377 = vmatmul.mubr.bf16.gmra.mrb[0].mxu0 %v3283
      %v3378 = vpop.f32.mrb[0].mxu0
      %v3379 = vadd.f32 0.0, %v3378
      %v3380 = vpop.f32.mrb[0].mxu0
      %v3381 = vpop.f32.mrb[0].mxu0
      %v3382 = vadd.f32 0.0, %v3381
      %v3383 = vpop.f32.mrb[0].mxu0
      %3384 = vdwg.mxu0
      %v3385 = vadd.f32 %v3103, %v3323
      %v3386 = vadd.f32 %v3104, %v3326
      %v3387 = vadd.f32 %v3105, %v3331
      %v3388 = vadd.f32 %v3106, %v3334
      %v3389 = vadd.f32 %v3107, %v3339
      %v3390 = vadd.f32 %v3108, %v3342
      %v3391 = vadd.f32 %v3109, %v3347
      %v3392 = vadd.f32 %v3110, %v3350
      %v3393 = vadd.f32 %v3111, %v3355
      %v3394 = vadd.f32 %v3112, %v3358
      %v3395 = vadd.f32 %v3113, %v3363
      %v3396 = vadd.f32 %v3114, %v3366
      %v3397 = vadd.f32 %v3115, %v3371
      %v3398 = vadd.f32 %v3116, %v3374
      %v3399 = vadd.f32 %v3117, %v3379
      %v3400 = vadd.f32 %v3118, %v3382
      %s3401 = scalar_lea.vmem %s3, 16
      %v3402 = vld [vmem:[%s3401] sm:$0xf]
      %v3403 = vpack.c.b16 %v3157, %v3156
      %v3404 = vpack.c.b16 %v3159, %v3158
      %v3405 = vpack.c.b16 %v3161, %v3160
      %v3406 = vpack.c.b16 %v3163, %v3162
      %v3407 = vpack.c.b16 %v3165, %v3164
      %v3408 = vpack.c.b16 %v3167, %v3166
      %v3409 = vpack.c.b16 %v3169, %v3168
      %v3410 = vpack.c.b16 %v3171, %v3170
      %v3412 = vsel %vm433, %v3403, 0
      %v3415 = vsel %vm433, %v3404, 0
      %v3418 = vsel %vm433, %v3405, 0
      %v3421 = vsel %vm433, %v3406, 0
      %v3424 = vsel %vm433, %v3407, 0
      %v3427 = vsel %vm433, %v3408, 0
      %v3430 = vsel %vm433, %v3409, 0
      %v3433 = vsel %vm433, %v3410, 0
      %v3436 = vsel %vm458, %v3402, 0
      %3438 = vmatprep.subr.bf16.mxu0 0
      %3439 = vmatpush1.bf16.msra.mxu0 %v3436
      %3440 = vmatprep.subr.bf16.mxu0 0
      %3441 = vmatpush1.bf16.msra.mxu0 0
      %3442 = vmatprep.subr.bf16.mxu0 0
      %3443 = vmatpush1.bf16.msra.mxu0 0
      %3444 = vmatprep.subr.bf16.mxu0 0
      %3445 = vmatpush1.bf16.msra.mxu0 0
      %3446 = vmatprep.subr.bf16.mxu0 0
      %3447 = vmatpush1.bf16.msra.mxu0 0
      %3448 = vmatprep.subr.bf16.mxu0 0
      %3449 = vmatpush1.bf16.msra.mxu0 0
      %3450 = vmatprep.subr.bf16.mxu0 0
      %3451 = vmatpush1.bf16.msra.mxu0 0
      %3452 = vmatprep.subr.bf16.mxu0 0
      %3453 = vmatpush1.bf16.msra.mxu0 0
      %3454 = vmatprep.subr.bf16.mxu0 0
      %3455 = vmatpush1.bf16.msra.mxu0 0
      %3456 = vmatprep.subr.bf16.mxu0 0
      %3457 = vmatpush1.bf16.msra.mxu0 0
      %3458 = vmatprep.subr.bf16.mxu0 0
      %3459 = vmatpush1.bf16.msra.mxu0 0
      %3460 = vmatprep.subr.bf16.mxu0 0
      %3461 = vmatpush1.bf16.msra.mxu0 0
      %3462 = vmatprep.subr.bf16.mxu0 0
      %3463 = vmatpush1.bf16.msra.mxu0 0
      %3464 = vmatprep.subr.bf16.mxu0 0
      %3465 = vmatpush1.bf16.msra.mxu0 0
      %3466 = vmatprep.subr.bf16.mxu0 0
      %3467 = vmatpush1.bf16.msra.mxu0 0
      %3468 = vmatprep.subr.bf16.mxu0 0
      %3469 = vmatpush1.bf16.msra.mxu0 0
      %3470 = vmatprep.mubr.bf16.mxu0 0
      %3471 = vmatmul.mubr.bf16.gmra.mrb[0].mxu0 %v3412
      %v3472 = vpop.f32.mrb[0].mxu0
      %v3473 = vadd.f32 0.0, %v3472
      %v3474 = vpop.f32.mrb[0].mxu0
      %v3475 = vpop.f32.mrb[0].mxu0
      %v3476 = vadd.f32 0.0, %v3475
      %v3477 = vpop.f32.mrb[0].mxu0
      %3478 = vmatprep.mubr.bf16.mxu0 0
      %3479 = vmatmul.mubr.bf16.gmra.mrb[0].mxu0 %v3415
      %v3480 = vpop.f32.mrb[0].mxu0
      %v3481 = vadd.f32 0.0, %v3480
      %v3482 = vpop.f32.mrb[0].mxu0
      %v3483 = vpop.f32.mrb[0].mxu0
      %v3484 = vadd.f32 0.0, %v3483
      %v3485 = vpop.f32.mrb[0].mxu0
      %3486 = vmatprep.mubr.bf16.mxu0 0
      %3487 = vmatmul.mubr.bf16.gmra.mrb[0].mxu0 %v3418
      %v3488 = vpop.f32.mrb[0].mxu0
      %v3489 = vadd.f32 0.0, %v3488
      %v3490 = vpop.f32.mrb[0].mxu0
      %v3491 = vpop.f32.mrb[0].mxu0
      %v3492 = vadd.f32 0.0, %v3491
      %v3493 = vpop.f32.mrb[0].mxu0
      %3494 = vmatprep.mubr.bf16.mxu0 0
      %3495 = vmatmul.mubr.bf16.gmra.mrb[0].mxu0 %v3421
      %v3496 = vpop.f32.mrb[0].mxu0
      %v3497 = vadd.f32 0.0, %v3496
      %v3498 = vpop.f32.mrb[0].mxu0
      %v3499 = vpop.f32.mrb[0].mxu0
      %v3500 = vadd.f32 0.0, %v3499
      %v3501 = vpop.f32.mrb[0].mxu0
      %3502 = vmatprep.mubr.bf16.mxu0 0
      %3503 = vmatmul.mubr.bf16.gmra.mrb[0].mxu0 %v3424
      %v3504 = vpop.f32.mrb[0].mxu0
      %v3505 = vadd.f32 0.0, %v3504
      %v3506 = vpop.f32.mrb[0].mxu0
      %v3507 = vpop.f32.mrb[0].mxu0
      %v3508 = vadd.f32 0.0, %v3507
      %v3509 = vpop.f32.mrb[0].mxu0
      %3510 = vmatprep.mubr.bf16.mxu0 0
      %3511 = vmatmul.mubr.bf16.gmra.mrb[0].mxu0 %v3427
      %v3512 = vpop.f32.mrb[0].mxu0
      %v3513 = vadd.f32 0.0, %v3512
      %v3514 = vpop.f32.mrb[0].mxu0
      %v3515 = vpop.f32.mrb[0].mxu0
      %v3516 = vadd.f32 0.0, %v3515
      %v3517 = vpop.f32.mrb[0].mxu0
      %3518 = vmatprep.mubr.bf16.mxu0 0
      %3519 = vmatmul.mubr.bf16.gmra.mrb[0].mxu0 %v3430
      %v3520 = vpop.f32.mrb[0].mxu0
      %v3521 = vadd.f32 0.0, %v3520
      %v3522 = vpop.f32.mrb[0].mxu0
      %v3523 = vpop.f32.mrb[0].mxu0
      %v3524 = vadd.f32 0.0, %v3523
      %v3525 = vpop.f32.mrb[0].mxu0
      %3526 = vmatprep.mubr.bf16.mxu0 0
      %3527 = vmatmul.mubr.bf16.gmra.mrb[0].mxu0 %v3433
      %v3528 = vpop.f32.mrb[0].mxu0
      %v3529 = vadd.f32 0.0, %v3528
      %v3530 = vpop.f32.mrb[0].mxu0
      %v3531 = vpop.f32.mrb[0].mxu0
      %v3532 = vadd.f32 0.0, %v3531
      %v3533 = vpop.f32.mrb[0].mxu0
      %3534 = vdwg.mxu0
      %v3535 = vadd.f32 %v3385, %v3473
      %v3536 = vadd.f32 %v3386, %v3476
      %v3537 = vadd.f32 %v3387, %v3481
      %v3538 = vadd.f32 %v3388, %v3484
      %v3539 = vadd.f32 %v3389, %v3489
      %v3540 = vadd.f32 %v3390, %v3492
      %v3541 = vadd.f32 %v3391, %v3497
      %v3542 = vadd.f32 %v3392, %v3500
      %v3543 = vadd.f32 %v3393, %v3505
      %v3544 = vadd.f32 %v3394, %v3508
      %v3545 = vadd.f32 %v3395, %v3513
      %v3546 = vadd.f32 %v3396, %v3516
      %v3547 = vadd.f32 %v3397, %v3521
      %v3548 = vadd.f32 %v3398, %v3524
      %v3549 = vadd.f32 %v3399, %v3529
      %v3550 = vadd.f32 %v3400, %v3532
      %v3551 = vld [vmem:[%s334 + $0x10] sm:$0xf]
      %v3552 = vld [vmem:[%s334 + $0x14] sm:$0xf]
      %v3553 = vld [vmem:[%s334 + $0x18] sm:$0xf]
      %v3554 = vld [vmem:[%s334 + $0x1c] sm:$0xf]
      %v3555 = vld [vmem:[%s334 + $0x20] sm:$0xf]
      %v3556 = vld [vmem:[%s334 + $0x24] sm:$0xf]
      %v3557 = vld [vmem:[%s334 + $0x28] sm:$0xf]
      %v3558 = vld [vmem:[%s334 + $0x2c] sm:$0xf]
      %v3559 = vld [vmem:[%s334 + $0x30] sm:$0xf]
      %v3560 = vld [vmem:[%s334 + $0x34] sm:$0xf]
      %v3561 = vld [vmem:[%s334 + $0x38] sm:$0xf]
      %v3562 = vld [vmem:[%s334 + $0x3c] sm:$0xf]
      %v3563 = vld [vmem:[%s334 + $0x40] sm:$0xf]
      %v3564 = vld [vmem:[%s334 + $0x44] sm:$0xf]
      %v3565 = vld [vmem:[%s334 + $0x48] sm:$0xf]
      %v3566 = vld [vmem:[%s334 + $0x4c] sm:$0xf]
      %v3567 = vld [vmem:[%s334 + $0x50] sm:$0x1]
      %s3568 = scalar_lea.vmem %s3, 20
      %v3569 = vld [vmem:[%s3568] sm:$0xf]
      %v3587 = vunpack.c.l.b16 %v3551
      %v3588 = vunpack.c.l.b16 %v3552
      %v3589 = vunpack.c.l.b16 %v3553
      %v3590 = vunpack.c.l.b16 %v3554
      %v3591 = vunpack.c.l.b16 %v3555
      %v3592 = vunpack.c.l.b16 %v3556
      %v3593 = vunpack.c.l.b16 %v3557
      %v3594 = vunpack.c.l.b16 %v3558
      %v3595 = vunpack.c.l.b16 %v3559
      %v3596 = vunpack.c.l.b16 %v3560
      %v3597 = vunpack.c.l.b16 %v3561
      %v3598 = vunpack.c.l.b16 %v3562
      %v3599 = vunpack.c.l.b16 %v3563
      %v3600 = vunpack.c.l.b16 %v3564
      %v3601 = vunpack.c.l.b16 %v3565
      %v3602 = vunpack.c.l.b16 %v3566
      %v3603 = vunpack.c.l.b16 %v3567
      %v3604 = vpack.c.b16 %v3588, %v3587
      %v3605 = vpack.c.b16 %v3590, %v3589
      %v3606 = vpack.c.b16 %v3592, %v3591
      %v3607 = vpack.c.b16 %v3594, %v3593
      %v3608 = vpack.c.b16 %v3596, %v3595
      %v3609 = vpack.c.b16 %v3598, %v3597
      %v3610 = vpack.c.b16 %v3600, %v3599
      %v3611 = vpack.c.b16 %v3602, %v3601
      %v3612 = vpack.c.b16 %v3603, %v3603
      %v3614 = vshrl.u32 %v3604, 16
      %v3616 = vshll.u32 %v3604, 16
      %v3618 = vrot.slane %v3616, 1
      %v3619 = vor.u32 %v3614, %v3618
      %v3621 = vshll.u32 %v3605, 16
      %v3623 = vrot.slane %v3621, 1
      %v3624 = vsel %vm837, %v3619, %v3623
      %v3625 = vshrl.u32 %v3605, 16
      %v3627 = vor.u32 %v3625, %v3623
      %v3629 = vshll.u32 %v3606, 16
      %v3631 = vrot.slane %v3629, 1
      %v3632 = vsel %vm837, %v3627, %v3631
      %v3633 = vshrl.u32 %v3606, 16
      %v3635 = vor.u32 %v3633, %v3631
      %v3637 = vshll.u32 %v3607, 16
      %v3639 = vrot.slane %v3637, 1
      %v3640 = vsel %vm837, %v3635, %v3639
      %v3641 = vshrl.u32 %v3607, 16
      %v3643 = vor.u32 %v3641, %v3639
      %v3645 = vshll.u32 %v3608, 16
      %v3647 = vrot.slane %v3645, 1
      %v3648 = vsel %vm837, %v3643, %v3647
      %v3649 = vshrl.u32 %v3608, 16
      %v3651 = vor.u32 %v3649, %v3647
      %v3653 = vshll.u32 %v3609, 16
      %v3655 = vrot.slane %v3653, 1
      %v3656 = vsel %vm837, %v3651, %v3655
      %v3657 = vshrl.u32 %v3609, 16
      %v3659 = vor.u32 %v3657, %v3655
      %v3661 = vshll.u32 %v3610, 16
      %v3663 = vrot.slane %v3661, 1
      %v3664 = vsel %vm837, %v3659, %v3663
      %v3665 = vshrl.u32 %v3610, 16
      %v3667 = vor.u32 %v3665, %v3663
      %v3669 = vshll.u32 %v3611, 16
      %v3671 = vrot.slane %v3669, 1
      %v3672 = vsel %vm837, %v3667, %v3671
      %v3673 = vshrl.u32 %v3611, 16
      %v3675 = vor.u32 %v3673, %v3671
      %v3677 = vshll.u32 %v3612, 16
      %v3679 = vrot.slane %v3677, 1
      %v3680 = vsel %vm837, %v3675, %v3679
      %v3682 = vsel %vm433, %v3624, 0
      %v3685 = vsel %vm433, %v3632, 0
      %v3688 = vsel %vm433, %v3640, 0
      %v3691 = vsel %vm433, %v3648, 0
      %v3694 = vsel %vm433, %v3656, 0
      %v3697 = vsel %vm433, %v3664, 0
      %v3700 = vsel %vm433, %v3672, 0
      %v3703 = vsel %vm433, %v3680, 0
      %v3706 = vsel %vm458, %v3569, 0
      %3708 = vmatprep.subr.bf16.mxu0 0
      %3709 = vmatpush1.bf16.msra.mxu0 %v3706
      %3710 = vmatprep.subr.bf16.mxu0 0
      %3711 = vmatpush1.bf16.msra.mxu0 0
      %3712 = vmatprep.subr.bf16.mxu0 0
      %3713 = vmatpush1.bf16.msra.mxu0 0
      %3714 = vmatprep.subr.bf16.mxu0 0
      %3715 = vmatpush1.bf16.msra.mxu0 0
      %3716 = vmatprep.subr.bf16.mxu0 0
      %3717 = vmatpush1.bf16.msra.mxu0 0
      %3718 = vmatprep.subr.bf16.mxu0 0
      %3719 = vmatpush1.bf16.msra.mxu0 0
      %3720 = vmatprep.subr.bf16.mxu0 0
      %3721 = vmatpush1.bf16.msra.mxu0 0
      %3722 = vmatprep.subr.bf16.mxu0 0
      %3723 = vmatpush1.bf16.msra.mxu0 0
      %3724 = vmatprep.subr.bf16.mxu0 0
      %3725 = vmatpush1.bf16.msra.mxu0 0
      %3726 = vmatprep.subr.bf16.mxu0 0
      %3727 = vmatpush1.bf16.msra.mxu0 0
      %3728 = vmatprep.subr.bf16.mxu0 0
      %3729 = vmatpush1.bf16.msra.mxu0 0
      %3730 = vmatprep.subr.bf16.mxu0 0
      %3731 = vmatpush1.bf16.msra.mxu0 0
      %3732 = vmatprep.subr.bf16.mxu0 0
      %3733 = vmatpush1.bf16.msra.mxu0 0
      %3734 = vmatprep.subr.bf16.mxu0 0
      %3735 = vmatpush1.bf16.msra.mxu0 0
      %3736 = vmatprep.subr.bf16.mxu0 0
      %3737 = vmatpush1.bf16.msra.mxu0 0
      %3738 = vmatprep.subr.bf16.mxu0 0
      %3739 = vmatpush1.bf16.msra.mxu0 0
      %3740 = vmatprep.mubr.bf16.mxu0 0
      %3741 = vmatmul.mubr.bf16.gmra.mrb[0].mxu0 %v3682
      %v3742 = vpop.f32.mrb[0].mxu0
      %v3743 = vadd.f32 0.0, %v3742
      %v3744 = vpop.f32.mrb[0].mxu0
      %v3745 = vpop.f32.mrb[0].mxu0
      %v3746 = vadd.f32 0.0, %v3745
      %v3747 = vpop.f32.mrb[0].mxu0
      %3748 = vmatprep.mubr.bf16.mxu0 0
      %3749 = vmatmul.mubr.bf16.gmra.mrb[0].mxu0 %v3685
      %v3750 = vpop.f32.mrb[0].mxu0
      %v3751 = vadd.f32 0.0, %v3750
      %v3752 = vpop.f32.mrb[0].mxu0
      %v3753 = vpop.f32.mrb[0].mxu0
      %v3754 = vadd.f32 0.0, %v3753
      %v3755 = vpop.f32.mrb[0].mxu0
      %3756 = vmatprep.mubr.bf16.mxu0 0
      %3757 = vmatmul.mubr.bf16.gmra.mrb[0].mxu0 %v3688
      %v3758 = vpop.f32.mrb[0].mxu0
      %v3759 = vadd.f32 0.0, %v3758
      %v3760 = vpop.f32.mrb[0].mxu0
      %v3761 = vpop.f32.mrb[0].mxu0
      %v3762 = vadd.f32 0.0, %v3761
      %v3763 = vpop.f32.mrb[0].mxu0
      %3764 = vmatprep.mubr.bf16.mxu0 0
      %3765 = vmatmul.mubr.bf16.gmra.mrb[0].mxu0 %v3691
      %v3766 = vpop.f32.mrb[0].mxu0
      %v3767 = vadd.f32 0.0, %v3766
      %v3768 = vpop.f32.mrb[0].mxu0
      %v3769 = vpop.f32.mrb[0].mxu0
      %v3770 = vadd.f32 0.0, %v3769
      %v3771 = vpop.f32.mrb[0].mxu0
      %3772 = vmatprep.mubr.bf16.mxu0 0
      %3773 = vmatmul.mubr.bf16.gmra.mrb[0].mxu0 %v3694
      %v3774 = vpop.f32.mrb[0].mxu0
      %v3775 = vadd.f32 0.0, %v3774
      %v3776 = vpop.f32.mrb[0].mxu0
      %v3777 = vpop.f32.mrb[0].mxu0
      %v3778 = vadd.f32 0.0, %v3777
      %v3779 = vpop.f32.mrb[0].mxu0
      %3780 = vmatprep.mubr.bf16.mxu0 0
      %3781 = vmatmul.mubr.bf16.gmra.mrb[0].mxu0 %v3697
      %v3782 = vpop.f32.mrb[0].mxu0
      %v3783 = vadd.f32 0.0, %v3782
      %v3784 = vpop.f32.mrb[0].mxu0
      %v3785 = vpop.f32.mrb[0].mxu0
      %v3786 = vadd.f32 0.0, %v3785
      %v3787 = vpop.f32.mrb[0].mxu0
      %3788 = vmatprep.mubr.bf16.mxu0 0
      %3789 = vmatmul.mubr.bf16.gmra.mrb[0].mxu0 %v3700
      %v3790 = vpop.f32.mrb[0].mxu0
      %v3791 = vadd.f32 0.0, %v3790
      %v3792 = vpop.f32.mrb[0].mxu0
      %v3793 = vpop.f32.mrb[0].mxu0
      %v3794 = vadd.f32 0.0, %v3793
      %v3795 = vpop.f32.mrb[0].mxu0
      %3796 = vmatprep.mubr.bf16.mxu0 0
      %3797 = vmatmul.mubr.bf16.gmra.mrb[0].mxu0 %v3703
      %v3798 = vpop.f32.mrb[0].mxu0
      %v3799 = vadd.f32 0.0, %v3798
      %v3800 = vpop.f32.mrb[0].mxu0
      %v3801 = vpop.f32.mrb[0].mxu0
      %v3802 = vadd.f32 0.0, %v3801
      %v3803 = vpop.f32.mrb[0].mxu0
      %3804 = vdwg.mxu0
      %v3805 = vadd.f32 %v3535, %v3743
      %v3806 = vadd.f32 %v3536, %v3746
      %v3807 = vadd.f32 %v3537, %v3751
      %v3808 = vadd.f32 %v3538, %v3754
      %v3809 = vadd.f32 %v3539, %v3759
      %v3810 = vadd.f32 %v3540, %v3762
      %v3811 = vadd.f32 %v3541, %v3767
      %v3812 = vadd.f32 %v3542, %v3770
      %v3813 = vadd.f32 %v3543, %v3775
      %v3814 = vadd.f32 %v3544, %v3778
      %v3815 = vadd.f32 %v3545, %v3783
      %v3816 = vadd.f32 %v3546, %v3786
      %v3817 = vadd.f32 %v3547, %v3791
      %v3818 = vadd.f32 %v3548, %v3794
      %v3819 = vadd.f32 %v3549, %v3799
      %v3820 = vadd.f32 %v3550, %v3802
      %v3821 = vld [vmem:[%s334 + $0x14] sm:$0x8]
      %v3822 = vld [vmem:[%s334 + $0x18] sm:$0xf]
      %v3823 = vld [vmem:[%s334 + $0x1c] sm:$0xf]
      %v3824 = vld [vmem:[%s334 + $0x20] sm:$0xf]
      %v3825 = vld [vmem:[%s334 + $0x24] sm:$0xf]
      %v3826 = vld [vmem:[%s334 + $0x28] sm:$0xf]
      %v3827 = vld [vmem:[%s334 + $0x2c] sm:$0xf]
      %v3828 = vld [vmem:[%s334 + $0x30] sm:$0xf]
      %v3829 = vld [vmem:[%s334 + $0x34] sm:$0xf]
      %v3830 = vld [vmem:[%s334 + $0x38] sm:$0xf]
      %v3831 = vld [vmem:[%s334 + $0x3c] sm:$0xf]
      %v3832 = vld [vmem:[%s334 + $0x40] sm:$0xf]
      %v3833 = vld [vmem:[%s334 + $0x44] sm:$0xf]
      %v3834 = vld [vmem:[%s334 + $0x48] sm:$0xf]
      %v3835 = vld [vmem:[%s334 + $0x4c] sm:$0xf]
      %v3836 = vld [vmem:[%s334 + $0x50] sm:$0xf]
      %v3837 = vld [vmem:[%s334 + $0x54] sm:$0xf]
      %s3838 = scalar_lea.vmem %s3, 24
      %v3839 = vld [vmem:[%s3838] sm:$0xf]
      %v3857 = vunpack.c.l.b16 %v3821
      %v3858 = vunpack.c.l.b16 %v3822
      %v3859 = vunpack.c.l.b16 %v3823
      %v3860 = vunpack.c.l.b16 %v3824
      %v3861 = vunpack.c.l.b16 %v3825
      %v3862 = vunpack.c.l.b16 %v3826
      %v3863 = vunpack.c.l.b16 %v3827
      %v3864 = vunpack.c.l.b16 %v3828
      %v3865 = vunpack.c.l.b16 %v3829
      %v3866 = vunpack.c.l.b16 %v3830
      %v3867 = vunpack.c.l.b16 %v3831
      %v3868 = vunpack.c.l.b16 %v3832
      %v3869 = vunpack.c.l.b16 %v3833
      %v3870 = vunpack.c.l.b16 %v3834
      %v3871 = vunpack.c.l.b16 %v3835
      %v3872 = vunpack.c.l.b16 %v3836
      %v3873 = vunpack.c.l.b16 %v3837
      %v3874 = vpack.c.b16 %v3858, %v3857
      %v3875 = vpack.c.b16 %v3860, %v3859
      %v3876 = vpack.c.b16 %v3862, %v3861
      %v3877 = vpack.c.b16 %v3864, %v3863
      %v3878 = vpack.c.b16 %v3866, %v3865
      %v3879 = vpack.c.b16 %v3868, %v3867
      %v3880 = vpack.c.b16 %v3870, %v3869
      %v3881 = vpack.c.b16 %v3872, %v3871
      %v3882 = vpack.c.b16 %v3873, %v3873
      %v3884 = vshrl.u32 %v3874, 16
      %v3886 = vrot.slane %v3884, 3
      %v3887 = vshll.u32 %v3874, 16
      %v3889 = vrot.slane %v3887, 4
      %v3890 = vor.u32 %v3886, %v3889
      %v3892 = vshrl.u32 %v3875, 16
      %v3894 = vrot.slane %v3892, 3
      %v3895 = vshll.u32 %v3875, 16
      %v3897 = vrot.slane %v3895, 4
      %v3898 = vor.u32 %v3894, %v3897
      %v3899 = vsel %vm570, %v3890, %v3898
      %v3901 = vshrl.u32 %v3876, 16
      %v3903 = vrot.slane %v3901, 3
      %v3904 = vshll.u32 %v3876, 16
      %v3906 = vrot.slane %v3904, 4
      %v3907 = vor.u32 %v3903, %v3906
      %v3908 = vsel %vm570, %v3898, %v3907
      %v3910 = vshrl.u32 %v3877, 16
      %v3912 = vrot.slane %v3910, 3
      %v3913 = vshll.u32 %v3877, 16
      %v3915 = vrot.slane %v3913, 4
      %v3916 = vor.u32 %v3912, %v3915
      %v3917 = vsel %vm570, %v3907, %v3916
      %v3919 = vshrl.u32 %v3878, 16
      %v3921 = vrot.slane %v3919, 3
      %v3922 = vshll.u32 %v3878, 16
      %v3924 = vrot.slane %v3922, 4
      %v3925 = vor.u32 %v3921, %v3924
      %v3926 = vsel %vm570, %v3916, %v3925
      %v3928 = vshrl.u32 %v3879, 16
      %v3930 = vrot.slane %v3928, 3
      %v3931 = vshll.u32 %v3879, 16
      %v3933 = vrot.slane %v3931, 4
      %v3934 = vor.u32 %v3930, %v3933
      %v3935 = vsel %vm570, %v3925, %v3934
      %v3937 = vshrl.u32 %v3880, 16
      %v3939 = vrot.slane %v3937, 3
      %v3940 = vshll.u32 %v3880, 16
      %v3942 = vrot.slane %v3940, 4
      %v3943 = vor.u32 %v3939, %v3942
      %v3944 = vsel %vm570, %v3934, %v3943
      %v3946 = vshrl.u32 %v3881, 16
      %v3948 = vrot.slane %v3946, 3
      %v3949 = vshll.u32 %v3881, 16
      %v3951 = vrot.slane %v3949, 4
      %v3952 = vor.u32 %v3948, %v3951
      %v3953 = vsel %vm570, %v3943, %v3952
      %v3955 = vshrl.u32 %v3882, 16
      %v3957 = vrot.slane %v3955, 3
      %v3958 = vshll.u32 %v3882, 16
      %v3960 = vrot.slane %v3958, 4
      %v3961 = vor.u32 %v3957, %v3960
      %v3962 = vsel %vm570, %v3952, %v3961
      %v3964 = vsel %vm433, %v3899, 0
      %v3967 = vsel %vm433, %v3908, 0
      %v3970 = vsel %vm433, %v3917, 0
      %v3973 = vsel %vm433, %v3926, 0
      %v3976 = vsel %vm433, %v3935, 0
      %v3979 = vsel %vm433, %v3944, 0
      %v3982 = vsel %vm433, %v3953, 0
      %v3985 = vsel %vm433, %v3962, 0
      %v3988 = vsel %vm458, %v3839, 0
      %3990 = vmatprep.subr.bf16.mxu0 0
      %3991 = vmatpush1.bf16.msra.mxu0 %v3988
      %3992 = vmatprep.subr.bf16.mxu0 0
      %3993 = vmatpush1.bf16.msra.mxu0 0
      %3994 = vmatprep.subr.bf16.mxu0 0
      %3995 = vmatpush1.bf16.msra.mxu0 0
      %3996 = vmatprep.subr.bf16.mxu0 0
      %3997 = vmatpush1.bf16.msra.mxu0 0
      %3998 = vmatprep.subr.bf16.mxu0 0
      %3999 = vmatpush1.bf16.msra.mxu0 0
      %4000 = vmatprep.subr.bf16.mxu0 0
      %4001 = vmatpush1.bf16.msra.mxu0 0
      %4002 = vmatprep.subr.bf16.mxu0 0
      %4003 = vmatpush1.bf16.msra.mxu0 0
      %4004 = vmatprep.subr.bf16.mxu0 0
      %4005 = vmatpush1.bf16.msra.mxu0 0
      %4006 = vmatprep.subr.bf16.mxu0 0
      %4007 = vmatpush1.bf16.msra.mxu0 0
      %4008 = vmatprep.subr.bf16.mxu0 0
      %4009 = vmatpush1.bf16.msra.mxu0 0
      %4010 = vmatprep.subr.bf16.mxu0 0
      %4011 = vmatpush1.bf16.msra.mxu0 0
      %4012 = vmatprep.subr.bf16.mxu0 0
      %4013 = vmatpush1.bf16.msra.mxu0 0
      %4014 = vmatprep.subr.bf16.mxu0 0
      %4015 = vmatpush1.bf16.msra.mxu0 0
      %4016 = vmatprep.subr.bf16.mxu0 0
      %4017 = vmatpush1.bf16.msra.mxu0 0
      %4018 = vmatprep.subr.bf16.mxu0 0
      %4019 = vmatpush1.bf16.msra.mxu0 0
      %4020 = vmatprep.subr.bf16.mxu0 0
      %4021 = vmatpush1.bf16.msra.mxu0 0
      %4022 = vmatprep.mubr.bf16.mxu0 0
      %4023 = vmatmul.mubr.bf16.gmra.mrb[0].mxu0 %v3964
      %v4024 = vpop.f32.mrb[0].mxu0
      %v4025 = vadd.f32 0.0, %v4024
      %v4026 = vpop.f32.mrb[0].mxu0
      %v4027 = vpop.f32.mrb[0].mxu0
      %v4028 = vadd.f32 0.0, %v4027
      %v4029 = vpop.f32.mrb[0].mxu0
      %4030 = vmatprep.mubr.bf16.mxu0 0
      %4031 = vmatmul.mubr.bf16.gmra.mrb[0].mxu0 %v3967
      %v4032 = vpop.f32.mrb[0].mxu0
      %v4033 = vadd.f32 0.0, %v4032
      %v4034 = vpop.f32.mrb[0].mxu0
      %v4035 = vpop.f32.mrb[0].mxu0
      %v4036 = vadd.f32 0.0, %v4035
      %v4037 = vpop.f32.mrb[0].mxu0
      %4038 = vmatprep.mubr.bf16.mxu0 0
      %4039 = vmatmul.mubr.bf16.gmra.mrb[0].mxu0 %v3970
      %v4040 = vpop.f32.mrb[0].mxu0
      %v4041 = vadd.f32 0.0, %v4040
      %v4042 = vpop.f32.mrb[0].mxu0
      %v4043 = vpop.f32.mrb[0].mxu0
      %v4044 = vadd.f32 0.0, %v4043
      %v4045 = vpop.f32.mrb[0].mxu0
      %4046 = vmatprep.mubr.bf16.mxu0 0
      %4047 = vmatmul.mubr.bf16.gmra.mrb[0].mxu0 %v3973
      %v4048 = vpop.f32.mrb[0].mxu0
      %v4049 = vadd.f32 0.0, %v4048
      %v4050 = vpop.f32.mrb[0].mxu0
      %v4051 = vpop.f32.mrb[0].mxu0
      %v4052 = vadd.f32 0.0, %v4051
      %v4053 = vpop.f32.mrb[0].mxu0
      %4054 = vmatprep.mubr.bf16.mxu0 0
      %4055 = vmatmul.mubr.bf16.gmra.mrb[0].mxu0 %v3976
      %v4056 = vpop.f32.mrb[0].mxu0
      %v4057 = vadd.f32 0.0, %v4056
      %v4058 = vpop.f32.mrb[0].mxu0
      %v4059 = vpop.f32.mrb[0].mxu0
      %v4060 = vadd.f32 0.0, %v4059
      %v4061 = vpop.f32.mrb[0].mxu0
      %4062 = vmatprep.mubr.bf16.mxu0 0
      %4063 = vmatmul.mubr.bf16.gmra.mrb[0].mxu0 %v3979
      %v4064 = vpop.f32.mrb[0].mxu0
      %v4065 = vadd.f32 0.0, %v4064
      %v4066 = vpop.f32.mrb[0].mxu0
      %v4067 = vpop.f32.mrb[0].mxu0
      %v4068 = vadd.f32 0.0, %v4067
      %v4069 = vpop.f32.mrb[0].mxu0
      %4070 = vmatprep.mubr.bf16.mxu0 0
      %4071 = vmatmul.mubr.bf16.gmra.mrb[0].mxu0 %v3982
      %v4072 = vpop.f32.mrb[0].mxu0
      %v4073 = vadd.f32 0.0, %v4072
      %v4074 = vpop.f32.mrb[0].mxu0
      %v4075 = vpop.f32.mrb[0].mxu0
      %v4076 = vadd.f32 0.0, %v4075
      %v4077 = vpop.f32.mrb[0].mxu0
      %4078 = vmatprep.mubr.bf16.mxu0 0
      %4079 = vmatmul.mubr.bf16.gmra.mrb[0].mxu0 %v3985
      %v4080 = vpop.f32.mrb[0].mxu0
      %v4081 = vadd.f32 0.0, %v4080
      %v4082 = vpop.f32.mrb[0].mxu0
      %v4083 = vpop.f32.mrb[0].mxu0
      %v4084 = vadd.f32 0.0, %v4083
      %v4085 = vpop.f32.mrb[0].mxu0
      %4086 = vdwg.mxu0
      %v4087 = vadd.f32 %v3805, %v4025
      %v4088 = vadd.f32 %v3806, %v4028
      %v4089 = vadd.f32 %v3807, %v4033
      %v4090 = vadd.f32 %v3808, %v4036
      %v4091 = vadd.f32 %v3809, %v4041
      %v4092 = vadd.f32 %v3810, %v4044
      %v4093 = vadd.f32 %v3811, %v4049
      %v4094 = vadd.f32 %v3812, %v4052
      %v4095 = vadd.f32 %v3813, %v4057
      %v4096 = vadd.f32 %v3814, %v4060
      %v4097 = vadd.f32 %v3815, %v4065
      %v4098 = vadd.f32 %v3816, %v4068
      %v4099 = vadd.f32 %v3817, %v4073
      %v4100 = vadd.f32 %v3818, %v4076
      %v4101 = vadd.f32 %v3819, %v4081
      %v4102 = vadd.f32 %v3820, %v4084
      %s4103 = scalar_lea.vmem %s3, 28
      %v4104 = vld [vmem:[%s4103] sm:$0xf]
      %v4105 = vpack.c.b16 %v3859, %v3858
      %v4106 = vpack.c.b16 %v3861, %v3860
      %v4107 = vpack.c.b16 %v3863, %v3862
      %v4108 = vpack.c.b16 %v3865, %v3864
      %v4109 = vpack.c.b16 %v3867, %v3866
      %v4110 = vpack.c.b16 %v3869, %v3868
      %v4111 = vpack.c.b16 %v3871, %v3870
      %v4112 = vpack.c.b16 %v3873, %v3872
      %v4114 = vsel %vm433, %v4105, 0
      %v4117 = vsel %vm433, %v4106, 0
      %v4120 = vsel %vm433, %v4107, 0
      %v4123 = vsel %vm433, %v4108, 0
      %v4126 = vsel %vm433, %v4109, 0
      %v4129 = vsel %vm433, %v4110, 0
      %v4132 = vsel %vm433, %v4111, 0
      %v4135 = vsel %vm433, %v4112, 0
      %v4138 = vsel %vm458, %v4104, 0
      %4140 = vmatprep.subr.bf16.mxu0 0
      %4141 = vmatpush1.bf16.msra.mxu0 %v4138
      %4142 = vmatprep.subr.bf16.mxu0 0
      %4143 = vmatpush1.bf16.msra.mxu0 0
      %4144 = vmatprep.subr.bf16.mxu0 0
      %4145 = vmatpush1.bf16.msra.mxu0 0
      %4146 = vmatprep.subr.bf16.mxu0 0
      %4147 = vmatpush1.bf16.msra.mxu0 0
      %4148 = vmatprep.subr.bf16.mxu0 0
      %4149 = vmatpush1.bf16.msra.mxu0 0
      %4150 = vmatprep.subr.bf16.mxu0 0
      %4151 = vmatpush1.bf16.msra.mxu0 0
      %4152 = vmatprep.subr.bf16.mxu0 0
      %4153 = vmatpush1.bf16.msra.mxu0 0
      %4154 = vmatprep.subr.bf16.mxu0 0
      %4155 = vmatpush1.bf16.msra.mxu0 0
      %4156 = vmatprep.subr.bf16.mxu0 0
      %4157 = vmatpush1.bf16.msra.mxu0 0
      %4158 = vmatprep.subr.bf16.mxu0 0
      %4159 = vmatpush1.bf16.msra.mxu0 0
      %4160 = vmatprep.subr.bf16.mxu0 0
      %4161 = vmatpush1.bf16.msra.mxu0 0
      %4162 = vmatprep.subr.bf16.mxu0 0
      %4163 = vmatpush1.bf16.msra.mxu0 0
      %4164 = vmatprep.subr.bf16.mxu0 0
      %4165 = vmatpush1.bf16.msra.mxu0 0
      %4166 = vmatprep.subr.bf16.mxu0 0
      %4167 = vmatpush1.bf16.msra.mxu0 0
      %4168 = vmatprep.subr.bf16.mxu0 0
      %4169 = vmatpush1.bf16.msra.mxu0 0
      %4170 = vmatprep.subr.bf16.mxu0 0
      %4171 = vmatpush1.bf16.msra.mxu0 0
      %4172 = vmatprep.mubr.bf16.mxu0 0
      %4173 = vmatmul.mubr.bf16.gmra.mrb[0].mxu0 %v4114
      %v4174 = vpop.f32.mrb[0].mxu0
      %v4175 = vadd.f32 0.0, %v4174
      %v4176 = vpop.f32.mrb[0].mxu0
      %v4177 = vpop.f32.mrb[0].mxu0
      %v4178 = vadd.f32 0.0, %v4177
      %v4179 = vpop.f32.mrb[0].mxu0
      %4180 = vmatprep.mubr.bf16.mxu0 0
      %4181 = vmatmul.mubr.bf16.gmra.mrb[0].mxu0 %v4117
      %v4182 = vpop.f32.mrb[0].mxu0
      %v4183 = vadd.f32 0.0, %v4182
      %v4184 = vpop.f32.mrb[0].mxu0
      %v4185 = vpop.f32.mrb[0].mxu0
      %v4186 = vadd.f32 0.0, %v4185
      %v4187 = vpop.f32.mrb[0].mxu0
      %4188 = vmatprep.mubr.bf16.mxu0 0
      %4189 = vmatmul.mubr.bf16.gmra.mrb[0].mxu0 %v4120
      %v4190 = vpop.f32.mrb[0].mxu0
      %v4191 = vadd.f32 0.0, %v4190
      %v4192 = vpop.f32.mrb[0].mxu0
      %v4193 = vpop.f32.mrb[0].mxu0
      %v4194 = vadd.f32 0.0, %v4193
      %v4195 = vpop.f32.mrb[0].mxu0
      %4196 = vmatprep.mubr.bf16.mxu0 0
      %4197 = vmatmul.mubr.bf16.gmra.mrb[0].mxu0 %v4123
      %v4198 = vpop.f32.mrb[0].mxu0
      %v4199 = vadd.f32 0.0, %v4198
      %v4200 = vpop.f32.mrb[0].mxu0
      %v4201 = vpop.f32.mrb[0].mxu0
      %v4202 = vadd.f32 0.0, %v4201
      %v4203 = vpop.f32.mrb[0].mxu0
      %4204 = vmatprep.mubr.bf16.mxu0 0
      %4205 = vmatmul.mubr.bf16.gmra.mrb[0].mxu0 %v4126
      %v4206 = vpop.f32.mrb[0].mxu0
      %v4207 = vadd.f32 0.0, %v4206
      %v4208 = vpop.f32.mrb[0].mxu0
      %v4209 = vpop.f32.mrb[0].mxu0
      %v4210 = vadd.f32 0.0, %v4209
      %v4211 = vpop.f32.mrb[0].mxu0
      %4212 = vmatprep.mubr.bf16.mxu0 0
      %4213 = vmatmul.mubr.bf16.gmra.mrb[0].mxu0 %v4129
      %v4214 = vpop.f32.mrb[0].mxu0
      %v4215 = vadd.f32 0.0, %v4214
      %v4216 = vpop.f32.mrb[0].mxu0
      %v4217 = vpop.f32.mrb[0].mxu0
      %v4218 = vadd.f32 0.0, %v4217
      %v4219 = vpop.f32.mrb[0].mxu0
      %4220 = vmatprep.mubr.bf16.mxu0 0
      %4221 = vmatmul.mubr.bf16.gmra.mrb[0].mxu0 %v4132
      %v4222 = vpop.f32.mrb[0].mxu0
      %v4223 = vadd.f32 0.0, %v4222
      %v4224 = vpop.f32.mrb[0].mxu0
      %v4225 = vpop.f32.mrb[0].mxu0
      %v4226 = vadd.f32 0.0, %v4225
      %v4227 = vpop.f32.mrb[0].mxu0
      %4228 = vmatprep.mubr.bf16.mxu0 0
      %4229 = vmatmul.mubr.bf16.gmra.mrb[0].mxu0 %v4135
      %v4230 = vpop.f32.mrb[0].mxu0
      %v4231 = vadd.f32 0.0, %v4230
      %v4232 = vpop.f32.mrb[0].mxu0
      %v4233 = vpop.f32.mrb[0].mxu0
      %v4234 = vadd.f32 0.0, %v4233
      %v4235 = vpop.f32.mrb[0].mxu0
      %4236 = vdwg.mxu0
      %v4237 = vadd.f32 %v4087, %v4175
      %v4238 = vadd.f32 %v4088, %v4178
      %v4239 = vadd.f32 %v4089, %v4183
      %v4240 = vadd.f32 %v4090, %v4186
      %v4241 = vadd.f32 %v4091, %v4191
      %v4242 = vadd.f32 %v4092, %v4194
      %v4243 = vadd.f32 %v4093, %v4199
      %v4244 = vadd.f32 %v4094, %v4202
      %v4245 = vadd.f32 %v4095, %v4207
      %v4246 = vadd.f32 %v4096, %v4210
      %v4247 = vadd.f32 %v4097, %v4215
      %v4248 = vadd.f32 %v4098, %v4218
      %v4249 = vadd.f32 %v4099, %v4223
      %v4250 = vadd.f32 %v4100, %v4226
      %v4251 = vadd.f32 %v4101, %v4231
      %v4252 = vadd.f32 %v4102, %v4234
      %v4253 = vld [vmem:[%s334 + $0x18] sm:$0xf]
      %v4254 = vld [vmem:[%s334 + $0x1c] sm:$0xf]
      %v4255 = vld [vmem:[%s334 + $0x20] sm:$0xf]
      %v4256 = vld [vmem:[%s334 + $0x24] sm:$0xf]
      %v4257 = vld [vmem:[%s334 + $0x28] sm:$0xf]
      %v4258 = vld [vmem:[%s334 + $0x2c] sm:$0xf]
      %v4259 = vld [vmem:[%s334 + $0x30] sm:$0xf]
      %v4260 = vld [vmem:[%s334 + $0x34] sm:$0xf]
      %v4261 = vld [vmem:[%s334 + $0x38] sm:$0xf]
      %v4262 = vld [vmem:[%s334 + $0x3c] sm:$0xf]
      %v4263 = vld [vmem:[%s334 + $0x40] sm:$0xf]
      %v4264 = vld [vmem:[%s334 + $0x44] sm:$0xf]
      %v4265 = vld [vmem:[%s334 + $0x48] sm:$0xf]
      %v4266 = vld [vmem:[%s334 + $0x4c] sm:$0xf]
      %v4267 = vld [vmem:[%s334 + $0x50] sm:$0xf]
      %v4268 = vld [vmem:[%s334 + $0x54] sm:$0xf]
      %v4269 = vld [vmem:[%s334 + $0x58] sm:$0x1]
      %s4270 = scalar_lea.vmem %s3, 32
      %v4271 = vld [vmem:[%s4270] sm:$0xf]
      %v4289 = vunpack.c.l.b16 %v4253
      %v4290 = vunpack.c.l.b16 %v4254
      %v4291 = vunpack.c.l.b16 %v4255
      %v4292 = vunpack.c.l.b16 %v4256
      %v4293 = vunpack.c.l.b16 %v4257
      %v4294 = vunpack.c.l.b16 %v4258
      %v4295 = vunpack.c.l.b16 %v4259
      %v4296 = vunpack.c.l.b16 %v4260
      %v4297 = vunpack.c.l.b16 %v4261
      %v4298 = vunpack.c.l.b16 %v4262
      %v4299 = vunpack.c.l.b16 %v4263
      %v4300 = vunpack.c.l.b16 %v4264
      %v4301 = vunpack.c.l.b16 %v4265
      %v4302 = vunpack.c.l.b16 %v4266
      %v4303 = vunpack.c.l.b16 %v4267
      %v4304 = vunpack.c.l.b16 %v4268
      %v4305 = vunpack.c.l.b16 %v4269
      %v4306 = vpack.c.b16 %v4290, %v4289
      %v4307 = vpack.c.b16 %v4292, %v4291
      %v4308 = vpack.c.b16 %v4294, %v4293
      %v4309 = vpack.c.b16 %v4296, %v4295
      %v4310 = vpack.c.b16 %v4298, %v4297
      %v4311 = vpack.c.b16 %v4300, %v4299
      %v4312 = vpack.c.b16 %v4302, %v4301
      %v4313 = vpack.c.b16 %v4304, %v4303
      %v4314 = vpack.c.b16 %v4305, %v4305
      %v4316 = vshrl.u32 %v4306, 16
      %v4318 = vshll.u32 %v4306, 16
      %v4320 = vrot.slane %v4318, 1
      %v4321 = vor.u32 %v4316, %v4320
      %v4323 = vshll.u32 %v4307, 16
      %v4325 = vrot.slane %v4323, 1
      %v4326 = vsel %vm837, %v4321, %v4325
      %v4327 = vshrl.u32 %v4307, 16
      %v4329 = vor.u32 %v4327, %v4325
      %v4331 = vshll.u32 %v4308, 16
      %v4333 = vrot.slane %v4331, 1
      %v4334 = vsel %vm837, %v4329, %v4333
      %v4335 = vshrl.u32 %v4308, 16
      %v4337 = vor.u32 %v4335, %v4333
      %v4339 = vshll.u32 %v4309, 16
      %v4341 = vrot.slane %v4339, 1
      %v4342 = vsel %vm837, %v4337, %v4341
      %v4343 = vshrl.u32 %v4309, 16
      %v4345 = vor.u32 %v4343, %v4341
      %v4347 = vshll.u32 %v4310, 16
      %v4349 = vrot.slane %v4347, 1
      %v4350 = vsel %vm837, %v4345, %v4349
      %v4351 = vshrl.u32 %v4310, 16
      %v4353 = vor.u32 %v4351, %v4349
      %v4355 = vshll.u32 %v4311, 16
      %v4357 = vrot.slane %v4355, 1
      %v4358 = vsel %vm837, %v4353, %v4357
      %v4359 = vshrl.u32 %v4311, 16
      %v4361 = vor.u32 %v4359, %v4357
      %v4363 = vshll.u32 %v4312, 16
      %v4365 = vrot.slane %v4363, 1
      %v4366 = vsel %vm837, %v4361, %v4365
      %v4367 = vshrl.u32 %v4312, 16
      %v4369 = vor.u32 %v4367, %v4365
      %v4371 = vshll.u32 %v4313, 16
      %v4373 = vrot.slane %v4371, 1
      %v4374 = vsel %vm837, %v4369, %v4373
      %v4375 = vshrl.u32 %v4313, 16
      %v4377 = vor.u32 %v4375, %v4373
      %v4379 = vshll.u32 %v4314, 16
      %v4381 = vrot.slane %v4379, 1
      %v4382 = vsel %vm837, %v4377, %v4381
      %v4384 = vsel %vm433, %v4326, 0
      %v4387 = vsel %vm433, %v4334, 0
      %v4390 = vsel %vm433, %v4342, 0
      %v4393 = vsel %vm433, %v4350, 0
      %v4396 = vsel %vm433, %v4358, 0
      %v4399 = vsel %vm433, %v4366, 0
      %v4402 = vsel %vm433, %v4374, 0
      %v4405 = vsel %vm433, %v4382, 0
      %v4408 = vsel %vm458, %v4271, 0
      %4410 = vmatprep.subr.bf16.mxu0 0
      %4411 = vmatpush1.bf16.msra.mxu0 %v4408
      %4412 = vmatprep.subr.bf16.mxu0 0
      %4413 = vmatpush1.bf16.msra.mxu0 0
      %4414 = vmatprep.subr.bf16.mxu0 0
      %4415 = vmatpush1.bf16.msra.mxu0 0
      %4416 = vmatprep.subr.bf16.mxu0 0
      %4417 = vmatpush1.bf16.msra.mxu0 0
      %4418 = vmatprep.subr.bf16.mxu0 0
      %4419 = vmatpush1.bf16.msra.mxu0 0
      %4420 = vmatprep.subr.bf16.mxu0 0
      %4421 = vmatpush1.bf16.msra.mxu0 0
      %4422 = vmatprep.subr.bf16.mxu0 0
      %4423 = vmatpush1.bf16.msra.mxu0 0
      %4424 = vmatprep.subr.bf16.mxu0 0
      %4425 = vmatpush1.bf16.msra.mxu0 0
      %4426 = vmatprep.subr.bf16.mxu0 0
      %4427 = vmatpush1.bf16.msra.mxu0 0
      %4428 = vmatprep.subr.bf16.mxu0 0
      %4429 = vmatpush1.bf16.msra.mxu0 0
      %4430 = vmatprep.subr.bf16.mxu0 0
      %4431 = vmatpush1.bf16.msra.mxu0 0
      %4432 = vmatprep.subr.bf16.mxu0 0
      %4433 = vmatpush1.bf16.msra.mxu0 0
      %4434 = vmatprep.subr.bf16.mxu0 0
      %4435 = vmatpush1.bf16.msra.mxu0 0
      %4436 = vmatprep.subr.bf16.mxu0 0
      %4437 = vmatpush1.bf16.msra.mxu0 0
      %4438 = vmatprep.subr.bf16.mxu0 0
      %4439 = vmatpush1.bf16.msra.mxu0 0
      %4440 = vmatprep.subr.bf16.mxu0 0
      %4441 = vmatpush1.bf16.msra.mxu0 0
      %4442 = vmatprep.mubr.bf16.mxu0 0
      %4443 = vmatmul.mubr.bf16.gmra.mrb[0].mxu0 %v4384
      %v4444 = vpop.f32.mrb[0].mxu0
      %v4445 = vadd.f32 0.0, %v4444
      %v4446 = vpop.f32.mrb[0].mxu0
      %v4447 = vpop.f32.mrb[0].mxu0
      %v4448 = vadd.f32 0.0, %v4447
      %v4449 = vpop.f32.mrb[0].mxu0
      %4450 = vmatprep.mubr.bf16.mxu0 0
      %4451 = vmatmul.mubr.bf16.gmra.mrb[0].mxu0 %v4387
      %v4452 = vpop.f32.mrb[0].mxu0
      %v4453 = vadd.f32 0.0, %v4452
      %v4454 = vpop.f32.mrb[0].mxu0
      %v4455 = vpop.f32.mrb[0].mxu0
      %v4456 = vadd.f32 0.0, %v4455
      %v4457 = vpop.f32.mrb[0].mxu0
      %4458 = vmatprep.mubr.bf16.mxu0 0
      %4459 = vmatmul.mubr.bf16.gmra.mrb[0].mxu0 %v4390
      %v4460 = vpop.f32.mrb[0].mxu0
      %v4461 = vadd.f32 0.0, %v4460
      %v4462 = vpop.f32.mrb[0].mxu0
      %v4463 = vpop.f32.mrb[0].mxu0
      %v4464 = vadd.f32 0.0, %v4463
      %v4465 = vpop.f32.mrb[0].mxu0
      %4466 = vmatprep.mubr.bf16.mxu0 0
      %4467 = vmatmul.mubr.bf16.gmra.mrb[0].mxu0 %v4393
      %v4468 = vpop.f32.mrb[0].mxu0
      %v4469 = vadd.f32 0.0, %v4468
      %v4470 = vpop.f32.mrb[0].mxu0
      %v4471 = vpop.f32.mrb[0].mxu0
      %v4472 = vadd.f32 0.0, %v4471
      %v4473 = vpop.f32.mrb[0].mxu0
      %4474 = vmatprep.mubr.bf16.mxu0 0
      %4475 = vmatmul.mubr.bf16.gmra.mrb[0].mxu0 %v4396
      %v4476 = vpop.f32.mrb[0].mxu0
      %v4477 = vadd.f32 0.0, %v4476
      %v4478 = vpop.f32.mrb[0].mxu0
      %v4479 = vpop.f32.mrb[0].mxu0
      %v4480 = vadd.f32 0.0, %v4479
      %v4481 = vpop.f32.mrb[0].mxu0
      %4482 = vmatprep.mubr.bf16.mxu0 0
      %4483 = vmatmul.mubr.bf16.gmra.mrb[0].mxu0 %v4399
      %v4484 = vpop.f32.mrb[0].mxu0
      %v4485 = vadd.f32 0.0, %v4484
      %v4486 = vpop.f32.mrb[0].mxu0
      %v4487 = vpop.f32.mrb[0].mxu0
      %v4488 = vadd.f32 0.0, %v4487
      %v4489 = vpop.f32.mrb[0].mxu0
      %4490 = vmatprep.mubr.bf16.mxu0 0
      %4491 = vmatmul.mubr.bf16.gmra.mrb[0].mxu0 %v4402
      %v4492 = vpop.f32.mrb[0].mxu0
      %v4493 = vadd.f32 0.0, %v4492
      %v4494 = vpop.f32.mrb[0].mxu0
      %v4495 = vpop.f32.mrb[0].mxu0
      %v4496 = vadd.f32 0.0, %v4495
      %v4497 = vpop.f32.mrb[0].mxu0
      %4498 = vmatprep.mubr.bf16.mxu0 0
      %4499 = vmatmul.mubr.bf16.gmra.mrb[0].mxu0 %v4405
      %v4500 = vpop.f32.mrb[0].mxu0
      %v4501 = vadd.f32 0.0, %v4500
      %v4502 = vpop.f32.mrb[0].mxu0
      %v4503 = vpop.f32.mrb[0].mxu0
      %v4504 = vadd.f32 0.0, %v4503
      %v4505 = vpop.f32.mrb[0].mxu0
      %4506 = vdwg.mxu0
      %v4507 = vadd.f32 %v4237, %v4445
      %v4508 = vadd.f32 %v4238, %v4448
      %v4509 = vadd.f32 %v4239, %v4453
      %v4510 = vadd.f32 %v4240, %v4456
      %v4511 = vadd.f32 %v4241, %v4461
      %v4512 = vadd.f32 %v4242, %v4464
      %v4513 = vadd.f32 %v4243, %v4469
      %v4514 = vadd.f32 %v4244, %v4472
      %v4515 = vadd.f32 %v4245, %v4477
      %v4516 = vadd.f32 %v4246, %v4480
      %v4517 = vadd.f32 %v4247, %v4485
      %v4518 = vadd.f32 %v4248, %v4488
      %v4519 = vadd.f32 %v4249, %v4493
      %v4520 = vadd.f32 %v4250, %v4496
      %v4521 = vadd.f32 %v4251, %v4501
      %v4522 = vadd.f32 %v4252, %v4504
      %p4523 = scmp.gt.s32.totalorder %s21, 0
      %s4524 = scalar_select %p4523, 1, 0
      %s4525 = scvt.s32.f32 %s4524
      %v4526 = vstv %s4525
      %v4527 = vmul.f32 %v4507, %v4526
      %v4528 = vmul.f32 %v4508, %v4526
      %v4529 = vmul.f32 %v4509, %v4526
      %v4530 = vmul.f32 %v4510, %v4526
      %v4531 = vmul.f32 %v4511, %v4526
      %v4532 = vmul.f32 %v4512, %v4526
      %v4533 = vmul.f32 %v4513, %v4526
      %v4534 = vmul.f32 %v4514, %v4526
      %v4535 = vmul.f32 %v4515, %v4526
      %v4536 = vmul.f32 %v4516, %v4526
      %v4537 = vmul.f32 %v4517, %v4526
      %v4538 = vmul.f32 %v4518, %v4526
      %v4539 = vmul.f32 %v4519, %v4526
      %v4540 = vmul.f32 %v4520, %v4526
      %v4541 = vmul.f32 %v4521, %v4526
      %v4542 = vmul.f32 %v4522, %v4526
      %v4543 = vadd.f32 %v2434, %v4527
      %v4544 = vadd.f32 %v2435, %v4528
      %v4545 = vadd.f32 %v2436, %v4529
      %v4546 = vadd.f32 %v2437, %v4530
      %v4547 = vadd.f32 %v2438, %v4531
      %v4548 = vadd.f32 %v2439, %v4532
      %v4549 = vadd.f32 %v2440, %v4533
      %v4550 = vadd.f32 %v2441, %v4534
      %v4551 = vadd.f32 %v2442, %v4535
      %v4552 = vadd.f32 %v2443, %v4536
      %v4553 = vadd.f32 %v2444, %v4537
      %v4554 = vadd.f32 %v2445, %v4538
      %v4555 = vadd.f32 %v2446, %v4539
      %v4556 = vadd.f32 %v2447, %v4540
      %v4557 = vadd.f32 %v2448, %v4541
      %v4558 = vadd.f32 %v2449, %v4542
      %v4559 = vld [vmem:[%s358 + $0x4] sm:$0x8]
      %v4560 = vld [vmem:[%s358 + $0x8] sm:$0xf]
      %v4561 = vld [vmem:[%s358 + $0xc] sm:$0xf]
      %v4562 = vld [vmem:[%s358 + $0x10] sm:$0xf]
      %v4563 = vld [vmem:[%s358 + $0x14] sm:$0xf]
      %v4564 = vld [vmem:[%s358 + $0x18] sm:$0xf]
      %v4565 = vld [vmem:[%s358 + $0x1c] sm:$0xf]
      %v4566 = vld [vmem:[%s358 + $0x20] sm:$0xf]
      %v4567 = vld [vmem:[%s358 + $0x24] sm:$0xf]
      %v4568 = vld [vmem:[%s358 + $0x28] sm:$0xf]
      %v4569 = vld [vmem:[%s358 + $0x2c] sm:$0xf]
      %v4570 = vld [vmem:[%s358 + $0x30] sm:$0xf]
      %v4571 = vld [vmem:[%s358 + $0x34] sm:$0xf]
      %v4572 = vld [vmem:[%s358 + $0x38] sm:$0xf]
      %v4573 = vld [vmem:[%s358 + $0x3c] sm:$0xf]
      %v4574 = vld [vmem:[%s358 + $0x40] sm:$0xf]
      %v4575 = vld [vmem:[%s358 + $0x44] sm:$0xf]
      %s4576 = scalar_lea.vmem %s3, 72
      %v4577 = vld [vmem:[%s4576] sm:$0xf]
      %s4578 = scalar_lea.vmem %s3, 76
      %v4579 = vld [vmem:[%s4578] sm:$0xf]
      %v4596 = vunpack.c.l.b16 %v4560
      %v4597 = vunpack.c.l.b16 %v4561
      %v4598 = vunpack.c.l.b16 %v4562
      %v4599 = vunpack.c.l.b16 %v4563
      %v4600 = vunpack.c.l.b16 %v4564
      %v4601 = vunpack.c.l.b16 %v4565
      %v4602 = vunpack.c.l.b16 %v4566
      %v4603 = vunpack.c.l.b16 %v4567
      %v4604 = vunpack.c.l.b16 %v4568
      %v4605 = vunpack.c.l.b16 %v4569
      %v4606 = vunpack.c.l.b16 %v4570
      %v4607 = vunpack.c.l.b16 %v4571
      %v4608 = vunpack.c.l.b16 %v4572
      %v4609 = vunpack.c.l.b16 %v4573
      %v4610 = vunpack.c.l.b16 %v4574
      %v4611 = vunpack.c.l.b16 %v4575
      %v4612 = vpack.c.b16 %v4597, %v4596
      %v4613 = vpack.c.b16 %v4599, %v4598
      %v4614 = vpack.c.b16 %v4601, %v4600
      %v4615 = vpack.c.b16 %v4603, %v4602
      %v4616 = vpack.c.b16 %v4605, %v4604
      %v4617 = vpack.c.b16 %v4607, %v4606
      %v4618 = vpack.c.b16 %v4609, %v4608
      %v4619 = vpack.c.b16 %v4611, %v4610
      %v4621 = vsel %vm433, %v4612, 0
      %v4624 = vsel %vm433, %v4613, 0
      %v4627 = vsel %vm433, %v4614, 0
      %v4630 = vsel %vm433, %v4615, 0
      %v4633 = vsel %vm433, %v4616, 0
      %v4636 = vsel %vm433, %v4617, 0
      %v4639 = vsel %vm433, %v4618, 0
      %v4642 = vsel %vm433, %v4619, 0
      %v4645 = vsel %vm458, %v4579, 0
      %4647 = vmatprep.subr.bf16.mxu0 0
      %4648 = vmatpush1.bf16.msra.mxu0 %v4645
      %4649 = vmatprep.subr.bf16.mxu0 0
      %4650 = vmatpush1.bf16.msra.mxu0 0
      %4651 = vmatprep.subr.bf16.mxu0 0
      %4652 = vmatpush1.bf16.msra.mxu0 0
      %4653 = vmatprep.subr.bf16.mxu0 0
      %4654 = vmatpush1.bf16.msra.mxu0 0
      %4655 = vmatprep.subr.bf16.mxu0 0
      %4656 = vmatpush1.bf16.msra.mxu0 0
      %4657 = vmatprep.subr.bf16.mxu0 0
      %4658 = vmatpush1.bf16.msra.mxu0 0
      %4659 = vmatprep.subr.bf16.mxu0 0
      %4660 = vmatpush1.bf16.msra.mxu0 0
      %4661 = vmatprep.subr.bf16.mxu0 0
      %4662 = vmatpush1.bf16.msra.mxu0 0
      %4663 = vmatprep.subr.bf16.mxu0 0
      %4664 = vmatpush1.bf16.msra.mxu0 0
      %4665 = vmatprep.subr.bf16.mxu0 0
      %4666 = vmatpush1.bf16.msra.mxu0 0
      %4667 = vmatprep.subr.bf16.mxu0 0
      %4668 = vmatpush1.bf16.msra.mxu0 0
      %4669 = vmatprep.subr.bf16.mxu0 0
      %4670 = vmatpush1.bf16.msra.mxu0 0
      %4671 = vmatprep.subr.bf16.mxu0 0
      %4672 = vmatpush1.bf16.msra.mxu0 0
      %4673 = vmatprep.subr.bf16.mxu0 0
      %4674 = vmatpush1.bf16.msra.mxu0 0
      %4675 = vmatprep.subr.bf16.mxu0 0
      %4676 = vmatpush1.bf16.msra.mxu0 0
      %4677 = vmatprep.subr.bf16.mxu0 0
      %4678 = vmatpush1.bf16.msra.mxu0 0
      %4679 = vmatprep.mubr.bf16.mxu0 0
      %4680 = vmatmul.mubr.bf16.gmra.mrb[0].mxu0 %v4621
      %v4681 = vpop.f32.mrb[0].mxu0
      %v4682 = vadd.f32 0.0, %v4681
      %v4683 = vpop.f32.mrb[0].mxu0
      %v4684 = vpop.f32.mrb[0].mxu0
      %v4685 = vadd.f32 0.0, %v4684
      %v4686 = vpop.f32.mrb[0].mxu0
      %4687 = vmatprep.mubr.bf16.mxu0 0
      %4688 = vmatmul.mubr.bf16.gmra.mrb[0].mxu0 %v4624
      %v4689 = vpop.f32.mrb[0].mxu0
      %v4690 = vadd.f32 0.0, %v4689
      %v4691 = vpop.f32.mrb[0].mxu0
      %v4692 = vpop.f32.mrb[0].mxu0
      %v4693 = vadd.f32 0.0, %v4692
      %v4694 = vpop.f32.mrb[0].mxu0
      %4695 = vmatprep.mubr.bf16.mxu0 0
      %4696 = vmatmul.mubr.bf16.gmra.mrb[0].mxu0 %v4627
      %v4697 = vpop.f32.mrb[0].mxu0
      %v4698 = vadd.f32 0.0, %v4697
      %v4699 = vpop.f32.mrb[0].mxu0
      %v4700 = vpop.f32.mrb[0].mxu0
      %v4701 = vadd.f32 0.0, %v4700
      %v4702 = vpop.f32.mrb[0].mxu0
      %4703 = vmatprep.mubr.bf16.mxu0 0
      %4704 = vmatmul.mubr.bf16.gmra.mrb[0].mxu0 %v4630
      %v4705 = vpop.f32.mrb[0].mxu0
      %v4706 = vadd.f32 0.0, %v4705
      %v4707 = vpop.f32.mrb[0].mxu0
      %v4708 = vpop.f32.mrb[0].mxu0
      %v4709 = vadd.f32 0.0, %v4708
      %v4710 = vpop.f32.mrb[0].mxu0
      %4711 = vmatprep.mubr.bf16.mxu0 0
      %4712 = vmatmul.mubr.bf16.gmra.mrb[0].mxu0 %v4633
      %v4713 = vpop.f32.mrb[0].mxu0
      %v4714 = vadd.f32 0.0, %v4713
      %v4715 = vpop.f32.mrb[0].mxu0
      %v4716 = vpop.f32.mrb[0].mxu0
      %v4717 = vadd.f32 0.0, %v4716
      %v4718 = vpop.f32.mrb[0].mxu0
      %4719 = vmatprep.mubr.bf16.mxu0 0
      %4720 = vmatmul.mubr.bf16.gmra.mrb[0].mxu0 %v4636
      %v4721 = vpop.f32.mrb[0].mxu0
      %v4722 = vadd.f32 0.0, %v4721
      %v4723 = vpop.f32.mrb[0].mxu0
      %v4724 = vpop.f32.mrb[0].mxu0
      %v4725 = vadd.f32 0.0, %v4724
      %v4726 = vpop.f32.mrb[0].mxu0
      %4727 = vmatprep.mubr.bf16.mxu0 0
      %4728 = vmatmul.mubr.bf16.gmra.mrb[0].mxu0 %v4639
      %v4729 = vpop.f32.mrb[0].mxu0
      %v4730 = vadd.f32 0.0, %v4729
      %v4731 = vpop.f32.mrb[0].mxu0
      %v4732 = vpop.f32.mrb[0].mxu0
      %v4733 = vadd.f32 0.0, %v4732
      %v4734 = vpop.f32.mrb[0].mxu0
      %4735 = vmatprep.mubr.bf16.mxu0 0
      %4736 = vmatmul.mubr.bf16.gmra.mrb[0].mxu0 %v4642
      %v4737 = vpop.f32.mrb[0].mxu0
      %v4738 = vadd.f32 0.0, %v4737
      %v4739 = vpop.f32.mrb[0].mxu0
      %v4740 = vpop.f32.mrb[0].mxu0
      %v4741 = vadd.f32 0.0, %v4740
      %v4742 = vpop.f32.mrb[0].mxu0
      %4743 = vdwg.mxu0
      %v4745 = vunpack.c.l.b16 %v4559
      %v4746 = vpack.c.b16 %v4596, %v4745
      %v4747 = vpack.c.b16 %v4598, %v4597
      %v4748 = vpack.c.b16 %v4600, %v4599
      %v4749 = vpack.c.b16 %v4602, %v4601
      %v4750 = vpack.c.b16 %v4604, %v4603
      %v4751 = vpack.c.b16 %v4606, %v4605
      %v4752 = vpack.c.b16 %v4608, %v4607
      %v4753 = vpack.c.b16 %v4610, %v4609
      %v4754 = vpack.c.b16 %v4611, %v4611
      %v4756 = vshrl.u32 %v4746, 16
      %v4758 = vrot.slane %v4756, 3
      %v4759 = vshll.u32 %v4746, 16
      %v4761 = vrot.slane %v4759, 4
      %v4762 = vor.u32 %v4758, %v4761
      %v4764 = vshrl.u32 %v4747, 16
      %v4766 = vrot.slane %v4764, 3
      %v4767 = vshll.u32 %v4747, 16
      %v4769 = vrot.slane %v4767, 4
      %v4770 = vor.u32 %v4766, %v4769
      %v4771 = vsel %vm570, %v4762, %v4770
      %v4773 = vshrl.u32 %v4748, 16
      %v4775 = vrot.slane %v4773, 3
      %v4776 = vshll.u32 %v4748, 16
      %v4778 = vrot.slane %v4776, 4
      %v4779 = vor.u32 %v4775, %v4778
      %v4780 = vsel %vm570, %v4770, %v4779
      %v4782 = vshrl.u32 %v4749, 16
      %v4784 = vrot.slane %v4782, 3
      %v4785 = vshll.u32 %v4749, 16
      %v4787 = vrot.slane %v4785, 4
      %v4788 = vor.u32 %v4784, %v4787
      %v4789 = vsel %vm570, %v4779, %v4788
      %v4791 = vshrl.u32 %v4750, 16
      %v4793 = vrot.slane %v4791, 3
      %v4794 = vshll.u32 %v4750, 16
      %v4796 = vrot.slane %v4794, 4
      %v4797 = vor.u32 %v4793, %v4796
      %v4798 = vsel %vm570, %v4788, %v4797
      %v4800 = vshrl.u32 %v4751, 16
      %v4802 = vrot.slane %v4800, 3
      %v4803 = vshll.u32 %v4751, 16
      %v4805 = vrot.slane %v4803, 4
      %v4806 = vor.u32 %v4802, %v4805
      %v4807 = vsel %vm570, %v4797, %v4806
      %v4809 = vshrl.u32 %v4752, 16
      %v4811 = vrot.slane %v4809, 3
      %v4812 = vshll.u32 %v4752, 16
      %v4814 = vrot.slane %v4812, 4
      %v4815 = vor.u32 %v4811, %v4814
      %v4816 = vsel %vm570, %v4806, %v4815
      %v4818 = vshrl.u32 %v4753, 16
      %v4820 = vrot.slane %v4818, 3
      %v4821 = vshll.u32 %v4753, 16
      %v4823 = vrot.slane %v4821, 4
      %v4824 = vor.u32 %v4820, %v4823
      %v4825 = vsel %vm570, %v4815, %v4824
      %v4827 = vshrl.u32 %v4754, 16
      %v4829 = vrot.slane %v4827, 3
      %v4830 = vshll.u32 %v4754, 16
      %v4832 = vrot.slane %v4830, 4
      %v4833 = vor.u32 %v4829, %v4832
      %v4834 = vsel %vm570, %v4824, %v4833
      %v4836 = vsel %vm433, %v4771, 0
      %v4839 = vsel %vm433, %v4780, 0
      %v4842 = vsel %vm433, %v4789, 0
      %v4845 = vsel %vm433, %v4798, 0
      %v4848 = vsel %vm433, %v4807, 0
      %v4851 = vsel %vm433, %v4816, 0
      %v4854 = vsel %vm433, %v4825, 0
      %v4857 = vsel %vm433, %v4834, 0
      %v4860 = vsel %vm458, %v4577, 0
      %4862 = vmatprep.subr.bf16.mxu0 0
      %4863 = vmatpush1.bf16.msra.mxu0 %v4860
      %4864 = vmatprep.subr.bf16.mxu0 0
      %4865 = vmatpush1.bf16.msra.mxu0 0
      %4866 = vmatprep.subr.bf16.mxu0 0
      %4867 = vmatpush1.bf16.msra.mxu0 0
      %4868 = vmatprep.subr.bf16.mxu0 0
      %4869 = vmatpush1.bf16.msra.mxu0 0
      %4870 = vmatprep.subr.bf16.mxu0 0
      %4871 = vmatpush1.bf16.msra.mxu0 0
      %4872 = vmatprep.subr.bf16.mxu0 0
      %4873 = vmatpush1.bf16.msra.mxu0 0
      %4874 = vmatprep.subr.bf16.mxu0 0
      %4875 = vmatpush1.bf16.msra.mxu0 0
      %4876 = vmatprep.subr.bf16.mxu0 0
      %4877 = vmatpush1.bf16.msra.mxu0 0
      %4878 = vmatprep.subr.bf16.mxu0 0
      %4879 = vmatpush1.bf16.msra.mxu0 0
      %4880 = vmatprep.subr.bf16.mxu0 0
      %4881 = vmatpush1.bf16.msra.mxu0 0
      %4882 = vmatprep.subr.bf16.mxu0 0
      %4883 = vmatpush1.bf16.msra.mxu0 0
      %4884 = vmatprep.subr.bf16.mxu0 0
      %4885 = vmatpush1.bf16.msra.mxu0 0
      %4886 = vmatprep.subr.bf16.mxu0 0
      %4887 = vmatpush1.bf16.msra.mxu0 0
      %4888 = vmatprep.subr.bf16.mxu0 0
      %4889 = vmatpush1.bf16.msra.mxu0 0
      %4890 = vmatprep.subr.bf16.mxu0 0
      %4891 = vmatpush1.bf16.msra.mxu0 0
      %4892 = vmatprep.subr.bf16.mxu0 0
      %4893 = vmatpush1.bf16.msra.mxu0 0
      %4894 = vmatprep.mubr.bf16.mxu0 0
      %4895 = vmatmul.mubr.bf16.gmra.mrb[0].mxu0 %v4836
      %v4896 = vpop.f32.mrb[0].mxu0
      %v4897 = vadd.f32 %v4682, %v4896
      %v4898 = vpop.f32.mrb[0].mxu0
      %v4899 = vpop.f32.mrb[0].mxu0
      %v4900 = vadd.f32 %v4685, %v4899
      %v4901 = vpop.f32.mrb[0].mxu0
      %4902 = vmatprep.mubr.bf16.mxu0 0
      %4903 = vmatmul.mubr.bf16.gmra.mrb[0].mxu0 %v4839
      %v4904 = vpop.f32.mrb[0].mxu0
      %v4905 = vadd.f32 %v4690, %v4904
      %v4906 = vpop.f32.mrb[0].mxu0
      %v4907 = vpop.f32.mrb[0].mxu0
      %v4908 = vadd.f32 %v4693, %v4907
      %v4909 = vpop.f32.mrb[0].mxu0
      %4910 = vmatprep.mubr.bf16.mxu0 0
      %4911 = vmatmul.mubr.bf16.gmra.mrb[0].mxu0 %v4842
      %v4912 = vpop.f32.mrb[0].mxu0
      %v4913 = vadd.f32 %v4698, %v4912
      %v4914 = vpop.f32.mrb[0].mxu0
      %v4915 = vpop.f32.mrb[0].mxu0
      %v4916 = vadd.f32 %v4701, %v4915
      %v4917 = vpop.f32.mrb[0].mxu0
      %4918 = vmatprep.mubr.bf16.mxu0 0
      %4919 = vmatmul.mubr.bf16.gmra.mrb[0].mxu0 %v4845
      %v4920 = vpop.f32.mrb[0].mxu0
      %v4921 = vadd.f32 %v4706, %v4920
      %v4922 = vpop.f32.mrb[0].mxu0
      %v4923 = vpop.f32.mrb[0].mxu0
      %v4924 = vadd.f32 %v4709, %v4923
      %v4925 = vpop.f32.mrb[0].mxu0
      %4926 = vmatprep.mubr.bf16.mxu0 0
      %4927 = vmatmul.mubr.bf16.gmra.mrb[0].mxu0 %v4848
      %v4928 = vpop.f32.mrb[0].mxu0
      %v4929 = vadd.f32 %v4714, %v4928
      %v4930 = vpop.f32.mrb[0].mxu0
      %v4931 = vpop.f32.mrb[0].mxu0
      %v4932 = vadd.f32 %v4717, %v4931
      %v4933 = vpop.f32.mrb[0].mxu0
      %4934 = vmatprep.mubr.bf16.mxu0 0
      %4935 = vmatmul.mubr.bf16.gmra.mrb[0].mxu0 %v4851
      %v4936 = vpop.f32.mrb[0].mxu0
      %v4937 = vadd.f32 %v4722, %v4936
      %v4938 = vpop.f32.mrb[0].mxu0
      %v4939 = vpop.f32.mrb[0].mxu0
      %v4940 = vadd.f32 %v4725, %v4939
      %v4941 = vpop.f32.mrb[0].mxu0
      %4942 = vmatprep.mubr.bf16.mxu0 0
      %4943 = vmatmul.mubr.bf16.gmra.mrb[0].mxu0 %v4854
      %v4944 = vpop.f32.mrb[0].mxu0
      %v4945 = vadd.f32 %v4730, %v4944
      %v4946 = vpop.f32.mrb[0].mxu0
      %v4947 = vpop.f32.mrb[0].mxu0
      %v4948 = vadd.f32 %v4733, %v4947
      %v4949 = vpop.f32.mrb[0].mxu0
      %4950 = vmatprep.mubr.bf16.mxu0 0
      %4951 = vmatmul.mubr.bf16.gmra.mrb[0].mxu0 %v4857
      %v4952 = vpop.f32.mrb[0].mxu0
      %v4953 = vadd.f32 %v4738, %v4952
      %v4954 = vpop.f32.mrb[0].mxu0
      %v4955 = vpop.f32.mrb[0].mxu0
      %v4956 = vadd.f32 %v4741, %v4955
      %v4957 = vpop.f32.mrb[0].mxu0
      %4958 = vdwg.mxu0
      %v4959 = vld [vmem:[%s358 + $0x8] sm:$0xf]
      %v4960 = vld [vmem:[%s358 + $0xc] sm:$0xf]
      %v4961 = vld [vmem:[%s358 + $0x10] sm:$0xf]
      %v4962 = vld [vmem:[%s358 + $0x14] sm:$0xf]
      %v4963 = vld [vmem:[%s358 + $0x18] sm:$0xf]
      %v4964 = vld [vmem:[%s358 + $0x1c] sm:$0xf]
      %v4965 = vld [vmem:[%s358 + $0x20] sm:$0xf]
      %v4966 = vld [vmem:[%s358 + $0x24] sm:$0xf]
      %v4967 = vld [vmem:[%s358 + $0x28] sm:$0xf]
      %v4968 = vld [vmem:[%s358 + $0x2c] sm:$0xf]
      %v4969 = vld [vmem:[%s358 + $0x30] sm:$0xf]
      %v4970 = vld [vmem:[%s358 + $0x34] sm:$0xf]
      %v4971 = vld [vmem:[%s358 + $0x38] sm:$0xf]
      %v4972 = vld [vmem:[%s358 + $0x3c] sm:$0xf]
      %v4973 = vld [vmem:[%s358 + $0x40] sm:$0xf]
      %v4974 = vld [vmem:[%s358 + $0x44] sm:$0xf]
      %v4975 = vld [vmem:[%s358 + $0x48] sm:$0x1]
      %s4976 = scalar_lea.vmem %s3, 80
      %v4977 = vld [vmem:[%s4976] sm:$0xf]
      %v4995 = vunpack.c.l.b16 %v4959
      %v4996 = vunpack.c.l.b16 %v4960
      %v4997 = vunpack.c.l.b16 %v4961
      %v4998 = vunpack.c.l.b16 %v4962
      %v4999 = vunpack.c.l.b16 %v4963
      %v5000 = vunpack.c.l.b16 %v4964
      %v5001 = vunpack.c.l.b16 %v4965
      %v5002 = vunpack.c.l.b16 %v4966
      %v5003 = vunpack.c.l.b16 %v4967
      %v5004 = vunpack.c.l.b16 %v4968
      %v5005 = vunpack.c.l.b16 %v4969
      %v5006 = vunpack.c.l.b16 %v4970
      %v5007 = vunpack.c.l.b16 %v4971
      %v5008 = vunpack.c.l.b16 %v4972
      %v5009 = vunpack.c.l.b16 %v4973
      %v5010 = vunpack.c.l.b16 %v4974
      %v5011 = vunpack.c.l.b16 %v4975
      %v5012 = vpack.c.b16 %v4996, %v4995
      %v5013 = vpack.c.b16 %v4998, %v4997
      %v5014 = vpack.c.b16 %v5000, %v4999
      %v5015 = vpack.c.b16 %v5002, %v5001
      %v5016 = vpack.c.b16 %v5004, %v5003
      %v5017 = vpack.c.b16 %v5006, %v5005
      %v5018 = vpack.c.b16 %v5008, %v5007
      %v5019 = vpack.c.b16 %v5010, %v5009
      %v5020 = vpack.c.b16 %v5011, %v5011
      %v5022 = vshrl.u32 %v5012, 16
      %v5024 = vshll.u32 %v5012, 16
      %v5026 = vrot.slane %v5024, 1
      %v5027 = vor.u32 %v5022, %v5026
      %v5029 = vshll.u32 %v5013, 16
      %v5031 = vrot.slane %v5029, 1
      %v5032 = vsel %vm837, %v5027, %v5031
      %v5033 = vshrl.u32 %v5013, 16
      %v5035 = vor.u32 %v5033, %v5031
      %v5037 = vshll.u32 %v5014, 16
      %v5039 = vrot.slane %v5037, 1
      %v5040 = vsel %vm837, %v5035, %v5039
      %v5041 = vshrl.u32 %v5014, 16
      %v5043 = vor.u32 %v5041, %v5039
      %v5045 = vshll.u32 %v5015, 16
      %v5047 = vrot.slane %v5045, 1
      %v5048 = vsel %vm837, %v5043, %v5047
      %v5049 = vshrl.u32 %v5015, 16
      %v5051 = vor.u32 %v5049, %v5047
      %v5053 = vshll.u32 %v5016, 16
      %v5055 = vrot.slane %v5053, 1
      %v5056 = vsel %vm837, %v5051, %v5055
      %v5057 = vshrl.u32 %v5016, 16
      %v5059 = vor.u32 %v5057, %v5055
      %v5061 = vshll.u32 %v5017, 16
      %v5063 = vrot.slane %v5061, 1
      %v5064 = vsel %vm837, %v5059, %v5063
      %v5065 = vshrl.u32 %v5017, 16
      %v5067 = vor.u32 %v5065, %v5063
      %v5069 = vshll.u32 %v5018, 16
      %v5071 = vrot.slane %v5069, 1
      %v5072 = vsel %vm837, %v5067, %v5071
      %v5073 = vshrl.u32 %v5018, 16
      %v5075 = vor.u32 %v5073, %v5071
      %v5077 = vshll.u32 %v5019, 16
      %v5079 = vrot.slane %v5077, 1
      %v5080 = vsel %vm837, %v5075, %v5079
      %v5081 = vshrl.u32 %v5019, 16
      %v5083 = vor.u32 %v5081, %v5079
      %v5085 = vshll.u32 %v5020, 16
      %v5087 = vrot.slane %v5085, 1
      %v5088 = vsel %vm837, %v5083, %v5087
      %v5090 = vsel %vm433, %v5032, 0
      %v5093 = vsel %vm433, %v5040, 0
      %v5096 = vsel %vm433, %v5048, 0
      %v5099 = vsel %vm433, %v5056, 0
      %v5102 = vsel %vm433, %v5064, 0
      %v5105 = vsel %vm433, %v5072, 0
      %v5108 = vsel %vm433, %v5080, 0
      %v5111 = vsel %vm433, %v5088, 0
      %v5114 = vsel %vm458, %v4977, 0
      %5116 = vmatprep.subr.bf16.mxu0 0
      %5117 = vmatpush1.bf16.msra.mxu0 %v5114
      %5118 = vmatprep.subr.bf16.mxu0 0
      %5119 = vmatpush1.bf16.msra.mxu0 0
      %5120 = vmatprep.subr.bf16.mxu0 0
      %5121 = vmatpush1.bf16.msra.mxu0 0
      %5122 = vmatprep.subr.bf16.mxu0 0
      %5123 = vmatpush1.bf16.msra.mxu0 0
      %5124 = vmatprep.subr.bf16.mxu0 0
      %5125 = vmatpush1.bf16.msra.mxu0 0
      %5126 = vmatprep.subr.bf16.mxu0 0
      %5127 = vmatpush1.bf16.msra.mxu0 0
      %5128 = vmatprep.subr.bf16.mxu0 0
      %5129 = vmatpush1.bf16.msra.mxu0 0
      %5130 = vmatprep.subr.bf16.mxu0 0
      %5131 = vmatpush1.bf16.msra.mxu0 0
      %5132 = vmatprep.subr.bf16.mxu0 0
      %5133 = vmatpush1.bf16.msra.mxu0 0
      %5134 = vmatprep.subr.bf16.mxu0 0
      %5135 = vmatpush1.bf16.msra.mxu0 0
      %5136 = vmatprep.subr.bf16.mxu0 0
      %5137 = vmatpush1.bf16.msra.mxu0 0
      %5138 = vmatprep.subr.bf16.mxu0 0
      %5139 = vmatpush1.bf16.msra.mxu0 0
      %5140 = vmatprep.subr.bf16.mxu0 0
      %5141 = vmatpush1.bf16.msra.mxu0 0
      %5142 = vmatprep.subr.bf16.mxu0 0
      %5143 = vmatpush1.bf16.msra.mxu0 0
      %5144 = vmatprep.subr.bf16.mxu0 0
      %5145 = vmatpush1.bf16.msra.mxu0 0
      %5146 = vmatprep.subr.bf16.mxu0 0
      %5147 = vmatpush1.bf16.msra.mxu0 0
      %5148 = vmatprep.mubr.bf16.mxu0 0
      %5149 = vmatmul.mubr.bf16.gmra.mrb[0].mxu0 %v5090
      %v5150 = vpop.f32.mrb[0].mxu0
      %v5151 = vadd.f32 0.0, %v5150
      %v5152 = vpop.f32.mrb[0].mxu0
      %v5153 = vpop.f32.mrb[0].mxu0
      %v5154 = vadd.f32 0.0, %v5153
      %v5155 = vpop.f32.mrb[0].mxu0
      %5156 = vmatprep.mubr.bf16.mxu0 0
      %5157 = vmatmul.mubr.bf16.gmra.mrb[0].mxu0 %v5093
      %v5158 = vpop.f32.mrb[0].mxu0
      %v5159 = vadd.f32 0.0, %v5158
      %v5160 = vpop.f32.mrb[0].mxu0
      %v5161 = vpop.f32.mrb[0].mxu0
      %v5162 = vadd.f32 0.0, %v5161
      %v5163 = vpop.f32.mrb[0].mxu0
      %5164 = vmatprep.mubr.bf16.mxu0 0
      %5165 = vmatmul.mubr.bf16.gmra.mrb[0].mxu0 %v5096
      %v5166 = vpop.f32.mrb[0].mxu0
      %v5167 = vadd.f32 0.0, %v5166
      %v5168 = vpop.f32.mrb[0].mxu0
      %v5169 = vpop.f32.mrb[0].mxu0
      %v5170 = vadd.f32 0.0, %v5169
      %v5171 = vpop.f32.mrb[0].mxu0
      %5172 = vmatprep.mubr.bf16.mxu0 0
      %5173 = vmatmul.mubr.bf16.gmra.mrb[0].mxu0 %v5099
      %v5174 = vpop.f32.mrb[0].mxu0
      %v5175 = vadd.f32 0.0, %v5174
      %v5176 = vpop.f32.mrb[0].mxu0
      %v5177 = vpop.f32.mrb[0].mxu0
      %v5178 = vadd.f32 0.0, %v5177
      %v5179 = vpop.f32.mrb[0].mxu0
      %5180 = vmatprep.mubr.bf16.mxu0 0
      %5181 = vmatmul.mubr.bf16.gmra.mrb[0].mxu0 %v5102
      %v5182 = vpop.f32.mrb[0].mxu0
      %v5183 = vadd.f32 0.0, %v5182
      %v5184 = vpop.f32.mrb[0].mxu0
      %v5185 = vpop.f32.mrb[0].mxu0
      %v5186 = vadd.f32 0.0, %v5185
      %v5187 = vpop.f32.mrb[0].mxu0
      %5188 = vmatprep.mubr.bf16.mxu0 0
      %5189 = vmatmul.mubr.bf16.gmra.mrb[0].mxu0 %v5105
      %v5190 = vpop.f32.mrb[0].mxu0
      %v5191 = vadd.f32 0.0, %v5190
      %v5192 = vpop.f32.mrb[0].mxu0
      %v5193 = vpop.f32.mrb[0].mxu0
      %v5194 = vadd.f32 0.0, %v5193
      %v5195 = vpop.f32.mrb[0].mxu0
      %5196 = vmatprep.mubr.bf16.mxu0 0
      %5197 = vmatmul.mubr.bf16.gmra.mrb[0].mxu0 %v5108
      %v5198 = vpop.f32.mrb[0].mxu0
      %v5199 = vadd.f32 0.0, %v5198
      %v5200 = vpop.f32.mrb[0].mxu0
      %v5201 = vpop.f32.mrb[0].mxu0
      %v5202 = vadd.f32 0.0, %v5201
      %v5203 = vpop.f32.mrb[0].mxu0
      %5204 = vmatprep.mubr.bf16.mxu0 0
      %5205 = vmatmul.mubr.bf16.gmra.mrb[0].mxu0 %v5111
      %v5206 = vpop.f32.mrb[0].mxu0
      %v5207 = vadd.f32 0.0, %v5206
      %v5208 = vpop.f32.mrb[0].mxu0
      %v5209 = vpop.f32.mrb[0].mxu0
      %v5210 = vadd.f32 0.0, %v5209
      %v5211 = vpop.f32.mrb[0].mxu0
      %5212 = vdwg.mxu0
      %v5213 = vadd.f32 %v4897, %v5151
      %v5214 = vadd.f32 %v4900, %v5154
      %v5215 = vadd.f32 %v4905, %v5159
      %v5216 = vadd.f32 %v4908, %v5162
      %v5217 = vadd.f32 %v4913, %v5167
      %v5218 = vadd.f32 %v4916, %v5170
      %v5219 = vadd.f32 %v4921, %v5175
      %v5220 = vadd.f32 %v4924, %v5178
      %v5221 = vadd.f32 %v4929, %v5183
      %v5222 = vadd.f32 %v4932, %v5186
      %v5223 = vadd.f32 %v4937, %v5191
      %v5224 = vadd.f32 %v4940, %v5194
      %v5225 = vadd.f32 %v4945, %v5199
      %v5226 = vadd.f32 %v4948, %v5202
      %v5227 = vadd.f32 %v4953, %v5207
      %v5228 = vadd.f32 %v4956, %v5210
      %v5229 = vld [vmem:[%s358 + $0xc] sm:$0x8]
      %v5230 = vld [vmem:[%s358 + $0x10] sm:$0xf]
      %v5231 = vld [vmem:[%s358 + $0x14] sm:$0xf]
      %v5232 = vld [vmem:[%s358 + $0x18] sm:$0xf]
      %v5233 = vld [vmem:[%s358 + $0x1c] sm:$0xf]
      %v5234 = vld [vmem:[%s358 + $0x20] sm:$0xf]
      %v5235 = vld [vmem:[%s358 + $0x24] sm:$0xf]
      %v5236 = vld [vmem:[%s358 + $0x28] sm:$0xf]
      %v5237 = vld [vmem:[%s358 + $0x2c] sm:$0xf]
      %v5238 = vld [vmem:[%s358 + $0x30] sm:$0xf]
      %v5239 = vld [vmem:[%s358 + $0x34] sm:$0xf]
      %v5240 = vld [vmem:[%s358 + $0x38] sm:$0xf]
      %v5241 = vld [vmem:[%s358 + $0x3c] sm:$0xf]
      %v5242 = vld [vmem:[%s358 + $0x40] sm:$0xf]
      %v5243 = vld [vmem:[%s358 + $0x44] sm:$0xf]
      %v5244 = vld [vmem:[%s358 + $0x48] sm:$0xf]
      %v5245 = vld [vmem:[%s358 + $0x4c] sm:$0xf]
      %s5246 = scalar_lea.vmem %s3, 84
      %v5247 = vld [vmem:[%s5246] sm:$0xf]
      %v5265 = vunpack.c.l.b16 %v5229
      %v5266 = vunpack.c.l.b16 %v5230
      %v5267 = vunpack.c.l.b16 %v5231
      %v5268 = vunpack.c.l.b16 %v5232
      %v5269 = vunpack.c.l.b16 %v5233
      %v5270 = vunpack.c.l.b16 %v5234
      %v5271 = vunpack.c.l.b16 %v5235
      %v5272 = vunpack.c.l.b16 %v5236
      %v5273 = vunpack.c.l.b16 %v5237
      %v5274 = vunpack.c.l.b16 %v5238
      %v5275 = vunpack.c.l.b16 %v5239
      %v5276 = vunpack.c.l.b16 %v5240
      %v5277 = vunpack.c.l.b16 %v5241
      %v5278 = vunpack.c.l.b16 %v5242
      %v5279 = vunpack.c.l.b16 %v5243
      %v5280 = vunpack.c.l.b16 %v5244
      %v5281 = vunpack.c.l.b16 %v5245
      %v5282 = vpack.c.b16 %v5266, %v5265
      %v5283 = vpack.c.b16 %v5268, %v5267
      %v5284 = vpack.c.b16 %v5270, %v5269
      %v5285 = vpack.c.b16 %v5272, %v5271
      %v5286 = vpack.c.b16 %v5274, %v5273
      %v5287 = vpack.c.b16 %v5276, %v5275
      %v5288 = vpack.c.b16 %v5278, %v5277
      %v5289 = vpack.c.b16 %v5280, %v5279
      %v5290 = vpack.c.b16 %v5281, %v5281
      %v5292 = vshrl.u32 %v5282, 16
      %v5294 = vrot.slane %v5292, 3
      %v5295 = vshll.u32 %v5282, 16
      %v5297 = vrot.slane %v5295, 4
      %v5298 = vor.u32 %v5294, %v5297
      %v5300 = vshrl.u32 %v5283, 16
      %v5302 = vrot.slane %v5300, 3
      %v5303 = vshll.u32 %v5283, 16
      %v5305 = vrot.slane %v5303, 4
      %v5306 = vor.u32 %v5302, %v5305
      %v5307 = vsel %vm570, %v5298, %v5306
      %v5309 = vshrl.u32 %v5284, 16
      %v5311 = vrot.slane %v5309, 3
      %v5312 = vshll.u32 %v5284, 16
      %v5314 = vrot.slane %v5312, 4
      %v5315 = vor.u32 %v5311, %v5314
      %v5316 = vsel %vm570, %v5306, %v5315
      %v5318 = vshrl.u32 %v5285, 16
      %v5320 = vrot.slane %v5318, 3
      %v5321 = vshll.u32 %v5285, 16
      %v5323 = vrot.slane %v5321, 4
      %v5324 = vor.u32 %v5320, %v5323
      %v5325 = vsel %vm570, %v5315, %v5324
      %v5327 = vshrl.u32 %v5286, 16
      %v5329 = vrot.slane %v5327, 3
      %v5330 = vshll.u32 %v5286, 16
      %v5332 = vrot.slane %v5330, 4
      %v5333 = vor.u32 %v5329, %v5332
      %v5334 = vsel %vm570, %v5324, %v5333
      %v5336 = vshrl.u32 %v5287, 16
      %v5338 = vrot.slane %v5336, 3
      %v5339 = vshll.u32 %v5287, 16
      %v5341 = vrot.slane %v5339, 4
      %v5342 = vor.u32 %v5338, %v5341
      %v5343 = vsel %vm570, %v5333, %v5342
      %v5345 = vshrl.u32 %v5288, 16
      %v5347 = vrot.slane %v5345, 3
      %v5348 = vshll.u32 %v5288, 16
      %v5350 = vrot.slane %v5348, 4
      %v5351 = vor.u32 %v5347, %v5350
      %v5352 = vsel %vm570, %v5342, %v5351
      %v5354 = vshrl.u32 %v5289, 16
      %v5356 = vrot.slane %v5354, 3
      %v5357 = vshll.u32 %v5289, 16
      %v5359 = vrot.slane %v5357, 4
      %v5360 = vor.u32 %v5356, %v5359
      %v5361 = vsel %vm570, %v5351, %v5360
      %v5363 = vshrl.u32 %v5290, 16
      %v5365 = vrot.slane %v5363, 3
      %v5366 = vshll.u32 %v5290, 16
      %v5368 = vrot.slane %v5366, 4
      %v5369 = vor.u32 %v5365, %v5368
      %v5370 = vsel %vm570, %v5360, %v5369
      %v5372 = vsel %vm433, %v5307, 0
      %v5375 = vsel %vm433, %v5316, 0
      %v5378 = vsel %vm433, %v5325, 0
      %v5381 = vsel %vm433, %v5334, 0
      %v5384 = vsel %vm433, %v5343, 0
      %v5387 = vsel %vm433, %v5352, 0
      %v5390 = vsel %vm433, %v5361, 0
      %v5393 = vsel %vm433, %v5370, 0
      %v5396 = vsel %vm458, %v5247, 0
      %5398 = vmatprep.subr.bf16.mxu0 0
      %5399 = vmatpush1.bf16.msra.mxu0 %v5396
      %5400 = vmatprep.subr.bf16.mxu0 0
      %5401 = vmatpush1.bf16.msra.mxu0 0
      %5402 = vmatprep.subr.bf16.mxu0 0
      %5403 = vmatpush1.bf16.msra.mxu0 0
      %5404 = vmatprep.subr.bf16.mxu0 0
      %5405 = vmatpush1.bf16.msra.mxu0 0
      %5406 = vmatprep.subr.bf16.mxu0 0
      %5407 = vmatpush1.bf16.msra.mxu0 0
      %5408 = vmatprep.subr.bf16.mxu0 0
      %5409 = vmatpush1.bf16.msra.mxu0 0
      %5410 = vmatprep.subr.bf16.mxu0 0
      %5411 = vmatpush1.bf16.msra.mxu0 0
      %5412 = vmatprep.subr.bf16.mxu0 0
      %5413 = vmatpush1.bf16.msra.mxu0 0
      %5414 = vmatprep.subr.bf16.mxu0 0
      %5415 = vmatpush1.bf16.msra.mxu0 0
      %5416 = vmatprep.subr.bf16.mxu0 0
      %5417 = vmatpush1.bf16.msra.mxu0 0
      %5418 = vmatprep.subr.bf16.mxu0 0
      %5419 = vmatpush1.bf16.msra.mxu0 0
      %5420 = vmatprep.subr.bf16.mxu0 0
      %5421 = vmatpush1.bf16.msra.mxu0 0
      %5422 = vmatprep.subr.bf16.mxu0 0
      %5423 = vmatpush1.bf16.msra.mxu0 0
      %5424 = vmatprep.subr.bf16.mxu0 0
      %5425 = vmatpush1.bf16.msra.mxu0 0
      %5426 = vmatprep.subr.bf16.mxu0 0
      %5427 = vmatpush1.bf16.msra.mxu0 0
      %5428 = vmatprep.subr.bf16.mxu0 0
      %5429 = vmatpush1.bf16.msra.mxu0 0
      %5430 = vmatprep.mubr.bf16.mxu0 0
      %5431 = vmatmul.mubr.bf16.gmra.mrb[0].mxu0 %v5372
      %v5432 = vpop.f32.mrb[0].mxu0
      %v5433 = vadd.f32 0.0, %v5432
      %v5434 = vpop.f32.mrb[0].mxu0
      %v5435 = vpop.f32.mrb[0].mxu0
      %v5436 = vadd.f32 0.0, %v5435
      %v5437 = vpop.f32.mrb[0].mxu0
      %5438 = vmatprep.mubr.bf16.mxu0 0
      %5439 = vmatmul.mubr.bf16.gmra.mrb[0].mxu0 %v5375
      %v5440 = vpop.f32.mrb[0].mxu0
      %v5441 = vadd.f32 0.0, %v5440
      %v5442 = vpop.f32.mrb[0].mxu0
      %v5443 = vpop.f32.mrb[0].mxu0
      %v5444 = vadd.f32 0.0, %v5443
      %v5445 = vpop.f32.mrb[0].mxu0
      %5446 = vmatprep.mubr.bf16.mxu0 0
      %5447 = vmatmul.mubr.bf16.gmra.mrb[0].mxu0 %v5378
      %v5448 = vpop.f32.mrb[0].mxu0
      %v5449 = vadd.f32 0.0, %v5448
      %v5450 = vpop.f32.mrb[0].mxu0
      %v5451 = vpop.f32.mrb[0].mxu0
      %v5452 = vadd.f32 0.0, %v5451
      %v5453 = vpop.f32.mrb[0].mxu0
      %5454 = vmatprep.mubr.bf16.mxu0 0
      %5455 = vmatmul.mubr.bf16.gmra.mrb[0].mxu0 %v5381
      %v5456 = vpop.f32.mrb[0].mxu0
      %v5457 = vadd.f32 0.0, %v5456
      %v5458 = vpop.f32.mrb[0].mxu0
      %v5459 = vpop.f32.mrb[0].mxu0
      %v5460 = vadd.f32 0.0, %v5459
      %v5461 = vpop.f32.mrb[0].mxu0
      %5462 = vmatprep.mubr.bf16.mxu0 0
      %5463 = vmatmul.mubr.bf16.gmra.mrb[0].mxu0 %v5384
      %v5464 = vpop.f32.mrb[0].mxu0
      %v5465 = vadd.f32 0.0, %v5464
      %v5466 = vpop.f32.mrb[0].mxu0
      %v5467 = vpop.f32.mrb[0].mxu0
      %v5468 = vadd.f32 0.0, %v5467
      %v5469 = vpop.f32.mrb[0].mxu0
      %5470 = vmatprep.mubr.bf16.mxu0 0
      %5471 = vmatmul.mubr.bf16.gmra.mrb[0].mxu0 %v5387
      %v5472 = vpop.f32.mrb[0].mxu0
      %v5473 = vadd.f32 0.0, %v5472
      %v5474 = vpop.f32.mrb[0].mxu0
      %v5475 = vpop.f32.mrb[0].mxu0
      %v5476 = vadd.f32 0.0, %v5475
      %v5477 = vpop.f32.mrb[0].mxu0
      %5478 = vmatprep.mubr.bf16.mxu0 0
      %5479 = vmatmul.mubr.bf16.gmra.mrb[0].mxu0 %v5390
      %v5480 = vpop.f32.mrb[0].mxu0
      %v5481 = vadd.f32 0.0, %v5480
      %v5482 = vpop.f32.mrb[0].mxu0
      %v5483 = vpop.f32.mrb[0].mxu0
      %v5484 = vadd.f32 0.0, %v5483
      %v5485 = vpop.f32.mrb[0].mxu0
      %5486 = vmatprep.mubr.bf16.mxu0 0
      %5487 = vmatmul.mubr.bf16.gmra.mrb[0].mxu0 %v5393
      %v5488 = vpop.f32.mrb[0].mxu0
      %v5489 = vadd.f32 0.0, %v5488
      %v5490 = vpop.f32.mrb[0].mxu0
      %v5491 = vpop.f32.mrb[0].mxu0
      %v5492 = vadd.f32 0.0, %v5491
      %v5493 = vpop.f32.mrb[0].mxu0
      %5494 = vdwg.mxu0
      %v5495 = vadd.f32 %v5213, %v5433
      %v5496 = vadd.f32 %v5214, %v5436
      %v5497 = vadd.f32 %v5215, %v5441
      %v5498 = vadd.f32 %v5216, %v5444
      %v5499 = vadd.f32 %v5217, %v5449
      %v5500 = vadd.f32 %v5218, %v5452
      %v5501 = vadd.f32 %v5219, %v5457
      %v5502 = vadd.f32 %v5220, %v5460
      %v5503 = vadd.f32 %v5221, %v5465
      %v5504 = vadd.f32 %v5222, %v5468
      %v5505 = vadd.f32 %v5223, %v5473
      %v5506 = vadd.f32 %v5224, %v5476
      %v5507 = vadd.f32 %v5225, %v5481
      %v5508 = vadd.f32 %v5226, %v5484
      %v5509 = vadd.f32 %v5227, %v5489
      %v5510 = vadd.f32 %v5228, %v5492
      %s5511 = scalar_lea.vmem %s3, 88
      %v5512 = vld [vmem:[%s5511] sm:$0xf]
      %v5513 = vpack.c.b16 %v5267, %v5266
      %v5514 = vpack.c.b16 %v5269, %v5268
      %v5515 = vpack.c.b16 %v5271, %v5270
      %v5516 = vpack.c.b16 %v5273, %v5272
      %v5517 = vpack.c.b16 %v5275, %v5274
      %v5518 = vpack.c.b16 %v5277, %v5276
      %v5519 = vpack.c.b16 %v5279, %v5278
      %v5520 = vpack.c.b16 %v5281, %v5280
      %v5522 = vsel %vm433, %v5513, 0
      %v5525 = vsel %vm433, %v5514, 0
      %v5528 = vsel %vm433, %v5515, 0
      %v5531 = vsel %vm433, %v5516, 0
      %v5534 = vsel %vm433, %v5517, 0
      %v5537 = vsel %vm433, %v5518, 0
      %v5540 = vsel %vm433, %v5519, 0
      %v5543 = vsel %vm433, %v5520, 0
      %v5546 = vsel %vm458, %v5512, 0
      %5548 = vmatprep.subr.bf16.mxu0 0
      %5549 = vmatpush1.bf16.msra.mxu0 %v5546
      %5550 = vmatprep.subr.bf16.mxu0 0
      %5551 = vmatpush1.bf16.msra.mxu0 0
      %5552 = vmatprep.subr.bf16.mxu0 0
      %5553 = vmatpush1.bf16.msra.mxu0 0
      %5554 = vmatprep.subr.bf16.mxu0 0
      %5555 = vmatpush1.bf16.msra.mxu0 0
      %5556 = vmatprep.subr.bf16.mxu0 0
      %5557 = vmatpush1.bf16.msra.mxu0 0
      %5558 = vmatprep.subr.bf16.mxu0 0
      %5559 = vmatpush1.bf16.msra.mxu0 0
      %5560 = vmatprep.subr.bf16.mxu0 0
      %5561 = vmatpush1.bf16.msra.mxu0 0
      %5562 = vmatprep.subr.bf16.mxu0 0
      %5563 = vmatpush1.bf16.msra.mxu0 0
      %5564 = vmatprep.subr.bf16.mxu0 0
      %5565 = vmatpush1.bf16.msra.mxu0 0
      %5566 = vmatprep.subr.bf16.mxu0 0
      %5567 = vmatpush1.bf16.msra.mxu0 0
      %5568 = vmatprep.subr.bf16.mxu0 0
      %5569 = vmatpush1.bf16.msra.mxu0 0
      %5570 = vmatprep.subr.bf16.mxu0 0
      %5571 = vmatpush1.bf16.msra.mxu0 0
      %5572 = vmatprep.subr.bf16.mxu0 0
      %5573 = vmatpush1.bf16.msra.mxu0 0
      %5574 = vmatprep.subr.bf16.mxu0 0
      %5575 = vmatpush1.bf16.msra.mxu0 0
      %5576 = vmatprep.subr.bf16.mxu0 0
      %5577 = vmatpush1.bf16.msra.mxu0 0
      %5578 = vmatprep.subr.bf16.mxu0 0
      %5579 = vmatpush1.bf16.msra.mxu0 0
      %5580 = vmatprep.mubr.bf16.mxu0 0
      %5581 = vmatmul.mubr.bf16.gmra.mrb[0].mxu0 %v5522
      %v5582 = vpop.f32.mrb[0].mxu0
      %v5583 = vadd.f32 0.0, %v5582
      %v5584 = vpop.f32.mrb[0].mxu0
      %v5585 = vpop.f32.mrb[0].mxu0
      %v5586 = vadd.f32 0.0, %v5585
      %v5587 = vpop.f32.mrb[0].mxu0
      %5588 = vmatprep.mubr.bf16.mxu0 0
      %5589 = vmatmul.mubr.bf16.gmra.mrb[0].mxu0 %v5525
      %v5590 = vpop.f32.mrb[0].mxu0
      %v5591 = vadd.f32 0.0, %v5590
      %v5592 = vpop.f32.mrb[0].mxu0
      %v5593 = vpop.f32.mrb[0].mxu0
      %v5594 = vadd.f32 0.0, %v5593
      %v5595 = vpop.f32.mrb[0].mxu0
      %5596 = vmatprep.mubr.bf16.mxu0 0
      %5597 = vmatmul.mubr.bf16.gmra.mrb[0].mxu0 %v5528
      %v5598 = vpop.f32.mrb[0].mxu0
      %v5599 = vadd.f32 0.0, %v5598
      %v5600 = vpop.f32.mrb[0].mxu0
      %v5601 = vpop.f32.mrb[0].mxu0
      %v5602 = vadd.f32 0.0, %v5601
      %v5603 = vpop.f32.mrb[0].mxu0
      %5604 = vmatprep.mubr.bf16.mxu0 0
      %5605 = vmatmul.mubr.bf16.gmra.mrb[0].mxu0 %v5531
      %v5606 = vpop.f32.mrb[0].mxu0
      %v5607 = vadd.f32 0.0, %v5606
      %v5608 = vpop.f32.mrb[0].mxu0
      %v5609 = vpop.f32.mrb[0].mxu0
      %v5610 = vadd.f32 0.0, %v5609
      %v5611 = vpop.f32.mrb[0].mxu0
      %5612 = vmatprep.mubr.bf16.mxu0 0
      %5613 = vmatmul.mubr.bf16.gmra.mrb[0].mxu0 %v5534
      %v5614 = vpop.f32.mrb[0].mxu0
      %v5615 = vadd.f32 0.0, %v5614
      %v5616 = vpop.f32.mrb[0].mxu0
      %v5617 = vpop.f32.mrb[0].mxu0
      %v5618 = vadd.f32 0.0, %v5617
      %v5619 = vpop.f32.mrb[0].mxu0
      %5620 = vmatprep.mubr.bf16.mxu0 0
      %5621 = vmatmul.mubr.bf16.gmra.mrb[0].mxu0 %v5537
      %v5622 = vpop.f32.mrb[0].mxu0
      %v5623 = vadd.f32 0.0, %v5622
      %v5624 = vpop.f32.mrb[0].mxu0
      %v5625 = vpop.f32.mrb[0].mxu0
      %v5626 = vadd.f32 0.0, %v5625
      %v5627 = vpop.f32.mrb[0].mxu0
      %5628 = vmatprep.mubr.bf16.mxu0 0
      %5629 = vmatmul.mubr.bf16.gmra.mrb[0].mxu0 %v5540
      %v5630 = vpop.f32.mrb[0].mxu0
      %v5631 = vadd.f32 0.0, %v5630
      %v5632 = vpop.f32.mrb[0].mxu0
      %v5633 = vpop.f32.mrb[0].mxu0
      %v5634 = vadd.f32 0.0, %v5633
      %v5635 = vpop.f32.mrb[0].mxu0
      %5636 = vmatprep.mubr.bf16.mxu0 0
      %5637 = vmatmul.mubr.bf16.gmra.mrb[0].mxu0 %v5543
      %v5638 = vpop.f32.mrb[0].mxu0
      %v5639 = vadd.f32 0.0, %v5638
      %v5640 = vpop.f32.mrb[0].mxu0
      %v5641 = vpop.f32.mrb[0].mxu0
      %v5642 = vadd.f32 0.0, %v5641
      %v5643 = vpop.f32.mrb[0].mxu0
      %5644 = vdwg.mxu0
      %v5645 = vadd.f32 %v5495, %v5583
      %v5646 = vadd.f32 %v5496, %v5586
      %v5647 = vadd.f32 %v5497, %v5591
      %v5648 = vadd.f32 %v5498, %v5594
      %v5649 = vadd.f32 %v5499, %v5599
      %v5650 = vadd.f32 %v5500, %v5602
      %v5651 = vadd.f32 %v5501, %v5607
      %v5652 = vadd.f32 %v5502, %v5610
      %v5653 = vadd.f32 %v5503, %v5615
      %v5654 = vadd.f32 %v5504, %v5618
      %v5655 = vadd.f32 %v5505, %v5623
      %v5656 = vadd.f32 %v5506, %v5626
      %v5657 = vadd.f32 %v5507, %v5631
      %v5658 = vadd.f32 %v5508, %v5634
      %v5659 = vadd.f32 %v5509, %v5639
      %v5660 = vadd.f32 %v5510, %v5642
      %v5661 = vld [vmem:[%s358 + $0x10] sm:$0xf]
      %v5662 = vld [vmem:[%s358 + $0x14] sm:$0xf]
      %v5663 = vld [vmem:[%s358 + $0x18] sm:$0xf]
      %v5664 = vld [vmem:[%s358 + $0x1c] sm:$0xf]
      %v5665 = vld [vmem:[%s358 + $0x20] sm:$0xf]
      %v5666 = vld [vmem:[%s358 + $0x24] sm:$0xf]
      %v5667 = vld [vmem:[%s358 + $0x28] sm:$0xf]
      %v5668 = vld [vmem:[%s358 + $0x2c] sm:$0xf]
      %v5669 = vld [vmem:[%s358 + $0x30] sm:$0xf]
      %v5670 = vld [vmem:[%s358 + $0x34] sm:$0xf]
      %v5671 = vld [vmem:[%s358 + $0x38] sm:$0xf]
      %v5672 = vld [vmem:[%s358 + $0x3c] sm:$0xf]
      %v5673 = vld [vmem:[%s358 + $0x40] sm:$0xf]
      %v5674 = vld [vmem:[%s358 + $0x44] sm:$0xf]
      %v5675 = vld [vmem:[%s358 + $0x48] sm:$0xf]
      %v5676 = vld [vmem:[%s358 + $0x4c] sm:$0xf]
      %v5677 = vld [vmem:[%s358 + $0x50] sm:$0x1]
      %s5678 = scalar_lea.vmem %s3, 92
      %v5679 = vld [vmem:[%s5678] sm:$0xf]
      %v5697 = vunpack.c.l.b16 %v5661
      %v5698 = vunpack.c.l.b16 %v5662
      %v5699 = vunpack.c.l.b16 %v5663
      %v5700 = vunpack.c.l.b16 %v5664
      %v5701 = vunpack.c.l.b16 %v5665
      %v5702 = vunpack.c.l.b16 %v5666
      %v5703 = vunpack.c.l.b16 %v5667
      %v5704 = vunpack.c.l.b16 %v5668
      %v5705 = vunpack.c.l.b16 %v5669
      %v5706 = vunpack.c.l.b16 %v5670
      %v5707 = vunpack.c.l.b16 %v5671
      %v5708 = vunpack.c.l.b16 %v5672
      %v5709 = vunpack.c.l.b16 %v5673
      %v5710 = vunpack.c.l.b16 %v5674
      %v5711 = vunpack.c.l.b16 %v5675
      %v5712 = vunpack.c.l.b16 %v5676
      %v5713 = vunpack.c.l.b16 %v5677
      %v5714 = vpack.c.b16 %v5698, %v5697
      %v5715 = vpack.c.b16 %v5700, %v5699
      %v5716 = vpack.c.b16 %v5702, %v5701
      %v5717 = vpack.c.b16 %v5704, %v5703
      %v5718 = vpack.c.b16 %v5706, %v5705
      %v5719 = vpack.c.b16 %v5708, %v5707
      %v5720 = vpack.c.b16 %v5710, %v5709
      %v5721 = vpack.c.b16 %v5712, %v5711
      %v5722 = vpack.c.b16 %v5713, %v5713
      %v5724 = vshrl.u32 %v5714, 16
      %v5726 = vshll.u32 %v5714, 16
      %v5728 = vrot.slane %v5726, 1
      %v5729 = vor.u32 %v5724, %v5728
      %v5731 = vshll.u32 %v5715, 16
      %v5733 = vrot.slane %v5731, 1
      %v5734 = vsel %vm837, %v5729, %v5733
      %v5735 = vshrl.u32 %v5715, 16
      %v5737 = vor.u32 %v5735, %v5733
      %v5739 = vshll.u32 %v5716, 16
      %v5741 = vrot.slane %v5739, 1
      %v5742 = vsel %vm837, %v5737, %v5741
      %v5743 = vshrl.u32 %v5716, 16
      %v5745 = vor.u32 %v5743, %v5741
      %v5747 = vshll.u32 %v5717, 16
      %v5749 = vrot.slane %v5747, 1
      %v5750 = vsel %vm837, %v5745, %v5749
      %v5751 = vshrl.u32 %v5717, 16
      %v5753 = vor.u32 %v5751, %v5749
      %v5755 = vshll.u32 %v5718, 16
      %v5757 = vrot.slane %v5755, 1
      %v5758 = vsel %vm837, %v5753, %v5757
      %v5759 = vshrl.u32 %v5718, 16
      %v5761 = vor.u32 %v5759, %v5757
      %v5763 = vshll.u32 %v5719, 16
      %v5765 = vrot.slane %v5763, 1
      %v5766 = vsel %vm837, %v5761, %v5765
      %v5767 = vshrl.u32 %v5719, 16
      %v5769 = vor.u32 %v5767, %v5765
      %v5771 = vshll.u32 %v5720, 16
      %v5773 = vrot.slane %v5771, 1
      %v5774 = vsel %vm837, %v5769, %v5773
      %v5775 = vshrl.u32 %v5720, 16
      %v5777 = vor.u32 %v5775, %v5773
      %v5779 = vshll.u32 %v5721, 16
      %v5781 = vrot.slane %v5779, 1
      %v5782 = vsel %vm837, %v5777, %v5781
      %v5783 = vshrl.u32 %v5721, 16
      %v5785 = vor.u32 %v5783, %v5781
      %v5787 = vshll.u32 %v5722, 16
      %v5789 = vrot.slane %v5787, 1
      %v5790 = vsel %vm837, %v5785, %v5789
      %v5792 = vsel %vm433, %v5734, 0
      %v5795 = vsel %vm433, %v5742, 0
      %v5798 = vsel %vm433, %v5750, 0
      %v5801 = vsel %vm433, %v5758, 0
      %v5804 = vsel %vm433, %v5766, 0
      %v5807 = vsel %vm433, %v5774, 0
      %v5810 = vsel %vm433, %v5782, 0
      %v5813 = vsel %vm433, %v5790, 0
      %v5816 = vsel %vm458, %v5679, 0
      %5818 = vmatprep.subr.bf16.mxu0 0
      %5819 = vmatpush1.bf16.msra.mxu0 %v5816
      %5820 = vmatprep.subr.bf16.mxu0 0
      %5821 = vmatpush1.bf16.msra.mxu0 0
      %5822 = vmatprep.subr.bf16.mxu0 0
      %5823 = vmatpush1.bf16.msra.mxu0 0
      %5824 = vmatprep.subr.bf16.mxu0 0
      %5825 = vmatpush1.bf16.msra.mxu0 0
      %5826 = vmatprep.subr.bf16.mxu0 0
      %5827 = vmatpush1.bf16.msra.mxu0 0
      %5828 = vmatprep.subr.bf16.mxu0 0
      %5829 = vmatpush1.bf16.msra.mxu0 0
      %5830 = vmatprep.subr.bf16.mxu0 0
      %5831 = vmatpush1.bf16.msra.mxu0 0
      %5832 = vmatprep.subr.bf16.mxu0 0
      %5833 = vmatpush1.bf16.msra.mxu0 0
      %5834 = vmatprep.subr.bf16.mxu0 0
      %5835 = vmatpush1.bf16.msra.mxu0 0
      %5836 = vmatprep.subr.bf16.mxu0 0
      %5837 = vmatpush1.bf16.msra.mxu0 0
      %5838 = vmatprep.subr.bf16.mxu0 0
      %5839 = vmatpush1.bf16.msra.mxu0 0
      %5840 = vmatprep.subr.bf16.mxu0 0
      %5841 = vmatpush1.bf16.msra.mxu0 0
      %5842 = vmatprep.subr.bf16.mxu0 0
      %5843 = vmatpush1.bf16.msra.mxu0 0
      %5844 = vmatprep.subr.bf16.mxu0 0
      %5845 = vmatpush1.bf16.msra.mxu0 0
      %5846 = vmatprep.subr.bf16.mxu0 0
      %5847 = vmatpush1.bf16.msra.mxu0 0
      %5848 = vmatprep.subr.bf16.mxu0 0
      %5849 = vmatpush1.bf16.msra.mxu0 0
      %5850 = vmatprep.mubr.bf16.mxu0 0
      %5851 = vmatmul.mubr.bf16.gmra.mrb[0].mxu0 %v5792
      %v5852 = vpop.f32.mrb[0].mxu0
      %v5853 = vadd.f32 0.0, %v5852
      %v5854 = vpop.f32.mrb[0].mxu0
      %v5855 = vpop.f32.mrb[0].mxu0
      %v5856 = vadd.f32 0.0, %v5855
      %v5857 = vpop.f32.mrb[0].mxu0
      %5858 = vmatprep.mubr.bf16.mxu0 0
      %5859 = vmatmul.mubr.bf16.gmra.mrb[0].mxu0 %v5795
      %v5860 = vpop.f32.mrb[0].mxu0
      %v5861 = vadd.f32 0.0, %v5860
      %v5862 = vpop.f32.mrb[0].mxu0
      %v5863 = vpop.f32.mrb[0].mxu0
      %v5864 = vadd.f32 0.0, %v5863
      %v5865 = vpop.f32.mrb[0].mxu0
      %5866 = vmatprep.mubr.bf16.mxu0 0
      %5867 = vmatmul.mubr.bf16.gmra.mrb[0].mxu0 %v5798
      %v5868 = vpop.f32.mrb[0].mxu0
      %v5869 = vadd.f32 0.0, %v5868
      %v5870 = vpop.f32.mrb[0].mxu0
      %v5871 = vpop.f32.mrb[0].mxu0
      %v5872 = vadd.f32 0.0, %v5871
      %v5873 = vpop.f32.mrb[0].mxu0
      %5874 = vmatprep.mubr.bf16.mxu0 0
      %5875 = vmatmul.mubr.bf16.gmra.mrb[0].mxu0 %v5801
      %v5876 = vpop.f32.mrb[0].mxu0
      %v5877 = vadd.f32 0.0, %v5876
      %v5878 = vpop.f32.mrb[0].mxu0
      %v5879 = vpop.f32.mrb[0].mxu0
      %v5880 = vadd.f32 0.0, %v5879
      %v5881 = vpop.f32.mrb[0].mxu0
      %5882 = vmatprep.mubr.bf16.mxu0 0
      %5883 = vmatmul.mubr.bf16.gmra.mrb[0].mxu0 %v5804
      %v5884 = vpop.f32.mrb[0].mxu0
      %v5885 = vadd.f32 0.0, %v5884
      %v5886 = vpop.f32.mrb[0].mxu0
      %v5887 = vpop.f32.mrb[0].mxu0
      %v5888 = vadd.f32 0.0, %v5887
      %v5889 = vpop.f32.mrb[0].mxu0
      %5890 = vmatprep.mubr.bf16.mxu0 0
      %5891 = vmatmul.mubr.bf16.gmra.mrb[0].mxu0 %v5807
      %v5892 = vpop.f32.mrb[0].mxu0
      %v5893 = vadd.f32 0.0, %v5892
      %v5894 = vpop.f32.mrb[0].mxu0
      %v5895 = vpop.f32.mrb[0].mxu0
      %v5896 = vadd.f32 0.0, %v5895
      %v5897 = vpop.f32.mrb[0].mxu0
      %5898 = vmatprep.mubr.bf16.mxu0 0
      %5899 = vmatmul.mubr.bf16.gmra.mrb[0].mxu0 %v5810
      %v5900 = vpop.f32.mrb[0].mxu0
      %v5901 = vadd.f32 0.0, %v5900
      %v5902 = vpop.f32.mrb[0].mxu0
      %v5903 = vpop.f32.mrb[0].mxu0
      %v5904 = vadd.f32 0.0, %v5903
      %v5905 = vpop.f32.mrb[0].mxu0
      %5906 = vmatprep.mubr.bf16.mxu0 0
      %5907 = vmatmul.mubr.bf16.gmra.mrb[0].mxu0 %v5813
      %v5908 = vpop.f32.mrb[0].mxu0
      %v5909 = vadd.f32 0.0, %v5908
      %v5910 = vpop.f32.mrb[0].mxu0
      %v5911 = vpop.f32.mrb[0].mxu0
      %v5912 = vadd.f32 0.0, %v5911
      %v5913 = vpop.f32.mrb[0].mxu0
      %5914 = vdwg.mxu0
      %v5915 = vadd.f32 %v5645, %v5853
      %v5916 = vadd.f32 %v5646, %v5856
      %v5917 = vadd.f32 %v5647, %v5861
      %v5918 = vadd.f32 %v5648, %v5864
      %v5919 = vadd.f32 %v5649, %v5869
      %v5920 = vadd.f32 %v5650, %v5872
      %v5921 = vadd.f32 %v5651, %v5877
      %v5922 = vadd.f32 %v5652, %v5880
      %v5923 = vadd.f32 %v5653, %v5885
      %v5924 = vadd.f32 %v5654, %v5888
      %v5925 = vadd.f32 %v5655, %v5893
      %v5926 = vadd.f32 %v5656, %v5896
      %v5927 = vadd.f32 %v5657, %v5901
      %v5928 = vadd.f32 %v5658, %v5904
      %v5929 = vadd.f32 %v5659, %v5909
      %v5930 = vadd.f32 %v5660, %v5912
      %v5931 = vld [vmem:[%s358 + $0x14] sm:$0x8]
      %v5932 = vld [vmem:[%s358 + $0x18] sm:$0xf]
      %v5933 = vld [vmem:[%s358 + $0x1c] sm:$0xf]
      %v5934 = vld [vmem:[%s358 + $0x20] sm:$0xf]
      %v5935 = vld [vmem:[%s358 + $0x24] sm:$0xf]
      %v5936 = vld [vmem:[%s358 + $0x28] sm:$0xf]
      %v5937 = vld [vmem:[%s358 + $0x2c] sm:$0xf]
      %v5938 = vld [vmem:[%s358 + $0x30] sm:$0xf]
      %v5939 = vld [vmem:[%s358 + $0x34] sm:$0xf]
      %v5940 = vld [vmem:[%s358 + $0x38] sm:$0xf]
      %v5941 = vld [vmem:[%s358 + $0x3c] sm:$0xf]
      %v5942 = vld [vmem:[%s358 + $0x40] sm:$0xf]
      %v5943 = vld [vmem:[%s358 + $0x44] sm:$0xf]
      %v5944 = vld [vmem:[%s358 + $0x48] sm:$0xf]
      %v5945 = vld [vmem:[%s358 + $0x4c] sm:$0xf]
      %v5946 = vld [vmem:[%s358 + $0x50] sm:$0xf]
      %v5947 = vld [vmem:[%s358 + $0x54] sm:$0xf]
      %s5948 = scalar_lea.vmem %s3, 96
      %v5949 = vld [vmem:[%s5948] sm:$0xf]
      %v5967 = vunpack.c.l.b16 %v5931
      %v5968 = vunpack.c.l.b16 %v5932
      %v5969 = vunpack.c.l.b16 %v5933
      %v5970 = vunpack.c.l.b16 %v5934
      %v5971 = vunpack.c.l.b16 %v5935
      %v5972 = vunpack.c.l.b16 %v5936
      %v5973 = vunpack.c.l.b16 %v5937
      %v5974 = vunpack.c.l.b16 %v5938
      %v5975 = vunpack.c.l.b16 %v5939
      %v5976 = vunpack.c.l.b16 %v5940
      %v5977 = vunpack.c.l.b16 %v5941
      %v5978 = vunpack.c.l.b16 %v5942
      %v5979 = vunpack.c.l.b16 %v5943
      %v5980 = vunpack.c.l.b16 %v5944
      %v5981 = vunpack.c.l.b16 %v5945
      %v5982 = vunpack.c.l.b16 %v5946
      %v5983 = vunpack.c.l.b16 %v5947
      %v5984 = vpack.c.b16 %v5968, %v5967
      %v5985 = vpack.c.b16 %v5970, %v5969
      %v5986 = vpack.c.b16 %v5972, %v5971
      %v5987 = vpack.c.b16 %v5974, %v5973
      %v5988 = vpack.c.b16 %v5976, %v5975
      %v5989 = vpack.c.b16 %v5978, %v5977
      %v5990 = vpack.c.b16 %v5980, %v5979
      %v5991 = vpack.c.b16 %v5982, %v5981
      %v5992 = vpack.c.b16 %v5983, %v5983
      %v5994 = vshrl.u32 %v5984, 16
      %v5996 = vrot.slane %v5994, 3
      %v5997 = vshll.u32 %v5984, 16
      %v5999 = vrot.slane %v5997, 4
      %v6000 = vor.u32 %v5996, %v5999
      %v6002 = vshrl.u32 %v5985, 16
      %v6004 = vrot.slane %v6002, 3
      %v6005 = vshll.u32 %v5985, 16
      %v6007 = vrot.slane %v6005, 4
      %v6008 = vor.u32 %v6004, %v6007
      %v6009 = vsel %vm570, %v6000, %v6008
      %v6011 = vshrl.u32 %v5986, 16
      %v6013 = vrot.slane %v6011, 3
      %v6014 = vshll.u32 %v5986, 16
      %v6016 = vrot.slane %v6014, 4
      %v6017 = vor.u32 %v6013, %v6016
      %v6018 = vsel %vm570, %v6008, %v6017
      %v6020 = vshrl.u32 %v5987, 16
      %v6022 = vrot.slane %v6020, 3
      %v6023 = vshll.u32 %v5987, 16
      %v6025 = vrot.slane %v6023, 4
      %v6026 = vor.u32 %v6022, %v6025
      %v6027 = vsel %vm570, %v6017, %v6026
      %v6029 = vshrl.u32 %v5988, 16
      %v6031 = vrot.slane %v6029, 3
      %v6032 = vshll.u32 %v5988, 16
      %v6034 = vrot.slane %v6032, 4
      %v6035 = vor.u32 %v6031, %v6034
      %v6036 = vsel %vm570, %v6026, %v6035
      %v6038 = vshrl.u32 %v5989, 16
      %v6040 = vrot.slane %v6038, 3
      %v6041 = vshll.u32 %v5989, 16
      %v6043 = vrot.slane %v6041, 4
      %v6044 = vor.u32 %v6040, %v6043
      %v6045 = vsel %vm570, %v6035, %v6044
      %v6047 = vshrl.u32 %v5990, 16
      %v6049 = vrot.slane %v6047, 3
      %v6050 = vshll.u32 %v5990, 16
      %v6052 = vrot.slane %v6050, 4
      %v6053 = vor.u32 %v6049, %v6052
      %v6054 = vsel %vm570, %v6044, %v6053
      %v6056 = vshrl.u32 %v5991, 16
      %v6058 = vrot.slane %v6056, 3
      %v6059 = vshll.u32 %v5991, 16
      %v6061 = vrot.slane %v6059, 4
      %v6062 = vor.u32 %v6058, %v6061
      %v6063 = vsel %vm570, %v6053, %v6062
      %v6065 = vshrl.u32 %v5992, 16
      %v6067 = vrot.slane %v6065, 3
      %v6068 = vshll.u32 %v5992, 16
      %v6070 = vrot.slane %v6068, 4
      %v6071 = vor.u32 %v6067, %v6070
      %v6072 = vsel %vm570, %v6062, %v6071
      %v6074 = vsel %vm433, %v6009, 0
      %v6077 = vsel %vm433, %v6018, 0
      %v6080 = vsel %vm433, %v6027, 0
      %v6083 = vsel %vm433, %v6036, 0
      %v6086 = vsel %vm433, %v6045, 0
      %v6089 = vsel %vm433, %v6054, 0
      %v6092 = vsel %vm433, %v6063, 0
      %v6095 = vsel %vm433, %v6072, 0
      %v6098 = vsel %vm458, %v5949, 0
      %6100 = vmatprep.subr.bf16.mxu0 0
      %6101 = vmatpush1.bf16.msra.mxu0 %v6098
      %6102 = vmatprep.subr.bf16.mxu0 0
      %6103 = vmatpush1.bf16.msra.mxu0 0
      %6104 = vmatprep.subr.bf16.mxu0 0
      %6105 = vmatpush1.bf16.msra.mxu0 0
      %6106 = vmatprep.subr.bf16.mxu0 0
      %6107 = vmatpush1.bf16.msra.mxu0 0
      %6108 = vmatprep.subr.bf16.mxu0 0
      %6109 = vmatpush1.bf16.msra.mxu0 0
      %6110 = vmatprep.subr.bf16.mxu0 0
      %6111 = vmatpush1.bf16.msra.mxu0 0
      %6112 = vmatprep.subr.bf16.mxu0 0
      %6113 = vmatpush1.bf16.msra.mxu0 0
      %6114 = vmatprep.subr.bf16.mxu0 0
      %6115 = vmatpush1.bf16.msra.mxu0 0
      %6116 = vmatprep.subr.bf16.mxu0 0
      %6117 = vmatpush1.bf16.msra.mxu0 0
      %6118 = vmatprep.subr.bf16.mxu0 0
      %6119 = vmatpush1.bf16.msra.mxu0 0
      %6120 = vmatprep.subr.bf16.mxu0 0
      %6121 = vmatpush1.bf16.msra.mxu0 0
      %6122 = vmatprep.subr.bf16.mxu0 0
      %6123 = vmatpush1.bf16.msra.mxu0 0
      %6124 = vmatprep.subr.bf16.mxu0 0
      %6125 = vmatpush1.bf16.msra.mxu0 0
      %6126 = vmatprep.subr.bf16.mxu0 0
      %6127 = vmatpush1.bf16.msra.mxu0 0
      %6128 = vmatprep.subr.bf16.mxu0 0
      %6129 = vmatpush1.bf16.msra.mxu0 0
      %6130 = vmatprep.subr.bf16.mxu0 0
      %6131 = vmatpush1.bf16.msra.mxu0 0
      %6132 = vmatprep.mubr.bf16.mxu0 0
      %6133 = vmatmul.mubr.bf16.gmra.mrb[0].mxu0 %v6074
      %v6134 = vpop.f32.mrb[0].mxu0
      %v6135 = vadd.f32 0.0, %v6134
      %v6136 = vpop.f32.mrb[0].mxu0
      %v6137 = vpop.f32.mrb[0].mxu0
      %v6138 = vadd.f32 0.0, %v6137
      %v6139 = vpop.f32.mrb[0].mxu0
      %6140 = vmatprep.mubr.bf16.mxu0 0
      %6141 = vmatmul.mubr.bf16.gmra.mrb[0].mxu0 %v6077
      %v6142 = vpop.f32.mrb[0].mxu0
      %v6143 = vadd.f32 0.0, %v6142
      %v6144 = vpop.f32.mrb[0].mxu0
      %v6145 = vpop.f32.mrb[0].mxu0
      %v6146 = vadd.f32 0.0, %v6145
      %v6147 = vpop.f32.mrb[0].mxu0
      %6148 = vmatprep.mubr.bf16.mxu0 0
      %6149 = vmatmul.mubr.bf16.gmra.mrb[0].mxu0 %v6080
      %v6150 = vpop.f32.mrb[0].mxu0
      %v6151 = vadd.f32 0.0, %v6150
      %v6152 = vpop.f32.mrb[0].mxu0
      %v6153 = vpop.f32.mrb[0].mxu0
      %v6154 = vadd.f32 0.0, %v6153
      %v6155 = vpop.f32.mrb[0].mxu0
      %6156 = vmatprep.mubr.bf16.mxu0 0
      %6157 = vmatmul.mubr.bf16.gmra.mrb[0].mxu0 %v6083
      %v6158 = vpop.f32.mrb[0].mxu0
      %v6159 = vadd.f32 0.0, %v6158
      %v6160 = vpop.f32.mrb[0].mxu0
      %v6161 = vpop.f32.mrb[0].mxu0
      %v6162 = vadd.f32 0.0, %v6161
      %v6163 = vpop.f32.mrb[0].mxu0
      %6164 = vmatprep.mubr.bf16.mxu0 0
      %6165 = vmatmul.mubr.bf16.gmra.mrb[0].mxu0 %v6086
      %v6166 = vpop.f32.mrb[0].mxu0
      %v6167 = vadd.f32 0.0, %v6166
      %v6168 = vpop.f32.mrb[0].mxu0
      %v6169 = vpop.f32.mrb[0].mxu0
      %v6170 = vadd.f32 0.0, %v6169
      %v6171 = vpop.f32.mrb[0].mxu0
      %6172 = vmatprep.mubr.bf16.mxu0 0
      %6173 = vmatmul.mubr.bf16.gmra.mrb[0].mxu0 %v6089
      %v6174 = vpop.f32.mrb[0].mxu0
      %v6175 = vadd.f32 0.0, %v6174
      %v6176 = vpop.f32.mrb[0].mxu0
      %v6177 = vpop.f32.mrb[0].mxu0
      %v6178 = vadd.f32 0.0, %v6177
      %v6179 = vpop.f32.mrb[0].mxu0
      %6180 = vmatprep.mubr.bf16.mxu0 0
      %6181 = vmatmul.mubr.bf16.gmra.mrb[0].mxu0 %v6092
      %v6182 = vpop.f32.mrb[0].mxu0
      %v6183 = vadd.f32 0.0, %v6182
      %v6184 = vpop.f32.mrb[0].mxu0
      %v6185 = vpop.f32.mrb[0].mxu0
      %v6186 = vadd.f32 0.0, %v6185
      %v6187 = vpop.f32.mrb[0].mxu0
      %6188 = vmatprep.mubr.bf16.mxu0 0
      %6189 = vmatmul.mubr.bf16.gmra.mrb[0].mxu0 %v6095
      %v6190 = vpop.f32.mrb[0].mxu0
      %v6191 = vadd.f32 0.0, %v6190
      %v6192 = vpop.f32.mrb[0].mxu0
      %v6193 = vpop.f32.mrb[0].mxu0
      %v6194 = vadd.f32 0.0, %v6193
      %v6195 = vpop.f32.mrb[0].mxu0
      %6196 = vdwg.mxu0
      %v6197 = vadd.f32 %v5915, %v6135
      %v6198 = vadd.f32 %v5916, %v6138
      %v6199 = vadd.f32 %v5917, %v6143
      %v6200 = vadd.f32 %v5918, %v6146
      %v6201 = vadd.f32 %v5919, %v6151
      %v6202 = vadd.f32 %v5920, %v6154
      %v6203 = vadd.f32 %v5921, %v6159
      %v6204 = vadd.f32 %v5922, %v6162
      %v6205 = vadd.f32 %v5923, %v6167
      %v6206 = vadd.f32 %v5924, %v6170
      %v6207 = vadd.f32 %v5925, %v6175
      %v6208 = vadd.f32 %v5926, %v6178
      %v6209 = vadd.f32 %v5927, %v6183
      %v6210 = vadd.f32 %v5928, %v6186
      %v6211 = vadd.f32 %v5929, %v6191
      %v6212 = vadd.f32 %v5930, %v6194
      %s6213 = scalar_lea.vmem %s3, 100
      %v6214 = vld [vmem:[%s6213] sm:$0xf]
      %v6215 = vpack.c.b16 %v5969, %v5968
      %v6216 = vpack.c.b16 %v5971, %v5970
      %v6217 = vpack.c.b16 %v5973, %v5972
      %v6218 = vpack.c.b16 %v5975, %v5974
      %v6219 = vpack.c.b16 %v5977, %v5976
      %v6220 = vpack.c.b16 %v5979, %v5978
      %v6221 = vpack.c.b16 %v5981, %v5980
      %v6222 = vpack.c.b16 %v5983, %v5982
      %v6224 = vsel %vm433, %v6215, 0
      %v6227 = vsel %vm433, %v6216, 0
      %v6230 = vsel %vm433, %v6217, 0
      %v6233 = vsel %vm433, %v6218, 0
      %v6236 = vsel %vm433, %v6219, 0
      %v6239 = vsel %vm433, %v6220, 0
      %v6242 = vsel %vm433, %v6221, 0
      %v6245 = vsel %vm433, %v6222, 0
      %v6248 = vsel %vm458, %v6214, 0
      %6250 = vmatprep.subr.bf16.mxu0 0
      %6251 = vmatpush1.bf16.msra.mxu0 %v6248
      %6252 = vmatprep.subr.bf16.mxu0 0
      %6253 = vmatpush1.bf16.msra.mxu0 0
      %6254 = vmatprep.subr.bf16.mxu0 0
      %6255 = vmatpush1.bf16.msra.mxu0 0
      %6256 = vmatprep.subr.bf16.mxu0 0
      %6257 = vmatpush1.bf16.msra.mxu0 0
      %6258 = vmatprep.subr.bf16.mxu0 0
      %6259 = vmatpush1.bf16.msra.mxu0 0
      %6260 = vmatprep.subr.bf16.mxu0 0
      %6261 = vmatpush1.bf16.msra.mxu0 0
      %6262 = vmatprep.subr.bf16.mxu0 0
      %6263 = vmatpush1.bf16.msra.mxu0 0
      %6264 = vmatprep.subr.bf16.mxu0 0
      %6265 = vmatpush1.bf16.msra.mxu0 0
      %6266 = vmatprep.subr.bf16.mxu0 0
      %6267 = vmatpush1.bf16.msra.mxu0 0
      %6268 = vmatprep.subr.bf16.mxu0 0
      %6269 = vmatpush1.bf16.msra.mxu0 0
      %6270 = vmatprep.subr.bf16.mxu0 0
      %6271 = vmatpush1.bf16.msra.mxu0 0
      %6272 = vmatprep.subr.bf16.mxu0 0
      %6273 = vmatpush1.bf16.msra.mxu0 0
      %6274 = vmatprep.subr.bf16.mxu0 0
      %6275 = vmatpush1.bf16.msra.mxu0 0
      %6276 = vmatprep.subr.bf16.mxu0 0
      %6277 = vmatpush1.bf16.msra.mxu0 0
      %6278 = vmatprep.subr.bf16.mxu0 0
      %6279 = vmatpush1.bf16.msra.mxu0 0
      %6280 = vmatprep.subr.bf16.mxu0 0
      %6281 = vmatpush1.bf16.msra.mxu0 0
      %6282 = vmatprep.mubr.bf16.mxu0 0
      %6283 = vmatmul.mubr.bf16.gmra.mrb[0].mxu0 %v6224
      %v6284 = vpop.f32.mrb[0].mxu0
      %v6285 = vadd.f32 0.0, %v6284
      %v6286 = vpop.f32.mrb[0].mxu0
      %v6287 = vpop.f32.mrb[0].mxu0
      %v6288 = vadd.f32 0.0, %v6287
      %v6289 = vpop.f32.mrb[0].mxu0
      %6290 = vmatprep.mubr.bf16.mxu0 0
      %6291 = vmatmul.mubr.bf16.gmra.mrb[0].mxu0 %v6227
      %v6292 = vpop.f32.mrb[0].mxu0
      %v6293 = vadd.f32 0.0, %v6292
      %v6294 = vpop.f32.mrb[0].mxu0
      %v6295 = vpop.f32.mrb[0].mxu0
      %v6296 = vadd.f32 0.0, %v6295
      %v6297 = vpop.f32.mrb[0].mxu0
      %6298 = vmatprep.mubr.bf16.mxu0 0
      %6299 = vmatmul.mubr.bf16.gmra.mrb[0].mxu0 %v6230
      %v6300 = vpop.f32.mrb[0].mxu0
      %v6301 = vadd.f32 0.0, %v6300
      %v6302 = vpop.f32.mrb[0].mxu0
      %v6303 = vpop.f32.mrb[0].mxu0
      %v6304 = vadd.f32 0.0, %v6303
      %v6305 = vpop.f32.mrb[0].mxu0
      %6306 = vmatprep.mubr.bf16.mxu0 0
      %6307 = vmatmul.mubr.bf16.gmra.mrb[0].mxu0 %v6233
      %v6308 = vpop.f32.mrb[0].mxu0
      %v6309 = vadd.f32 0.0, %v6308
      %v6310 = vpop.f32.mrb[0].mxu0
      %v6311 = vpop.f32.mrb[0].mxu0
      %v6312 = vadd.f32 0.0, %v6311
      %v6313 = vpop.f32.mrb[0].mxu0
      %6314 = vmatprep.mubr.bf16.mxu0 0
      %6315 = vmatmul.mubr.bf16.gmra.mrb[0].mxu0 %v6236
      %v6316 = vpop.f32.mrb[0].mxu0
      %v6317 = vadd.f32 0.0, %v6316
      %v6318 = vpop.f32.mrb[0].mxu0
      %v6319 = vpop.f32.mrb[0].mxu0
      %v6320 = vadd.f32 0.0, %v6319
      %v6321 = vpop.f32.mrb[0].mxu0
      %6322 = vmatprep.mubr.bf16.mxu0 0
      %6323 = vmatmul.mubr.bf16.gmra.mrb[0].mxu0 %v6239
      %v6324 = vpop.f32.mrb[0].mxu0
      %v6325 = vadd.f32 0.0, %v6324
      %v6326 = vpop.f32.mrb[0].mxu0
      %v6327 = vpop.f32.mrb[0].mxu0
      %v6328 = vadd.f32 0.0, %v6327
      %v6329 = vpop.f32.mrb[0].mxu0
      %6330 = vmatprep.mubr.bf16.mxu0 0
      %6331 = vmatmul.mubr.bf16.gmra.mrb[0].mxu0 %v6242
      %v6332 = vpop.f32.mrb[0].mxu0
      %v6333 = vadd.f32 0.0, %v6332
      %v6334 = vpop.f32.mrb[0].mxu0
      %v6335 = vpop.f32.mrb[0].mxu0
      %v6336 = vadd.f32 0.0, %v6335
      %v6337 = vpop.f32.mrb[0].mxu0
      %6338 = vmatprep.mubr.bf16.mxu0 0
      %6339 = vmatmul.mubr.bf16.gmra.mrb[0].mxu0 %v6245
      %v6340 = vpop.f32.mrb[0].mxu0
      %v6341 = vadd.f32 0.0, %v6340
      %v6342 = vpop.f32.mrb[0].mxu0
      %v6343 = vpop.f32.mrb[0].mxu0
      %v6344 = vadd.f32 0.0, %v6343
      %v6345 = vpop.f32.mrb[0].mxu0
      %6346 = vdwg.mxu0
      %v6347 = vadd.f32 %v6197, %v6285
      %v6348 = vadd.f32 %v6198, %v6288
      %v6349 = vadd.f32 %v6199, %v6293
      %v6350 = vadd.f32 %v6200, %v6296
      %v6351 = vadd.f32 %v6201, %v6301
      %v6352 = vadd.f32 %v6202, %v6304
      %v6353 = vadd.f32 %v6203, %v6309
      %v6354 = vadd.f32 %v6204, %v6312
      %v6355 = vadd.f32 %v6205, %v6317
      %v6356 = vadd.f32 %v6206, %v6320
      %v6357 = vadd.f32 %v6207, %v6325
      %v6358 = vadd.f32 %v6208, %v6328
      %v6359 = vadd.f32 %v6209, %v6333
      %v6360 = vadd.f32 %v6210, %v6336
      %v6361 = vadd.f32 %v6211, %v6341
      %v6362 = vadd.f32 %v6212, %v6344
      %v6363 = vld [vmem:[%s358 + $0x18] sm:$0xf]
      %v6364 = vld [vmem:[%s358 + $0x1c] sm:$0xf]
      %v6365 = vld [vmem:[%s358 + $0x20] sm:$0xf]
      %v6366 = vld [vmem:[%s358 + $0x24] sm:$0xf]
      %v6367 = vld [vmem:[%s358 + $0x28] sm:$0xf]
      %v6368 = vld [vmem:[%s358 + $0x2c] sm:$0xf]
      %v6369 = vld [vmem:[%s358 + $0x30] sm:$0xf]
      %v6370 = vld [vmem:[%s358 + $0x34] sm:$0xf]
      %v6371 = vld [vmem:[%s358 + $0x38] sm:$0xf]
      %v6372 = vld [vmem:[%s358 + $0x3c] sm:$0xf]
      %v6373 = vld [vmem:[%s358 + $0x40] sm:$0xf]
      %v6374 = vld [vmem:[%s358 + $0x44] sm:$0xf]
      %v6375 = vld [vmem:[%s358 + $0x48] sm:$0xf]
      %v6376 = vld [vmem:[%s358 + $0x4c] sm:$0xf]
      %v6377 = vld [vmem:[%s358 + $0x50] sm:$0xf]
      %v6378 = vld [vmem:[%s358 + $0x54] sm:$0xf]
      %v6379 = vld [vmem:[%s358 + $0x58] sm:$0x1]
      %s6380 = scalar_lea.vmem %s3, 104
      %v6381 = vld [vmem:[%s6380] sm:$0xf]
      %v6399 = vunpack.c.l.b16 %v6363
      %v6400 = vunpack.c.l.b16 %v6364
      %v6401 = vunpack.c.l.b16 %v6365
      %v6402 = vunpack.c.l.b16 %v6366
      %v6403 = vunpack.c.l.b16 %v6367
      %v6404 = vunpack.c.l.b16 %v6368
      %v6405 = vunpack.c.l.b16 %v6369
      %v6406 = vunpack.c.l.b16 %v6370
      %v6407 = vunpack.c.l.b16 %v6371
      %v6408 = vunpack.c.l.b16 %v6372
      %v6409 = vunpack.c.l.b16 %v6373
      %v6410 = vunpack.c.l.b16 %v6374
      %v6411 = vunpack.c.l.b16 %v6375
      %v6412 = vunpack.c.l.b16 %v6376
      %v6413 = vunpack.c.l.b16 %v6377
      %v6414 = vunpack.c.l.b16 %v6378
      %v6415 = vunpack.c.l.b16 %v6379
      %v6416 = vpack.c.b16 %v6400, %v6399
      %v6417 = vpack.c.b16 %v6402, %v6401
      %v6418 = vpack.c.b16 %v6404, %v6403
      %v6419 = vpack.c.b16 %v6406, %v6405
      %v6420 = vpack.c.b16 %v6408, %v6407
      %v6421 = vpack.c.b16 %v6410, %v6409
      %v6422 = vpack.c.b16 %v6412, %v6411
      %v6423 = vpack.c.b16 %v6414, %v6413
      %v6424 = vpack.c.b16 %v6415, %v6415
      %v6426 = vshrl.u32 %v6416, 16
      %v6428 = vshll.u32 %v6416, 16
      %v6430 = vrot.slane %v6428, 1
      %v6431 = vor.u32 %v6426, %v6430
      %v6433 = vshll.u32 %v6417, 16
      %v6435 = vrot.slane %v6433, 1
      %v6436 = vsel %vm837, %v6431, %v6435
      %v6437 = vshrl.u32 %v6417, 16
      %v6439 = vor.u32 %v6437, %v6435
      %v6441 = vshll.u32 %v6418, 16
      %v6443 = vrot.slane %v6441, 1
      %v6444 = vsel %vm837, %v6439, %v6443
      %v6445 = vshrl.u32 %v6418, 16
      %v6447 = vor.u32 %v6445, %v6443
      %v6449 = vshll.u32 %v6419, 16
      %v6451 = vrot.slane %v6449, 1
      %v6452 = vsel %vm837, %v6447, %v6451
      %v6453 = vshrl.u32 %v6419, 16
      %v6455 = vor.u32 %v6453, %v6451
      %v6457 = vshll.u32 %v6420, 16
      %v6459 = vrot.slane %v6457, 1
      %v6460 = vsel %vm837, %v6455, %v6459
      %v6461 = vshrl.u32 %v6420, 16
      %v6463 = vor.u32 %v6461, %v6459
      %v6465 = vshll.u32 %v6421, 16
      %v6467 = vrot.slane %v6465, 1
      %v6468 = vsel %vm837, %v6463, %v6467
      %v6469 = vshrl.u32 %v6421, 16
      %v6471 = vor.u32 %v6469, %v6467
      %v6473 = vshll.u32 %v6422, 16
      %v6475 = vrot.slane %v6473, 1
      %v6476 = vsel %vm837, %v6471, %v6475
      %v6477 = vshrl.u32 %v6422, 16
      %v6479 = vor.u32 %v6477, %v6475
      %v6481 = vshll.u32 %v6423, 16
      %v6483 = vrot.slane %v6481, 1
      %v6484 = vsel %vm837, %v6479, %v6483
      %v6485 = vshrl.u32 %v6423, 16
      %v6487 = vor.u32 %v6485, %v6483
      %v6489 = vshll.u32 %v6424, 16
      %v6491 = vrot.slane %v6489, 1
      %v6492 = vsel %vm837, %v6487, %v6491
      %v6494 = vsel %vm433, %v6436, 0
      %v6497 = vsel %vm433, %v6444, 0
      %v6500 = vsel %vm433, %v6452, 0
      %v6503 = vsel %vm433, %v6460, 0
      %v6506 = vsel %vm433, %v6468, 0
      %v6509 = vsel %vm433, %v6476, 0
      %v6512 = vsel %vm433, %v6484, 0
      %v6515 = vsel %vm433, %v6492, 0
      %v6518 = vsel %vm458, %v6381, 0
      %6520 = vmatprep.subr.bf16.mxu0 0
      %6521 = vmatpush1.bf16.msra.mxu0 %v6518
      %6522 = vmatprep.subr.bf16.mxu0 0
      %6523 = vmatpush1.bf16.msra.mxu0 0
      %6524 = vmatprep.subr.bf16.mxu0 0
      %6525 = vmatpush1.bf16.msra.mxu0 0
      %6526 = vmatprep.subr.bf16.mxu0 0
      %6527 = vmatpush1.bf16.msra.mxu0 0
      %6528 = vmatprep.subr.bf16.mxu0 0
      %6529 = vmatpush1.bf16.msra.mxu0 0
      %6530 = vmatprep.subr.bf16.mxu0 0
      %6531 = vmatpush1.bf16.msra.mxu0 0
      %6532 = vmatprep.subr.bf16.mxu0 0
      %6533 = vmatpush1.bf16.msra.mxu0 0
      %6534 = vmatprep.subr.bf16.mxu0 0
      %6535 = vmatpush1.bf16.msra.mxu0 0
      %6536 = vmatprep.subr.bf16.mxu0 0
      %6537 = vmatpush1.bf16.msra.mxu0 0
      %6538 = vmatprep.subr.bf16.mxu0 0
      %6539 = vmatpush1.bf16.msra.mxu0 0
      %6540 = vmatprep.subr.bf16.mxu0 0
      %6541 = vmatpush1.bf16.msra.mxu0 0
      %6542 = vmatprep.subr.bf16.mxu0 0
      %6543 = vmatpush1.bf16.msra.mxu0 0
      %6544 = vmatprep.subr.bf16.mxu0 0
      %6545 = vmatpush1.bf16.msra.mxu0 0
      %6546 = vmatprep.subr.bf16.mxu0 0
      %6547 = vmatpush1.bf16.msra.mxu0 0
      %6548 = vmatprep.subr.bf16.mxu0 0
      %6549 = vmatpush1.bf16.msra.mxu0 0
      %6550 = vmatprep.subr.bf16.mxu0 0
      %6551 = vmatpush1.bf16.msra.mxu0 0
      %6552 = vmatprep.mubr.bf16.mxu0 0
      %6553 = vmatmul.mubr.bf16.gmra.mrb[0].mxu0 %v6494
      %v6554 = vpop.f32.mrb[0].mxu0
      %v6555 = vadd.f32 0.0, %v6554
      %v6556 = vpop.f32.mrb[0].mxu0
      %v6557 = vpop.f32.mrb[0].mxu0
      %v6558 = vadd.f32 0.0, %v6557
      %v6559 = vpop.f32.mrb[0].mxu0
      %6560 = vmatprep.mubr.bf16.mxu0 0
      %6561 = vmatmul.mubr.bf16.gmra.mrb[0].mxu0 %v6497
      %v6562 = vpop.f32.mrb[0].mxu0
      %v6563 = vadd.f32 0.0, %v6562
      %v6564 = vpop.f32.mrb[0].mxu0
      %v6565 = vpop.f32.mrb[0].mxu0
      %v6566 = vadd.f32 0.0, %v6565
      %v6567 = vpop.f32.mrb[0].mxu0
      %6568 = vmatprep.mubr.bf16.mxu0 0
      %6569 = vmatmul.mubr.bf16.gmra.mrb[0].mxu0 %v6500
      %v6570 = vpop.f32.mrb[0].mxu0
      %v6571 = vadd.f32 0.0, %v6570
      %v6572 = vpop.f32.mrb[0].mxu0
      %v6573 = vpop.f32.mrb[0].mxu0
      %v6574 = vadd.f32 0.0, %v6573
      %v6575 = vpop.f32.mrb[0].mxu0
      %6576 = vmatprep.mubr.bf16.mxu0 0
      %6577 = vmatmul.mubr.bf16.gmra.mrb[0].mxu0 %v6503
      %v6578 = vpop.f32.mrb[0].mxu0
      %v6579 = vadd.f32 0.0, %v6578
      %v6580 = vpop.f32.mrb[0].mxu0
      %v6581 = vpop.f32.mrb[0].mxu0
      %v6582 = vadd.f32 0.0, %v6581
      %v6583 = vpop.f32.mrb[0].mxu0
      %6584 = vmatprep.mubr.bf16.mxu0 0
      %6585 = vmatmul.mubr.bf16.gmra.mrb[0].mxu0 %v6506
      %v6586 = vpop.f32.mrb[0].mxu0
      %v6587 = vadd.f32 0.0, %v6586
      %v6588 = vpop.f32.mrb[0].mxu0
      %v6589 = vpop.f32.mrb[0].mxu0
      %v6590 = vadd.f32 0.0, %v6589
      %v6591 = vpop.f32.mrb[0].mxu0
      %6592 = vmatprep.mubr.bf16.mxu0 0
      %6593 = vmatmul.mubr.bf16.gmra.mrb[0].mxu0 %v6509
      %v6594 = vpop.f32.mrb[0].mxu0
      %v6595 = vadd.f32 0.0, %v6594
      %v6596 = vpop.f32.mrb[0].mxu0
      %v6597 = vpop.f32.mrb[0].mxu0
      %v6598 = vadd.f32 0.0, %v6597
      %v6599 = vpop.f32.mrb[0].mxu0
      %6600 = vmatprep.mubr.bf16.mxu0 0
      %6601 = vmatmul.mubr.bf16.gmra.mrb[0].mxu0 %v6512
      %v6602 = vpop.f32.mrb[0].mxu0
      %v6603 = vadd.f32 0.0, %v6602
      %v6604 = vpop.f32.mrb[0].mxu0
      %v6605 = vpop.f32.mrb[0].mxu0
      %v6606 = vadd.f32 0.0, %v6605
      %v6607 = vpop.f32.mrb[0].mxu0
      %6608 = vmatprep.mubr.bf16.mxu0 0
      %6609 = vmatmul.mubr.bf16.gmra.mrb[0].mxu0 %v6515
      %v6610 = vpop.f32.mrb[0].mxu0
      %v6611 = vadd.f32 0.0, %v6610
      %v6612 = vpop.f32.mrb[0].mxu0
      %v6613 = vpop.f32.mrb[0].mxu0
      %v6614 = vadd.f32 0.0, %v6613
      %v6615 = vpop.f32.mrb[0].mxu0
      %6616 = vdwg.mxu0
      %v6617 = vadd.f32 %v6347, %v6555
      %v6618 = vadd.f32 %v6348, %v6558
      %v6619 = vadd.f32 %v6349, %v6563
      %v6620 = vadd.f32 %v6350, %v6566
      %v6621 = vadd.f32 %v6351, %v6571
      %v6622 = vadd.f32 %v6352, %v6574
      %v6623 = vadd.f32 %v6353, %v6579
      %v6624 = vadd.f32 %v6354, %v6582
      %v6625 = vadd.f32 %v6355, %v6587
      %v6626 = vadd.f32 %v6356, %v6590
      %v6627 = vadd.f32 %v6357, %v6595
      %v6628 = vadd.f32 %v6358, %v6598
      %v6629 = vadd.f32 %v6359, %v6603
      %v6630 = vadd.f32 %v6360, %v6606
      %v6631 = vadd.f32 %v6361, %v6611
      %v6632 = vadd.f32 %v6362, %v6614
      %p6633 = scmp.lt.s32.totalorder %s21, 7
      %s6634 = scalar_select %p6633, 1, 0
      %s6635 = scvt.s32.f32 %s6634
      %v6636 = vstv %s6635
      %v6637 = vmul.f32 %v6617, %v6636
      %v6638 = vmul.f32 %v6618, %v6636
      %v6639 = vmul.f32 %v6619, %v6636
      %v6640 = vmul.f32 %v6620, %v6636
      %v6641 = vmul.f32 %v6621, %v6636
      %v6642 = vmul.f32 %v6622, %v6636
      %v6643 = vmul.f32 %v6623, %v6636
      %v6644 = vmul.f32 %v6624, %v6636
      %v6645 = vmul.f32 %v6625, %v6636
      %v6646 = vmul.f32 %v6626, %v6636
      %v6647 = vmul.f32 %v6627, %v6636
      %v6648 = vmul.f32 %v6628, %v6636
      %v6649 = vmul.f32 %v6629, %v6636
      %v6650 = vmul.f32 %v6630, %v6636
      %v6651 = vmul.f32 %v6631, %v6636
      %v6652 = vmul.f32 %v6632, %v6636
      %v6653 = vadd.f32 %v4543, %v6637
      %v6654 = vadd.f32 %v4544, %v6638
      %v6655 = vadd.f32 %v4545, %v6639
      %v6656 = vadd.f32 %v4546, %v6640
      %v6657 = vadd.f32 %v4547, %v6641
      %v6658 = vadd.f32 %v4548, %v6642
      %v6659 = vadd.f32 %v4549, %v6643
      %v6660 = vadd.f32 %v4550, %v6644
      %v6661 = vadd.f32 %v4551, %v6645
      %v6662 = vadd.f32 %v4552, %v6646
      %v6663 = vadd.f32 %v4553, %v6647
      %v6664 = vadd.f32 %v4554, %v6648
      %v6665 = vadd.f32 %v4555, %v6649
      %v6666 = vadd.f32 %v4556, %v6650
      %v6667 = vadd.f32 %v4557, %v6651
      %v6668 = vadd.f32 %v4558, %v6652
      %v6669 = vld [vmem:[%s4] sm:$0x1]
      %v6671 = vlaneseq
      %v6672 = vshrl.u32 %v6671, 7
      %v6673 = vsub.s32 0, %v6672
      %v6674 = vrot.slane %v6669, %v6673
      %v6676 = vadd.f32 %v6653, %v6674
      %v6677 = vadd.f32 %v6654, %v6674
      %v6678 = vadd.f32 %v6655, %v6674
      %v6679 = vadd.f32 %v6656, %v6674
      %v6680 = vadd.f32 %v6657, %v6674
      %v6681 = vadd.f32 %v6658, %v6674
      %v6682 = vadd.f32 %v6659, %v6674
      %v6683 = vadd.f32 %v6660, %v6674
      %v6684 = vadd.f32 %v6661, %v6674
      %v6685 = vadd.f32 %v6662, %v6674
      %v6686 = vadd.f32 %v6663, %v6674
      %v6687 = vadd.f32 %v6664, %v6674
      %v6688 = vadd.f32 %v6665, %v6674
      %v6689 = vadd.f32 %v6666, %v6674
      %v6690 = vadd.f32 %v6667, %v6674
      %v6691 = vadd.f32 %v6668, %v6674
      %v6692 = vmax.f32 %v6676, 0.0
      %v6693 = vmax.f32 %v6677, 0.0
      %v6694 = vmax.f32 %v6678, 0.0
      %v6695 = vmax.f32 %v6679, 0.0
      %v6696 = vmax.f32 %v6680, 0.0
      %v6697 = vmax.f32 %v6681, 0.0
      %v6698 = vmax.f32 %v6682, 0.0
      %v6699 = vmax.f32 %v6683, 0.0
      %v6700 = vmax.f32 %v6684, 0.0
      %v6701 = vmax.f32 %v6685, 0.0
      %v6702 = vmax.f32 %v6686, 0.0
      %v6703 = vmax.f32 %v6687, 0.0
      %v6704 = vmax.f32 %v6688, 0.0
      %v6705 = vmax.f32 %v6689, 0.0
      %v6706 = vmax.f32 %v6690, 0.0
      %v6707 = vmax.f32 %v6691, 0.0
      %v6708 = vlaneseq
      %v6709 = vshrl.u32 %v6708, 7
      %v6710 = vadd.s32 %v6709, 8
      %v6711 = vadd.s32 %v6709, 16
      %v6712 = vadd.s32 %v6709, 24
      %v6713 = vadd.s32 %v6709, 32
      %v6714 = vadd.s32 %v6709, 40
      %v6715 = vadd.s32 %v6709, 48
      %v6716 = vadd.s32 %v6709, 56
      %v6717 = vadd.s32 %v6709, 64
      %v6718 = vadd.s32 %v6709, 72
      %v6719 = vadd.s32 %v6709, 80
      %v6720 = vadd.s32 %v6709, 88
      %v6721 = vadd.s32 %v6709, 96
      %v6722 = vadd.s32 %v6709, 104
      %v6723 = vadd.s32 %v6709, 112
      %v6724 = vadd.s32 %v6709, 120
      %vm6725 = vcmp.lt.s32.totalorder %v6709, 0
      %v6726 = vsub.s32 0, %v6709
      %v6727 = vsel %vm6725, %v6726, %v6709
      %v6728 = vshrl.u32 %v6727, 4
      %v6729 = vand.u32 %v6727, 15
      %v6730 = vsub.s32 0, %v6729
      %v6731 = vsel %vm6725, %v6730, %v6729
      %vm6732 = vcmp.lt.s32.totalorder %v6710, 0
      %v6733 = vsub.s32 0, %v6710
      %v6734 = vsel %vm6732, %v6733, %v6710
      %v6735 = vshrl.u32 %v6734, 4
      %v6736 = vand.u32 %v6734, 15
      %v6737 = vsub.s32 0, %v6736
      %v6738 = vsel %vm6732, %v6737, %v6736
      %vm6739 = vcmp.lt.s32.totalorder %v6711, 0
      %v6740 = vsub.s32 0, %v6711
      %v6741 = vsel %vm6739, %v6740, %v6711
      %v6742 = vshrl.u32 %v6741, 4
      %v6743 = vand.u32 %v6741, 15
      %v6744 = vsub.s32 0, %v6743
      %v6745 = vsel %vm6739, %v6744, %v6743
      %vm6746 = vcmp.lt.s32.totalorder %v6712, 0
      %v6747 = vsub.s32 0, %v6712
      %v6748 = vsel %vm6746, %v6747, %v6712
      %v6749 = vshrl.u32 %v6748, 4
      %v6750 = vand.u32 %v6748, 15
      %v6751 = vsub.s32 0, %v6750
      %v6752 = vsel %vm6746, %v6751, %v6750
      %vm6753 = vcmp.lt.s32.totalorder %v6713, 0
      %v6754 = vsub.s32 0, %v6713
      %v6755 = vsel %vm6753, %v6754, %v6713
      %v6756 = vshrl.u32 %v6755, 4
      %v6757 = vand.u32 %v6755, 15
      %v6758 = vsub.s32 0, %v6757
      %v6759 = vsel %vm6753, %v6758, %v6757
      %vm6760 = vcmp.lt.s32.totalorder %v6714, 0
      %v6761 = vsub.s32 0, %v6714
      %v6762 = vsel %vm6760, %v6761, %v6714
      %v6763 = vshrl.u32 %v6762, 4
      %v6764 = vand.u32 %v6762, 15
      %v6765 = vsub.s32 0, %v6764
      %v6766 = vsel %vm6760, %v6765, %v6764
      %vm6767 = vcmp.lt.s32.totalorder %v6715, 0
      %v6768 = vsub.s32 0, %v6715
      %v6769 = vsel %vm6767, %v6768, %v6715
      %v6770 = vshrl.u32 %v6769, 4
      %v6771 = vand.u32 %v6769, 15
      %v6772 = vsub.s32 0, %v6771
      %v6773 = vsel %vm6767, %v6772, %v6771
      %vm6774 = vcmp.lt.s32.totalorder %v6716, 0
      %v6775 = vsub.s32 0, %v6716
      %v6776 = vsel %vm6774, %v6775, %v6716
      %v6777 = vshrl.u32 %v6776, 4
      %v6778 = vand.u32 %v6776, 15
      %v6779 = vsub.s32 0, %v6778
      %v6780 = vsel %vm6774, %v6779, %v6778
      %vm6781 = vcmp.lt.s32.totalorder %v6717, 0
      %v6782 = vsub.s32 0, %v6717
      %v6783 = vsel %vm6781, %v6782, %v6717
      %v6784 = vshrl.u32 %v6783, 4
      %v6785 = vand.u32 %v6783, 15
      %v6786 = vsub.s32 0, %v6785
      %v6787 = vsel %vm6781, %v6786, %v6785
      %vm6788 = vcmp.lt.s32.totalorder %v6718, 0
      %v6789 = vsub.s32 0, %v6718
      %v6790 = vsel %vm6788, %v6789, %v6718
      %v6791 = vshrl.u32 %v6790, 4
      %v6792 = vand.u32 %v6790, 15
      %v6793 = vsub.s32 0, %v6792
      %v6794 = vsel %vm6788, %v6793, %v6792
      %vm6795 = vcmp.lt.s32.totalorder %v6719, 0
      %v6796 = vsub.s32 0, %v6719
      %v6797 = vsel %vm6795, %v6796, %v6719
      %v6798 = vshrl.u32 %v6797, 4
      %v6799 = vand.u32 %v6797, 15
      %v6800 = vsub.s32 0, %v6799
      %v6801 = vsel %vm6795, %v6800, %v6799
      %vm6802 = vcmp.lt.s32.totalorder %v6720, 0
      %v6803 = vsub.s32 0, %v6720
      %v6804 = vsel %vm6802, %v6803, %v6720
      %v6805 = vshrl.u32 %v6804, 4
      %v6806 = vand.u32 %v6804, 15
      %v6807 = vsub.s32 0, %v6806
      %v6808 = vsel %vm6802, %v6807, %v6806
      %vm6809 = vcmp.lt.s32.totalorder %v6721, 0
      %v6810 = vsub.s32 0, %v6721
      %v6811 = vsel %vm6809, %v6810, %v6721
      %v6812 = vshrl.u32 %v6811, 4
      %v6813 = vand.u32 %v6811, 15
      %v6814 = vsub.s32 0, %v6813
      %v6815 = vsel %vm6809, %v6814, %v6813
      %vm6816 = vcmp.lt.s32.totalorder %v6722, 0
      %v6817 = vsub.s32 0, %v6722
      %v6818 = vsel %vm6816, %v6817, %v6722
      %v6819 = vshrl.u32 %v6818, 4
      %v6820 = vand.u32 %v6818, 15
      %v6821 = vsub.s32 0, %v6820
      %v6822 = vsel %vm6816, %v6821, %v6820
      %vm6823 = vcmp.lt.s32.totalorder %v6723, 0
      %v6824 = vsub.s32 0, %v6723
      %v6825 = vsel %vm6823, %v6824, %v6723
      %v6826 = vshrl.u32 %v6825, 4
      %v6827 = vand.u32 %v6825, 15
      %v6828 = vsub.s32 0, %v6827
      %v6829 = vsel %vm6823, %v6828, %v6827
      %vm6830 = vcmp.lt.s32.totalorder %v6724, 0
      %v6831 = vsub.s32 0, %v6724
      %v6832 = vsel %vm6830, %v6831, %v6724
      %v6833 = vshrl.u32 %v6832, 4
      %v6834 = vand.u32 %v6832, 15
      %v6835 = vsub.s32 0, %v6834
      %v6836 = vsel %vm6830, %v6835, %v6834
      %vm6837 = vcmp.ne.s32.totalorder %v6731, 0
      %vm6838 = vcmp.ne.s32.totalorder %v6738, 0
      %vm6839 = vcmp.ne.s32.totalorder %v6745, 0
      %vm6840 = vcmp.ne.s32.totalorder %v6752, 0
      %vm6841 = vcmp.ne.s32.totalorder %v6759, 0
      %vm6842 = vcmp.ne.s32.totalorder %v6766, 0
      %vm6843 = vcmp.ne.s32.totalorder %v6773, 0
      %vm6844 = vcmp.ne.s32.totalorder %v6780, 0
      %vm6845 = vcmp.ne.s32.totalorder %v6787, 0
      %vm6846 = vcmp.ne.s32.totalorder %v6794, 0
      %vm6847 = vcmp.ne.s32.totalorder %v6801, 0
      %vm6848 = vcmp.ne.s32.totalorder %v6808, 0
      %vm6849 = vcmp.ne.s32.totalorder %v6815, 0
      %vm6850 = vcmp.ne.s32.totalorder %v6822, 0
      %vm6851 = vcmp.ne.s32.totalorder %v6829, 0
      %vm6852 = vcmp.ne.s32.totalorder %v6836, 0
      %vm6853 = vcmp.lt.s32.totalorder %v6731, 0
      %vm6854 = vcmp.lt.s32.totalorder %v6738, 0
      %vm6855 = vcmp.lt.s32.totalorder %v6745, 0
      %vm6856 = vcmp.lt.s32.totalorder %v6752, 0
      %vm6857 = vcmp.lt.s32.totalorder %v6759, 0
      %vm6858 = vcmp.lt.s32.totalorder %v6766, 0
      %vm6859 = vcmp.lt.s32.totalorder %v6773, 0
      %vm6860 = vcmp.lt.s32.totalorder %v6780, 0
      %vm6861 = vcmp.lt.s32.totalorder %v6787, 0
      %vm6862 = vcmp.lt.s32.totalorder %v6794, 0
      %vm6863 = vcmp.lt.s32.totalorder %v6801, 0
      %vm6864 = vcmp.lt.s32.totalorder %v6808, 0
      %vm6865 = vcmp.lt.s32.totalorder %v6815, 0
      %vm6866 = vcmp.lt.s32.totalorder %v6822, 0
      %vm6867 = vcmp.lt.s32.totalorder %v6829, 0
      %vm6868 = vcmp.lt.s32.totalorder %v6836, 0
      %vm6869 = vmand %vm6853, %vm6837
      %vm6870 = vmand %vm6854, %vm6838
      %vm6871 = vmand %vm6855, %vm6839
      %vm6872 = vmand %vm6856, %vm6840
      %vm6873 = vmand %vm6857, %vm6841
      %vm6874 = vmand %vm6858, %vm6842
      %vm6875 = vmand %vm6859, %vm6843
      %vm6876 = vmand %vm6860, %vm6844
      %vm6877 = vmand %vm6861, %vm6845
      %vm6878 = vmand %vm6862, %vm6846
      %vm6879 = vmand %vm6863, %vm6847
      %vm6880 = vmand %vm6864, %vm6848
      %vm6881 = vmand %vm6865, %vm6849
      %vm6882 = vmand %vm6866, %vm6850
      %vm6883 = vmand %vm6867, %vm6851
      %vm6884 = vmand %vm6868, %vm6852
      %v6885 = vadd.s32 %v6731, 16
      %v6886 = vadd.s32 %v6738, 16
      %v6887 = vadd.s32 %v6745, 16
      %v6888 = vadd.s32 %v6752, 16
      %v6889 = vadd.s32 %v6759, 16
      %v6890 = vadd.s32 %v6766, 16
      %v6891 = vadd.s32 %v6773, 16
      %v6892 = vadd.s32 %v6780, 16
      %v6893 = vadd.s32 %v6787, 16
      %v6894 = vadd.s32 %v6794, 16
      %v6895 = vadd.s32 %v6801, 16
      %v6896 = vadd.s32 %v6808, 16
      %v6897 = vadd.s32 %v6815, 16
      %v6898 = vadd.s32 %v6822, 16
      %v6899 = vadd.s32 %v6829, 16
      %v6900 = vadd.s32 %v6836, 16
      %v6901 = vsel %vm6869, %v6885, %v6731
      %v6902 = vsel %vm6870, %v6886, %v6738
      %v6903 = vsel %vm6871, %v6887, %v6745
      %v6904 = vsel %vm6872, %v6888, %v6752
      %v6905 = vsel %vm6873, %v6889, %v6759
      %v6906 = vsel %vm6874, %v6890, %v6766
      %v6907 = vsel %vm6875, %v6891, %v6773
      %v6908 = vsel %vm6876, %v6892, %v6780
      %v6909 = vsel %vm6877, %v6893, %v6787
      %v6910 = vsel %vm6878, %v6894, %v6794
      %v6911 = vsel %vm6879, %v6895, %v6801
      %v6912 = vsel %vm6880, %v6896, %v6808
      %v6913 = vsel %vm6881, %v6897, %v6815
      %v6914 = vsel %vm6882, %v6898, %v6822
      %v6915 = vsel %vm6883, %v6899, %v6829
      %v6916 = vsel %vm6884, %v6900, %v6836
      %vm6917 = vcmp.ge.s32.totalorder %v6901, 1
      %vm6918 = vcmp.ge.s32.totalorder %v6902, 1
      %vm6919 = vcmp.ge.s32.totalorder %v6903, 1
      %vm6920 = vcmp.ge.s32.totalorder %v6904, 1
      %vm6921 = vcmp.ge.s32.totalorder %v6905, 1
      %vm6922 = vcmp.ge.s32.totalorder %v6906, 1
      %vm6923 = vcmp.ge.s32.totalorder %v6907, 1
      %vm6924 = vcmp.ge.s32.totalorder %v6908, 1
      %vm6925 = vcmp.ge.s32.totalorder %v6909, 1
      %vm6926 = vcmp.ge.s32.totalorder %v6910, 1
      %vm6927 = vcmp.ge.s32.totalorder %v6911, 1
      %vm6928 = vcmp.ge.s32.totalorder %v6912, 1
      %vm6929 = vcmp.ge.s32.totalorder %v6913, 1
      %vm6930 = vcmp.ge.s32.totalorder %v6914, 1
      %vm6931 = vcmp.ge.s32.totalorder %v6915, 1
      %vm6932 = vcmp.ge.s32.totalorder %v6916, 1
      %vm6933 = vcmp.le.s32.totalorder %v6901, 8
      %vm6934 = vcmp.le.s32.totalorder %v6902, 8
      %vm6935 = vcmp.le.s32.totalorder %v6903, 8
      %vm6936 = vcmp.le.s32.totalorder %v6904, 8
      %vm6937 = vcmp.le.s32.totalorder %v6905, 8
      %vm6938 = vcmp.le.s32.totalorder %v6906, 8
      %vm6939 = vcmp.le.s32.totalorder %v6907, 8
      %vm6940 = vcmp.le.s32.totalorder %v6908, 8
      %vm6941 = vcmp.le.s32.totalorder %v6909, 8
      %vm6942 = vcmp.le.s32.totalorder %v6910, 8
      %vm6943 = vcmp.le.s32.totalorder %v6911, 8
      %vm6944 = vcmp.le.s32.totalorder %v6912, 8
      %vm6945 = vcmp.le.s32.totalorder %v6913, 8
      %vm6946 = vcmp.le.s32.totalorder %v6914, 8
      %vm6947 = vcmp.le.s32.totalorder %v6915, 8
      %vm6948 = vcmp.le.s32.totalorder %v6916, 8
      %vm6949 = vmand %vm6917, %vm6933
      %vm6950 = vmand %vm6918, %vm6934
      %vm6951 = vmand %vm6919, %vm6935
      %vm6952 = vmand %vm6920, %vm6936
      %vm6953 = vmand %vm6921, %vm6937
      %vm6954 = vmand %vm6922, %vm6938
      %vm6955 = vmand %vm6923, %vm6939
      %vm6956 = vmand %vm6924, %vm6940
      %vm6957 = vmand %vm6925, %vm6941
      %vm6958 = vmand %vm6926, %vm6942
      %vm6959 = vmand %vm6927, %vm6943
      %vm6960 = vmand %vm6928, %vm6944
      %vm6961 = vmand %vm6929, %vm6945
      %vm6962 = vmand %vm6930, %vm6946
      %vm6963 = vmand %vm6931, %vm6947
      %vm6964 = vmand %vm6932, %vm6948
      %v6965 = vsel %vm6949, 1, 0
      %v6966 = vsel %vm6950, 1, 0
      %v6967 = vsel %vm6951, 1, 0
      %v6968 = vsel %vm6952, 1, 0
      %v6969 = vsel %vm6953, 1, 0
      %v6970 = vsel %vm6954, 1, 0
      %v6971 = vsel %vm6955, 1, 0
      %v6972 = vsel %vm6956, 1, 0
      %v6973 = vsel %vm6957, 1, 0
      %v6974 = vsel %vm6958, 1, 0
      %v6975 = vsel %vm6959, 1, 0
      %v6976 = vsel %vm6960, 1, 0
      %v6977 = vsel %vm6961, 1, 0
      %v6978 = vsel %vm6962, 1, 0
      %v6979 = vsel %vm6963, 1, 0
      %v6980 = vsel %vm6964, 1, 0
      %vm6981 = vcmp.eq.s32.totalorder %v6965, 1
      %vm6982 = vcmp.eq.s32.totalorder %v6966, 1
      %vm6983 = vcmp.eq.s32.totalorder %v6967, 1
      %vm6984 = vcmp.eq.s32.totalorder %v6968, 1
      %vm6985 = vcmp.eq.s32.totalorder %v6969, 1
      %vm6986 = vcmp.eq.s32.totalorder %v6970, 1
      %vm6987 = vcmp.eq.s32.totalorder %v6971, 1
      %vm6988 = vcmp.eq.s32.totalorder %v6972, 1
      %vm6989 = vcmp.eq.s32.totalorder %v6973, 1
      %vm6990 = vcmp.eq.s32.totalorder %v6974, 1
      %vm6991 = vcmp.eq.s32.totalorder %v6975, 1
      %vm6992 = vcmp.eq.s32.totalorder %v6976, 1
      %vm6993 = vcmp.eq.s32.totalorder %v6977, 1
      %vm6994 = vcmp.eq.s32.totalorder %v6978, 1
      %vm6995 = vcmp.eq.s32.totalorder %v6979, 1
      %vm6996 = vcmp.eq.s32.totalorder %v6980, 1
      %v6997 = vsel %vm6981, %v6692, 0.0
      %v6998 = vsel %vm6982, %v6693, 0.0
      %v6999 = vsel %vm6983, %v6694, 0.0
      %v7000 = vsel %vm6984, %v6695, 0.0
      %v7001 = vsel %vm6985, %v6696, 0.0
      %v7002 = vsel %vm6986, %v6697, 0.0
      %v7003 = vsel %vm6987, %v6698, 0.0
      %v7004 = vsel %vm6988, %v6699, 0.0
      %v7005 = vsel %vm6989, %v6700, 0.0
      %v7006 = vsel %vm6990, %v6701, 0.0
      %v7007 = vsel %vm6991, %v6702, 0.0
      %v7008 = vsel %vm6992, %v6703, 0.0
      %v7009 = vsel %vm6993, %v6704, 0.0
      %v7010 = vsel %vm6994, %v6705, 0.0
      %v7011 = vsel %vm6995, %v6706, 0.0
      %v7012 = vsel %vm6996, %v6707, 0.0
      %vm7013 = vcmask 60416
      %7014 = vst.msk [vmem:[%s370] sm:$0xf] %vm7013, 0
      %7015 = vst.msk [vmem:[%s370 + $0x4] sm:$0xf] %vm7013, 0
      %7016 = vst.msk [vmem:[%s370 + $0x8] sm:$0xf] %vm7013, 0
      %7017 = vst.msk [vmem:[%s370 + $0xc] sm:$0xf] %vm7013, 0
      %v7018 = vpack.c.bf16 %v6998, %v6997
      %v7019 = vpack.c.bf16 %v7000, %v6999
      %v7020 = vpack.c.bf16 %v7002, %v7001
      %v7021 = vpack.c.bf16 %v7004, %v7003
      %v7022 = vpack.c.bf16 %v7006, %v7005
      %v7023 = vpack.c.bf16 %v7008, %v7007
      %v7024 = vpack.c.bf16 %v7010, %v7009
      %v7025 = vpack.c.bf16 %v7012, %v7011
      %v7034 = vunpack.c.l.b16 %v7018
      %v7035 = vunpack.c.h.b16 %v7018
      %v7036 = vunpack.c.l.b16 %v7019
      %v7037 = vunpack.c.h.b16 %v7019
      %v7038 = vunpack.c.l.b16 %v7020
      %v7039 = vunpack.c.h.b16 %v7020
      %v7040 = vunpack.c.l.b16 %v7021
      %v7041 = vunpack.c.h.b16 %v7021
      %v7042 = vunpack.c.l.b16 %v7022
      %v7043 = vunpack.c.h.b16 %v7022
      %v7044 = vunpack.c.l.b16 %v7023
      %v7045 = vunpack.c.h.b16 %v7023
      %v7046 = vunpack.c.l.b16 %v7024
      %v7047 = vunpack.c.h.b16 %v7024
      %v7048 = vunpack.c.l.b16 %v7025
      %v7049 = vunpack.c.h.b16 %v7025
      %v7050 = vpack.c.b16 %v7034, %v7034
      %v7051 = vpack.c.b16 %v7035, %v7035
      %v7052 = vpack.c.b16 %v7036, %v7036
      %v7053 = vpack.c.b16 %v7037, %v7037
      %v7054 = vpack.c.b16 %v7038, %v7038
      %v7055 = vpack.c.b16 %v7039, %v7039
      %v7056 = vpack.c.b16 %v7040, %v7040
      %v7057 = vpack.c.b16 %v7041, %v7041
      %v7058 = vpack.c.b16 %v7042, %v7042
      %v7059 = vpack.c.b16 %v7043, %v7043
      %v7060 = vpack.c.b16 %v7044, %v7044
      %v7061 = vpack.c.b16 %v7045, %v7045
      %v7062 = vpack.c.b16 %v7046, %v7046
      %v7063 = vpack.c.b16 %v7047, %v7047
      %v7064 = vpack.c.b16 %v7048, %v7048
      %v7065 = vpack.c.b16 %v7049, %v7049
      %7082 = vst.msk [vmem:[%s370 + $0x10] sm:$0xf] %vm7013, %v7050
      %7083 = vst.msk [vmem:[%s370 + $0x14] sm:$0xf] %vm7013, %v7051
      %7084 = vst.msk [vmem:[%s370 + $0x18] sm:$0xf] %vm7013, %v7052
      %7085 = vst.msk [vmem:[%s370 + $0x1c] sm:$0xf] %vm7013, %v7053
      %7086 = vst.msk [vmem:[%s370 + $0x20] sm:$0xf] %vm7013, %v7054
      %7087 = vst.msk [vmem:[%s370 + $0x24] sm:$0xf] %vm7013, %v7055
      %7088 = vst.msk [vmem:[%s370 + $0x28] sm:$0xf] %vm7013, %v7056
      %7089 = vst.msk [vmem:[%s370 + $0x2c] sm:$0xf] %vm7013, %v7057
      %7090 = vst.msk [vmem:[%s370 + $0x30] sm:$0xf] %vm7013, %v7058
      %7091 = vst.msk [vmem:[%s370 + $0x34] sm:$0xf] %vm7013, %v7059
      %7092 = vst.msk [vmem:[%s370 + $0x38] sm:$0xf] %vm7013, %v7060
      %7093 = vst.msk [vmem:[%s370 + $0x3c] sm:$0xf] %vm7013, %v7061
      %7094 = vst.msk [vmem:[%s370 + $0x40] sm:$0xf] %vm7013, %v7062
      %7095 = vst.msk [vmem:[%s370 + $0x44] sm:$0xf] %vm7013, %v7063
      %7096 = vst.msk [vmem:[%s370 + $0x48] sm:$0xf] %vm7013, %v7064
      %7097 = vst.msk [vmem:[%s370 + $0x4c] sm:$0xf] %vm7013, %v7065
      %7098 = vst.msk [vmem:[%s370 + $0x50] sm:$0xf] %vm7013, 0
      %7099 = vst.msk [vmem:[%s370 + $0x54] sm:$0xf] %vm7013, 0
      %7100 = vst.msk [vmem:[%s370 + $0x58] sm:$0xf] %vm7013, 0
      %7101 = vst.msk [vmem:[%s370 + $0x5c] sm:$0xf] %vm7013, 0
      %p7102 = scmp.lt.s32.totalorder %s20, 1
      %s7103 = scalar_select %p7102, %s20, 1
      %p7104 = scmp.lt.s32.totalorder %s21, 7
      %s7105 = scalar_select %p7104, %s21, 7
      %s7106 = smul.addr %s7105, 24
      %s7107 = smul.addr %s7103, 192
      %s7108 = sadd.s32 %s7106, %s7107
      %s7109 = smul.addr %s7108, 4
      %s7110 = scalar_lea.vmem %s5, %s7109
      // Predicated region
      $region41: #{tpu_custom_call.1} parent=39 // pred_check
        %p7111 = pneg %p186
      $region42: #{tpu_custom_call.1} parent=39 // pred_check_branch
        %7113 = sbr.rel (%p7111) target = $region44
      $region43: #{tpu_custom_call.1} parent=39 // pred_region
        _
      $region44: #{tpu_custom_call.1} parent=39 // pred_fallthru
        _
    $region40: #{tpu_custom_call.1} parent=5 // pred_fallthru
      _
    %p7114 = scmp.le.s32.totalorder 2, %s11
    // Predicated region
    $region45: #{tpu_custom_call.1} parent=5 // pred_check
      %p7115 = pneg %p7114
    $region46: #{tpu_custom_call.1} parent=5 // pred_check_branch
      %7117 = sbr.rel (%p7115) target = $region48
    $region47: #{tpu_custom_call.1} parent=5 // pred_region
      %s7118 = ssub.s32 %s11, 2
      // Predicated region
      $region49: #{tpu_custom_call.1} parent=47 // pred_check
        %p7119 = pneg %p192
      $region50: #{tpu_custom_call.1} parent=47 // pred_check_branch
        %7121 = sbr.rel (%p7119) target = $region52
      $region51: #{tpu_custom_call.1} parent=47 // pred_region
        %p7122 = scmp.lt.s32.totalorder %s22, 1
        %s7123 = scalar_select %p7122, %s22, 1
        %p7124 = scmp.lt.s32.totalorder %s23, 7
        %s7125 = scalar_select %p7124, %s23, 7
        %s7126 = smul.addr %s7125, 24
        %s7127 = smul.addr %s7123, 192
        %s7128 = sadd.s32 %s7126, %s7127
        %s7129 = smul.addr %s7128, 4
        %s7130 = scalar_lea.vmem %s5, %s7129
      $region52: #{tpu_custom_call.1} parent=47 // pred_fallthru
        _
    $region48: #{tpu_custom_call.1} parent=5 // pred_fallthru
      _
  $region6: #{tpu_custom_call.1} parent=0 // loop_footer
    %s15 = sadd.s32 1, %s11
  $region7: #{tpu_custom_call.1} parent=0 // loop_footer_branch
    %10 = sbr.rel target = $region3
  $region8: #{tpu_custom_call.1} parent=0 // loop_exit
    _

</llo_original>
